<compile_context>
chip_gen: v5e
topology: v5e:2x2
jax: 0.10.0
libtpu: 0.0.40
codegen_flags: <defaults>
</compile_context>

<pallas_src>
import jax
import jax.numpy as jnp
from jax import lax
from jax.experimental import pallas as pl
from jax.experimental.pallas import tpu as pltpu

BN_EPS = 1e-5


def _round_up(v, m):
    return (v + m - 1) // m * m


# ----------------------------- Pallas kernels ------------------------------

def _make_conv_kernel(H, W, Cin_pad, Cout_pad, fuse_bn_relu_in):
    """[optional BN-apply+ReLU on input] -> 3x3 'same' conv as 9 weight-
    stationary tap matmuls -> per-channel sum / sumsq epilogue.

    Refs per grid step (= one image):
      x_ref     : (1, H*W, Cin_pad)       lane-dense activation (C on lanes)
      scale_ref : (1, Cin_pad)            only if fuse_bn_relu_in
      shift_ref : (1, Cin_pad)            only if fuse_bn_relu_in
      w_ref     : (9*Cin_pad, Cout_pad)   repacked conv weights (tap-major)
      o_ref     : (1, H*W, Cout_pad)      conv output (pre-BN)
      sum_ref   : (1, 1, Cout_pad)        per-image per-channel sum
      sq_ref    : (1, 1, Cout_pad)        per-image per-channel sum of squares
    """
    HW = H * W

    def kernel(x_ref, *rest):
        if fuse_bn_relu_in:
            scale_ref, shift_ref, w_ref, o_ref, sum_ref, sq_ref = rest
        else:
            w_ref, o_ref, sum_ref, sq_ref = rest

        x = x_ref[0]                                            # (HW, Cin_pad)
        if fuse_bn_relu_in:
            # BN1-apply + ReLU fused into conv2's prologue (lane broadcast).
            x = jnp.maximum(x * scale_ref[...] + shift_ref[...], 0.0)

        # Boundary masks computed ONCE per grid step as (HW, 1) columns along
        # the sublane (flat-spatial) axis; lane-broadcast per tap.
        p = lax.broadcasted_iota(jnp.int32, (HW, 1), 0)         # flat y*W + x
        if (W & (W - 1)) == 0:
            col = jnp.bitwise_and(p, W - 1)                     # p % W (W pow2)
        else:
            col = p % W
        m_top = p >= W                                          # y >= 1
        m_bot = p < (H - 1) * W                                 # y <= H-2
        m_left = col >= 1                                       # x >= 1
        m_right = col <= W - 2                                  # x <= W-2

        # 9 tap matmuls accumulated in f32.  Each tap: shifted activation
        # (HW rows streaming through the MXU) x small stationary weight tile.
        acc = None
        for kh in range(3):
            for kw in range(3):
                dh, dw = kh - 1, kw - 1
                d = dh * W + dw
                shifted = x if d == 0 else pltpu.roll(x, shift=(-d) % HW, axis=0)
                masks = []
                if dh == -1:
                    masks.append(m_top)
                elif dh == 1:
                    masks.append(m_bot)
                if dw == -1:
                    masks.append(m_left)
                elif dw == 1:
                    masks.append(m_right)
                if masks:
                    valid = masks[0]
                    for m in masks[1:]:
                        valid = jnp.logical_and(valid, m)
                    shifted = jnp.where(valid, shifted, 0.0)
                t = kh * 3 + kw
                w_tap = w_ref[t * Cin_pad:(t + 1) * Cin_pad, :]  # (Cin_pad, Cout_pad)
                part = jnp.dot(shifted, w_tap, preferred_element_type=jnp.float32)
                acc = part if acc is None else acc + part

        o_ref[0] = acc                                           # unmasked 128-lane store
        # BN statistics epilogue on the resident accumulator (sublane reduce).
        sum_ref[0] = jnp.sum(acc, axis=0, keepdims=True)
        sq_ref[0] = jnp.sum(acc * acc, axis=0, keepdims=True)

    return kernel


def _make_bn_relu_nchw_kernel(Cout):
    """BN2-apply + ReLU fused with the un-pad + transpose back to NCHW."""
    def kernel(y_ref, scale_ref, shift_ref, o_ref):
        y = jnp.maximum(y_ref[0] * scale_ref[...] + shift_ref[...], 0.0)  # (HW, Cp)
        o_ref[0] = y.T[:Cout, :]                                          # (Cout, HW)
    return kernel


# ------------------------------ Wrappers ------------------------------------

def _repack_weight(w_hwio, cin_pad, cout_pad):
    """HWIO (3,3,Cin,Cout) -> (9*cin_pad, cout_pad), row = (kh*3+kw)*cin_pad+ci."""
    kh, kw, cin, cout = w_hwio.shape
    w = jnp.pad(w_hwio, ((0, 0), (0, 0), (0, cin_pad - cin), (0, cout_pad - cout)))
    return w.reshape(kh * kw * cin_pad, cout_pad)


def _conv_bn_stats(x, w_r, scale, shift, *, H, W, Cin_pad, Cout_pad,
                   fuse_bn_relu_in):
    N = x.shape[0]
    HW = H * W
    K = 9 * Cin_pad

    kernel = _make_conv_kernel(H, W, Cin_pad, Cout_pad, fuse_bn_relu_in)

    in_specs = [pl.BlockSpec((1, HW, Cin_pad), lambda n: (n, 0, 0))]
    args = [x]
    if fuse_bn_relu_in:
        in_specs += [pl.BlockSpec((1, Cin_pad), lambda n: (0, 0)),
                     pl.BlockSpec((1, Cin_pad), lambda n: (0, 0))]
        args += [scale, shift]
    in_specs += [pl.BlockSpec((K, Cout_pad), lambda n: (0, 0))]
    args += [w_r]

    out_shape = (jax.ShapeDtypeStruct((N, HW, Cout_pad), jnp.float32),
                 jax.ShapeDtypeStruct((N, 1, Cout_pad), jnp.float32),
                 jax.ShapeDtypeStruct((N, 1, Cout_pad), jnp.float32))
    out_specs = (pl.BlockSpec((1, HW, Cout_pad), lambda n: (n, 0, 0)),
                 pl.BlockSpec((1, 1, Cout_pad), lambda n: (n, 0, 0)),
                 pl.BlockSpec((1, 1, Cout_pad), lambda n: (n, 0, 0)))

    return pl.pallas_call(
        kernel,
        out_shape=out_shape,
        grid=(N,),
        in_specs=in_specs,
        out_specs=out_specs,
        compiler_params=pltpu.CompilerParams(
            dimension_semantics=("parallel",)),
    )(*args)


def _bn2_relu_to_nchw(y, scale, shift, Cout):
    N, HW, Cp = y.shape
    return pl.pallas_call(
        _make_bn_relu_nchw_kernel(Cout),
        out_shape=jax.ShapeDtypeStruct((N, Cout, HW), jnp.float32),
        grid=(N,),
        in_specs=[pl.BlockSpec((1, HW, Cp), lambda n: (n, 0, 0)),
                  pl.BlockSpec((1, Cp), lambda n: (0, 0)),
                  pl.BlockSpec((1, Cp), lambda n: (0, 0))],
        out_specs=pl.BlockSpec((1, Cout, HW), lambda n: (n, 0, 0)),
        compiler_params=pltpu.CompilerParams(
            dimension_semantics=("parallel",)),
    )(y, scale, shift)


def _bn_scale_shift(sums, sumsqs, gamma_pad, beta_pad, count):
    """Training-mode BN (biased variance) folded to per-channel scale/shift."""
    total = jnp.sum(sums, axis=0)                       # (1, Cp)
    total_sq = jnp.sum(sumsqs, axis=0)                  # (1, Cp)
    mean = total / count
    var = jnp.maximum(total_sq / count - mean * mean, 0.0)
    scale = gamma_pad[None, :] * lax.rsqrt(var + BN_EPS)
    shift = beta_pad[None, :] - mean * scale
    return scale, shift


def double_conv(x_nchw, params):
    """Pallas implementation of DoubleConv.forward (input/output NCHW)."""
    w1, g1, b1, w2, g2, b2 = params                     # w: HWIO
    N, Cin, H, W = x_nchw.shape
    Cout = w1.shape[-1]
    HW = H * W
    cin1_pad = _round_up(Cin, 8)                        # conv1 contraction pad
    cpad = _round_up(Cout, 128)                         # lane-dense channel pad

    # NCHW -> lane-dense NHWC-flat (N, HW, C); channel zero-pad hoisted here.
    x = jnp.transpose(x_nchw, (0, 2, 3, 1)).reshape(N, HW, Cin)
    x = jnp.pad(x, ((0, 0), (0, 0), (0, cin1_pad - Cin)))

    w1r = _repack_weight(w1, cin1_pad, cpad)
    w2r = _repack_weight(w2, cpad, cpad)
    g1p = jnp.pad(g1, (0, cpad - Cout)); b1p = jnp.pad(b1, (0, cpad - Cout))
    g2p = jnp.pad(g2, (0, cpad - Cout)); b2p = jnp.pad(b2, (0, cpad - Cout))

    # conv1 + BN1 statistics
    y1, s1, q1 = _conv_bn_stats(x, w1r, None, None, H=H, W=W,
                                Cin_pad=cin1_pad, Cout_pad=cpad,
                                fuse_bn_relu_in=False)
    scale1, shift1 = _bn_scale_shift(s1, q1, g1p, b1p, N * HW)
    # BN1-apply + ReLU fused into conv2 prologue; conv2 + BN2 statistics
    y2, s2, q2 = _conv_bn_stats(y1, w2r, scale1, shift1, H=H, W=W,
                                Cin_pad=cpad, Cout_pad=cpad,
                                fuse_bn_relu_in=True)
    scale2, shift2 = _bn_scale_shift(s2, q2, g2p, b2p, N * HW)
    # BN2-apply + ReLU fused with un-pad + transpose back to NCHW
    out = _bn2_relu_to_nchw(y2, scale2, shift2, Cout)
    return out.reshape(N, Cout, H, W)


# --------------------------- Pure-JAX reference -----------------------------

def double_conv_ref(x_nchw, params):
    w1, g1, b1, w2, g2, b2 = params
    x = jnp.transpose(x_nchw, (0, 2, 3, 1))

    def conv(xx, w):
        return lax.conv_general_dilated(
            xx, w, window_strides=(1, 1), padding="SAME",
            dimension_numbers=("NHWC", "HWIO", "NHWC"))

    def bn(yy, g, b):
        m = yy.mean((0, 1, 2), keepdims=True)
        v = ((yy - m) ** 2).mean((0, 1, 2), keepdims=True)
        return jnp.maximum((yy - m) * lax.rsqrt(v + BN_EPS) * g + b, 0.0)

    y = bn(conv(x, w1), g1, b1)
    y = bn(conv(y, w2), g2, b2)
    return jnp.transpose(y, (0, 3, 1, 2))


# --------------------------------- Main --------------------------------------

if __name__ == "__main__":
    N, Cin, Cout, H, W = 2, 4, 8, 16, 16

    key = jax.random.PRNGKey(0)
    k1, k2, kx = jax.random.split(key, 3)

    # Deterministic synthetic parameters (shapes of nn.Conv2d / nn.BatchNorm2d).
    w1 = jax.random.normal(k1, (3, 3, Cin, Cout), jnp.float32) * 0.1   # HWIO
    w2 = jax.random.normal(k2, (3, 3, Cout, Cout), jnp.float32) * 0.1  # HWIO
    g1 = 1.0 + 0.05 * jnp.arange(Cout, dtype=jnp.float32)
    b1 = 0.02 * jnp.arange(Cout, dtype=jnp.float32) - 0.05
    g2 = 1.0 - 0.03 * jnp.arange(Cout, dtype=jnp.float32)
    b2 = 0.01 * jnp.arange(Cout, dtype=jnp.float32)
    params = (w1, g1, b1, w2, g2, b2)

    x = jax.random.normal(kx, (N, Cin, H, W), jnp.float32)  # NCHW like PyTorch

    out = jax.block_until_ready(jax.jit(double_conv)(x, params))
    ref = jax.block_until_ready(double_conv_ref(x, params))

    assert out.shape == (N, Cout, H, W)
    err = float(jnp.max(jnp.abs(out - ref)))
    assert jnp.allclose(out, ref, rtol=5e-4, atol=5e-4), f"max err {err}"

    print("KERNEL_OK")
</pallas_src>

<mosaic_0001>
module attributes {stable_mosaic.version = 11 : i64} {
  func.func @kernel(%arg0: i32, %arg1: memref<1x256x8xf32, #tpu.memory_space<vmem>>, %arg2: memref<72x128xf32, #tpu.memory_space<vmem>>, %arg3: memref<1x256x128xf32, #tpu.memory_space<vmem>>, %arg4: memref<1x1x128xf32, #tpu.memory_space<vmem>>, %arg5: memref<1x1x128xf32, #tpu.memory_space<vmem>>) attributes {dimension_semantics = [#tpu.dimension_semantics<parallel>], iteration_bounds = array<i64: 2>, scalar_prefetch = 0 : i64, scratch_operands = 0 : i64, tpu.core_type = #tpu.core_type<tc>, window_params = [{transform_indices = @transform_0, window_bounds = array<i64: 1, 256, 8>}, {pipeline_mode = #tpu.pipeline_mode<synchronous>, transform_indices = @transform_1, window_bounds = array<i64: 72, 128>}, {transform_indices = @transform_2, window_bounds = array<i64: 1, 256, 128>}, {transform_indices = @transform_3, window_bounds = array<i64: 1, 1, 128>}, {transform_indices = @transform_4, window_bounds = array<i64: 1, 1, 128>}]} {
    %c0 = arith.constant 0 : index
    %c0_0 = arith.constant 0 : index
    %c0_1 = arith.constant 0 : index
    %0 = vector.load %arg1[%c0, %c0_0, %c0_1] : memref<1x256x8xf32, #tpu.memory_space<vmem>>, vector<1x256x8xf32>
    %1 = vector.shape_cast %0 : vector<1x256x8xf32> to vector<256x8xf32>
    %2 = tpu.iota {dimensions = array<i32: 0>} : vector<256x1xi32>
    %c15_i32 = arith.constant 15 : i32
    %3 = vector.broadcast %c15_i32 : i32 to vector<256x1xi32>
    %4 = arith.andi %2, %3 : vector<256x1xi32>
    %c16_i32 = arith.constant 16 : i32
    %5 = vector.broadcast %c16_i32 : i32 to vector<256x1xi32>
    %6 = arith.cmpi sge, %2, %5 : vector<256x1xi32>
    %c240_i32 = arith.constant 240 : i32
    %7 = vector.broadcast %c240_i32 : i32 to vector<256x1xi32>
    %8 = arith.cmpi slt, %2, %7 : vector<256x1xi32>
    %c1_i32 = arith.constant 1 : i32
    %9 = vector.broadcast %c1_i32 : i32 to vector<256x1xi32>
    %10 = arith.cmpi sge, %4, %9 : vector<256x1xi32>
    %c14_i32 = arith.constant 14 : i32
    %11 = vector.broadcast %c14_i32 : i32 to vector<256x1xi32>
    %12 = arith.cmpi sle, %4, %11 : vector<256x1xi32>
    %c17_i32 = arith.constant 17 : i32
    %13 = tpu.dynamic_rotate %1 by %c17_i32 dim 0 : vector<256x8xf32>, i32 -> vector<256x8xf32>
    %14 = arith.andi %6, %10 : vector<256x1xi1>
    %cst = arith.constant 0.000000e+00 : f32
    %15 = vector.shape_cast %14 : vector<256x1xi1> to vector<256x1xi1>
    %16 = vector.broadcast %15 : vector<256x1xi1> to vector<256x8xi1>
    %17 = vector.broadcast %cst : f32 to vector<256x8xf32>
    %18 = arith.select %16, %13, %17 : vector<256x8xi1>, vector<256x8xf32>
    %c0_2 = arith.constant 0 : index
    %c0_3 = arith.constant 0 : index
    %19 = vector.load %arg2[%c0_2, %c0_3] : memref<72x128xf32, #tpu.memory_space<vmem>>, vector<8x128xf32>
    %cst_4 = arith.constant dense<0.000000e+00> : vector<256x128xf32>
    %20 = tpu.matmul %18, %19, %cst_4 {dimension_numbers = #tpu.dot_dimension_numbers<[1], [0], [0], [1], [0, 0, 1, 1], [], []>} : vector<256x8xf32>, vector<8x128xf32>, vector<256x128xf32> -> vector<256x128xf32>
    %c16_i32_5 = arith.constant 16 : i32
    %21 = tpu.dynamic_rotate %1 by %c16_i32_5 dim 0 : vector<256x8xf32>, i32 -> vector<256x8xf32>
    %cst_6 = arith.constant 0.000000e+00 : f32
    %22 = vector.shape_cast %6 : vector<256x1xi1> to vector<256x1xi1>
    %23 = vector.broadcast %22 : vector<256x1xi1> to vector<256x8xi1>
    %24 = vector.broadcast %cst_6 : f32 to vector<256x8xf32>
    %25 = arith.select %23, %21, %24 : vector<256x8xi1>, vector<256x8xf32>
    %c8 = arith.constant 8 : index
    %c0_7 = arith.constant 0 : index
    %26 = vector.load %arg2[%c8, %c0_7] : memref<72x128xf32, #tpu.memory_space<vmem>>, vector<8x128xf32>
    %cst_8 = arith.constant dense<0.000000e+00> : vector<256x128xf32>
    %27 = tpu.matmul %25, %26, %cst_8 {dimension_numbers = #tpu.dot_dimension_numbers<[1], [0], [0], [1], [0, 0, 1, 1], [], []>} : vector<256x8xf32>, vector<8x128xf32>, vector<256x128xf32> -> vector<256x128xf32>
    %28 = arith.addf %20, %27 : vector<256x128xf32>
    %c15_i32_9 = arith.constant 15 : i32
    %29 = tpu.dynamic_rotate %1 by %c15_i32_9 dim 0 : vector<256x8xf32>, i32 -> vector<256x8xf32>
    %30 = arith.andi %6, %12 : vector<256x1xi1>
    %cst_10 = arith.constant 0.000000e+00 : f32
    %31 = vector.shape_cast %30 : vector<256x1xi1> to vector<256x1xi1>
    %32 = vector.broadcast %31 : vector<256x1xi1> to vector<256x8xi1>
    %33 = vector.broadcast %cst_10 : f32 to vector<256x8xf32>
    %34 = arith.select %32, %29, %33 : vector<256x8xi1>, vector<256x8xf32>
    %c16 = arith.constant 16 : index
    %c0_11 = arith.constant 0 : index
    %35 = vector.load %arg2[%c16, %c0_11] : memref<72x128xf32, #tpu.memory_space<vmem>>, vector<8x128xf32>
    %cst_12 = arith.constant dense<0.000000e+00> : vector<256x128xf32>
    %36 = tpu.matmul %34, %35, %cst_12 {dimension_numbers = #tpu.dot_dimension_numbers<[1], [0], [0], [1], [0, 0, 1, 1], [], []>} : vector<256x8xf32>, vector<8x128xf32>, vector<256x128xf32> -> vector<256x128xf32>
    %37 = arith.addf %28, %36 : vector<256x128xf32>
    %c1_i32_13 = arith.constant 1 : i32
    %38 = tpu.dynamic_rotate %1 by %c1_i32_13 dim 0 : vector<256x8xf32>, i32 -> vector<256x8xf32>
    %cst_14 = arith.constant 0.000000e+00 : f32
    %39 = vector.shape_cast %10 : vector<256x1xi1> to vector<256x1xi1>
    %40 = vector.broadcast %39 : vector<256x1xi1> to vector<256x8xi1>
    %41 = vector.broadcast %cst_14 : f32 to vector<256x8xf32>
    %42 = arith.select %40, %38, %41 : vector<256x8xi1>, vector<256x8xf32>
    %c24 = arith.constant 24 : index
    %c0_15 = arith.constant 0 : index
    %43 = vector.load %arg2[%c24, %c0_15] : memref<72x128xf32, #tpu.memory_space<vmem>>, vector<8x128xf32>
    %cst_16 = arith.constant dense<0.000000e+00> : vector<256x128xf32>
    %44 = tpu.matmul %42, %43, %cst_16 {dimension_numbers = #tpu.dot_dimension_numbers<[1], [0], [0], [1], [0, 0, 1, 1], [], []>} : vector<256x8xf32>, vector<8x128xf32>, vector<256x128xf32> -> vector<256x128xf32>
    %45 = arith.addf %37, %44 : vector<256x128xf32>
    %c32 = arith.constant 32 : index
    %c0_17 = arith.constant 0 : index
    %46 = vector.load %arg2[%c32, %c0_17] : memref<72x128xf32, #tpu.memory_space<vmem>>, vector<8x128xf32>
    %cst_18 = arith.constant dense<0.000000e+00> : vector<256x128xf32>
    %47 = tpu.matmul %1, %46, %cst_18 {dimension_numbers = #tpu.dot_dimension_numbers<[1], [0], [0], [1], [0, 0, 1, 1], [], []>} : vector<256x8xf32>, vector<8x128xf32>, vector<256x128xf32> -> vector<256x128xf32>
    %48 = arith.addf %45, %47 : vector<256x128xf32>
    %c255_i32 = arith.constant 255 : i32
    %49 = tpu.dynamic_rotate %1 by %c255_i32 dim 0 : vector<256x8xf32>, i32 -> vector<256x8xf32>
    %cst_19 = arith.constant 0.000000e+00 : f32
    %50 = vector.shape_cast %12 : vector<256x1xi1> to vector<256x1xi1>
    %51 = vector.broadcast %50 : vector<256x1xi1> to vector<256x8xi1>
    %52 = vector.broadcast %cst_19 : f32 to vector<256x8xf32>
    %53 = arith.select %51, %49, %52 : vector<256x8xi1>, vector<256x8xf32>
    %c40 = arith.constant 40 : index
    %c0_20 = arith.constant 0 : index
    %54 = vector.load %arg2[%c40, %c0_20] : memref<72x128xf32, #tpu.memory_space<vmem>>, vector<8x128xf32>
    %cst_21 = arith.constant dense<0.000000e+00> : vector<256x128xf32>
    %55 = tpu.matmul %53, %54, %cst_21 {dimension_numbers = #tpu.dot_dimension_numbers<[1], [0], [0], [1], [0, 0, 1, 1], [], []>} : vector<256x8xf32>, vector<8x128xf32>, vector<256x128xf32> -> vector<256x128xf32>
    %56 = arith.addf %48, %55 : vector<256x128xf32>
    %c241_i32 = arith.constant 241 : i32
    %57 = tpu.dynamic_rotate %1 by %c241_i32 dim 0 : vector<256x8xf32>, i32 -> vector<256x8xf32>
    %58 = arith.andi %8, %10 : vector<256x1xi1>
    %cst_22 = arith.constant 0.000000e+00 : f32
    %59 = vector.shape_cast %58 : vector<256x1xi1> to vector<256x1xi1>
    %60 = vector.broadcast %59 : vector<256x1xi1> to vector<256x8xi1>
    %61 = vector.broadcast %cst_22 : f32 to vector<256x8xf32>
    %62 = arith.select %60, %57, %61 : vector<256x8xi1>, vector<256x8xf32>
    %c48 = arith.constant 48 : index
    %c0_23 = arith.constant 0 : index
    %63 = vector.load %arg2[%c48, %c0_23] : memref<72x128xf32, #tpu.memory_space<vmem>>, vector<8x128xf32>
    %cst_24 = arith.constant dense<0.000000e+00> : vector<256x128xf32>
    %64 = tpu.matmul %62, %63, %cst_24 {dimension_numbers = #tpu.dot_dimension_numbers<[1], [0], [0], [1], [0, 0, 1, 1], [], []>} : vector<256x8xf32>, vector<8x128xf32>, vector<256x128xf32> -> vector<256x128xf32>
    %65 = arith.addf %56, %64 : vector<256x128xf32>
    %c240_i32_25 = arith.constant 240 : i32
    %66 = tpu.dynamic_rotate %1 by %c240_i32_25 dim 0 : vector<256x8xf32>, i32 -> vector<256x8xf32>
    %cst_26 = arith.constant 0.000000e+00 : f32
    %67 = vector.shape_cast %8 : vector<256x1xi1> to vector<256x1xi1>
    %68 = vector.broadcast %67 : vector<256x1xi1> to vector<256x8xi1>
    %69 = vector.broadcast %cst_26 : f32 to vector<256x8xf32>
    %70 = arith.select %68, %66, %69 : vector<256x8xi1>, vector<256x8xf32>
    %c56 = arith.constant 56 : index
    %c0_27 = arith.constant 0 : index
    %71 = vector.load %arg2[%c56, %c0_27] : memref<72x128xf32, #tpu.memory_space<vmem>>, vector<8x128xf32>
    %cst_28 = arith.constant dense<0.000000e+00> : vector<256x128xf32>
    %72 = tpu.matmul %70, %71, %cst_28 {dimension_numbers = #tpu.dot_dimension_numbers<[1], [0], [0], [1], [0, 0, 1, 1], [], []>} : vector<256x8xf32>, vector<8x128xf32>, vector<256x128xf32> -> vector<256x128xf32>
    %73 = arith.addf %65, %72 : vector<256x128xf32>
    %c239_i32 = arith.constant 239 : i32
    %74 = tpu.dynamic_rotate %1 by %c239_i32 dim 0 : vector<256x8xf32>, i32 -> vector<256x8xf32>
    %75 = arith.andi %8, %12 : vector<256x1xi1>
    %cst_29 = arith.constant 0.000000e+00 : f32
    %76 = vector.shape_cast %75 : vector<256x1xi1> to vector<256x1xi1>
    %77 = vector.broadcast %76 : vector<256x1xi1> to vector<256x8xi1>
    %78 = vector.broadcast %cst_29 : f32 to vector<256x8xf32>
    %79 = arith.select %77, %74, %78 : vector<256x8xi1>, vector<256x8xf32>
    %c64 = arith.constant 64 : index
    %c0_30 = arith.constant 0 : index
    %80 = vector.load %arg2[%c64, %c0_30] : memref<72x128xf32, #tpu.memory_space<vmem>>, vector<8x128xf32>
    %cst_31 = arith.constant dense<0.000000e+00> : vector<256x128xf32>
    %81 = tpu.matmul %79, %80, %cst_31 {dimension_numbers = #tpu.dot_dimension_numbers<[1], [0], [0], [1], [0, 0, 1, 1], [], []>} : vector<256x8xf32>, vector<8x128xf32>, vector<256x128xf32> -> vector<256x128xf32>
    %82 = arith.addf %73, %81 : vector<256x128xf32>
    %c0_32 = arith.constant 0 : index
    %c0_33 = arith.constant 0 : index
    %c0_34 = arith.constant 0 : index
    %83 = vector.load %arg3[%c0_32, %c0_33, %c0_34] : memref<1x256x128xf32, #tpu.memory_space<vmem>>, vector<1x256x128xf32>
    %84 = vector.shape_cast %83 : vector<1x256x128xf32> to vector<256x128xf32>
    %85 = vector.shape_cast %82 : vector<256x128xf32> to vector<1x256x128xf32>
    tpu.vector_store %arg3[%c0_32, %c0_33, %c0_34], %85 {strides = array<i32>} : memref<1x256x128xf32, #tpu.memory_space<vmem>>, vector<1x256x128xf32>,
    %cst_35 = arith.constant dense<0.000000e+00> : vector<128xf32>
    %86 = vector.multi_reduction <add>, %82, %cst_35 [0] : vector<256x128xf32> to vector<128xf32>
    %87 = vector.shape_cast %86 : vector<128xf32> to vector<1x128xf32>
    %c0_36 = arith.constant 0 : index
    %c0_37 = arith.constant 0 : index
    %c0_38 = arith.constant 0 : index
    %88 = vector.load %arg4[%c0_36, %c0_37, %c0_38] : memref<1x1x128xf32, #tpu.memory_space<vmem>>, vector<1x1x128xf32>
    %89 = vector.shape_cast %88 : vector<1x1x128xf32> to vector<1x128xf32>
    %90 = vector.shape_cast %87 : vector<1x128xf32> to vector<1x1x128xf32>
    tpu.vector_store %arg4[%c0_36, %c0_37, %c0_38], %90 {strides = array<i32>} : memref<1x1x128xf32, #tpu.memory_space<vmem>>, vector<1x1x128xf32>,
    %91 = arith.mulf %82, %82 : vector<256x128xf32>
    %cst_39 = arith.constant dense<0.000000e+00> : vector<128xf32>
    %92 = vector.multi_reduction <add>, %91, %cst_39 [0] : vector<256x128xf32> to vector<128xf32>
    %93 = vector.shape_cast %92 : vector<128xf32> to vector<1x128xf32>
    %c0_40 = arith.constant 0 : index
    %c0_41 = arith.constant 0 : index
    %c0_42 = arith.constant 0 : index
    %94 = vector.load %arg5[%c0_40, %c0_41, %c0_42] : memref<1x1x128xf32, #tpu.memory_space<vmem>>, vector<1x1x128xf32>
    %95 = vector.shape_cast %94 : vector<1x1x128xf32> to vector<1x128xf32>
    %96 = vector.shape_cast %93 : vector<1x128xf32> to vector<1x1x128xf32>
    tpu.vector_store %arg5[%c0_40, %c0_41, %c0_42], %96 {strides = array<i32>} : memref<1x1x128xf32, #tpu.memory_space<vmem>>, vector<1x1x128xf32>,
    return
  }
  func.func @transform_0(%arg0: i32) -> (i32, i32, i32) {
    %c0_i32 = arith.constant 0 : i32
    %c0_i32_0 = arith.constant 0 : i32
    %c0_i32_1 = arith.constant 0 : i32
    return %arg0, %c0_i32, %c0_i32_0 : i32, i32, i32
  }
  func.func @transform_1(%arg0: i32) -> (i32, i32) {
    %c0_i32 = arith.constant 0 : i32
    %c0_i32_0 = arith.constant 0 : i32
    %c0_i32_1 = arith.constant 0 : i32
    return %c0_i32, %c0_i32_0 : i32, i32
  }
  func.func @transform_2(%arg0: i32) -> (i32, i32, i32) {
    %c0_i32 = arith.constant 0 : i32
    %c0_i32_0 = arith.constant 0 : i32
    %c0_i32_1 = arith.constant 0 : i32
    return %arg0, %c0_i32, %c0_i32_0 : i32, i32, i32
  }
  func.func @transform_3(%arg0: i32) -> (i32, i32, i32) {
    %c0_i32 = arith.constant 0 : i32
    %c0_i32_0 = arith.constant 0 : i32
    %c0_i32_1 = arith.constant 0 : i32
    return %arg0, %c0_i32, %c0_i32_0 : i32, i32, i32
  }
  func.func @transform_4(%arg0: i32) -> (i32, i32, i32) {
    %c0_i32 = arith.constant 0 : i32
    %c0_i32_0 = arith.constant 0 : i32
    %c0_i32_1 = arith.constant 0 : i32
    return %arg0, %c0_i32, %c0_i32_0 : i32, i32, i32
  }
}

module attributes {stable_mosaic.version = 11 : i64} {
  func.func @kernel(%arg0: i32, %arg1: memref<1x256x128xf32, #tpu.memory_space<vmem>>, %arg2: memref<1x128xf32, #tpu.memory_space<vmem>>, %arg3: memref<1x128xf32, #tpu.memory_space<vmem>>, %arg4: memref<1x8x256xf32, #tpu.memory_space<vmem>>) attributes {dimension_semantics = [#tpu.dimension_semantics<parallel>], iteration_bounds = array<i64: 2>, scalar_prefetch = 0 : i64, scratch_operands = 0 : i64, tpu.core_type = #tpu.core_type<tc>, window_params = [{transform_indices = @transform_0, window_bounds = array<i64: 1, 256, 128>}, {pipeline_mode = #tpu.pipeline_mode<synchronous>, transform_indices = @transform_1, window_bounds = array<i64: 1, 128>}, {pipeline_mode = #tpu.pipeline_mode<synchronous>, transform_indices = @transform_2, window_bounds = array<i64: 1, 128>}, {transform_indices = @transform_3, window_bounds = array<i64: 1, 8, 256>}]} {
    %c0 = arith.constant 0 : index
    %c0_0 = arith.constant 0 : index
    %c0_1 = arith.constant 0 : index
    %0 = vector.load %arg1[%c0, %c0_0, %c0_1] : memref<1x256x128xf32, #tpu.memory_space<vmem>>, vector<1x256x128xf32>
    %1 = vector.shape_cast %0 : vector<1x256x128xf32> to vector<256x128xf32>
    %c0_2 = arith.constant 0 : index
    %c0_3 = arith.constant 0 : index
    %2 = vector.load %arg2[%c0_2, %c0_3] : memref<1x128xf32, #tpu.memory_space<vmem>>, vector<1x128xf32>
    %3 = vector.broadcast %2 : vector<1x128xf32> to vector<256x128xf32>
    %4 = arith.mulf %1, %3 : vector<256x128xf32>
    %c0_4 = arith.constant 0 : index
    %c0_5 = arith.constant 0 : index
    %5 = vector.load %arg3[%c0_4, %c0_5] : memref<1x128xf32, #tpu.memory_space<vmem>>, vector<1x128xf32>
    %6 = vector.broadcast %5 : vector<1x128xf32> to vector<256x128xf32>
    %7 = arith.addf %4, %6 : vector<256x128xf32>
    %cst = arith.constant 0.000000e+00 : f32
    %8 = vector.broadcast %cst : f32 to vector<256x128xf32>
    %9 = arith.maximumf %7, %8 : vector<256x128xf32>
    %10 = tpu.transpose %9, [1, 0] : vector<256x128xf32> -> vector<128x256xf32>
    %11 = vector.extract_strided_slice %10 {offsets = [0, 0], sizes = [8, 256], strides = [1, 1]} : vector<128x256xf32> to vector<8x256xf32>
    %c0_6 = arith.constant 0 : index
    %c0_7 = arith.constant 0 : index
    %c0_8 = arith.constant 0 : index
    %12 = vector.load %arg4[%c0_6, %c0_7, %c0_8] : memref<1x8x256xf32, #tpu.memory_space<vmem>>, vector<1x8x256xf32>
    %13 = vector.shape_cast %12 : vector<1x8x256xf32> to vector<8x256xf32>
    %14 = vector.shape_cast %11 : vector<8x256xf32> to vector<1x8x256xf32>
    tpu.vector_store %arg4[%c0_6, %c0_7, %c0_8], %14 {strides = array<i32>} : memref<1x8x256xf32, #tpu.memory_space<vmem>>, vector<1x8x256xf32>,
    return
  }
  func.func @transform_0(%arg0: i32) -> (i32, i32, i32) {
    %c0_i32 = arith.constant 0 : i32
    %c0_i32_0 = arith.constant 0 : i32
    %c0_i32_1 = arith.constant 0 : i32
    return %arg0, %c0_i32, %c0_i32_0 : i32, i32, i32
  }
  func.func @transform_1(%arg0: i32) -> (i32, i32) {
    %c0_i32 = arith.constant 0 : i32
    %c0_i32_0 = arith.constant 0 : i32
    %c0_i32_1 = arith.constant 0 : i32
    return %c0_i32, %c0_i32_0 : i32, i32
  }
  func.func @transform_2(%arg0: i32) -> (i32, i32) {
    %c0_i32 = arith.constant 0 : i32
    %c0_i32_0 = arith.constant 0 : i32
    %c0_i32_1 = arith.constant 0 : i32
    return %c0_i32, %c0_i32_0 : i32, i32
  }
  func.func @transform_3(%arg0: i32) -> (i32, i32, i32) {
    %c0_i32 = arith.constant 0 : i32
    %c0_i32_0 = arith.constant 0 : i32
    %c0_i32_1 = arith.constant 0 : i32
    return %arg0, %c0_i32, %c0_i32_0 : i32, i32, i32
  }
}

module attributes {stable_mosaic.version = 11 : i64} {
  func.func @kernel(%arg0: i32, %arg1: memref<1x256x128xf32, #tpu.memory_space<vmem>>, %arg2: memref<1x128xf32, #tpu.memory_space<vmem>>, %arg3: memref<1x128xf32, #tpu.memory_space<vmem>>, %arg4: memref<1152x128xf32, #tpu.memory_space<vmem>>, %arg5: memref<1x256x128xf32, #tpu.memory_space<vmem>>, %arg6: memref<1x1x128xf32, #tpu.memory_space<vmem>>, %arg7: memref<1x1x128xf32, #tpu.memory_space<vmem>>) attributes {dimension_semantics = [#tpu.dimension_semantics<parallel>], iteration_bounds = array<i64: 2>, scalar_prefetch = 0 : i64, scratch_operands = 0 : i64, tpu.core_type = #tpu.core_type<tc>, window_params = [{transform_indices = @transform_0, window_bounds = array<i64: 1, 256, 128>}, {pipeline_mode = #tpu.pipeline_mode<synchronous>, transform_indices = @transform_1, window_bounds = array<i64: 1, 128>}, {pipeline_mode = #tpu.pipeline_mode<synchronous>, transform_indices = @transform_2, window_bounds = array<i64: 1, 128>}, {pipeline_mode = #tpu.pipeline_mode<synchronous>, transform_indices = @transform_3, window_bounds = array<i64: 1152, 128>}, {transform_indices = @transform_4, window_bounds = array<i64: 1, 256, 128>}, {transform_indices = @transform_5, window_bounds = array<i64: 1, 1, 128>}, {transform_indices = @transform_6, window_bounds = array<i64: 1, 1, 128>}]} {
    %c0 = arith.constant 0 : index
    %c0_0 = arith.constant 0 : index
    %c0_1 = arith.constant 0 : index
    %0 = vector.load %arg1[%c0, %c0_0, %c0_1] : memref<1x256x128xf32, #tpu.memory_space<vmem>>, vector<1x256x128xf32>
    %1 = vector.shape_cast %0 : vector<1x256x128xf32> to vector<256x128xf32>
    %c0_2 = arith.constant 0 : index
    %c0_3 = arith.constant 0 : index
    %2 = vector.load %arg2[%c0_2, %c0_3] : memref<1x128xf32, #tpu.memory_space<vmem>>, vector<1x128xf32>
    %3 = vector.broadcast %2 : vector<1x128xf32> to vector<256x128xf32>
    %4 = arith.mulf %1, %3 : vector<256x128xf32>
    %c0_4 = arith.constant 0 : index
    %c0_5 = arith.constant 0 : index
    %5 = vector.load %arg3[%c0_4, %c0_5] : memref<1x128xf32, #tpu.memory_space<vmem>>, vector<1x128xf32>
    %6 = vector.broadcast %5 : vector<1x128xf32> to vector<256x128xf32>
    %7 = arith.addf %4, %6 : vector<256x128xf32>
    %cst = arith.constant 0.000000e+00 : f32
    %8 = vector.broadcast %cst : f32 to vector<256x128xf32>
    %9 = arith.maximumf %7, %8 : vector<256x128xf32>
    %10 = tpu.iota {dimensions = array<i32: 0>} : vector<256x1xi32>
    %c15_i32 = arith.constant 15 : i32
    %11 = vector.broadcast %c15_i32 : i32 to vector<256x1xi32>
    %12 = arith.andi %10, %11 : vector<256x1xi32>
    %c16_i32 = arith.constant 16 : i32
    %13 = vector.broadcast %c16_i32 : i32 to vector<256x1xi32>
    %14 = arith.cmpi sge, %10, %13 : vector<256x1xi32>
    %c240_i32 = arith.constant 240 : i32
    %15 = vector.broadcast %c240_i32 : i32 to vector<256x1xi32>
    %16 = arith.cmpi slt, %10, %15 : vector<256x1xi32>
    %c1_i32 = arith.constant 1 : i32
    %17 = vector.broadcast %c1_i32 : i32 to vector<256x1xi32>
    %18 = arith.cmpi sge, %12, %17 : vector<256x1xi32>
    %c14_i32 = arith.constant 14 : i32
    %19 = vector.broadcast %c14_i32 : i32 to vector<256x1xi32>
    %20 = arith.cmpi sle, %12, %19 : vector<256x1xi32>
    %c17_i32 = arith.constant 17 : i32
    %21 = tpu.dynamic_rotate %9 by %c17_i32 dim 0 : vector<256x128xf32>, i32 -> vector<256x128xf32>
    %22 = arith.andi %14, %18 : vector<256x1xi1>
    %cst_6 = arith.constant 0.000000e+00 : f32
    %23 = vector.shape_cast %22 : vector<256x1xi1> to vector<256x1xi1>
    %24 = vector.broadcast %23 : vector<256x1xi1> to vector<256x128xi1>
    %25 = vector.broadcast %cst_6 : f32 to vector<256x128xf32>
    %26 = arith.select %24, %21, %25 : vector<256x128xi1>, vector<256x128xf32>
    %c0_7 = arith.constant 0 : index
    %c0_8 = arith.constant 0 : index
    %27 = vector.load %arg4[%c0_7, %c0_8] : memref<1152x128xf32, #tpu.memory_space<vmem>>, vector<128x128xf32>
    %cst_9 = arith.constant dense<0.000000e+00> : vector<256x128xf32>
    %28 = tpu.matmul %26, %27, %cst_9 {dimension_numbers = #tpu.dot_dimension_numbers<[1], [0], [0], [1], [0, 0, 1, 1], [], []>} : vector<256x128xf32>, vector<128x128xf32>, vector<256x128xf32> -> vector<256x128xf32>
    %c16_i32_10 = arith.constant 16 : i32
    %29 = tpu.dynamic_rotate %9 by %c16_i32_10 dim 0 : vector<256x128xf32>, i32 -> vector<256x128xf32>
    %cst_11 = arith.constant 0.000000e+00 : f32
    %30 = vector.shape_cast %14 : vector<256x1xi1> to vector<256x1xi1>
    %31 = vector.broadcast %30 : vector<256x1xi1> to vector<256x128xi1>
    %32 = vector.broadcast %cst_11 : f32 to vector<256x128xf32>
    %33 = arith.select %31, %29, %32 : vector<256x128xi1>, vector<256x128xf32>
    %c128 = arith.constant 128 : index
    %c0_12 = arith.constant 0 : index
    %34 = vector.load %arg4[%c128, %c0_12] : memref<1152x128xf32, #tpu.memory_space<vmem>>, vector<128x128xf32>
    %cst_13 = arith.constant dense<0.000000e+00> : vector<256x128xf32>
    %35 = tpu.matmul %33, %34, %cst_13 {dimension_numbers = #tpu.dot_dimension_numbers<[1], [0], [0], [1], [0, 0, 1, 1], [], []>} : vector<256x128xf32>, vector<128x128xf32>, vector<256x128xf32> -> vector<256x128xf32>
    %36 = arith.addf %28, %35 : vector<256x128xf32>
    %c15_i32_14 = arith.constant 15 : i32
    %37 = tpu.dynamic_rotate %9 by %c15_i32_14 dim 0 : vector<256x128xf32>, i32 -> vector<256x128xf32>
    %38 = arith.andi %14, %20 : vector<256x1xi1>
    %cst_15 = arith.constant 0.000000e+00 : f32
    %39 = vector.shape_cast %38 : vector<256x1xi1> to vector<256x1xi1>
    %40 = vector.broadcast %39 : vector<256x1xi1> to vector<256x128xi1>
    %41 = vector.broadcast %cst_15 : f32 to vector<256x128xf32>
    %42 = arith.select %40, %37, %41 : vector<256x128xi1>, vector<256x128xf32>
    %c256 = arith.constant 256 : index
    %c0_16 = arith.constant 0 : index
    %43 = vector.load %arg4[%c256, %c0_16] : memref<1152x128xf32, #tpu.memory_space<vmem>>, vector<128x128xf32>
    %cst_17 = arith.constant dense<0.000000e+00> : vector<256x128xf32>
    %44 = tpu.matmul %42, %43, %cst_17 {dimension_numbers = #tpu.dot_dimension_numbers<[1], [0], [0], [1], [0, 0, 1, 1], [], []>} : vector<256x128xf32>, vector<128x128xf32>, vector<256x128xf32> -> vector<256x128xf32>
    %45 = arith.addf %36, %44 : vector<256x128xf32>
    %c1_i32_18 = arith.constant 1 : i32
    %46 = tpu.dynamic_rotate %9 by %c1_i32_18 dim 0 : vector<256x128xf32>, i32 -> vector<256x128xf32>
    %cst_19 = arith.constant 0.000000e+00 : f32
    %47 = vector.shape_cast %18 : vector<256x1xi1> to vector<256x1xi1>
    %48 = vector.broadcast %47 : vector<256x1xi1> to vector<256x128xi1>
    %49 = vector.broadcast %cst_19 : f32 to vector<256x128xf32>
    %50 = arith.select %48, %46, %49 : vector<256x128xi1>, vector<256x128xf32>
    %c384 = arith.constant 384 : index
    %c0_20 = arith.constant 0 : index
    %51 = vector.load %arg4[%c384, %c0_20] : memref<1152x128xf32, #tpu.memory_space<vmem>>, vector<128x128xf32>
    %cst_21 = arith.constant dense<0.000000e+00> : vector<256x128xf32>
    %52 = tpu.matmul %50, %51, %cst_21 {dimension_numbers = #tpu.dot_dimension_numbers<[1], [0], [0], [1], [0, 0, 1, 1], [], []>} : vector<256x128xf32>, vector<128x128xf32>, vector<256x128xf32> -> vector<256x128xf32>
    %53 = arith.addf %45, %52 : vector<256x128xf32>
    %c512 = arith.constant 512 : index
    %c0_22 = arith.constant 0 : index
    %54 = vector.load %arg4[%c512, %c0_22] : memref<1152x128xf32, #tpu.memory_space<vmem>>, vector<128x128xf32>
    %cst_23 = arith.constant dense<0.000000e+00> : vector<256x128xf32>
    %55 = tpu.matmul %9, %54, %cst_23 {dimension_numbers = #tpu.dot_dimension_numbers<[1], [0], [0], [1], [0, 0, 1, 1], [], []>} : vector<256x128xf32>, vector<128x128xf32>, vector<256x128xf32> -> vector<256x128xf32>
    %56 = arith.addf %53, %55 : vector<256x128xf32>
    %c255_i32 = arith.constant 255 : i32
    %57 = tpu.dynamic_rotate %9 by %c255_i32 dim 0 : vector<256x128xf32>, i32 -> vector<256x128xf32>
    %cst_24 = arith.constant 0.000000e+00 : f32
    %58 = vector.shape_cast %20 : vector<256x1xi1> to vector<256x1xi1>
    %59 = vector.broadcast %58 : vector<256x1xi1> to vector<256x128xi1>
    %60 = vector.broadcast %cst_24 : f32 to vector<256x128xf32>
    %61 = arith.select %59, %57, %60 : vector<256x128xi1>, vector<256x128xf32>
    %c640 = arith.constant 640 : index
    %c0_25 = arith.constant 0 : index
    %62 = vector.load %arg4[%c640, %c0_25] : memref<1152x128xf32, #tpu.memory_space<vmem>>, vector<128x128xf32>
    %cst_26 = arith.constant dense<0.000000e+00> : vector<256x128xf32>
    %63 = tpu.matmul %61, %62, %cst_26 {dimension_numbers = #tpu.dot_dimension_numbers<[1], [0], [0], [1], [0, 0, 1, 1], [], []>} : vector<256x128xf32>, vector<128x128xf32>, vector<256x128xf32> -> vector<256x128xf32>
    %64 = arith.addf %56, %63 : vector<256x128xf32>
    %c241_i32 = arith.constant 241 : i32
    %65 = tpu.dynamic_rotate %9 by %c241_i32 dim 0 : vector<256x128xf32>, i32 -> vector<256x128xf32>
    %66 = arith.andi %16, %18 : vector<256x1xi1>
    %cst_27 = arith.constant 0.000000e+00 : f32
    %67 = vector.shape_cast %66 : vector<256x1xi1> to vector<256x1xi1>
    %68 = vector.broadcast %67 : vector<256x1xi1> to vector<256x128xi1>
    %69 = vector.broadcast %cst_27 : f32 to vector<256x128xf32>
    %70 = arith.select %68, %65, %69 : vector<256x128xi1>, vector<256x128xf32>
    %c768 = arith.constant 768 : index
    %c0_28 = arith.constant 0 : index
    %71 = vector.load %arg4[%c768, %c0_28] : memref<1152x128xf32, #tpu.memory_space<vmem>>, vector<128x128xf32>
    %cst_29 = arith.constant dense<0.000000e+00> : vector<256x128xf32>
    %72 = tpu.matmul %70, %71, %cst_29 {dimension_numbers = #tpu.dot_dimension_numbers<[1], [0], [0], [1], [0, 0, 1, 1], [], []>} : vector<256x128xf32>, vector<128x128xf32>, vector<256x128xf32> -> vector<256x128xf32>
    %73 = arith.addf %64, %72 : vector<256x128xf32>
    %c240_i32_30 = arith.constant 240 : i32
    %74 = tpu.dynamic_rotate %9 by %c240_i32_30 dim 0 : vector<256x128xf32>, i32 -> vector<256x128xf32>
    %cst_31 = arith.constant 0.000000e+00 : f32
    %75 = vector.shape_cast %16 : vector<256x1xi1> to vector<256x1xi1>
    %76 = vector.broadcast %75 : vector<256x1xi1> to vector<256x128xi1>
    %77 = vector.broadcast %cst_31 : f32 to vector<256x128xf32>
    %78 = arith.select %76, %74, %77 : vector<256x128xi1>, vector<256x128xf32>
    %c896 = arith.constant 896 : index
    %c0_32 = arith.constant 0 : index
    %79 = vector.load %arg4[%c896, %c0_32] : memref<1152x128xf32, #tpu.memory_space<vmem>>, vector<128x128xf32>
    %cst_33 = arith.constant dense<0.000000e+00> : vector<256x128xf32>
    %80 = tpu.matmul %78, %79, %cst_33 {dimension_numbers = #tpu.dot_dimension_numbers<[1], [0], [0], [1], [0, 0, 1, 1], [], []>} : vector<256x128xf32>, vector<128x128xf32>, vector<256x128xf32> -> vector<256x128xf32>
    %81 = arith.addf %73, %80 : vector<256x128xf32>
    %c239_i32 = arith.constant 239 : i32
    %82 = tpu.dynamic_rotate %9 by %c239_i32 dim 0 : vector<256x128xf32>, i32 -> vector<256x128xf32>
    %83 = arith.andi %16, %20 : vector<256x1xi1>
    %cst_34 = arith.constant 0.000000e+00 : f32
    %84 = vector.shape_cast %83 : vector<256x1xi1> to vector<256x1xi1>
    %85 = vector.broadcast %84 : vector<256x1xi1> to vector<256x128xi1>
    %86 = vector.broadcast %cst_34 : f32 to vector<256x128xf32>
    %87 = arith.select %85, %82, %86 : vector<256x128xi1>, vector<256x128xf32>
    %c1024 = arith.constant 1024 : index
    %c0_35 = arith.constant 0 : index
    %88 = vector.load %arg4[%c1024, %c0_35] : memref<1152x128xf32, #tpu.memory_space<vmem>>, vector<128x128xf32>
    %cst_36 = arith.constant dense<0.000000e+00> : vector<256x128xf32>
    %89 = tpu.matmul %87, %88, %cst_36 {dimension_numbers = #tpu.dot_dimension_numbers<[1], [0], [0], [1], [0, 0, 1, 1], [], []>} : vector<256x128xf32>, vector<128x128xf32>, vector<256x128xf32> -> vector<256x128xf32>
    %90 = arith.addf %81, %89 : vector<256x128xf32>
    %c0_37 = arith.constant 0 : index
    %c0_38 = arith.constant 0 : index
    %c0_39 = arith.constant 0 : index
    %91 = vector.load %arg5[%c0_37, %c0_38, %c0_39] : memref<1x256x128xf32, #tpu.memory_space<vmem>>, vector<1x256x128xf32>
    %92 = vector.shape_cast %91 : vector<1x256x128xf32> to vector<256x128xf32>
    %93 = vector.shape_cast %90 : vector<256x128xf32> to vector<1x256x128xf32>
    tpu.vector_store %arg5[%c0_37, %c0_38, %c0_39], %93 {strides = array<i32>} : memref<1x256x128xf32, #tpu.memory_space<vmem>>, vector<1x256x128xf32>,
    %cst_40 = arith.constant dense<0.000000e+00> : vector<128xf32>
    %94 = vector.multi_reduction <add>, %90, %cst_40 [0] : vector<256x128xf32> to vector<128xf32>
    %95 = vector.shape_cast %94 : vector<128xf32> to vector<1x128xf32>
    %c0_41 = arith.constant 0 : index
    %c0_42 = arith.constant 0 : index
    %c0_43 = arith.constant 0 : index
    %96 = vector.load %arg6[%c0_41, %c0_42, %c0_43] : memref<1x1x128xf32, #tpu.memory_space<vmem>>, vector<1x1x128xf32>
    %97 = vector.shape_cast %96 : vector<1x1x128xf32> to vector<1x128xf32>
    %98 = vector.shape_cast %95 : vector<1x128xf32> to vector<1x1x128xf32>
    tpu.vector_store %arg6[%c0_41, %c0_42, %c0_43], %98 {strides = array<i32>} : memref<1x1x128xf32, #tpu.memory_space<vmem>>, vector<1x1x128xf32>,
    %99 = arith.mulf %90, %90 : vector<256x128xf32>
    %cst_44 = arith.constant dense<0.000000e+00> : vector<128xf32>
    %100 = vector.multi_reduction <add>, %99, %cst_44 [0] : vector<256x128xf32> to vector<128xf32>
    %101 = vector.shape_cast %100 : vector<128xf32> to vector<1x128xf32>
    %c0_45 = arith.constant 0 : index
    %c0_46 = arith.constant 0 : index
    %c0_47 = arith.constant 0 : index
    %102 = vector.load %arg7[%c0_45, %c0_46, %c0_47] : memref<1x1x128xf32, #tpu.memory_space<vmem>>, vector<1x1x128xf32>
    %103 = vector.shape_cast %102 : vector<1x1x128xf32> to vector<1x128xf32>
    %104 = vector.shape_cast %101 : vector<1x128xf32> to vector<1x1x128xf32>
    tpu.vector_store %arg7[%c0_45, %c0_46, %c0_47], %104 {strides = array<i32>} : memref<1x1x128xf32, #tpu.memory_space<vmem>>, vector<1x1x128xf32>,
    return
  }
  func.func @transform_0(%arg0: i32) -> (i32, i32, i32) {
    %c0_i32 = arith.constant 0 : i32
    %c0_i32_0 = arith.constant 0 : i32
    %c0_i32_1 = arith.constant 0 : i32
    return %arg0, %c0_i32, %c0_i32_0 : i32, i32, i32
  }
  func.func @transform_1(%arg0: i32) -> (i32, i32) {
    %c0_i32 = arith.constant 0 : i32
    %c0_i32_0 = arith.constant 0 : i32
    %c0_i32_1 = arith.constant 0 : i32
    return %c0_i32, %c0_i32_0 : i32, i32
  }
  func.func @transform_2(%arg0: i32) -> (i32, i32) {
    %c0_i32 = arith.constant 0 : i32
    %c0_i32_0 = arith.constant 0 : i32
    %c0_i32_1 = arith.constant 0 : i32
    return %c0_i32, %c0_i32_0 : i32, i32
  }
  func.func @transform_3(%arg0: i32) -> (i32, i32) {
    %c0_i32 = arith.constant 0 : i32
    %c0_i32_0 = arith.constant 0 : i32
    %c0_i32_1 = arith.constant 0 : i32
    return %c0_i32, %c0_i32_0 : i32, i32
  }
  func.func @transform_4(%arg0: i32) -> (i32, i32, i32) {
    %c0_i32 = arith.constant 0 : i32
    %c0_i32_0 = arith.constant 0 : i32
    %c0_i32_1 = arith.constant 0 : i32
    return %arg0, %c0_i32, %c0_i32_0 : i32, i32, i32
  }
  func.func @transform_5(%arg0: i32) -> (i32, i32, i32) {
    %c0_i32 = arith.constant 0 : i32
    %c0_i32_0 = arith.constant 0 : i32
    %c0_i32_1 = arith.constant 0 : i32
    return %arg0, %c0_i32, %c0_i32_0 : i32, i32, i32
  }
  func.func @transform_6(%arg0: i32) -> (i32, i32, i32) {
    %c0_i32 = arith.constant 0 : i32
    %c0_i32_0 = arith.constant 0 : i32
    %c0_i32_1 = arith.constant 0 : i32
    return %arg0, %c0_i32, %c0_i32_0 : i32, i32, i32
  }
}

</mosaic_0001>

<llo_original>
// kernel: double_conv.5
$region0: #{double_conv.5}
  #allocation0 [shape = 'u32[]', space=smem, size = 0x4, offset = 0x4, fixed_abs, tag = 'smem constant byte address 0x4 - core index']
  #allocation1 [shape = 'u32[72,128]{1,0:T(1,128)}', space=vmem, size = 0x9000, scoped, tag = 'internal scratch']
  %s0 = inlined_call_operand.vmem [shape: f32[2,256,128], index: 0, kind: input, shape index: {}]
  %s1 = inlined_call_operand.vmem [shape: f32[1,128], index: 1, kind: input, shape index: {}]
  %s2 = inlined_call_operand.vmem [shape: f32[1,128], index: 2, kind: input, shape index: {}]
  %s3 = inlined_call_operand.vmem [shape: f32[2,8,256], index: 3, kind: output, shape index: {}]
  %s4 = sld [smem:[#allocation0]]
  $region45: #{double_conv.5} parent=0
    _
  %s6 = ssub.s32 1, %s4
  %s7 = scalar_select 0, %s6, %s4
  loop: start=0, step=1, limit=4
  $region2: #{double_conv.5} parent=0 // loop_pre_header
    _
  $region3: #{double_conv.5} parent=0 // loop_header
    %s9 = sphi 0, %s13
    %p10 = scmp.ge.s32.totalorder %s9, 4
    %s19 = sphi 0, %s21
    %s22 = sphi 0, %s19
    %s23 = sphi 0, %s22
    %s39 = sphi 0, %s23
    %s43 = sphi 0, %s43
    %s45 = sphi 0, %s43
    %s46 = sphi 0, %s45
    %s60 = sphi 0, %s46
    %s64 = sphi 0, %s64
    %s66 = sphi 0, %s64
    %s67 = sphi 0, %s66
    %s81 = sphi 0, %s67
    %s87 = sphi 0, %s89
    %s90 = sphi 0, %s87
    %s91 = sphi 0, %s90
    %s107 = sphi 0, %s91
  $region4: #{double_conv.5} parent=0 // loop_header_branch
    %12 = sbr.rel (%p10) target = $region8
  $region5: #{double_conv.5} parent=0 // loop_body
    %s14 = ssub.s32 %s9, 1
    %s15 = ssub.s32 %s9, 2
    %s16 = sadd.s32 %s9, 1
    %s17 = ssub.s32 %s9, %s16
    %p18 = scmp.eq.s32.totalorder %s17, 0
    %s20 = sadd.s32 %s19, 1
    %s21 = scalar_select %p18, %s19, %s20
    %p24 = pneg %p18
    %p25 = scmp.eq.s32.totalorder %s9, 1
    %p26 = por %p24, %p25
    %p27 = scmp.ne.s32.totalorder %s19, %s22
    %p28 = scmp.eq.s32.totalorder %s9, 0
    %p29 = por %p27, %p28
    %p30 = scmp.ne.s32.totalorder %s19, %s22
    %p31 = scmp.eq.s32.totalorder %s14, 1
    %p32 = por %p30, %p31
    %p33 = scmp.ne.s32.totalorder %s22, %s23
    %p34 = scmp.eq.s32.totalorder %s14, 0
    %p35 = por %p33, %p34
    %p36 = scmp.ne.s32.totalorder %s22, %s23
    %p37 = scmp.eq.s32.totalorder %s15, 1
    %p38 = por %p36, %p37
    %p40 = scmp.ne.s32.totalorder %s23, %s39
    %p41 = scmp.eq.s32.totalorder %s15, 0
    %p42 = por %p40, %p41
    %s44 = sadd.s32 %s43, 1
    %p47 = scmp.eq.s32.totalorder %s9, 1
    %p48 = scmp.ne.s32.totalorder %s43, %s45
    %p49 = scmp.eq.s32.totalorder %s9, 0
    %p50 = por %p48, %p49
    %p51 = scmp.ne.s32.totalorder %s43, %s45
    %p52 = scmp.eq.s32.totalorder %s14, 1
    %p53 = por %p51, %p52
    %p54 = scmp.ne.s32.totalorder %s45, %s46
    %p55 = scmp.eq.s32.totalorder %s14, 0
    %p56 = por %p54, %p55
    %p57 = scmp.ne.s32.totalorder %s45, %s46
    %p58 = scmp.eq.s32.totalorder %s15, 1
    %p59 = por %p57, %p58
    %p61 = scmp.ne.s32.totalorder %s46, %s60
    %p62 = scmp.eq.s32.totalorder %s15, 0
    %p63 = por %p61, %p62
    %s65 = sadd.s32 %s64, 1
    %p68 = scmp.eq.s32.totalorder %s9, 1
    %p69 = scmp.ne.s32.totalorder %s64, %s66
    %p70 = scmp.eq.s32.totalorder %s9, 0
    %p71 = por %p69, %p70
    %p72 = scmp.ne.s32.totalorder %s64, %s66
    %p73 = scmp.eq.s32.totalorder %s14, 1
    %p74 = por %p72, %p73
    %p75 = scmp.ne.s32.totalorder %s66, %s67
    %p76 = scmp.eq.s32.totalorder %s14, 0
    %p77 = por %p75, %p76
    %p78 = scmp.ne.s32.totalorder %s66, %s67
    %p79 = scmp.eq.s32.totalorder %s15, 1
    %p80 = por %p78, %p79
    %p82 = scmp.ne.s32.totalorder %s67, %s81
    %p83 = scmp.eq.s32.totalorder %s15, 0
    %p84 = por %p82, %p83
    %s85 = ssub.s32 %s9, %s16
    %p86 = scmp.eq.s32.totalorder %s85, 0
    %s88 = sadd.s32 %s87, 1
    %s89 = scalar_select %p86, %s87, %s88
    %p92 = pneg %p86
    %p93 = scmp.eq.s32.totalorder %s9, 1
    %p94 = por %p92, %p93
    %p95 = scmp.ne.s32.totalorder %s87, %s90
    %p96 = scmp.eq.s32.totalorder %s9, 0
    %p97 = por %p95, %p96
    %p98 = scmp.ne.s32.totalorder %s87, %s90
    %p99 = scmp.eq.s32.totalorder %s14, 1
    %p100 = por %p98, %p99
    %p101 = scmp.ne.s32.totalorder %s90, %s91
    %p102 = scmp.eq.s32.totalorder %s14, 0
    %p103 = por %p101, %p102
    %p104 = scmp.ne.s32.totalorder %s90, %s91
    %p105 = scmp.eq.s32.totalorder %s15, 1
    %p106 = por %p104, %p105
    %p108 = scmp.ne.s32.totalorder %s91, %s107
    %p109 = scmp.eq.s32.totalorder %s15, 0
    %p110 = por %p108, %p109
    %p111 = scmp.le.s32.totalorder 1, %s9
    %p112 = scmp.lt.s32.totalorder %s9, 3
    %p113 = pnand %p111, %p112
    %p114 = pneg %p113
    // Predicated region
    $region9: #{double_conv.5} parent=5 // pred_check
      _
    $region10: #{double_conv.5} parent=5 // pred_check_branch
      %116 = sbr.rel (%p113) target = $region12
    $region11: #{double_conv.5} parent=5 // pred_region
      %s117 = ssub.s32 %s9, 1
      // Predicated region
      $region13: #{double_conv.5} parent=11 // pred_check
        %p118 = pneg %p56
      $region14: #{double_conv.5} parent=11 // pred_check_branch
        %120 = sbr.rel (%p118) target = $region16
      $region15: #{double_conv.5} parent=11 // pred_region
        _
      $region16: #{double_conv.5} parent=11 // pred_fallthru
        _
      // Predicated region
      $region17: #{double_conv.5} parent=11 // pred_check
        %p121 = pneg %p77
      $region18: #{double_conv.5} parent=11 // pred_check_branch
        %123 = sbr.rel (%p121) target = $region20
      $region19: #{double_conv.5} parent=11 // pred_region
        _
      $region20: #{double_conv.5} parent=11 // pred_fallthru
        _
    $region12: #{double_conv.5} parent=5 // pred_fallthru
      _
    %p124 = scmp.lt.s32.totalorder %s9, 2
    // Predicated region
    $region21: #{double_conv.5} parent=5 // pred_check
      %p125 = pneg %p124
    $region22: #{double_conv.5} parent=5 // pred_check_branch
      %127 = sbr.rel (%p125) target = $region24
    $region23: #{double_conv.5} parent=5 // pred_region
      // Predicated region
      $region25: #{double_conv.5} parent=23 // pred_check
        %p128 = pneg %p29
      $region26: #{double_conv.5} parent=23 // pred_check_branch
        %130 = sbr.rel (%p128) target = $region28
      $region27: #{double_conv.5} parent=23 // pred_region
        %p131 = scmp.lt.s32.totalorder %s9, 1
        %s132 = scalar_select %p131, %s9, 1
        %s133 = smul.addr %s132, 32
        %s134 = smul.addr %s133, 8
        %s135 = scalar_lea.vmem %s0, %s134
      $region28: #{double_conv.5} parent=23 // pred_fallthru
        _
    $region24: #{double_conv.5} parent=5 // pred_fallthru
      _
    %p136 = scmp.le.s32.totalorder 1, %s9
    %p137 = scmp.lt.s32.totalorder %s9, 3
    %p138 = pnand %p136, %p137
    %p139 = pneg %p138
    // Predicated region
    $region29: #{double_conv.5} parent=5 // pred_check
      _
    $region30: #{double_conv.5} parent=5 // pred_check_branch
      %141 = sbr.rel (%p138) target = $region32
    $region31: #{double_conv.5} parent=5 // pred_region
      %s142 = ssub.s32 %s9, 1
      %p143 = scmp.lt.s32.totalorder %s14, 1
      %s144 = scalar_select %p143, %s14, 1
      %s145 = smul.addr %s144, 32
      %s146 = smul.addr %s145, 8
      %s147 = scalar_lea.vmem %s0, %s146
      %p148 = pneg %p35
      %p149 = pneg %p32
      %p150 = pneg %p56
      %p151 = pneg %p53
      %p152 = pneg %p77
      %p153 = pneg %p74
      %p154 = pneg %p103
      %p155 = pneg %p100
      %p156 = scmp.lt.s32.totalorder %s14, 1
      %s157 = scalar_select %p156, %s14, 1
      %s158 = smul.addr %s157, 2
      %s159 = smul.addr %s158, 8
      %s160 = scalar_lea.vmem %s3, %s159
      %p161 = scmp.lt.s32.totalorder %s14, 1
      %s162 = scalar_select %p161, %s14, 1
      %s163 = smul.addr %s162, 32
      %s164 = smul.addr %s163, 8
      %s165 = scalar_lea.vmem %s0, %s164
      %p166 = scmp.lt.s32.totalorder %s14, 1
      %s167 = scalar_select %p166, %s14, 1
      %s168 = smul.addr %s167, 2
      %s169 = smul.addr %s168, 8
      %s170 = scalar_lea.vmem %s3, %s169
      %v171 = vld [vmem:[%s165] sm:$0xff]
      %v172 = vld [vmem:[%s165 + $0x8] sm:$0xff]
      %v173 = vld [vmem:[%s165 + $0x10] sm:$0xff]
      %v174 = vld [vmem:[%s165 + $0x18] sm:$0xff]
      %v175 = vld [vmem:[%s165 + $0x20] sm:$0xff]
      %v176 = vld [vmem:[%s165 + $0x28] sm:$0xff]
      %v177 = vld [vmem:[%s165 + $0x30] sm:$0xff]
      %v178 = vld [vmem:[%s165 + $0x38] sm:$0xff]
      %v179 = vld [vmem:[%s165 + $0x40] sm:$0xff]
      %v180 = vld [vmem:[%s165 + $0x48] sm:$0xff]
      %v181 = vld [vmem:[%s165 + $0x50] sm:$0xff]
      %v182 = vld [vmem:[%s165 + $0x58] sm:$0xff]
      %v183 = vld [vmem:[%s165 + $0x60] sm:$0xff]
      %v184 = vld [vmem:[%s165 + $0x68] sm:$0xff]
      %v185 = vld [vmem:[%s165 + $0x70] sm:$0xff]
      %v186 = vld [vmem:[%s165 + $0x78] sm:$0xff]
      %v187 = vld [vmem:[%s165 + $0x80] sm:$0xff]
      %v188 = vld [vmem:[%s165 + $0x88] sm:$0xff]
      %v189 = vld [vmem:[%s165 + $0x90] sm:$0xff]
      %v190 = vld [vmem:[%s165 + $0x98] sm:$0xff]
      %v191 = vld [vmem:[%s165 + $0xa0] sm:$0xff]
      %v192 = vld [vmem:[%s165 + $0xa8] sm:$0xff]
      %v193 = vld [vmem:[%s165 + $0xb0] sm:$0xff]
      %v194 = vld [vmem:[%s165 + $0xb8] sm:$0xff]
      %v195 = vld [vmem:[%s165 + $0xc0] sm:$0xff]
      %v196 = vld [vmem:[%s165 + $0xc8] sm:$0xff]
      %v197 = vld [vmem:[%s165 + $0xd0] sm:$0xff]
      %v198 = vld [vmem:[%s165 + $0xd8] sm:$0xff]
      %v199 = vld [vmem:[%s165 + $0xe0] sm:$0xff]
      %v200 = vld [vmem:[%s165 + $0xe8] sm:$0xff]
      %v201 = vld [vmem:[%s165 + $0xf0] sm:$0xff]
      %v202 = vld [vmem:[%s165 + $0xf8] sm:$0xff]
      %v203 = vld [vmem:[%s1] sm:$0x1]
      %v205 = vperm.slane %v203, 0
      %v207 = vmul.f32 %v171, %v205
      %v208 = vmul.f32 %v172, %v205
      %v209 = vmul.f32 %v173, %v205
      %v210 = vmul.f32 %v174, %v205
      %v211 = vmul.f32 %v175, %v205
      %v212 = vmul.f32 %v176, %v205
      %v213 = vmul.f32 %v177, %v205
      %v214 = vmul.f32 %v178, %v205
      %v215 = vmul.f32 %v179, %v205
      %v216 = vmul.f32 %v180, %v205
      %v217 = vmul.f32 %v181, %v205
      %v218 = vmul.f32 %v182, %v205
      %v219 = vmul.f32 %v183, %v205
      %v220 = vmul.f32 %v184, %v205
      %v221 = vmul.f32 %v185, %v205
      %v222 = vmul.f32 %v186, %v205
      %v223 = vmul.f32 %v187, %v205
      %v224 = vmul.f32 %v188, %v205
      %v225 = vmul.f32 %v189, %v205
      %v226 = vmul.f32 %v190, %v205
      %v227 = vmul.f32 %v191, %v205
      %v228 = vmul.f32 %v192, %v205
      %v229 = vmul.f32 %v193, %v205
      %v230 = vmul.f32 %v194, %v205
      %v231 = vmul.f32 %v195, %v205
      %v232 = vmul.f32 %v196, %v205
      %v233 = vmul.f32 %v197, %v205
      %v234 = vmul.f32 %v198, %v205
      %v235 = vmul.f32 %v199, %v205
      %v236 = vmul.f32 %v200, %v205
      %v237 = vmul.f32 %v201, %v205
      %v238 = vmul.f32 %v202, %v205
      %v239 = vld [vmem:[%s2] sm:$0x1]
      %v241 = vperm.slane %v239, 0
      %v243 = vadd.f32 %v207, %v241
      %v244 = vadd.f32 %v208, %v241
      %v245 = vadd.f32 %v209, %v241
      %v246 = vadd.f32 %v210, %v241
      %v247 = vadd.f32 %v211, %v241
      %v248 = vadd.f32 %v212, %v241
      %v249 = vadd.f32 %v213, %v241
      %v250 = vadd.f32 %v214, %v241
      %v251 = vadd.f32 %v215, %v241
      %v252 = vadd.f32 %v216, %v241
      %v253 = vadd.f32 %v217, %v241
      %v254 = vadd.f32 %v218, %v241
      %v255 = vadd.f32 %v219, %v241
      %v256 = vadd.f32 %v220, %v241
      %v257 = vadd.f32 %v221, %v241
      %v258 = vadd.f32 %v222, %v241
      %v259 = vadd.f32 %v223, %v241
      %v260 = vadd.f32 %v224, %v241
      %v261 = vadd.f32 %v225, %v241
      %v262 = vadd.f32 %v226, %v241
      %v263 = vadd.f32 %v227, %v241
      %v264 = vadd.f32 %v228, %v241
      %v265 = vadd.f32 %v229, %v241
      %v266 = vadd.f32 %v230, %v241
      %v267 = vadd.f32 %v231, %v241
      %v268 = vadd.f32 %v232, %v241
      %v269 = vadd.f32 %v233, %v241
      %v270 = vadd.f32 %v234, %v241
      %v271 = vadd.f32 %v235, %v241
      %v272 = vadd.f32 %v236, %v241
      %v273 = vadd.f32 %v237, %v241
      %v274 = vadd.f32 %v238, %v241
      %v275 = vmax.f32 %v243, 0.0
      %v276 = vmax.f32 %v244, 0.0
      %v277 = vmax.f32 %v245, 0.0
      %v278 = vmax.f32 %v246, 0.0
      %v279 = vmax.f32 %v247, 0.0
      %v280 = vmax.f32 %v248, 0.0
      %v281 = vmax.f32 %v249, 0.0
      %v282 = vmax.f32 %v250, 0.0
      %v283 = vmax.f32 %v251, 0.0
      %v284 = vmax.f32 %v252, 0.0
      %v285 = vmax.f32 %v253, 0.0
      %v286 = vmax.f32 %v254, 0.0
      %v287 = vmax.f32 %v255, 0.0
      %v288 = vmax.f32 %v256, 0.0
      %v289 = vmax.f32 %v257, 0.0
      %v290 = vmax.f32 %v258, 0.0
      %v291 = vmax.f32 %v259, 0.0
      %v292 = vmax.f32 %v260, 0.0
      %v293 = vmax.f32 %v261, 0.0
      %v294 = vmax.f32 %v262, 0.0
      %v295 = vmax.f32 %v263, 0.0
      %v296 = vmax.f32 %v264, 0.0
      %v297 = vmax.f32 %v265, 0.0
      %v298 = vmax.f32 %v266, 0.0
      %v299 = vmax.f32 %v267, 0.0
      %v300 = vmax.f32 %v268, 0.0
      %v301 = vmax.f32 %v269, 0.0
      %v302 = vmax.f32 %v270, 0.0
      %v303 = vmax.f32 %v271, 0.0
      %v304 = vmax.f32 %v272, 0.0
      %v305 = vmax.f32 %v273, 0.0
      %v306 = vmax.f32 %v274, 0.0
      %307 = vxpose.xlu0.b32.start [1/16] %v275, 128
      %308 = vxpose.xlu0.b32.cont [2/16] %v276, 128
      %309 = vxpose.xlu0.b32.cont [3/16] %v277, 128
      %310 = vxpose.xlu0.b32.cont [4/16] %v278, 128
      %311 = vxpose.xlu0.b32.cont [5/16] %v279, 128
      %312 = vxpose.xlu0.b32.cont [6/16] %v280, 128
      %313 = vxpose.xlu0.b32.cont [7/16] %v281, 128
      %314 = vxpose.xlu0.b32.cont [8/16] %v282, 128
      %315 = vxpose.xlu0.b32.cont [9/16] %v283, 128
      %316 = vxpose.xlu0.b32.cont [10/16] %v284, 128
      %317 = vxpose.xlu0.b32.cont [11/16] %v285, 128
      %318 = vxpose.xlu0.b32.cont [12/16] %v286, 128
      %319 = vxpose.xlu0.b32.cont [13/16] %v287, 128
      %320 = vxpose.xlu0.b32.cont [14/16] %v288, 128
      %321 = vxpose.xlu0.b32.cont [15/16] %v289, 128
      %322 = vxpose.xlu0.b32.end [16/16] %v290, 128
      %v323 = vpop.trf.xlu0
      %v324 = vpop.trf.xlu0
      %v325 = vpop.trf.xlu0
      %v326 = vpop.trf.xlu0
      %v327 = vpop.trf.xlu0
      %v328 = vpop.trf.xlu0
      %v329 = vpop.trf.xlu0
      %v330 = vpop.trf.xlu0
      %v331 = vpop.trf.xlu0
      %v332 = vpop.trf.xlu0
      %v333 = vpop.trf.xlu0
      %v334 = vpop.trf.xlu0
      %v335 = vpop.trf.xlu0
      %v336 = vpop.trf.xlu0
      %v337 = vpop.trf.xlu0
      %v338 = vpop.trf.xlu0
      %339 = vxpose.xlu0.b32.start [1/16] %v291, 128
      %340 = vxpose.xlu0.b32.cont [2/16] %v292, 128
      %341 = vxpose.xlu0.b32.cont [3/16] %v293, 128
      %342 = vxpose.xlu0.b32.cont [4/16] %v294, 128
      %343 = vxpose.xlu0.b32.cont [5/16] %v295, 128
      %344 = vxpose.xlu0.b32.cont [6/16] %v296, 128
      %345 = vxpose.xlu0.b32.cont [7/16] %v297, 128
      %346 = vxpose.xlu0.b32.cont [8/16] %v298, 128
      %347 = vxpose.xlu0.b32.cont [9/16] %v299, 128
      %348 = vxpose.xlu0.b32.cont [10/16] %v300, 128
      %349 = vxpose.xlu0.b32.cont [11/16] %v301, 128
      %350 = vxpose.xlu0.b32.cont [12/16] %v302, 128
      %351 = vxpose.xlu0.b32.cont [13/16] %v303, 128
      %352 = vxpose.xlu0.b32.cont [14/16] %v304, 128
      %353 = vxpose.xlu0.b32.cont [15/16] %v305, 128
      %354 = vxpose.xlu0.b32.end [16/16] %v306, 128
      %v355 = vpop.trf.xlu0
      %v356 = vpop.trf.xlu0
      %v357 = vpop.trf.xlu0
      %v358 = vpop.trf.xlu0
      %v359 = vpop.trf.xlu0
      %v360 = vpop.trf.xlu0
      %v361 = vpop.trf.xlu0
      %v362 = vpop.trf.xlu0
      %v363 = vpop.trf.xlu0
      %v364 = vpop.trf.xlu0
      %v365 = vpop.trf.xlu0
      %v366 = vpop.trf.xlu0
      %v367 = vpop.trf.xlu0
      %v368 = vpop.trf.xlu0
      %v369 = vpop.trf.xlu0
      %v370 = vpop.trf.xlu0
      %371 = vst [vmem:[%s170] sm:$0xff] %v323
      %372 = vst [vmem:[%s170 + $0x8] sm:$0xff] %v355
      %p373 = scmp.lt.s32.totalorder %s14, 1
      %s374 = scalar_select %p373, %s14, 1
      %s375 = smul.addr %s374, 2
      %s376 = smul.addr %s375, 8
      %s377 = scalar_lea.vmem %s3, %s376
      // Predicated region
      $region33: #{double_conv.5} parent=31 // pred_check
        %p378 = pneg %p100
      $region34: #{double_conv.5} parent=31 // pred_check_branch
        %380 = sbr.rel (%p378) target = $region36
      $region35: #{double_conv.5} parent=31 // pred_region
        _
      $region36: #{double_conv.5} parent=31 // pred_fallthru
        _
    $region32: #{double_conv.5} parent=5 // pred_fallthru
      _
    %p381 = scmp.le.s32.totalorder 2, %s9
    // Predicated region
    $region37: #{double_conv.5} parent=5 // pred_check
      %p382 = pneg %p381
    $region38: #{double_conv.5} parent=5 // pred_check_branch
      %384 = sbr.rel (%p382) target = $region40
    $region39: #{double_conv.5} parent=5 // pred_region
      %s385 = ssub.s32 %s9, 2
      // Predicated region
      $region41: #{double_conv.5} parent=39 // pred_check
        %p386 = pneg %p106
      $region42: #{double_conv.5} parent=39 // pred_check_branch
        %388 = sbr.rel (%p386) target = $region44
      $region43: #{double_conv.5} parent=39 // pred_region
        %p389 = scmp.lt.s32.totalorder %s15, 1
        %s390 = scalar_select %p389, %s15, 1
        %s391 = smul.addr %s390, 2
        %s392 = smul.addr %s391, 8
        %s393 = scalar_lea.vmem %s3, %s392
      $region44: #{double_conv.5} parent=39 // pred_fallthru
        _
    $region40: #{double_conv.5} parent=5 // pred_fallthru
      _
  $region6: #{double_conv.5} parent=0 // loop_footer
    %s13 = sadd.s32 1, %s9
  $region7: #{double_conv.5} parent=0 // loop_footer_branch
    %8 = sbr.rel target = $region3
  $region8: #{double_conv.5} parent=0 // loop_exit
    _

// kernel: double_conv.3
$region0: #{double_conv.3}
  #allocation0 [shape = 'u32[]', space=smem, size = 0x4, offset = 0x4, fixed_abs, tag = 'smem constant byte address 0x4 - core index']
  #allocation1 [shape = 'u32[72,128]{1,0:T(1,128)}', space=vmem, size = 0x9000, scoped, tag = 'internal scratch']
  %s0 = inlined_call_operand.vmem [shape: f32[2,256,8], index: 0, kind: input, shape index: {}]
  %s1 = inlined_call_operand.vmem [shape: f32[72,128], index: 1, kind: input, shape index: {}]
  %s2 = inlined_call_operand.vmem [shape: f32[2,256,128], index: 2, kind: output, shape index: {0}]
  %s3 = inlined_call_operand.vmem [shape: f32[2,1,128], index: 3, kind: output, shape index: {1}]
  %s4 = inlined_call_operand.vmem [shape: f32[2,1,128], index: 4, kind: output, shape index: {2}]
  %5 = xla_tuple %s2, %s3, %s4
  %s6 = sld [smem:[#allocation0]]
  $region57: #{double_conv.3} parent=0
    _
  %s8 = ssub.s32 1, %s6
  %s9 = scalar_select 0, %s8, %s6
  loop: start=0, step=1, limit=4
  $region2: #{double_conv.3} parent=0 // loop_pre_header
    _
  $region3: #{double_conv.3} parent=0 // loop_header
    %s11 = sphi 0, %s15
    %p12 = scmp.ge.s32.totalorder %s11, 4
    %s21 = sphi 0, %s23
    %s24 = sphi 0, %s21
    %s25 = sphi 0, %s24
    %s41 = sphi 0, %s25
    %s45 = sphi 0, %s45
    %s47 = sphi 0, %s45
    %s48 = sphi 0, %s47
    %s62 = sphi 0, %s48
    %s68 = sphi 0, %s70
    %s71 = sphi 0, %s68
    %s72 = sphi 0, %s71
    %s88 = sphi 0, %s72
    %s94 = sphi 0, %s96
    %s97 = sphi 0, %s94
    %s98 = sphi 0, %s97
    %s114 = sphi 0, %s98
    %s120 = sphi 0, %s122
    %s123 = sphi 0, %s120
    %s124 = sphi 0, %s123
    %s140 = sphi 0, %s124
  $region4: #{double_conv.3} parent=0 // loop_header_branch
    %14 = sbr.rel (%p12) target = $region8
  $region5: #{double_conv.3} parent=0 // loop_body
    %s16 = ssub.s32 %s11, 1
    %s17 = ssub.s32 %s11, 2
    %s18 = sadd.s32 %s11, 1
    %s19 = ssub.s32 %s11, %s18
    %p20 = scmp.eq.s32.totalorder %s19, 0
    %s22 = sadd.s32 %s21, 1
    %s23 = scalar_select %p20, %s21, %s22
    %p26 = pneg %p20
    %p27 = scmp.eq.s32.totalorder %s11, 1
    %p28 = por %p26, %p27
    %p29 = scmp.ne.s32.totalorder %s21, %s24
    %p30 = scmp.eq.s32.totalorder %s11, 0
    %p31 = por %p29, %p30
    %p32 = scmp.ne.s32.totalorder %s21, %s24
    %p33 = scmp.eq.s32.totalorder %s16, 1
    %p34 = por %p32, %p33
    %p35 = scmp.ne.s32.totalorder %s24, %s25
    %p36 = scmp.eq.s32.totalorder %s16, 0
    %p37 = por %p35, %p36
    %p38 = scmp.ne.s32.totalorder %s24, %s25
    %p39 = scmp.eq.s32.totalorder %s17, 1
    %p40 = por %p38, %p39
    %p42 = scmp.ne.s32.totalorder %s25, %s41
    %p43 = scmp.eq.s32.totalorder %s17, 0
    %p44 = por %p42, %p43
    %s46 = sadd.s32 %s45, 1
    %p49 = scmp.eq.s32.totalorder %s11, 1
    %p50 = scmp.ne.s32.totalorder %s45, %s47
    %p51 = scmp.eq.s32.totalorder %s11, 0
    %p52 = por %p50, %p51
    %p53 = scmp.ne.s32.totalorder %s45, %s47
    %p54 = scmp.eq.s32.totalorder %s16, 1
    %p55 = por %p53, %p54
    %p56 = scmp.ne.s32.totalorder %s47, %s48
    %p57 = scmp.eq.s32.totalorder %s16, 0
    %p58 = por %p56, %p57
    %p59 = scmp.ne.s32.totalorder %s47, %s48
    %p60 = scmp.eq.s32.totalorder %s17, 1
    %p61 = por %p59, %p60
    %p63 = scmp.ne.s32.totalorder %s48, %s62
    %p64 = scmp.eq.s32.totalorder %s17, 0
    %p65 = por %p63, %p64
    %s66 = ssub.s32 %s11, %s18
    %p67 = scmp.eq.s32.totalorder %s66, 0
    %s69 = sadd.s32 %s68, 1
    %s70 = scalar_select %p67, %s68, %s69
    %p73 = pneg %p67
    %p74 = scmp.eq.s32.totalorder %s11, 1
    %p75 = por %p73, %p74
    %p76 = scmp.ne.s32.totalorder %s68, %s71
    %p77 = scmp.eq.s32.totalorder %s11, 0
    %p78 = por %p76, %p77
    %p79 = scmp.ne.s32.totalorder %s68, %s71
    %p80 = scmp.eq.s32.totalorder %s16, 1
    %p81 = por %p79, %p80
    %p82 = scmp.ne.s32.totalorder %s71, %s72
    %p83 = scmp.eq.s32.totalorder %s16, 0
    %p84 = por %p82, %p83
    %p85 = scmp.ne.s32.totalorder %s71, %s72
    %p86 = scmp.eq.s32.totalorder %s17, 1
    %p87 = por %p85, %p86
    %p89 = scmp.ne.s32.totalorder %s72, %s88
    %p90 = scmp.eq.s32.totalorder %s17, 0
    %p91 = por %p89, %p90
    %s92 = ssub.s32 %s11, %s18
    %p93 = scmp.eq.s32.totalorder %s92, 0
    %s95 = sadd.s32 %s94, 1
    %s96 = scalar_select %p93, %s94, %s95
    %p99 = pneg %p93
    %p100 = scmp.eq.s32.totalorder %s11, 1
    %p101 = por %p99, %p100
    %p102 = scmp.ne.s32.totalorder %s94, %s97
    %p103 = scmp.eq.s32.totalorder %s11, 0
    %p104 = por %p102, %p103
    %p105 = scmp.ne.s32.totalorder %s94, %s97
    %p106 = scmp.eq.s32.totalorder %s16, 1
    %p107 = por %p105, %p106
    %p108 = scmp.ne.s32.totalorder %s97, %s98
    %p109 = scmp.eq.s32.totalorder %s16, 0
    %p110 = por %p108, %p109
    %p111 = scmp.ne.s32.totalorder %s97, %s98
    %p112 = scmp.eq.s32.totalorder %s17, 1
    %p113 = por %p111, %p112
    %p115 = scmp.ne.s32.totalorder %s98, %s114
    %p116 = scmp.eq.s32.totalorder %s17, 0
    %p117 = por %p115, %p116
    %s118 = ssub.s32 %s11, %s18
    %p119 = scmp.eq.s32.totalorder %s118, 0
    %s121 = sadd.s32 %s120, 1
    %s122 = scalar_select %p119, %s120, %s121
    %p125 = pneg %p119
    %p126 = scmp.eq.s32.totalorder %s11, 1
    %p127 = por %p125, %p126
    %p128 = scmp.ne.s32.totalorder %s120, %s123
    %p129 = scmp.eq.s32.totalorder %s11, 0
    %p130 = por %p128, %p129
    %p131 = scmp.ne.s32.totalorder %s120, %s123
    %p132 = scmp.eq.s32.totalorder %s16, 1
    %p133 = por %p131, %p132
    %p134 = scmp.ne.s32.totalorder %s123, %s124
    %p135 = scmp.eq.s32.totalorder %s16, 0
    %p136 = por %p134, %p135
    %p137 = scmp.ne.s32.totalorder %s123, %s124
    %p138 = scmp.eq.s32.totalorder %s17, 1
    %p139 = por %p137, %p138
    %p141 = scmp.ne.s32.totalorder %s124, %s140
    %p142 = scmp.eq.s32.totalorder %s17, 0
    %p143 = por %p141, %p142
    %p144 = scmp.le.s32.totalorder 1, %s11
    %p145 = scmp.lt.s32.totalorder %s11, 3
    %p146 = pnand %p144, %p145
    %p147 = pneg %p146
    // Predicated region
    $region9: #{double_conv.3} parent=5 // pred_check
      _
    $region10: #{double_conv.3} parent=5 // pred_check_branch
      %149 = sbr.rel (%p146) target = $region12
    $region11: #{double_conv.3} parent=5 // pred_region
      %s150 = ssub.s32 %s11, 1
      // Predicated region
      $region13: #{double_conv.3} parent=11 // pred_check
        %p151 = pneg %p58
      $region14: #{double_conv.3} parent=11 // pred_check_branch
        %153 = sbr.rel (%p151) target = $region16
      $region15: #{double_conv.3} parent=11 // pred_region
        _
      $region16: #{double_conv.3} parent=11 // pred_fallthru
        _
    $region12: #{double_conv.3} parent=5 // pred_fallthru
      _
    %p154 = scmp.lt.s32.totalorder %s11, 2
    // Predicated region
    $region17: #{double_conv.3} parent=5 // pred_check
      %p155 = pneg %p154
    $region18: #{double_conv.3} parent=5 // pred_check_branch
      %157 = sbr.rel (%p155) target = $region20
    $region19: #{double_conv.3} parent=5 // pred_region
      // Predicated region
      $region21: #{double_conv.3} parent=19 // pred_check
        %p158 = pneg %p31
      $region22: #{double_conv.3} parent=19 // pred_check_branch
        %160 = sbr.rel (%p158) target = $region24
      $region23: #{double_conv.3} parent=19 // pred_region
        %p161 = scmp.lt.s32.totalorder %s11, 1
        %s162 = scalar_select %p161, %s11, 1
        %s163 = smul.addr %s162, 32
        %s164 = smul.addr %s163, 8
        %s165 = scalar_lea.vmem %s0, %s164
      $region24: #{double_conv.3} parent=19 // pred_fallthru
        _
    $region20: #{double_conv.3} parent=5 // pred_fallthru
      _
    %p166 = scmp.le.s32.totalorder 1, %s11
    %p167 = scmp.lt.s32.totalorder %s11, 3
    %p168 = pnand %p166, %p167
    %p169 = pneg %p168
    // Predicated region
    $region25: #{double_conv.3} parent=5 // pred_check
      _
    $region26: #{double_conv.3} parent=5 // pred_check_branch
      %171 = sbr.rel (%p168) target = $region28
    $region27: #{double_conv.3} parent=5 // pred_region
      %s172 = ssub.s32 %s11, 1
      %p173 = scmp.lt.s32.totalorder %s16, 1
      %s174 = scalar_select %p173, %s16, 1
      %s175 = smul.addr %s174, 32
      %s176 = smul.addr %s175, 8
      %s177 = scalar_lea.vmem %s0, %s176
      %p178 = pneg %p37
      %p179 = pneg %p34
      %p180 = pneg %p58
      %p181 = pneg %p55
      %p182 = pneg %p84
      %p183 = pneg %p81
      %p184 = scmp.lt.s32.totalorder %s16, 1
      %s185 = scalar_select %p184, %s16, 1
      %s186 = smul.addr %s185, 32
      %s187 = smul.addr %s186, 8
      %s188 = scalar_lea.vmem %s2, %s187
      %p189 = pneg %p110
      %p190 = pneg %p107
      %p191 = scmp.lt.s32.totalorder %s16, 1
      %s192 = scalar_select %p191, %s16, 1
      %s193 = scalar_lea.vmem %s3, %s192
      %p194 = pneg %p136
      %p195 = pneg %p133
      %p196 = scmp.lt.s32.totalorder %s16, 1
      %s197 = scalar_select %p196, %s16, 1
      %s198 = scalar_lea.vmem %s4, %s197
      %p199 = scmp.lt.s32.totalorder %s16, 1
      %s200 = scalar_select %p199, %s16, 1
      %s201 = smul.addr %s200, 32
      %s202 = smul.addr %s201, 8
      %s203 = scalar_lea.vmem %s0, %s202
      %p204 = scmp.lt.s32.totalorder %s16, 1
      %s205 = scalar_select %p204, %s16, 1
      %s206 = smul.addr %s205, 32
      %s207 = smul.addr %s206, 8
      %s208 = scalar_lea.vmem %s2, %s207
      %p209 = scmp.lt.s32.totalorder %s16, 1
      %s210 = scalar_select %p209, %s16, 1
      %s211 = scalar_lea.vmem %s3, %s210
      %p212 = scmp.lt.s32.totalorder %s16, 1
      %s213 = scalar_select %p212, %s16, 1
      %s214 = scalar_lea.vmem %s4, %s213
      %v215 = vld [vmem:[%s203] sm:$0xff]
      %v216 = vld [vmem:[%s203 + $0x8] sm:$0xff]
      %v217 = vld [vmem:[%s203 + $0x10] sm:$0xff]
      %v218 = vld [vmem:[%s203 + $0x18] sm:$0xff]
      %v219 = vld [vmem:[%s203 + $0x20] sm:$0xff]
      %v220 = vld [vmem:[%s203 + $0x28] sm:$0xff]
      %v221 = vld [vmem:[%s203 + $0x30] sm:$0xff]
      %v222 = vld [vmem:[%s203 + $0x38] sm:$0xff]
      %v223 = vld [vmem:[%s203 + $0x40] sm:$0xff]
      %v224 = vld [vmem:[%s203 + $0x48] sm:$0xff]
      %v225 = vld [vmem:[%s203 + $0x50] sm:$0xff]
      %v226 = vld [vmem:[%s203 + $0x58] sm:$0xff]
      %v227 = vld [vmem:[%s203 + $0x60] sm:$0xff]
      %v228 = vld [vmem:[%s203 + $0x68] sm:$0xff]
      %v229 = vld [vmem:[%s203 + $0x70] sm:$0xff]
      %v230 = vld [vmem:[%s203 + $0x78] sm:$0xff]
      %v231 = vld [vmem:[%s203 + $0x80] sm:$0xff]
      %v232 = vld [vmem:[%s203 + $0x88] sm:$0xff]
      %v233 = vld [vmem:[%s203 + $0x90] sm:$0xff]
      %v234 = vld [vmem:[%s203 + $0x98] sm:$0xff]
      %v235 = vld [vmem:[%s203 + $0xa0] sm:$0xff]
      %v236 = vld [vmem:[%s203 + $0xa8] sm:$0xff]
      %v237 = vld [vmem:[%s203 + $0xb0] sm:$0xff]
      %v238 = vld [vmem:[%s203 + $0xb8] sm:$0xff]
      %v239 = vld [vmem:[%s203 + $0xc0] sm:$0xff]
      %v240 = vld [vmem:[%s203 + $0xc8] sm:$0xff]
      %v241 = vld [vmem:[%s203 + $0xd0] sm:$0xff]
      %v242 = vld [vmem:[%s203 + $0xd8] sm:$0xff]
      %v243 = vld [vmem:[%s203 + $0xe0] sm:$0xff]
      %v244 = vld [vmem:[%s203 + $0xe8] sm:$0xff]
      %v245 = vld [vmem:[%s203 + $0xf0] sm:$0xff]
      %v246 = vld [vmem:[%s203 + $0xf8] sm:$0xff]
      %v247 = vlaneseq
      %v248 = vshrl.u32 %v247, 7
      %v249 = vadd.s32 %v248, 8
      %v250 = vadd.s32 %v248, 16
      %v251 = vadd.s32 %v248, 24
      %v252 = vadd.s32 %v248, 32
      %v253 = vadd.s32 %v248, 40
      %v254 = vadd.s32 %v248, 48
      %v255 = vadd.s32 %v248, 56
      %v256 = vadd.s32 %v248, 64
      %v257 = vadd.s32 %v248, 72
      %v258 = vadd.s32 %v248, 80
      %v259 = vadd.s32 %v248, 88
      %v260 = vadd.s32 %v248, 96
      %v261 = vadd.s32 %v248, 104
      %v262 = vadd.s32 %v248, 112
      %v263 = vadd.s32 %v248, 120
      %v264 = vadd.s32 %v248, 128
      %v265 = vadd.s32 %v248, 136
      %v266 = vadd.s32 %v248, 144
      %v267 = vadd.s32 %v248, 152
      %v268 = vadd.s32 %v248, 160
      %v269 = vadd.s32 %v248, 168
      %v270 = vadd.s32 %v248, 176
      %v271 = vadd.s32 %v248, 184
      %v272 = vadd.s32 %v248, 192
      %v273 = vadd.s32 %v248, 200
      %v274 = vadd.s32 %v248, 208
      %v275 = vadd.s32 %v248, 216
      %v276 = vadd.s32 %v248, 224
      %v277 = vadd.s32 %v248, 232
      %v278 = vadd.s32 %v248, 240
      %v279 = vadd.s32 %v248, 248
      %v280 = vand.u32 %v248, 15
      %v281 = vand.u32 %v249, 15
      %v282 = vand.u32 %v250, 15
      %v283 = vand.u32 %v251, 15
      %v284 = vand.u32 %v252, 15
      %v285 = vand.u32 %v253, 15
      %v286 = vand.u32 %v254, 15
      %v287 = vand.u32 %v255, 15
      %v288 = vand.u32 %v256, 15
      %v289 = vand.u32 %v257, 15
      %v290 = vand.u32 %v258, 15
      %v291 = vand.u32 %v259, 15
      %v292 = vand.u32 %v260, 15
      %v293 = vand.u32 %v261, 15
      %v294 = vand.u32 %v262, 15
      %v295 = vand.u32 %v263, 15
      %v296 = vand.u32 %v264, 15
      %v297 = vand.u32 %v265, 15
      %v298 = vand.u32 %v266, 15
      %v299 = vand.u32 %v267, 15
      %v300 = vand.u32 %v268, 15
      %v301 = vand.u32 %v269, 15
      %v302 = vand.u32 %v270, 15
      %v303 = vand.u32 %v271, 15
      %v304 = vand.u32 %v272, 15
      %v305 = vand.u32 %v273, 15
      %v306 = vand.u32 %v274, 15
      %v307 = vand.u32 %v275, 15
      %v308 = vand.u32 %v276, 15
      %v309 = vand.u32 %v277, 15
      %v310 = vand.u32 %v278, 15
      %v311 = vand.u32 %v279, 15
      %vm312 = vcmp.ge.s32.totalorder %v248, 16
      %vm313 = vcmp.ge.s32.totalorder %v249, 16
      %vm314 = vcmp.ge.s32.totalorder %v250, 16
      %vm315 = vcmp.ge.s32.totalorder %v251, 16
      %vm316 = vcmp.ge.s32.totalorder %v252, 16
      %vm317 = vcmp.ge.s32.totalorder %v253, 16
      %vm318 = vcmp.ge.s32.totalorder %v254, 16
      %vm319 = vcmp.ge.s32.totalorder %v255, 16
      %vm320 = vcmp.ge.s32.totalorder %v256, 16
      %vm321 = vcmp.ge.s32.totalorder %v257, 16
      %vm322 = vcmp.ge.s32.totalorder %v258, 16
      %vm323 = vcmp.ge.s32.totalorder %v259, 16
      %vm324 = vcmp.ge.s32.totalorder %v260, 16
      %vm325 = vcmp.ge.s32.totalorder %v261, 16
      %vm326 = vcmp.ge.s32.totalorder %v262, 16
      %vm327 = vcmp.ge.s32.totalorder %v263, 16
      %vm328 = vcmp.ge.s32.totalorder %v264, 16
      %vm329 = vcmp.ge.s32.totalorder %v265, 16
      %vm330 = vcmp.ge.s32.totalorder %v266, 16
      %vm331 = vcmp.ge.s32.totalorder %v267, 16
      %vm332 = vcmp.ge.s32.totalorder %v268, 16
      %vm333 = vcmp.ge.s32.totalorder %v269, 16
      %vm334 = vcmp.ge.s32.totalorder %v270, 16
      %vm335 = vcmp.ge.s32.totalorder %v271, 16
      %vm336 = vcmp.ge.s32.totalorder %v272, 16
      %vm337 = vcmp.ge.s32.totalorder %v273, 16
      %vm338 = vcmp.ge.s32.totalorder %v274, 16
      %vm339 = vcmp.ge.s32.totalorder %v275, 16
      %vm340 = vcmp.ge.s32.totalorder %v276, 16
      %vm341 = vcmp.ge.s32.totalorder %v277, 16
      %vm342 = vcmp.ge.s32.totalorder %v278, 16
      %vm343 = vcmp.ge.s32.totalorder %v279, 16
      %vm344 = vcmp.lt.s32.totalorder %v248, 240
      %vm345 = vcmp.lt.s32.totalorder %v249, 240
      %vm346 = vcmp.lt.s32.totalorder %v250, 240
      %vm347 = vcmp.lt.s32.totalorder %v251, 240
      %vm348 = vcmp.lt.s32.totalorder %v252, 240
      %vm349 = vcmp.lt.s32.totalorder %v253, 240
      %vm350 = vcmp.lt.s32.totalorder %v254, 240
      %vm351 = vcmp.lt.s32.totalorder %v255, 240
      %vm352 = vcmp.lt.s32.totalorder %v256, 240
      %vm353 = vcmp.lt.s32.totalorder %v257, 240
      %vm354 = vcmp.lt.s32.totalorder %v258, 240
      %vm355 = vcmp.lt.s32.totalorder %v259, 240
      %vm356 = vcmp.lt.s32.totalorder %v260, 240
      %vm357 = vcmp.lt.s32.totalorder %v261, 240
      %vm358 = vcmp.lt.s32.totalorder %v262, 240
      %vm359 = vcmp.lt.s32.totalorder %v263, 240
      %vm360 = vcmp.lt.s32.totalorder %v264, 240
      %vm361 = vcmp.lt.s32.totalorder %v265, 240
      %vm362 = vcmp.lt.s32.totalorder %v266, 240
      %vm363 = vcmp.lt.s32.totalorder %v267, 240
      %vm364 = vcmp.lt.s32.totalorder %v268, 240
      %vm365 = vcmp.lt.s32.totalorder %v269, 240
      %vm366 = vcmp.lt.s32.totalorder %v270, 240
      %vm367 = vcmp.lt.s32.totalorder %v271, 240
      %vm368 = vcmp.lt.s32.totalorder %v272, 240
      %vm369 = vcmp.lt.s32.totalorder %v273, 240
      %vm370 = vcmp.lt.s32.totalorder %v274, 240
      %vm371 = vcmp.lt.s32.totalorder %v275, 240
      %vm372 = vcmp.lt.s32.totalorder %v276, 240
      %vm373 = vcmp.lt.s32.totalorder %v277, 240
      %vm374 = vcmp.lt.s32.totalorder %v278, 240
      %vm375 = vcmp.lt.s32.totalorder %v279, 240
      %vm376 = vcmp.ge.s32.totalorder %v280, 1
      %vm377 = vcmp.ge.s32.totalorder %v281, 1
      %vm378 = vcmp.ge.s32.totalorder %v282, 1
      %vm379 = vcmp.ge.s32.totalorder %v283, 1
      %vm380 = vcmp.ge.s32.totalorder %v284, 1
      %vm381 = vcmp.ge.s32.totalorder %v285, 1
      %vm382 = vcmp.ge.s32.totalorder %v286, 1
      %vm383 = vcmp.ge.s32.totalorder %v287, 1
      %vm384 = vcmp.ge.s32.totalorder %v288, 1
      %vm385 = vcmp.ge.s32.totalorder %v289, 1
      %vm386 = vcmp.ge.s32.totalorder %v290, 1
      %vm387 = vcmp.ge.s32.totalorder %v291, 1
      %vm388 = vcmp.ge.s32.totalorder %v292, 1
      %vm389 = vcmp.ge.s32.totalorder %v293, 1
      %vm390 = vcmp.ge.s32.totalorder %v294, 1
      %vm391 = vcmp.ge.s32.totalorder %v295, 1
      %vm392 = vcmp.ge.s32.totalorder %v296, 1
      %vm393 = vcmp.ge.s32.totalorder %v297, 1
      %vm394 = vcmp.ge.s32.totalorder %v298, 1
      %vm395 = vcmp.ge.s32.totalorder %v299, 1
      %vm396 = vcmp.ge.s32.totalorder %v300, 1
      %vm397 = vcmp.ge.s32.totalorder %v301, 1
      %vm398 = vcmp.ge.s32.totalorder %v302, 1
      %vm399 = vcmp.ge.s32.totalorder %v303, 1
      %vm400 = vcmp.ge.s32.totalorder %v304, 1
      %vm401 = vcmp.ge.s32.totalorder %v305, 1
      %vm402 = vcmp.ge.s32.totalorder %v306, 1
      %vm403 = vcmp.ge.s32.totalorder %v307, 1
      %vm404 = vcmp.ge.s32.totalorder %v308, 1
      %vm405 = vcmp.ge.s32.totalorder %v309, 1
      %vm406 = vcmp.ge.s32.totalorder %v310, 1
      %vm407 = vcmp.ge.s32.totalorder %v311, 1
      %vm408 = vcmp.le.s32.totalorder %v280, 14
      %vm409 = vcmp.le.s32.totalorder %v281, 14
      %vm410 = vcmp.le.s32.totalorder %v282, 14
      %vm411 = vcmp.le.s32.totalorder %v283, 14
      %vm412 = vcmp.le.s32.totalorder %v284, 14
      %vm413 = vcmp.le.s32.totalorder %v285, 14
      %vm414 = vcmp.le.s32.totalorder %v286, 14
      %vm415 = vcmp.le.s32.totalorder %v287, 14
      %vm416 = vcmp.le.s32.totalorder %v288, 14
      %vm417 = vcmp.le.s32.totalorder %v289, 14
      %vm418 = vcmp.le.s32.totalorder %v290, 14
      %vm419 = vcmp.le.s32.totalorder %v291, 14
      %vm420 = vcmp.le.s32.totalorder %v292, 14
      %vm421 = vcmp.le.s32.totalorder %v293, 14
      %vm422 = vcmp.le.s32.totalorder %v294, 14
      %vm423 = vcmp.le.s32.totalorder %v295, 14
      %vm424 = vcmp.le.s32.totalorder %v296, 14
      %vm425 = vcmp.le.s32.totalorder %v297, 14
      %vm426 = vcmp.le.s32.totalorder %v298, 14
      %vm427 = vcmp.le.s32.totalorder %v299, 14
      %vm428 = vcmp.le.s32.totalorder %v300, 14
      %vm429 = vcmp.le.s32.totalorder %v301, 14
      %vm430 = vcmp.le.s32.totalorder %v302, 14
      %vm431 = vcmp.le.s32.totalorder %v303, 14
      %vm432 = vcmp.le.s32.totalorder %v304, 14
      %vm433 = vcmp.le.s32.totalorder %v305, 14
      %vm434 = vcmp.le.s32.totalorder %v306, 14
      %vm435 = vcmp.le.s32.totalorder %v307, 14
      %vm436 = vcmp.le.s32.totalorder %v308, 14
      %vm437 = vcmp.le.s32.totalorder %v309, 14
      %vm438 = vcmp.le.s32.totalorder %v310, 14
      %vm439 = vcmp.le.s32.totalorder %v311, 14
      %v440 = vrot.slane %v215, 7
      %v441 = vrot.slane %v216, 7
      %v442 = vrot.slane %v217, 7
      %v443 = vrot.slane %v218, 7
      %v444 = vrot.slane %v219, 7
      %v445 = vrot.slane %v220, 7
      %v446 = vrot.slane %v221, 7
      %v447 = vrot.slane %v222, 7
      %v448 = vrot.slane %v223, 7
      %v449 = vrot.slane %v224, 7
      %v450 = vrot.slane %v225, 7
      %v451 = vrot.slane %v226, 7
      %v452 = vrot.slane %v227, 7
      %v453 = vrot.slane %v228, 7
      %v454 = vrot.slane %v229, 7
      %v455 = vrot.slane %v230, 7
      %v456 = vrot.slane %v231, 7
      %v457 = vrot.slane %v232, 7
      %v458 = vrot.slane %v233, 7
      %v459 = vrot.slane %v234, 7
      %v460 = vrot.slane %v235, 7
      %v461 = vrot.slane %v236, 7
      %v462 = vrot.slane %v237, 7
      %v463 = vrot.slane %v238, 7
      %v464 = vrot.slane %v239, 7
      %v465 = vrot.slane %v240, 7
      %v466 = vrot.slane %v241, 7
      %v467 = vrot.slane %v242, 7
      %v468 = vrot.slane %v243, 7
      %v469 = vrot.slane %v244, 7
      %v470 = vrot.slane %v245, 7
      %v471 = vrot.slane %v246, 7
      %vm472 = vcmp.lt.s32.totalorder %v248, 1
      %v473 = vsel %vm472, %v470, %v471
      %v474 = vsel %vm472, %v469, %v470
      %v475 = vsel %vm472, %v468, %v469
      %v476 = vsel %vm472, %v467, %v468
      %v477 = vsel %vm472, %v466, %v467
      %v478 = vsel %vm472, %v465, %v466
      %v479 = vsel %vm472, %v464, %v465
      %v480 = vsel %vm472, %v463, %v464
      %v481 = vsel %vm472, %v462, %v463
      %v482 = vsel %vm472, %v461, %v462
      %v483 = vsel %vm472, %v460, %v461
      %v484 = vsel %vm472, %v459, %v460
      %v485 = vsel %vm472, %v458, %v459
      %v486 = vsel %vm472, %v457, %v458
      %v487 = vsel %vm472, %v456, %v457
      %v488 = vsel %vm472, %v455, %v456
      %v489 = vsel %vm472, %v454, %v455
      %v490 = vsel %vm472, %v453, %v454
      %v491 = vsel %vm472, %v452, %v453
      %v492 = vsel %vm472, %v451, %v452
      %v493 = vsel %vm472, %v450, %v451
      %v494 = vsel %vm472, %v449, %v450
      %v495 = vsel %vm472, %v448, %v449
      %v496 = vsel %vm472, %v447, %v448
      %v497 = vsel %vm472, %v446, %v447
      %v498 = vsel %vm472, %v445, %v446
      %v499 = vsel %vm472, %v444, %v445
      %v500 = vsel %vm472, %v443, %v444
      %v501 = vsel %vm472, %v442, %v443
      %v502 = vsel %vm472, %v441, %v442
      %v503 = vsel %vm472, %v440, %v441
      %v504 = vsel %vm472, %v471, %v440
      %vm505 = vmand %vm312, %vm376
      %vm506 = vmand %vm313, %vm377
      %vm507 = vmand %vm314, %vm378
      %vm508 = vmand %vm315, %vm379
      %vm509 = vmand %vm316, %vm380
      %vm510 = vmand %vm317, %vm381
      %vm511 = vmand %vm318, %vm382
      %vm512 = vmand %vm319, %vm383
      %vm513 = vmand %vm320, %vm384
      %vm514 = vmand %vm321, %vm385
      %vm515 = vmand %vm322, %vm386
      %vm516 = vmand %vm323, %vm387
      %vm517 = vmand %vm324, %vm388
      %vm518 = vmand %vm325, %vm389
      %vm519 = vmand %vm326, %vm390
      %vm520 = vmand %vm327, %vm391
      %vm521 = vmand %vm328, %vm392
      %vm522 = vmand %vm329, %vm393
      %vm523 = vmand %vm330, %vm394
      %vm524 = vmand %vm331, %vm395
      %vm525 = vmand %vm332, %vm396
      %vm526 = vmand %vm333, %vm397
      %vm527 = vmand %vm334, %vm398
      %vm528 = vmand %vm335, %vm399
      %vm529 = vmand %vm336, %vm400
      %vm530 = vmand %vm337, %vm401
      %vm531 = vmand %vm338, %vm402
      %vm532 = vmand %vm339, %vm403
      %vm533 = vmand %vm340, %vm404
      %vm534 = vmand %vm341, %vm405
      %vm535 = vmand %vm342, %vm406
      %vm536 = vmand %vm343, %vm407
      %v537 = vsel %vm505, 1, 0
      %v538 = vsel %vm506, 1, 0
      %v539 = vsel %vm507, 1, 0
      %v540 = vsel %vm508, 1, 0
      %v541 = vsel %vm509, 1, 0
      %v542 = vsel %vm510, 1, 0
      %v543 = vsel %vm511, 1, 0
      %v544 = vsel %vm512, 1, 0
      %v545 = vsel %vm513, 1, 0
      %v546 = vsel %vm514, 1, 0
      %v547 = vsel %vm515, 1, 0
      %v548 = vsel %vm516, 1, 0
      %v549 = vsel %vm517, 1, 0
      %v550 = vsel %vm518, 1, 0
      %v551 = vsel %vm519, 1, 0
      %v552 = vsel %vm520, 1, 0
      %v553 = vsel %vm521, 1, 0
      %v554 = vsel %vm522, 1, 0
      %v555 = vsel %vm523, 1, 0
      %v556 = vsel %vm524, 1, 0
      %v557 = vsel %vm525, 1, 0
      %v558 = vsel %vm526, 1, 0
      %v559 = vsel %vm527, 1, 0
      %v560 = vsel %vm528, 1, 0
      %v561 = vsel %vm529, 1, 0
      %v562 = vsel %vm530, 1, 0
      %v563 = vsel %vm531, 1, 0
      %v564 = vsel %vm532, 1, 0
      %v565 = vsel %vm533, 1, 0
      %v566 = vsel %vm534, 1, 0
      %v567 = vsel %vm535, 1, 0
      %v568 = vsel %vm536, 1, 0
      %vm569 = vcmp.eq.s32.totalorder %v537, 1
      %vm570 = vcmp.eq.s32.totalorder %v538, 1
      %vm571 = vcmp.eq.s32.totalorder %v539, 1
      %vm572 = vcmp.eq.s32.totalorder %v540, 1
      %vm573 = vcmp.eq.s32.totalorder %v541, 1
      %vm574 = vcmp.eq.s32.totalorder %v542, 1
      %vm575 = vcmp.eq.s32.totalorder %v543, 1
      %vm576 = vcmp.eq.s32.totalorder %v544, 1
      %vm577 = vcmp.eq.s32.totalorder %v545, 1
      %vm578 = vcmp.eq.s32.totalorder %v546, 1
      %vm579 = vcmp.eq.s32.totalorder %v547, 1
      %vm580 = vcmp.eq.s32.totalorder %v548, 1
      %vm581 = vcmp.eq.s32.totalorder %v549, 1
      %vm582 = vcmp.eq.s32.totalorder %v550, 1
      %vm583 = vcmp.eq.s32.totalorder %v551, 1
      %vm584 = vcmp.eq.s32.totalorder %v552, 1
      %vm585 = vcmp.eq.s32.totalorder %v553, 1
      %vm586 = vcmp.eq.s32.totalorder %v554, 1
      %vm587 = vcmp.eq.s32.totalorder %v555, 1
      %vm588 = vcmp.eq.s32.totalorder %v556, 1
      %vm589 = vcmp.eq.s32.totalorder %v557, 1
      %vm590 = vcmp.eq.s32.totalorder %v558, 1
      %vm591 = vcmp.eq.s32.totalorder %v559, 1
      %vm592 = vcmp.eq.s32.totalorder %v560, 1
      %vm593 = vcmp.eq.s32.totalorder %v561, 1
      %vm594 = vcmp.eq.s32.totalorder %v562, 1
      %vm595 = vcmp.eq.s32.totalorder %v563, 1
      %vm596 = vcmp.eq.s32.totalorder %v564, 1
      %vm597 = vcmp.eq.s32.totalorder %v565, 1
      %vm598 = vcmp.eq.s32.totalorder %v566, 1
      %vm599 = vcmp.eq.s32.totalorder %v567, 1
      %vm600 = vcmp.eq.s32.totalorder %v568, 1
      %v601 = vsel %vm569, %v474, 0.0
      %v602 = vsel %vm570, %v473, 0.0
      %v603 = vsel %vm571, %v504, 0.0
      %v604 = vsel %vm572, %v503, 0.0
      %v605 = vsel %vm573, %v502, 0.0
      %v606 = vsel %vm574, %v501, 0.0
      %v607 = vsel %vm575, %v500, 0.0
      %v608 = vsel %vm576, %v499, 0.0
      %v609 = vsel %vm577, %v498, 0.0
      %v610 = vsel %vm578, %v497, 0.0
      %v611 = vsel %vm579, %v496, 0.0
      %v612 = vsel %vm580, %v495, 0.0
      %v613 = vsel %vm581, %v494, 0.0
      %v614 = vsel %vm582, %v493, 0.0
      %v615 = vsel %vm583, %v492, 0.0
      %v616 = vsel %vm584, %v491, 0.0
      %v617 = vsel %vm585, %v490, 0.0
      %v618 = vsel %vm586, %v489, 0.0
      %v619 = vsel %vm587, %v488, 0.0
      %v620 = vsel %vm588, %v487, 0.0
      %v621 = vsel %vm589, %v486, 0.0
      %v622 = vsel %vm590, %v485, 0.0
      %v623 = vsel %vm591, %v484, 0.0
      %v624 = vsel %vm592, %v483, 0.0
      %v625 = vsel %vm593, %v482, 0.0
      %v626 = vsel %vm594, %v481, 0.0
      %v627 = vsel %vm595, %v480, 0.0
      %v628 = vsel %vm596, %v479, 0.0
      %v629 = vsel %vm597, %v478, 0.0
      %v630 = vsel %vm598, %v477, 0.0
      %v631 = vsel %vm599, %v476, 0.0
      %v632 = vsel %vm600, %v475, 0.0
      %v633 = vld [vmem:[%s1] sm:$0xff]
      %v634 = vsel %vm312, 1, 0
      %v635 = vsel %vm313, 1, 0
      %v636 = vsel %vm314, 1, 0
      %v637 = vsel %vm315, 1, 0
      %v638 = vsel %vm316, 1, 0
      %v639 = vsel %vm317, 1, 0
      %v640 = vsel %vm318, 1, 0
      %v641 = vsel %vm319, 1, 0
      %v642 = vsel %vm320, 1, 0
      %v643 = vsel %vm321, 1, 0
      %v644 = vsel %vm322, 1, 0
      %v645 = vsel %vm323, 1, 0
      %v646 = vsel %vm324, 1, 0
      %v647 = vsel %vm325, 1, 0
      %v648 = vsel %vm326, 1, 0
      %v649 = vsel %vm327, 1, 0
      %v650 = vsel %vm328, 1, 0
      %v651 = vsel %vm329, 1, 0
      %v652 = vsel %vm330, 1, 0
      %v653 = vsel %vm331, 1, 0
      %v654 = vsel %vm332, 1, 0
      %v655 = vsel %vm333, 1, 0
      %v656 = vsel %vm334, 1, 0
      %v657 = vsel %vm335, 1, 0
      %v658 = vsel %vm336, 1, 0
      %v659 = vsel %vm337, 1, 0
      %v660 = vsel %vm338, 1, 0
      %v661 = vsel %vm339, 1, 0
      %v662 = vsel %vm340, 1, 0
      %v663 = vsel %vm341, 1, 0
      %v664 = vsel %vm342, 1, 0
      %v665 = vsel %vm343, 1, 0
      %vm666 = vcmp.eq.s32.totalorder %v634, 1
      %vm667 = vcmp.eq.s32.totalorder %v635, 1
      %vm668 = vcmp.eq.s32.totalorder %v636, 1
      %vm669 = vcmp.eq.s32.totalorder %v637, 1
      %vm670 = vcmp.eq.s32.totalorder %v638, 1
      %vm671 = vcmp.eq.s32.totalorder %v639, 1
      %vm672 = vcmp.eq.s32.totalorder %v640, 1
      %vm673 = vcmp.eq.s32.totalorder %v641, 1
      %vm674 = vcmp.eq.s32.totalorder %v642, 1
      %vm675 = vcmp.eq.s32.totalorder %v643, 1
      %vm676 = vcmp.eq.s32.totalorder %v644, 1
      %vm677 = vcmp.eq.s32.totalorder %v645, 1
      %vm678 = vcmp.eq.s32.totalorder %v646, 1
      %vm679 = vcmp.eq.s32.totalorder %v647, 1
      %vm680 = vcmp.eq.s32.totalorder %v648, 1
      %vm681 = vcmp.eq.s32.totalorder %v649, 1
      %vm682 = vcmp.eq.s32.totalorder %v650, 1
      %vm683 = vcmp.eq.s32.totalorder %v651, 1
      %vm684 = vcmp.eq.s32.totalorder %v652, 1
      %vm685 = vcmp.eq.s32.totalorder %v653, 1
      %vm686 = vcmp.eq.s32.totalorder %v654, 1
      %vm687 = vcmp.eq.s32.totalorder %v655, 1
      %vm688 = vcmp.eq.s32.totalorder %v656, 1
      %vm689 = vcmp.eq.s32.totalorder %v657, 1
      %vm690 = vcmp.eq.s32.totalorder %v658, 1
      %vm691 = vcmp.eq.s32.totalorder %v659, 1
      %vm692 = vcmp.eq.s32.totalorder %v660, 1
      %vm693 = vcmp.eq.s32.totalorder %v661, 1
      %vm694 = vcmp.eq.s32.totalorder %v662, 1
      %vm695 = vcmp.eq.s32.totalorder %v663, 1
      %vm696 = vcmp.eq.s32.totalorder %v664, 1
      %vm697 = vcmp.eq.s32.totalorder %v665, 1
      %v698 = vsel %vm666, %v245, 0.0
      %v699 = vsel %vm667, %v246, 0.0
      %v700 = vsel %vm668, %v215, 0.0
      %v701 = vsel %vm669, %v216, 0.0
      %v702 = vsel %vm670, %v217, 0.0
      %v703 = vsel %vm671, %v218, 0.0
      %v704 = vsel %vm672, %v219, 0.0
      %v705 = vsel %vm673, %v220, 0.0
      %v706 = vsel %vm674, %v221, 0.0
      %v707 = vsel %vm675, %v222, 0.0
      %v708 = vsel %vm676, %v223, 0.0
      %v709 = vsel %vm677, %v224, 0.0
      %v710 = vsel %vm678, %v225, 0.0
      %v711 = vsel %vm679, %v226, 0.0
      %v712 = vsel %vm680, %v227, 0.0
      %v713 = vsel %vm681, %v228, 0.0
      %v714 = vsel %vm682, %v229, 0.0
      %v715 = vsel %vm683, %v230, 0.0
      %v716 = vsel %vm684, %v231, 0.0
      %v717 = vsel %vm685, %v232, 0.0
      %v718 = vsel %vm686, %v233, 0.0
      %v719 = vsel %vm687, %v234, 0.0
      %v720 = vsel %vm688, %v235, 0.0
      %v721 = vsel %vm689, %v236, 0.0
      %v722 = vsel %vm690, %v237, 0.0
      %v723 = vsel %vm691, %v238, 0.0
      %v724 = vsel %vm692, %v239, 0.0
      %v725 = vsel %vm693, %v240, 0.0
      %v726 = vsel %vm694, %v241, 0.0
      %v727 = vsel %vm695, %v242, 0.0
      %v728 = vsel %vm696, %v243, 0.0
      %v729 = vsel %vm697, %v244, 0.0
      %v730 = vld [vmem:[%s1 + $0x8] sm:$0xff]
      %vm731 = vcmask 64512
      %v733 = vsel %vm731, %v698, 0
      %v736 = vsel %vm731, %v699, 0
      %v739 = vsel %vm731, %v700, 0
      %v742 = vsel %vm731, %v701, 0
      %v745 = vsel %vm731, %v702, 0
      %v748 = vsel %vm731, %v703, 0
      %v751 = vsel %vm731, %v704, 0
      %v754 = vsel %vm731, %v705, 0
      %v757 = vsel %vm731, %v706, 0
      %v760 = vsel %vm731, %v707, 0
      %v763 = vsel %vm731, %v708, 0
      %v766 = vsel %vm731, %v709, 0
      %v769 = vsel %vm731, %v710, 0
      %v772 = vsel %vm731, %v711, 0
      %v775 = vsel %vm731, %v712, 0
      %v778 = vsel %vm731, %v713, 0
      %v781 = vsel %vm731, %v714, 0
      %v784 = vsel %vm731, %v715, 0
      %v787 = vsel %vm731, %v716, 0
      %v790 = vsel %vm731, %v717, 0
      %v793 = vsel %vm731, %v718, 0
      %v796 = vsel %vm731, %v719, 0
      %v799 = vsel %vm731, %v720, 0
      %v802 = vsel %vm731, %v721, 0
      %v805 = vsel %vm731, %v722, 0
      %v808 = vsel %vm731, %v723, 0
      %v811 = vsel %vm731, %v724, 0
      %v814 = vsel %vm731, %v725, 0
      %v817 = vsel %vm731, %v726, 0
      %v820 = vsel %vm731, %v727, 0
      %v823 = vsel %vm731, %v728, 0
      %v826 = vsel %vm731, %v729, 0
      %828 = vmatpush.msra.mxu0 0.0
      %829 = vmatpush.msra.mxu0 0.0
      %830 = vmatpush.msra.mxu0 0.0
      %831 = vmatpush.msra.mxu0 0.0
      %832 = vmatpush.msra.mxu0 0.0
      %833 = vmatpush.msra.mxu0 0.0
      %834 = vmatpush.msra.mxu0 0.0
      %835 = vmatpush.msra.mxu0 0.0
      %836 = vmatpush.msra.mxu0 0.0
      %837 = vmatpush.msra.mxu0 0.0
      %838 = vmatpush.msra.mxu0 0.0
      %839 = vmatpush.msra.mxu0 0.0
      %840 = vmatpush.msra.mxu0 0.0
      %841 = vmatpush.msra.mxu0 0.0
      %842 = vmatpush.msra.mxu0 0.0
      %843 = vmatpush.msra.mxu0 %v730
      %844 = vmatmul.f32.gmra.mxu0 %v733
      %v845 = vpop.f32.mrf.mxu0
      %v846 = vadd.f32 0.0, %v845
      %847 = vmatmul.f32.gmra.mxu0 %v736
      %v848 = vpop.f32.mrf.mxu0
      %v849 = vadd.f32 0.0, %v848
      %850 = vmatmul.f32.gmra.mxu0 %v739
      %v851 = vpop.f32.mrf.mxu0
      %v852 = vadd.f32 0.0, %v851
      %853 = vmatmul.f32.gmra.mxu0 %v742
      %v854 = vpop.f32.mrf.mxu0
      %v855 = vadd.f32 0.0, %v854
      %856 = vmatmul.f32.gmra.mxu0 %v745
      %v857 = vpop.f32.mrf.mxu0
      %v858 = vadd.f32 0.0, %v857
      %859 = vmatmul.f32.gmra.mxu0 %v748
      %v860 = vpop.f32.mrf.mxu0
      %v861 = vadd.f32 0.0, %v860
      %862 = vmatmul.f32.gmra.mxu0 %v751
      %v863 = vpop.f32.mrf.mxu0
      %v864 = vadd.f32 0.0, %v863
      %865 = vmatmul.f32.gmra.mxu0 %v754
      %v866 = vpop.f32.mrf.mxu0
      %v867 = vadd.f32 0.0, %v866
      %868 = vmatmul.f32.gmra.mxu0 %v757
      %v869 = vpop.f32.mrf.mxu0
      %v870 = vadd.f32 0.0, %v869
      %871 = vmatmul.f32.gmra.mxu0 %v760
      %v872 = vpop.f32.mrf.mxu0
      %v873 = vadd.f32 0.0, %v872
      %874 = vmatmul.f32.gmra.mxu0 %v763
      %v875 = vpop.f32.mrf.mxu0
      %v876 = vadd.f32 0.0, %v875
      %877 = vmatmul.f32.gmra.mxu0 %v766
      %v878 = vpop.f32.mrf.mxu0
      %v879 = vadd.f32 0.0, %v878
      %880 = vmatmul.f32.gmra.mxu0 %v769
      %v881 = vpop.f32.mrf.mxu0
      %v882 = vadd.f32 0.0, %v881
      %883 = vmatmul.f32.gmra.mxu0 %v772
      %v884 = vpop.f32.mrf.mxu0
      %v885 = vadd.f32 0.0, %v884
      %886 = vmatmul.f32.gmra.mxu0 %v775
      %v887 = vpop.f32.mrf.mxu0
      %v888 = vadd.f32 0.0, %v887
      %889 = vmatmul.f32.gmra.mxu0 %v778
      %v890 = vpop.f32.mrf.mxu0
      %v891 = vadd.f32 0.0, %v890
      %892 = vmatmul.f32.gmra.mxu0 %v781
      %v893 = vpop.f32.mrf.mxu0
      %v894 = vadd.f32 0.0, %v893
      %895 = vmatmul.f32.gmra.mxu0 %v784
      %v896 = vpop.f32.mrf.mxu0
      %v897 = vadd.f32 0.0, %v896
      %898 = vmatmul.f32.gmra.mxu0 %v787
      %v899 = vpop.f32.mrf.mxu0
      %v900 = vadd.f32 0.0, %v899
      %901 = vmatmul.f32.gmra.mxu0 %v790
      %v902 = vpop.f32.mrf.mxu0
      %v903 = vadd.f32 0.0, %v902
      %904 = vmatmul.f32.gmra.mxu0 %v793
      %v905 = vpop.f32.mrf.mxu0
      %v906 = vadd.f32 0.0, %v905
      %907 = vmatmul.f32.gmra.mxu0 %v796
      %v908 = vpop.f32.mrf.mxu0
      %v909 = vadd.f32 0.0, %v908
      %910 = vmatmul.f32.gmra.mxu0 %v799
      %v911 = vpop.f32.mrf.mxu0
      %v912 = vadd.f32 0.0, %v911
      %913 = vmatmul.f32.gmra.mxu0 %v802
      %v914 = vpop.f32.mrf.mxu0
      %v915 = vadd.f32 0.0, %v914
      %916 = vmatmul.f32.gmra.mxu0 %v805
      %v917 = vpop.f32.mrf.mxu0
      %v918 = vadd.f32 0.0, %v917
      %919 = vmatmul.f32.gmra.mxu0 %v808
      %v920 = vpop.f32.mrf.mxu0
      %v921 = vadd.f32 0.0, %v920
      %922 = vmatmul.f32.gmra.mxu0 %v811
      %v923 = vpop.f32.mrf.mxu0
      %v924 = vadd.f32 0.0, %v923
      %925 = vmatmul.f32.gmra.mxu0 %v814
      %v926 = vpop.f32.mrf.mxu0
      %v927 = vadd.f32 0.0, %v926
      %928 = vmatmul.f32.gmra.mxu0 %v817
      %v929 = vpop.f32.mrf.mxu0
      %v930 = vadd.f32 0.0, %v929
      %931 = vmatmul.f32.gmra.mxu0 %v820
      %v932 = vpop.f32.mrf.mxu0
      %v933 = vadd.f32 0.0, %v932
      %934 = vmatmul.f32.gmra.mxu0 %v823
      %v935 = vpop.f32.mrf.mxu0
      %v936 = vadd.f32 0.0, %v935
      %937 = vmatmul.f32.gmra.mxu0 %v826
      %v938 = vpop.f32.mrf.mxu0
      %v939 = vadd.f32 0.0, %v938
      %940 = vdwg.mxu0
      %v942 = vsel %vm731, %v601, 0
      %v945 = vsel %vm731, %v602, 0
      %v948 = vsel %vm731, %v603, 0
      %v951 = vsel %vm731, %v604, 0
      %v954 = vsel %vm731, %v605, 0
      %v957 = vsel %vm731, %v606, 0
      %v960 = vsel %vm731, %v607, 0
      %v963 = vsel %vm731, %v608, 0
      %v966 = vsel %vm731, %v609, 0
      %v969 = vsel %vm731, %v610, 0
      %v972 = vsel %vm731, %v611, 0
      %v975 = vsel %vm731, %v612, 0
      %v978 = vsel %vm731, %v613, 0
      %v981 = vsel %vm731, %v614, 0
      %v984 = vsel %vm731, %v615, 0
      %v987 = vsel %vm731, %v616, 0
      %v990 = vsel %vm731, %v617, 0
      %v993 = vsel %vm731, %v618, 0
      %v996 = vsel %vm731, %v619, 0
      %v999 = vsel %vm731, %v620, 0
      %v1002 = vsel %vm731, %v621, 0
      %v1005 = vsel %vm731, %v622, 0
      %v1008 = vsel %vm731, %v623, 0
      %v1011 = vsel %vm731, %v624, 0
      %v1014 = vsel %vm731, %v625, 0
      %v1017 = vsel %vm731, %v626, 0
      %v1020 = vsel %vm731, %v627, 0
      %v1023 = vsel %vm731, %v628, 0
      %v1026 = vsel %vm731, %v629, 0
      %v1029 = vsel %vm731, %v630, 0
      %v1032 = vsel %vm731, %v631, 0
      %v1035 = vsel %vm731, %v632, 0
      %1037 = vmatpush.msra.mxu0 0.0
      %1038 = vmatpush.msra.mxu0 0.0
      %1039 = vmatpush.msra.mxu0 0.0
      %1040 = vmatpush.msra.mxu0 0.0
      %1041 = vmatpush.msra.mxu0 0.0
      %1042 = vmatpush.msra.mxu0 0.0
      %1043 = vmatpush.msra.mxu0 0.0
      %1044 = vmatpush.msra.mxu0 0.0
      %1045 = vmatpush.msra.mxu0 0.0
      %1046 = vmatpush.msra.mxu0 0.0
      %1047 = vmatpush.msra.mxu0 0.0
      %1048 = vmatpush.msra.mxu0 0.0
      %1049 = vmatpush.msra.mxu0 0.0
      %1050 = vmatpush.msra.mxu0 0.0
      %1051 = vmatpush.msra.mxu0 0.0
      %1052 = vmatpush.msra.mxu0 %v633
      %1053 = vmatmul.f32.gmra.mxu0 %v942
      %v1054 = vpop.f32.mrf.mxu0
      %v1055 = vadd.f32 %v846, %v1054
      %1056 = vmatmul.f32.gmra.mxu0 %v945
      %v1057 = vpop.f32.mrf.mxu0
      %v1058 = vadd.f32 %v849, %v1057
      %1059 = vmatmul.f32.gmra.mxu0 %v948
      %v1060 = vpop.f32.mrf.mxu0
      %v1061 = vadd.f32 %v852, %v1060
      %1062 = vmatmul.f32.gmra.mxu0 %v951
      %v1063 = vpop.f32.mrf.mxu0
      %v1064 = vadd.f32 %v855, %v1063
      %1065 = vmatmul.f32.gmra.mxu0 %v954
      %v1066 = vpop.f32.mrf.mxu0
      %v1067 = vadd.f32 %v858, %v1066
      %1068 = vmatmul.f32.gmra.mxu0 %v957
      %v1069 = vpop.f32.mrf.mxu0
      %v1070 = vadd.f32 %v861, %v1069
      %1071 = vmatmul.f32.gmra.mxu0 %v960
      %v1072 = vpop.f32.mrf.mxu0
      %v1073 = vadd.f32 %v864, %v1072
      %1074 = vmatmul.f32.gmra.mxu0 %v963
      %v1075 = vpop.f32.mrf.mxu0
      %v1076 = vadd.f32 %v867, %v1075
      %1077 = vmatmul.f32.gmra.mxu0 %v966
      %v1078 = vpop.f32.mrf.mxu0
      %v1079 = vadd.f32 %v870, %v1078
      %1080 = vmatmul.f32.gmra.mxu0 %v969
      %v1081 = vpop.f32.mrf.mxu0
      %v1082 = vadd.f32 %v873, %v1081
      %1083 = vmatmul.f32.gmra.mxu0 %v972
      %v1084 = vpop.f32.mrf.mxu0
      %v1085 = vadd.f32 %v876, %v1084
      %1086 = vmatmul.f32.gmra.mxu0 %v975
      %v1087 = vpop.f32.mrf.mxu0
      %v1088 = vadd.f32 %v879, %v1087
      %1089 = vmatmul.f32.gmra.mxu0 %v978
      %v1090 = vpop.f32.mrf.mxu0
      %v1091 = vadd.f32 %v882, %v1090
      %1092 = vmatmul.f32.gmra.mxu0 %v981
      %v1093 = vpop.f32.mrf.mxu0
      %v1094 = vadd.f32 %v885, %v1093
      %1095 = vmatmul.f32.gmra.mxu0 %v984
      %v1096 = vpop.f32.mrf.mxu0
      %v1097 = vadd.f32 %v888, %v1096
      %1098 = vmatmul.f32.gmra.mxu0 %v987
      %v1099 = vpop.f32.mrf.mxu0
      %v1100 = vadd.f32 %v891, %v1099
      %1101 = vmatmul.f32.gmra.mxu0 %v990
      %v1102 = vpop.f32.mrf.mxu0
      %v1103 = vadd.f32 %v894, %v1102
      %1104 = vmatmul.f32.gmra.mxu0 %v993
      %v1105 = vpop.f32.mrf.mxu0
      %v1106 = vadd.f32 %v897, %v1105
      %1107 = vmatmul.f32.gmra.mxu0 %v996
      %v1108 = vpop.f32.mrf.mxu0
      %v1109 = vadd.f32 %v900, %v1108
      %1110 = vmatmul.f32.gmra.mxu0 %v999
      %v1111 = vpop.f32.mrf.mxu0
      %v1112 = vadd.f32 %v903, %v1111
      %1113 = vmatmul.f32.gmra.mxu0 %v1002
      %v1114 = vpop.f32.mrf.mxu0
      %v1115 = vadd.f32 %v906, %v1114
      %1116 = vmatmul.f32.gmra.mxu0 %v1005
      %v1117 = vpop.f32.mrf.mxu0
      %v1118 = vadd.f32 %v909, %v1117
      %1119 = vmatmul.f32.gmra.mxu0 %v1008
      %v1120 = vpop.f32.mrf.mxu0
      %v1121 = vadd.f32 %v912, %v1120
      %1122 = vmatmul.f32.gmra.mxu0 %v1011
      %v1123 = vpop.f32.mrf.mxu0
      %v1124 = vadd.f32 %v915, %v1123
      %1125 = vmatmul.f32.gmra.mxu0 %v1014
      %v1126 = vpop.f32.mrf.mxu0
      %v1127 = vadd.f32 %v918, %v1126
      %1128 = vmatmul.f32.gmra.mxu0 %v1017
      %v1129 = vpop.f32.mrf.mxu0
      %v1130 = vadd.f32 %v921, %v1129
      %1131 = vmatmul.f32.gmra.mxu0 %v1020
      %v1132 = vpop.f32.mrf.mxu0
      %v1133 = vadd.f32 %v924, %v1132
      %1134 = vmatmul.f32.gmra.mxu0 %v1023
      %v1135 = vpop.f32.mrf.mxu0
      %v1136 = vadd.f32 %v927, %v1135
      %1137 = vmatmul.f32.gmra.mxu0 %v1026
      %v1138 = vpop.f32.mrf.mxu0
      %v1139 = vadd.f32 %v930, %v1138
      %1140 = vmatmul.f32.gmra.mxu0 %v1029
      %v1141 = vpop.f32.mrf.mxu0
      %v1142 = vadd.f32 %v933, %v1141
      %1143 = vmatmul.f32.gmra.mxu0 %v1032
      %v1144 = vpop.f32.mrf.mxu0
      %v1145 = vadd.f32 %v936, %v1144
      %1146 = vmatmul.f32.gmra.mxu0 %v1035
      %v1147 = vpop.f32.mrf.mxu0
      %v1148 = vadd.f32 %v939, %v1147
      %1149 = vdwg.mxu0
      %v1150 = vrot.slane %v215, 1
      %v1151 = vrot.slane %v216, 1
      %v1152 = vrot.slane %v217, 1
      %v1153 = vrot.slane %v218, 1
      %v1154 = vrot.slane %v219, 1
      %v1155 = vrot.slane %v220, 1
      %v1156 = vrot.slane %v221, 1
      %v1157 = vrot.slane %v222, 1
      %v1158 = vrot.slane %v223, 1
      %v1159 = vrot.slane %v224, 1
      %v1160 = vrot.slane %v225, 1
      %v1161 = vrot.slane %v226, 1
      %v1162 = vrot.slane %v227, 1
      %v1163 = vrot.slane %v228, 1
      %v1164 = vrot.slane %v229, 1
      %v1165 = vrot.slane %v230, 1
      %v1166 = vrot.slane %v231, 1
      %v1167 = vrot.slane %v232, 1
      %v1168 = vrot.slane %v233, 1
      %v1169 = vrot.slane %v234, 1
      %v1170 = vrot.slane %v235, 1
      %v1171 = vrot.slane %v236, 1
      %v1172 = vrot.slane %v237, 1
      %v1173 = vrot.slane %v238, 1
      %v1174 = vrot.slane %v239, 1
      %v1175 = vrot.slane %v240, 1
      %v1176 = vrot.slane %v241, 1
      %v1177 = vrot.slane %v242, 1
      %v1178 = vrot.slane %v243, 1
      %v1179 = vrot.slane %v244, 1
      %v1180 = vrot.slane %v245, 1
      %v1181 = vrot.slane %v246, 1
      %vm1182 = vcmp.lt.s32.totalorder %v248, 7
      %v1183 = vsel %vm1182, %v1180, %v1181
      %v1184 = vsel %vm1182, %v1179, %v1180
      %v1185 = vsel %vm1182, %v1178, %v1179
      %v1186 = vsel %vm1182, %v1177, %v1178
      %v1187 = vsel %vm1182, %v1176, %v1177
      %v1188 = vsel %vm1182, %v1175, %v1176
      %v1189 = vsel %vm1182, %v1174, %v1175
      %v1190 = vsel %vm1182, %v1173, %v1174
      %v1191 = vsel %vm1182, %v1172, %v1173
      %v1192 = vsel %vm1182, %v1171, %v1172
      %v1193 = vsel %vm1182, %v1170, %v1171
      %v1194 = vsel %vm1182, %v1169, %v1170
      %v1195 = vsel %vm1182, %v1168, %v1169
      %v1196 = vsel %vm1182, %v1167, %v1168
      %v1197 = vsel %vm1182, %v1166, %v1167
      %v1198 = vsel %vm1182, %v1165, %v1166
      %v1199 = vsel %vm1182, %v1164, %v1165
      %v1200 = vsel %vm1182, %v1163, %v1164
      %v1201 = vsel %vm1182, %v1162, %v1163
      %v1202 = vsel %vm1182, %v1161, %v1162
      %v1203 = vsel %vm1182, %v1160, %v1161
      %v1204 = vsel %vm1182, %v1159, %v1160
      %v1205 = vsel %vm1182, %v1158, %v1159
      %v1206 = vsel %vm1182, %v1157, %v1158
      %v1207 = vsel %vm1182, %v1156, %v1157
      %v1208 = vsel %vm1182, %v1155, %v1156
      %v1209 = vsel %vm1182, %v1154, %v1155
      %v1210 = vsel %vm1182, %v1153, %v1154
      %v1211 = vsel %vm1182, %v1152, %v1153
      %v1212 = vsel %vm1182, %v1151, %v1152
      %v1213 = vsel %vm1182, %v1150, %v1151
      %v1214 = vsel %vm1182, %v1181, %v1150
      %vm1215 = vmand %vm312, %vm408
      %vm1216 = vmand %vm313, %vm409
      %vm1217 = vmand %vm314, %vm410
      %vm1218 = vmand %vm315, %vm411
      %vm1219 = vmand %vm316, %vm412
      %vm1220 = vmand %vm317, %vm413
      %vm1221 = vmand %vm318, %vm414
      %vm1222 = vmand %vm319, %vm415
      %vm1223 = vmand %vm320, %vm416
      %vm1224 = vmand %vm321, %vm417
      %vm1225 = vmand %vm322, %vm418
      %vm1226 = vmand %vm323, %vm419
      %vm1227 = vmand %vm324, %vm420
      %vm1228 = vmand %vm325, %vm421
      %vm1229 = vmand %vm326, %vm422
      %vm1230 = vmand %vm327, %vm423
      %vm1231 = vmand %vm328, %vm424
      %vm1232 = vmand %vm329, %vm425
      %vm1233 = vmand %vm330, %vm426
      %vm1234 = vmand %vm331, %vm427
      %vm1235 = vmand %vm332, %vm428
      %vm1236 = vmand %vm333, %vm429
      %vm1237 = vmand %vm334, %vm430
      %vm1238 = vmand %vm335, %vm431
      %vm1239 = vmand %vm336, %vm432
      %vm1240 = vmand %vm337, %vm433
      %vm1241 = vmand %vm338, %vm434
      %vm1242 = vmand %vm339, %vm435
      %vm1243 = vmand %vm340, %vm436
      %vm1244 = vmand %vm341, %vm437
      %vm1245 = vmand %vm342, %vm438
      %vm1246 = vmand %vm343, %vm439
      %v1247 = vsel %vm1215, 1, 0
      %v1248 = vsel %vm1216, 1, 0
      %v1249 = vsel %vm1217, 1, 0
      %v1250 = vsel %vm1218, 1, 0
      %v1251 = vsel %vm1219, 1, 0
      %v1252 = vsel %vm1220, 1, 0
      %v1253 = vsel %vm1221, 1, 0
      %v1254 = vsel %vm1222, 1, 0
      %v1255 = vsel %vm1223, 1, 0
      %v1256 = vsel %vm1224, 1, 0
      %v1257 = vsel %vm1225, 1, 0
      %v1258 = vsel %vm1226, 1, 0
      %v1259 = vsel %vm1227, 1, 0
      %v1260 = vsel %vm1228, 1, 0
      %v1261 = vsel %vm1229, 1, 0
      %v1262 = vsel %vm1230, 1, 0
      %v1263 = vsel %vm1231, 1, 0
      %v1264 = vsel %vm1232, 1, 0
      %v1265 = vsel %vm1233, 1, 0
      %v1266 = vsel %vm1234, 1, 0
      %v1267 = vsel %vm1235, 1, 0
      %v1268 = vsel %vm1236, 1, 0
      %v1269 = vsel %vm1237, 1, 0
      %v1270 = vsel %vm1238, 1, 0
      %v1271 = vsel %vm1239, 1, 0
      %v1272 = vsel %vm1240, 1, 0
      %v1273 = vsel %vm1241, 1, 0
      %v1274 = vsel %vm1242, 1, 0
      %v1275 = vsel %vm1243, 1, 0
      %v1276 = vsel %vm1244, 1, 0
      %v1277 = vsel %vm1245, 1, 0
      %v1278 = vsel %vm1246, 1, 0
      %vm1279 = vcmp.eq.s32.totalorder %v1247, 1
      %vm1280 = vcmp.eq.s32.totalorder %v1248, 1
      %vm1281 = vcmp.eq.s32.totalorder %v1249, 1
      %vm1282 = vcmp.eq.s32.totalorder %v1250, 1
      %vm1283 = vcmp.eq.s32.totalorder %v1251, 1
      %vm1284 = vcmp.eq.s32.totalorder %v1252, 1
      %vm1285 = vcmp.eq.s32.totalorder %v1253, 1
      %vm1286 = vcmp.eq.s32.totalorder %v1254, 1
      %vm1287 = vcmp.eq.s32.totalorder %v1255, 1
      %vm1288 = vcmp.eq.s32.totalorder %v1256, 1
      %vm1289 = vcmp.eq.s32.totalorder %v1257, 1
      %vm1290 = vcmp.eq.s32.totalorder %v1258, 1
      %vm1291 = vcmp.eq.s32.totalorder %v1259, 1
      %vm1292 = vcmp.eq.s32.totalorder %v1260, 1
      %vm1293 = vcmp.eq.s32.totalorder %v1261, 1
      %vm1294 = vcmp.eq.s32.totalorder %v1262, 1
      %vm1295 = vcmp.eq.s32.totalorder %v1263, 1
      %vm1296 = vcmp.eq.s32.totalorder %v1264, 1
      %vm1297 = vcmp.eq.s32.totalorder %v1265, 1
      %vm1298 = vcmp.eq.s32.totalorder %v1266, 1
      %vm1299 = vcmp.eq.s32.totalorder %v1267, 1
      %vm1300 = vcmp.eq.s32.totalorder %v1268, 1
      %vm1301 = vcmp.eq.s32.totalorder %v1269, 1
      %vm1302 = vcmp.eq.s32.totalorder %v1270, 1
      %vm1303 = vcmp.eq.s32.totalorder %v1271, 1
      %vm1304 = vcmp.eq.s32.totalorder %v1272, 1
      %vm1305 = vcmp.eq.s32.totalorder %v1273, 1
      %vm1306 = vcmp.eq.s32.totalorder %v1274, 1
      %vm1307 = vcmp.eq.s32.totalorder %v1275, 1
      %vm1308 = vcmp.eq.s32.totalorder %v1276, 1
      %vm1309 = vcmp.eq.s32.totalorder %v1277, 1
      %vm1310 = vcmp.eq.s32.totalorder %v1278, 1
      %v1311 = vsel %vm1279, %v1183, 0.0
      %v1312 = vsel %vm1280, %v1214, 0.0
      %v1313 = vsel %vm1281, %v1213, 0.0
      %v1314 = vsel %vm1282, %v1212, 0.0
      %v1315 = vsel %vm1283, %v1211, 0.0
      %v1316 = vsel %vm1284, %v1210, 0.0
      %v1317 = vsel %vm1285, %v1209, 0.0
      %v1318 = vsel %vm1286, %v1208, 0.0
      %v1319 = vsel %vm1287, %v1207, 0.0
      %v1320 = vsel %vm1288, %v1206, 0.0
      %v1321 = vsel %vm1289, %v1205, 0.0
      %v1322 = vsel %vm1290, %v1204, 0.0
      %v1323 = vsel %vm1291, %v1203, 0.0
      %v1324 = vsel %vm1292, %v1202, 0.0
      %v1325 = vsel %vm1293, %v1201, 0.0
      %v1326 = vsel %vm1294, %v1200, 0.0
      %v1327 = vsel %vm1295, %v1199, 0.0
      %v1328 = vsel %vm1296, %v1198, 0.0
      %v1329 = vsel %vm1297, %v1197, 0.0
      %v1330 = vsel %vm1298, %v1196, 0.0
      %v1331 = vsel %vm1299, %v1195, 0.0
      %v1332 = vsel %vm1300, %v1194, 0.0
      %v1333 = vsel %vm1301, %v1193, 0.0
      %v1334 = vsel %vm1302, %v1192, 0.0
      %v1335 = vsel %vm1303, %v1191, 0.0
      %v1336 = vsel %vm1304, %v1190, 0.0
      %v1337 = vsel %vm1305, %v1189, 0.0
      %v1338 = vsel %vm1306, %v1188, 0.0
      %v1339 = vsel %vm1307, %v1187, 0.0
      %v1340 = vsel %vm1308, %v1186, 0.0
      %v1341 = vsel %vm1309, %v1185, 0.0
      %v1342 = vsel %vm1310, %v1184, 0.0
      %v1343 = vld [vmem:[%s1 + $0x10] sm:$0xff]
      %v1345 = vsel %vm731, %v1311, 0
      %v1348 = vsel %vm731, %v1312, 0
      %v1351 = vsel %vm731, %v1313, 0
      %v1354 = vsel %vm731, %v1314, 0
      %v1357 = vsel %vm731, %v1315, 0
      %v1360 = vsel %vm731, %v1316, 0
      %v1363 = vsel %vm731, %v1317, 0
      %v1366 = vsel %vm731, %v1318, 0
      %v1369 = vsel %vm731, %v1319, 0
      %v1372 = vsel %vm731, %v1320, 0
      %v1375 = vsel %vm731, %v1321, 0
      %v1378 = vsel %vm731, %v1322, 0
      %v1381 = vsel %vm731, %v1323, 0
      %v1384 = vsel %vm731, %v1324, 0
      %v1387 = vsel %vm731, %v1325, 0
      %v1390 = vsel %vm731, %v1326, 0
      %v1393 = vsel %vm731, %v1327, 0
      %v1396 = vsel %vm731, %v1328, 0
      %v1399 = vsel %vm731, %v1329, 0
      %v1402 = vsel %vm731, %v1330, 0
      %v1405 = vsel %vm731, %v1331, 0
      %v1408 = vsel %vm731, %v1332, 0
      %v1411 = vsel %vm731, %v1333, 0
      %v1414 = vsel %vm731, %v1334, 0
      %v1417 = vsel %vm731, %v1335, 0
      %v1420 = vsel %vm731, %v1336, 0
      %v1423 = vsel %vm731, %v1337, 0
      %v1426 = vsel %vm731, %v1338, 0
      %v1429 = vsel %vm731, %v1339, 0
      %v1432 = vsel %vm731, %v1340, 0
      %v1435 = vsel %vm731, %v1341, 0
      %v1438 = vsel %vm731, %v1342, 0
      %1440 = vmatpush.msra.mxu0 0.0
      %1441 = vmatpush.msra.mxu0 0.0
      %1442 = vmatpush.msra.mxu0 0.0
      %1443 = vmatpush.msra.mxu0 0.0
      %1444 = vmatpush.msra.mxu0 0.0
      %1445 = vmatpush.msra.mxu0 0.0
      %1446 = vmatpush.msra.mxu0 0.0
      %1447 = vmatpush.msra.mxu0 0.0
      %1448 = vmatpush.msra.mxu0 0.0
      %1449 = vmatpush.msra.mxu0 0.0
      %1450 = vmatpush.msra.mxu0 0.0
      %1451 = vmatpush.msra.mxu0 0.0
      %1452 = vmatpush.msra.mxu0 0.0
      %1453 = vmatpush.msra.mxu0 0.0
      %1454 = vmatpush.msra.mxu0 0.0
      %1455 = vmatpush.msra.mxu0 %v1343
      %1456 = vmatmul.f32.gmra.mxu0 %v1345
      %v1457 = vpop.f32.mrf.mxu0
      %v1458 = vadd.f32 0.0, %v1457
      %1459 = vmatmul.f32.gmra.mxu0 %v1348
      %v1460 = vpop.f32.mrf.mxu0
      %v1461 = vadd.f32 0.0, %v1460
      %1462 = vmatmul.f32.gmra.mxu0 %v1351
      %v1463 = vpop.f32.mrf.mxu0
      %v1464 = vadd.f32 0.0, %v1463
      %1465 = vmatmul.f32.gmra.mxu0 %v1354
      %v1466 = vpop.f32.mrf.mxu0
      %v1467 = vadd.f32 0.0, %v1466
      %1468 = vmatmul.f32.gmra.mxu0 %v1357
      %v1469 = vpop.f32.mrf.mxu0
      %v1470 = vadd.f32 0.0, %v1469
      %1471 = vmatmul.f32.gmra.mxu0 %v1360
      %v1472 = vpop.f32.mrf.mxu0
      %v1473 = vadd.f32 0.0, %v1472
      %1474 = vmatmul.f32.gmra.mxu0 %v1363
      %v1475 = vpop.f32.mrf.mxu0
      %v1476 = vadd.f32 0.0, %v1475
      %1477 = vmatmul.f32.gmra.mxu0 %v1366
      %v1478 = vpop.f32.mrf.mxu0
      %v1479 = vadd.f32 0.0, %v1478
      %1480 = vmatmul.f32.gmra.mxu0 %v1369
      %v1481 = vpop.f32.mrf.mxu0
      %v1482 = vadd.f32 0.0, %v1481
      %1483 = vmatmul.f32.gmra.mxu0 %v1372
      %v1484 = vpop.f32.mrf.mxu0
      %v1485 = vadd.f32 0.0, %v1484
      %1486 = vmatmul.f32.gmra.mxu0 %v1375
      %v1487 = vpop.f32.mrf.mxu0
      %v1488 = vadd.f32 0.0, %v1487
      %1489 = vmatmul.f32.gmra.mxu0 %v1378
      %v1490 = vpop.f32.mrf.mxu0
      %v1491 = vadd.f32 0.0, %v1490
      %1492 = vmatmul.f32.gmra.mxu0 %v1381
      %v1493 = vpop.f32.mrf.mxu0
      %v1494 = vadd.f32 0.0, %v1493
      %1495 = vmatmul.f32.gmra.mxu0 %v1384
      %v1496 = vpop.f32.mrf.mxu0
      %v1497 = vadd.f32 0.0, %v1496
      %1498 = vmatmul.f32.gmra.mxu0 %v1387
      %v1499 = vpop.f32.mrf.mxu0
      %v1500 = vadd.f32 0.0, %v1499
      %1501 = vmatmul.f32.gmra.mxu0 %v1390
      %v1502 = vpop.f32.mrf.mxu0
      %v1503 = vadd.f32 0.0, %v1502
      %1504 = vmatmul.f32.gmra.mxu0 %v1393
      %v1505 = vpop.f32.mrf.mxu0
      %v1506 = vadd.f32 0.0, %v1505
      %1507 = vmatmul.f32.gmra.mxu0 %v1396
      %v1508 = vpop.f32.mrf.mxu0
      %v1509 = vadd.f32 0.0, %v1508
      %1510 = vmatmul.f32.gmra.mxu0 %v1399
      %v1511 = vpop.f32.mrf.mxu0
      %v1512 = vadd.f32 0.0, %v1511
      %1513 = vmatmul.f32.gmra.mxu0 %v1402
      %v1514 = vpop.f32.mrf.mxu0
      %v1515 = vadd.f32 0.0, %v1514
      %1516 = vmatmul.f32.gmra.mxu0 %v1405
      %v1517 = vpop.f32.mrf.mxu0
      %v1518 = vadd.f32 0.0, %v1517
      %1519 = vmatmul.f32.gmra.mxu0 %v1408
      %v1520 = vpop.f32.mrf.mxu0
      %v1521 = vadd.f32 0.0, %v1520
      %1522 = vmatmul.f32.gmra.mxu0 %v1411
      %v1523 = vpop.f32.mrf.mxu0
      %v1524 = vadd.f32 0.0, %v1523
      %1525 = vmatmul.f32.gmra.mxu0 %v1414
      %v1526 = vpop.f32.mrf.mxu0
      %v1527 = vadd.f32 0.0, %v1526
      %1528 = vmatmul.f32.gmra.mxu0 %v1417
      %v1529 = vpop.f32.mrf.mxu0
      %v1530 = vadd.f32 0.0, %v1529
      %1531 = vmatmul.f32.gmra.mxu0 %v1420
      %v1532 = vpop.f32.mrf.mxu0
      %v1533 = vadd.f32 0.0, %v1532
      %1534 = vmatmul.f32.gmra.mxu0 %v1423
      %v1535 = vpop.f32.mrf.mxu0
      %v1536 = vadd.f32 0.0, %v1535
      %1537 = vmatmul.f32.gmra.mxu0 %v1426
      %v1538 = vpop.f32.mrf.mxu0
      %v1539 = vadd.f32 0.0, %v1538
      %1540 = vmatmul.f32.gmra.mxu0 %v1429
      %v1541 = vpop.f32.mrf.mxu0
      %v1542 = vadd.f32 0.0, %v1541
      %1543 = vmatmul.f32.gmra.mxu0 %v1432
      %v1544 = vpop.f32.mrf.mxu0
      %v1545 = vadd.f32 0.0, %v1544
      %1546 = vmatmul.f32.gmra.mxu0 %v1435
      %v1547 = vpop.f32.mrf.mxu0
      %v1548 = vadd.f32 0.0, %v1547
      %1549 = vmatmul.f32.gmra.mxu0 %v1438
      %v1550 = vpop.f32.mrf.mxu0
      %v1551 = vadd.f32 0.0, %v1550
      %1552 = vdwg.mxu0
      %v1553 = vadd.f32 %v1055, %v1458
      %v1554 = vadd.f32 %v1058, %v1461
      %v1555 = vadd.f32 %v1061, %v1464
      %v1556 = vadd.f32 %v1064, %v1467
      %v1557 = vadd.f32 %v1067, %v1470
      %v1558 = vadd.f32 %v1070, %v1473
      %v1559 = vadd.f32 %v1073, %v1476
      %v1560 = vadd.f32 %v1076, %v1479
      %v1561 = vadd.f32 %v1079, %v1482
      %v1562 = vadd.f32 %v1082, %v1485
      %v1563 = vadd.f32 %v1085, %v1488
      %v1564 = vadd.f32 %v1088, %v1491
      %v1565 = vadd.f32 %v1091, %v1494
      %v1566 = vadd.f32 %v1094, %v1497
      %v1567 = vadd.f32 %v1097, %v1500
      %v1568 = vadd.f32 %v1100, %v1503
      %v1569 = vadd.f32 %v1103, %v1506
      %v1570 = vadd.f32 %v1106, %v1509
      %v1571 = vadd.f32 %v1109, %v1512
      %v1572 = vadd.f32 %v1112, %v1515
      %v1573 = vadd.f32 %v1115, %v1518
      %v1574 = vadd.f32 %v1118, %v1521
      %v1575 = vadd.f32 %v1121, %v1524
      %v1576 = vadd.f32 %v1124, %v1527
      %v1577 = vadd.f32 %v1127, %v1530
      %v1578 = vadd.f32 %v1130, %v1533
      %v1579 = vadd.f32 %v1133, %v1536
      %v1580 = vadd.f32 %v1136, %v1539
      %v1581 = vadd.f32 %v1139, %v1542
      %v1582 = vadd.f32 %v1142, %v1545
      %v1583 = vadd.f32 %v1145, %v1548
      %v1584 = vadd.f32 %v1148, %v1551
      %v1585 = vsel %vm376, 1, 0
      %v1586 = vsel %vm377, 1, 0
      %v1587 = vsel %vm378, 1, 0
      %v1588 = vsel %vm379, 1, 0
      %v1589 = vsel %vm380, 1, 0
      %v1590 = vsel %vm381, 1, 0
      %v1591 = vsel %vm382, 1, 0
      %v1592 = vsel %vm383, 1, 0
      %v1593 = vsel %vm384, 1, 0
      %v1594 = vsel %vm385, 1, 0
      %v1595 = vsel %vm386, 1, 0
      %v1596 = vsel %vm387, 1, 0
      %v1597 = vsel %vm388, 1, 0
      %v1598 = vsel %vm389, 1, 0
      %v1599 = vsel %vm390, 1, 0
      %v1600 = vsel %vm391, 1, 0
      %v1601 = vsel %vm392, 1, 0
      %v1602 = vsel %vm393, 1, 0
      %v1603 = vsel %vm394, 1, 0
      %v1604 = vsel %vm395, 1, 0
      %v1605 = vsel %vm396, 1, 0
      %v1606 = vsel %vm397, 1, 0
      %v1607 = vsel %vm398, 1, 0
      %v1608 = vsel %vm399, 1, 0
      %v1609 = vsel %vm400, 1, 0
      %v1610 = vsel %vm401, 1, 0
      %v1611 = vsel %vm402, 1, 0
      %v1612 = vsel %vm403, 1, 0
      %v1613 = vsel %vm404, 1, 0
      %v1614 = vsel %vm405, 1, 0
      %v1615 = vsel %vm406, 1, 0
      %v1616 = vsel %vm407, 1, 0
      %vm1617 = vcmp.eq.s32.totalorder %v1585, 1
      %vm1618 = vcmp.eq.s32.totalorder %v1586, 1
      %vm1619 = vcmp.eq.s32.totalorder %v1587, 1
      %vm1620 = vcmp.eq.s32.totalorder %v1588, 1
      %vm1621 = vcmp.eq.s32.totalorder %v1589, 1
      %vm1622 = vcmp.eq.s32.totalorder %v1590, 1
      %vm1623 = vcmp.eq.s32.totalorder %v1591, 1
      %vm1624 = vcmp.eq.s32.totalorder %v1592, 1
      %vm1625 = vcmp.eq.s32.totalorder %v1593, 1
      %vm1626 = vcmp.eq.s32.totalorder %v1594, 1
      %vm1627 = vcmp.eq.s32.totalorder %v1595, 1
      %vm1628 = vcmp.eq.s32.totalorder %v1596, 1
      %vm1629 = vcmp.eq.s32.totalorder %v1597, 1
      %vm1630 = vcmp.eq.s32.totalorder %v1598, 1
      %vm1631 = vcmp.eq.s32.totalorder %v1599, 1
      %vm1632 = vcmp.eq.s32.totalorder %v1600, 1
      %vm1633 = vcmp.eq.s32.totalorder %v1601, 1
      %vm1634 = vcmp.eq.s32.totalorder %v1602, 1
      %vm1635 = vcmp.eq.s32.totalorder %v1603, 1
      %vm1636 = vcmp.eq.s32.totalorder %v1604, 1
      %vm1637 = vcmp.eq.s32.totalorder %v1605, 1
      %vm1638 = vcmp.eq.s32.totalorder %v1606, 1
      %vm1639 = vcmp.eq.s32.totalorder %v1607, 1
      %vm1640 = vcmp.eq.s32.totalorder %v1608, 1
      %vm1641 = vcmp.eq.s32.totalorder %v1609, 1
      %vm1642 = vcmp.eq.s32.totalorder %v1610, 1
      %vm1643 = vcmp.eq.s32.totalorder %v1611, 1
      %vm1644 = vcmp.eq.s32.totalorder %v1612, 1
      %vm1645 = vcmp.eq.s32.totalorder %v1613, 1
      %vm1646 = vcmp.eq.s32.totalorder %v1614, 1
      %vm1647 = vcmp.eq.s32.totalorder %v1615, 1
      %vm1648 = vcmp.eq.s32.totalorder %v1616, 1
      %v1649 = vsel %vm1617, %v504, 0.0
      %v1650 = vsel %vm1618, %v503, 0.0
      %v1651 = vsel %vm1619, %v502, 0.0
      %v1652 = vsel %vm1620, %v501, 0.0
      %v1653 = vsel %vm1621, %v500, 0.0
      %v1654 = vsel %vm1622, %v499, 0.0
      %v1655 = vsel %vm1623, %v498, 0.0
      %v1656 = vsel %vm1624, %v497, 0.0
      %v1657 = vsel %vm1625, %v496, 0.0
      %v1658 = vsel %vm1626, %v495, 0.0
      %v1659 = vsel %vm1627, %v494, 0.0
      %v1660 = vsel %vm1628, %v493, 0.0
      %v1661 = vsel %vm1629, %v492, 0.0
      %v1662 = vsel %vm1630, %v491, 0.0
      %v1663 = vsel %vm1631, %v490, 0.0
      %v1664 = vsel %vm1632, %v489, 0.0
      %v1665 = vsel %vm1633, %v488, 0.0
      %v1666 = vsel %vm1634, %v487, 0.0
      %v1667 = vsel %vm1635, %v486, 0.0
      %v1668 = vsel %vm1636, %v485, 0.0
      %v1669 = vsel %vm1637, %v484, 0.0
      %v1670 = vsel %vm1638, %v483, 0.0
      %v1671 = vsel %vm1639, %v482, 0.0
      %v1672 = vsel %vm1640, %v481, 0.0
      %v1673 = vsel %vm1641, %v480, 0.0
      %v1674 = vsel %vm1642, %v479, 0.0
      %v1675 = vsel %vm1643, %v478, 0.0
      %v1676 = vsel %vm1644, %v477, 0.0
      %v1677 = vsel %vm1645, %v476, 0.0
      %v1678 = vsel %vm1646, %v475, 0.0
      %v1679 = vsel %vm1647, %v474, 0.0
      %v1680 = vsel %vm1648, %v473, 0.0
      %v1681 = vld [vmem:[%s1 + $0x18] sm:$0xff]
      %v1683 = vsel %vm731, %v1649, 0
      %v1686 = vsel %vm731, %v1650, 0
      %v1689 = vsel %vm731, %v1651, 0
      %v1692 = vsel %vm731, %v1652, 0
      %v1695 = vsel %vm731, %v1653, 0
      %v1698 = vsel %vm731, %v1654, 0
      %v1701 = vsel %vm731, %v1655, 0
      %v1704 = vsel %vm731, %v1656, 0
      %v1707 = vsel %vm731, %v1657, 0
      %v1710 = vsel %vm731, %v1658, 0
      %v1713 = vsel %vm731, %v1659, 0
      %v1716 = vsel %vm731, %v1660, 0
      %v1719 = vsel %vm731, %v1661, 0
      %v1722 = vsel %vm731, %v1662, 0
      %v1725 = vsel %vm731, %v1663, 0
      %v1728 = vsel %vm731, %v1664, 0
      %v1731 = vsel %vm731, %v1665, 0
      %v1734 = vsel %vm731, %v1666, 0
      %v1737 = vsel %vm731, %v1667, 0
      %v1740 = vsel %vm731, %v1668, 0
      %v1743 = vsel %vm731, %v1669, 0
      %v1746 = vsel %vm731, %v1670, 0
      %v1749 = vsel %vm731, %v1671, 0
      %v1752 = vsel %vm731, %v1672, 0
      %v1755 = vsel %vm731, %v1673, 0
      %v1758 = vsel %vm731, %v1674, 0
      %v1761 = vsel %vm731, %v1675, 0
      %v1764 = vsel %vm731, %v1676, 0
      %v1767 = vsel %vm731, %v1677, 0
      %v1770 = vsel %vm731, %v1678, 0
      %v1773 = vsel %vm731, %v1679, 0
      %v1776 = vsel %vm731, %v1680, 0
      %1778 = vmatpush.msra.mxu0 0.0
      %1779 = vmatpush.msra.mxu0 0.0
      %1780 = vmatpush.msra.mxu0 0.0
      %1781 = vmatpush.msra.mxu0 0.0
      %1782 = vmatpush.msra.mxu0 0.0
      %1783 = vmatpush.msra.mxu0 0.0
      %1784 = vmatpush.msra.mxu0 0.0
      %1785 = vmatpush.msra.mxu0 0.0
      %1786 = vmatpush.msra.mxu0 0.0
      %1787 = vmatpush.msra.mxu0 0.0
      %1788 = vmatpush.msra.mxu0 0.0
      %1789 = vmatpush.msra.mxu0 0.0
      %1790 = vmatpush.msra.mxu0 0.0
      %1791 = vmatpush.msra.mxu0 0.0
      %1792 = vmatpush.msra.mxu0 0.0
      %1793 = vmatpush.msra.mxu0 %v1681
      %1794 = vmatmul.f32.gmra.mxu0 %v1683
      %v1795 = vpop.f32.mrf.mxu0
      %v1796 = vadd.f32 0.0, %v1795
      %1797 = vmatmul.f32.gmra.mxu0 %v1686
      %v1798 = vpop.f32.mrf.mxu0
      %v1799 = vadd.f32 0.0, %v1798
      %1800 = vmatmul.f32.gmra.mxu0 %v1689
      %v1801 = vpop.f32.mrf.mxu0
      %v1802 = vadd.f32 0.0, %v1801
      %1803 = vmatmul.f32.gmra.mxu0 %v1692
      %v1804 = vpop.f32.mrf.mxu0
      %v1805 = vadd.f32 0.0, %v1804
      %1806 = vmatmul.f32.gmra.mxu0 %v1695
      %v1807 = vpop.f32.mrf.mxu0
      %v1808 = vadd.f32 0.0, %v1807
      %1809 = vmatmul.f32.gmra.mxu0 %v1698
      %v1810 = vpop.f32.mrf.mxu0
      %v1811 = vadd.f32 0.0, %v1810
      %1812 = vmatmul.f32.gmra.mxu0 %v1701
      %v1813 = vpop.f32.mrf.mxu0
      %v1814 = vadd.f32 0.0, %v1813
      %1815 = vmatmul.f32.gmra.mxu0 %v1704
      %v1816 = vpop.f32.mrf.mxu0
      %v1817 = vadd.f32 0.0, %v1816
      %1818 = vmatmul.f32.gmra.mxu0 %v1707
      %v1819 = vpop.f32.mrf.mxu0
      %v1820 = vadd.f32 0.0, %v1819
      %1821 = vmatmul.f32.gmra.mxu0 %v1710
      %v1822 = vpop.f32.mrf.mxu0
      %v1823 = vadd.f32 0.0, %v1822
      %1824 = vmatmul.f32.gmra.mxu0 %v1713
      %v1825 = vpop.f32.mrf.mxu0
      %v1826 = vadd.f32 0.0, %v1825
      %1827 = vmatmul.f32.gmra.mxu0 %v1716
      %v1828 = vpop.f32.mrf.mxu0
      %v1829 = vadd.f32 0.0, %v1828
      %1830 = vmatmul.f32.gmra.mxu0 %v1719
      %v1831 = vpop.f32.mrf.mxu0
      %v1832 = vadd.f32 0.0, %v1831
      %1833 = vmatmul.f32.gmra.mxu0 %v1722
      %v1834 = vpop.f32.mrf.mxu0
      %v1835 = vadd.f32 0.0, %v1834
      %1836 = vmatmul.f32.gmra.mxu0 %v1725
      %v1837 = vpop.f32.mrf.mxu0
      %v1838 = vadd.f32 0.0, %v1837
      %1839 = vmatmul.f32.gmra.mxu0 %v1728
      %v1840 = vpop.f32.mrf.mxu0
      %v1841 = vadd.f32 0.0, %v1840
      %1842 = vmatmul.f32.gmra.mxu0 %v1731
      %v1843 = vpop.f32.mrf.mxu0
      %v1844 = vadd.f32 0.0, %v1843
      %1845 = vmatmul.f32.gmra.mxu0 %v1734
      %v1846 = vpop.f32.mrf.mxu0
      %v1847 = vadd.f32 0.0, %v1846
      %1848 = vmatmul.f32.gmra.mxu0 %v1737
      %v1849 = vpop.f32.mrf.mxu0
      %v1850 = vadd.f32 0.0, %v1849
      %1851 = vmatmul.f32.gmra.mxu0 %v1740
      %v1852 = vpop.f32.mrf.mxu0
      %v1853 = vadd.f32 0.0, %v1852
      %1854 = vmatmul.f32.gmra.mxu0 %v1743
      %v1855 = vpop.f32.mrf.mxu0
      %v1856 = vadd.f32 0.0, %v1855
      %1857 = vmatmul.f32.gmra.mxu0 %v1746
      %v1858 = vpop.f32.mrf.mxu0
      %v1859 = vadd.f32 0.0, %v1858
      %1860 = vmatmul.f32.gmra.mxu0 %v1749
      %v1861 = vpop.f32.mrf.mxu0
      %v1862 = vadd.f32 0.0, %v1861
      %1863 = vmatmul.f32.gmra.mxu0 %v1752
      %v1864 = vpop.f32.mrf.mxu0
      %v1865 = vadd.f32 0.0, %v1864
      %1866 = vmatmul.f32.gmra.mxu0 %v1755
      %v1867 = vpop.f32.mrf.mxu0
      %v1868 = vadd.f32 0.0, %v1867
      %1869 = vmatmul.f32.gmra.mxu0 %v1758
      %v1870 = vpop.f32.mrf.mxu0
      %v1871 = vadd.f32 0.0, %v1870
      %1872 = vmatmul.f32.gmra.mxu0 %v1761
      %v1873 = vpop.f32.mrf.mxu0
      %v1874 = vadd.f32 0.0, %v1873
      %1875 = vmatmul.f32.gmra.mxu0 %v1764
      %v1876 = vpop.f32.mrf.mxu0
      %v1877 = vadd.f32 0.0, %v1876
      %1878 = vmatmul.f32.gmra.mxu0 %v1767
      %v1879 = vpop.f32.mrf.mxu0
      %v1880 = vadd.f32 0.0, %v1879
      %1881 = vmatmul.f32.gmra.mxu0 %v1770
      %v1882 = vpop.f32.mrf.mxu0
      %v1883 = vadd.f32 0.0, %v1882
      %1884 = vmatmul.f32.gmra.mxu0 %v1773
      %v1885 = vpop.f32.mrf.mxu0
      %v1886 = vadd.f32 0.0, %v1885
      %1887 = vmatmul.f32.gmra.mxu0 %v1776
      %v1888 = vpop.f32.mrf.mxu0
      %v1889 = vadd.f32 0.0, %v1888
      %1890 = vdwg.mxu0
      %v1891 = vadd.f32 %v1553, %v1796
      %v1892 = vadd.f32 %v1554, %v1799
      %v1893 = vadd.f32 %v1555, %v1802
      %v1894 = vadd.f32 %v1556, %v1805
      %v1895 = vadd.f32 %v1557, %v1808
      %v1896 = vadd.f32 %v1558, %v1811
      %v1897 = vadd.f32 %v1559, %v1814
      %v1898 = vadd.f32 %v1560, %v1817
      %v1899 = vadd.f32 %v1561, %v1820
      %v1900 = vadd.f32 %v1562, %v1823
      %v1901 = vadd.f32 %v1563, %v1826
      %v1902 = vadd.f32 %v1564, %v1829
      %v1903 = vadd.f32 %v1565, %v1832
      %v1904 = vadd.f32 %v1566, %v1835
      %v1905 = vadd.f32 %v1567, %v1838
      %v1906 = vadd.f32 %v1568, %v1841
      %v1907 = vadd.f32 %v1569, %v1844
      %v1908 = vadd.f32 %v1570, %v1847
      %v1909 = vadd.f32 %v1571, %v1850
      %v1910 = vadd.f32 %v1572, %v1853
      %v1911 = vadd.f32 %v1573, %v1856
      %v1912 = vadd.f32 %v1574, %v1859
      %v1913 = vadd.f32 %v1575, %v1862
      %v1914 = vadd.f32 %v1576, %v1865
      %v1915 = vadd.f32 %v1577, %v1868
      %v1916 = vadd.f32 %v1578, %v1871
      %v1917 = vadd.f32 %v1579, %v1874
      %v1918 = vadd.f32 %v1580, %v1877
      %v1919 = vadd.f32 %v1581, %v1880
      %v1920 = vadd.f32 %v1582, %v1883
      %v1921 = vadd.f32 %v1583, %v1886
      %v1922 = vadd.f32 %v1584, %v1889
      %v1923 = vld [vmem:[%s1 + $0x20] sm:$0xff]
      %v1925 = vsel %vm731, %v215, 0
      %v1928 = vsel %vm731, %v216, 0
      %v1931 = vsel %vm731, %v217, 0
      %v1934 = vsel %vm731, %v218, 0
      %v1937 = vsel %vm731, %v219, 0
      %v1940 = vsel %vm731, %v220, 0
      %v1943 = vsel %vm731, %v221, 0
      %v1946 = vsel %vm731, %v222, 0
      %v1949 = vsel %vm731, %v223, 0
      %v1952 = vsel %vm731, %v224, 0
      %v1955 = vsel %vm731, %v225, 0
      %v1958 = vsel %vm731, %v226, 0
      %v1961 = vsel %vm731, %v227, 0
      %v1964 = vsel %vm731, %v228, 0
      %v1967 = vsel %vm731, %v229, 0
      %v1970 = vsel %vm731, %v230, 0
      %v1973 = vsel %vm731, %v231, 0
      %v1976 = vsel %vm731, %v232, 0
      %v1979 = vsel %vm731, %v233, 0
      %v1982 = vsel %vm731, %v234, 0
      %v1985 = vsel %vm731, %v235, 0
      %v1988 = vsel %vm731, %v236, 0
      %v1991 = vsel %vm731, %v237, 0
      %v1994 = vsel %vm731, %v238, 0
      %v1997 = vsel %vm731, %v239, 0
      %v2000 = vsel %vm731, %v240, 0
      %v2003 = vsel %vm731, %v241, 0
      %v2006 = vsel %vm731, %v242, 0
      %v2009 = vsel %vm731, %v243, 0
      %v2012 = vsel %vm731, %v244, 0
      %v2015 = vsel %vm731, %v245, 0
      %v2018 = vsel %vm731, %v246, 0
      %2020 = vmatpush.msra.mxu0 0.0
      %2021 = vmatpush.msra.mxu0 0.0
      %2022 = vmatpush.msra.mxu0 0.0
      %2023 = vmatpush.msra.mxu0 0.0
      %2024 = vmatpush.msra.mxu0 0.0
      %2025 = vmatpush.msra.mxu0 0.0
      %2026 = vmatpush.msra.mxu0 0.0
      %2027 = vmatpush.msra.mxu0 0.0
      %2028 = vmatpush.msra.mxu0 0.0
      %2029 = vmatpush.msra.mxu0 0.0
      %2030 = vmatpush.msra.mxu0 0.0
      %2031 = vmatpush.msra.mxu0 0.0
      %2032 = vmatpush.msra.mxu0 0.0
      %2033 = vmatpush.msra.mxu0 0.0
      %2034 = vmatpush.msra.mxu0 0.0
      %2035 = vmatpush.msra.mxu0 %v1923
      %2036 = vmatmul.f32.gmra.mxu0 %v1925
      %v2037 = vpop.f32.mrf.mxu0
      %v2038 = vadd.f32 0.0, %v2037
      %2039 = vmatmul.f32.gmra.mxu0 %v1928
      %v2040 = vpop.f32.mrf.mxu0
      %v2041 = vadd.f32 0.0, %v2040
      %2042 = vmatmul.f32.gmra.mxu0 %v1931
      %v2043 = vpop.f32.mrf.mxu0
      %v2044 = vadd.f32 0.0, %v2043
      %2045 = vmatmul.f32.gmra.mxu0 %v1934
      %v2046 = vpop.f32.mrf.mxu0
      %v2047 = vadd.f32 0.0, %v2046
      %2048 = vmatmul.f32.gmra.mxu0 %v1937
      %v2049 = vpop.f32.mrf.mxu0
      %v2050 = vadd.f32 0.0, %v2049
      %2051 = vmatmul.f32.gmra.mxu0 %v1940
      %v2052 = vpop.f32.mrf.mxu0
      %v2053 = vadd.f32 0.0, %v2052
      %2054 = vmatmul.f32.gmra.mxu0 %v1943
      %v2055 = vpop.f32.mrf.mxu0
      %v2056 = vadd.f32 0.0, %v2055
      %2057 = vmatmul.f32.gmra.mxu0 %v1946
      %v2058 = vpop.f32.mrf.mxu0
      %v2059 = vadd.f32 0.0, %v2058
      %2060 = vmatmul.f32.gmra.mxu0 %v1949
      %v2061 = vpop.f32.mrf.mxu0
      %v2062 = vadd.f32 0.0, %v2061
      %2063 = vmatmul.f32.gmra.mxu0 %v1952
      %v2064 = vpop.f32.mrf.mxu0
      %v2065 = vadd.f32 0.0, %v2064
      %2066 = vmatmul.f32.gmra.mxu0 %v1955
      %v2067 = vpop.f32.mrf.mxu0
      %v2068 = vadd.f32 0.0, %v2067
      %2069 = vmatmul.f32.gmra.mxu0 %v1958
      %v2070 = vpop.f32.mrf.mxu0
      %v2071 = vadd.f32 0.0, %v2070
      %2072 = vmatmul.f32.gmra.mxu0 %v1961
      %v2073 = vpop.f32.mrf.mxu0
      %v2074 = vadd.f32 0.0, %v2073
      %2075 = vmatmul.f32.gmra.mxu0 %v1964
      %v2076 = vpop.f32.mrf.mxu0
      %v2077 = vadd.f32 0.0, %v2076
      %2078 = vmatmul.f32.gmra.mxu0 %v1967
      %v2079 = vpop.f32.mrf.mxu0
      %v2080 = vadd.f32 0.0, %v2079
      %2081 = vmatmul.f32.gmra.mxu0 %v1970
      %v2082 = vpop.f32.mrf.mxu0
      %v2083 = vadd.f32 0.0, %v2082
      %2084 = vmatmul.f32.gmra.mxu0 %v1973
      %v2085 = vpop.f32.mrf.mxu0
      %v2086 = vadd.f32 0.0, %v2085
      %2087 = vmatmul.f32.gmra.mxu0 %v1976
      %v2088 = vpop.f32.mrf.mxu0
      %v2089 = vadd.f32 0.0, %v2088
      %2090 = vmatmul.f32.gmra.mxu0 %v1979
      %v2091 = vpop.f32.mrf.mxu0
      %v2092 = vadd.f32 0.0, %v2091
      %2093 = vmatmul.f32.gmra.mxu0 %v1982
      %v2094 = vpop.f32.mrf.mxu0
      %v2095 = vadd.f32 0.0, %v2094
      %2096 = vmatmul.f32.gmra.mxu0 %v1985
      %v2097 = vpop.f32.mrf.mxu0
      %v2098 = vadd.f32 0.0, %v2097
      %2099 = vmatmul.f32.gmra.mxu0 %v1988
      %v2100 = vpop.f32.mrf.mxu0
      %v2101 = vadd.f32 0.0, %v2100
      %2102 = vmatmul.f32.gmra.mxu0 %v1991
      %v2103 = vpop.f32.mrf.mxu0
      %v2104 = vadd.f32 0.0, %v2103
      %2105 = vmatmul.f32.gmra.mxu0 %v1994
      %v2106 = vpop.f32.mrf.mxu0
      %v2107 = vadd.f32 0.0, %v2106
      %2108 = vmatmul.f32.gmra.mxu0 %v1997
      %v2109 = vpop.f32.mrf.mxu0
      %v2110 = vadd.f32 0.0, %v2109
      %2111 = vmatmul.f32.gmra.mxu0 %v2000
      %v2112 = vpop.f32.mrf.mxu0
      %v2113 = vadd.f32 0.0, %v2112
      %2114 = vmatmul.f32.gmra.mxu0 %v2003
      %v2115 = vpop.f32.mrf.mxu0
      %v2116 = vadd.f32 0.0, %v2115
      %2117 = vmatmul.f32.gmra.mxu0 %v2006
      %v2118 = vpop.f32.mrf.mxu0
      %v2119 = vadd.f32 0.0, %v2118
      %2120 = vmatmul.f32.gmra.mxu0 %v2009
      %v2121 = vpop.f32.mrf.mxu0
      %v2122 = vadd.f32 0.0, %v2121
      %2123 = vmatmul.f32.gmra.mxu0 %v2012
      %v2124 = vpop.f32.mrf.mxu0
      %v2125 = vadd.f32 0.0, %v2124
      %2126 = vmatmul.f32.gmra.mxu0 %v2015
      %v2127 = vpop.f32.mrf.mxu0
      %v2128 = vadd.f32 0.0, %v2127
      %2129 = vmatmul.f32.gmra.mxu0 %v2018
      %v2130 = vpop.f32.mrf.mxu0
      %v2131 = vadd.f32 0.0, %v2130
      %2132 = vdwg.mxu0
      %v2133 = vadd.f32 %v1891, %v2038
      %v2134 = vadd.f32 %v1892, %v2041
      %v2135 = vadd.f32 %v1893, %v2044
      %v2136 = vadd.f32 %v1894, %v2047
      %v2137 = vadd.f32 %v1895, %v2050
      %v2138 = vadd.f32 %v1896, %v2053
      %v2139 = vadd.f32 %v1897, %v2056
      %v2140 = vadd.f32 %v1898, %v2059
      %v2141 = vadd.f32 %v1899, %v2062
      %v2142 = vadd.f32 %v1900, %v2065
      %v2143 = vadd.f32 %v1901, %v2068
      %v2144 = vadd.f32 %v1902, %v2071
      %v2145 = vadd.f32 %v1903, %v2074
      %v2146 = vadd.f32 %v1904, %v2077
      %v2147 = vadd.f32 %v1905, %v2080
      %v2148 = vadd.f32 %v1906, %v2083
      %v2149 = vadd.f32 %v1907, %v2086
      %v2150 = vadd.f32 %v1908, %v2089
      %v2151 = vadd.f32 %v1909, %v2092
      %v2152 = vadd.f32 %v1910, %v2095
      %v2153 = vadd.f32 %v1911, %v2098
      %v2154 = vadd.f32 %v1912, %v2101
      %v2155 = vadd.f32 %v1913, %v2104
      %v2156 = vadd.f32 %v1914, %v2107
      %v2157 = vadd.f32 %v1915, %v2110
      %v2158 = vadd.f32 %v1916, %v2113
      %v2159 = vadd.f32 %v1917, %v2116
      %v2160 = vadd.f32 %v1918, %v2119
      %v2161 = vadd.f32 %v1919, %v2122
      %v2162 = vadd.f32 %v1920, %v2125
      %v2163 = vadd.f32 %v1921, %v2128
      %v2164 = vadd.f32 %v1922, %v2131
      %v2165 = vsel %vm408, 1, 0
      %v2166 = vsel %vm409, 1, 0
      %v2167 = vsel %vm410, 1, 0
      %v2168 = vsel %vm411, 1, 0
      %v2169 = vsel %vm412, 1, 0
      %v2170 = vsel %vm413, 1, 0
      %v2171 = vsel %vm414, 1, 0
      %v2172 = vsel %vm415, 1, 0
      %v2173 = vsel %vm416, 1, 0
      %v2174 = vsel %vm417, 1, 0
      %v2175 = vsel %vm418, 1, 0
      %v2176 = vsel %vm419, 1, 0
      %v2177 = vsel %vm420, 1, 0
      %v2178 = vsel %vm421, 1, 0
      %v2179 = vsel %vm422, 1, 0
      %v2180 = vsel %vm423, 1, 0
      %v2181 = vsel %vm424, 1, 0
      %v2182 = vsel %vm425, 1, 0
      %v2183 = vsel %vm426, 1, 0
      %v2184 = vsel %vm427, 1, 0
      %v2185 = vsel %vm428, 1, 0
      %v2186 = vsel %vm429, 1, 0
      %v2187 = vsel %vm430, 1, 0
      %v2188 = vsel %vm431, 1, 0
      %v2189 = vsel %vm432, 1, 0
      %v2190 = vsel %vm433, 1, 0
      %v2191 = vsel %vm434, 1, 0
      %v2192 = vsel %vm435, 1, 0
      %v2193 = vsel %vm436, 1, 0
      %v2194 = vsel %vm437, 1, 0
      %v2195 = vsel %vm438, 1, 0
      %v2196 = vsel %vm439, 1, 0
      %vm2197 = vcmp.eq.s32.totalorder %v2165, 1
      %vm2198 = vcmp.eq.s32.totalorder %v2166, 1
      %vm2199 = vcmp.eq.s32.totalorder %v2167, 1
      %vm2200 = vcmp.eq.s32.totalorder %v2168, 1
      %vm2201 = vcmp.eq.s32.totalorder %v2169, 1
      %vm2202 = vcmp.eq.s32.totalorder %v2170, 1
      %vm2203 = vcmp.eq.s32.totalorder %v2171, 1
      %vm2204 = vcmp.eq.s32.totalorder %v2172, 1
      %vm2205 = vcmp.eq.s32.totalorder %v2173, 1
      %vm2206 = vcmp.eq.s32.totalorder %v2174, 1
      %vm2207 = vcmp.eq.s32.totalorder %v2175, 1
      %vm2208 = vcmp.eq.s32.totalorder %v2176, 1
      %vm2209 = vcmp.eq.s32.totalorder %v2177, 1
      %vm2210 = vcmp.eq.s32.totalorder %v2178, 1
      %vm2211 = vcmp.eq.s32.totalorder %v2179, 1
      %vm2212 = vcmp.eq.s32.totalorder %v2180, 1
      %vm2213 = vcmp.eq.s32.totalorder %v2181, 1
      %vm2214 = vcmp.eq.s32.totalorder %v2182, 1
      %vm2215 = vcmp.eq.s32.totalorder %v2183, 1
      %vm2216 = vcmp.eq.s32.totalorder %v2184, 1
      %vm2217 = vcmp.eq.s32.totalorder %v2185, 1
      %vm2218 = vcmp.eq.s32.totalorder %v2186, 1
      %vm2219 = vcmp.eq.s32.totalorder %v2187, 1
      %vm2220 = vcmp.eq.s32.totalorder %v2188, 1
      %vm2221 = vcmp.eq.s32.totalorder %v2189, 1
      %vm2222 = vcmp.eq.s32.totalorder %v2190, 1
      %vm2223 = vcmp.eq.s32.totalorder %v2191, 1
      %vm2224 = vcmp.eq.s32.totalorder %v2192, 1
      %vm2225 = vcmp.eq.s32.totalorder %v2193, 1
      %vm2226 = vcmp.eq.s32.totalorder %v2194, 1
      %vm2227 = vcmp.eq.s32.totalorder %v2195, 1
      %vm2228 = vcmp.eq.s32.totalorder %v2196, 1
      %v2229 = vsel %vm2197, %v1213, 0.0
      %v2230 = vsel %vm2198, %v1212, 0.0
      %v2231 = vsel %vm2199, %v1211, 0.0
      %v2232 = vsel %vm2200, %v1210, 0.0
      %v2233 = vsel %vm2201, %v1209, 0.0
      %v2234 = vsel %vm2202, %v1208, 0.0
      %v2235 = vsel %vm2203, %v1207, 0.0
      %v2236 = vsel %vm2204, %v1206, 0.0
      %v2237 = vsel %vm2205, %v1205, 0.0
      %v2238 = vsel %vm2206, %v1204, 0.0
      %v2239 = vsel %vm2207, %v1203, 0.0
      %v2240 = vsel %vm2208, %v1202, 0.0
      %v2241 = vsel %vm2209, %v1201, 0.0
      %v2242 = vsel %vm2210, %v1200, 0.0
      %v2243 = vsel %vm2211, %v1199, 0.0
      %v2244 = vsel %vm2212, %v1198, 0.0
      %v2245 = vsel %vm2213, %v1197, 0.0
      %v2246 = vsel %vm2214, %v1196, 0.0
      %v2247 = vsel %vm2215, %v1195, 0.0
      %v2248 = vsel %vm2216, %v1194, 0.0
      %v2249 = vsel %vm2217, %v1193, 0.0
      %v2250 = vsel %vm2218, %v1192, 0.0
      %v2251 = vsel %vm2219, %v1191, 0.0
      %v2252 = vsel %vm2220, %v1190, 0.0
      %v2253 = vsel %vm2221, %v1189, 0.0
      %v2254 = vsel %vm2222, %v1188, 0.0
      %v2255 = vsel %vm2223, %v1187, 0.0
      %v2256 = vsel %vm2224, %v1186, 0.0
      %v2257 = vsel %vm2225, %v1185, 0.0
      %v2258 = vsel %vm2226, %v1184, 0.0
      %v2259 = vsel %vm2227, %v1183, 0.0
      %v2260 = vsel %vm2228, %v1214, 0.0
      %v2261 = vld [vmem:[%s1 + $0x28] sm:$0xff]
      %v2263 = vsel %vm731, %v2229, 0
      %v2266 = vsel %vm731, %v2230, 0
      %v2269 = vsel %vm731, %v2231, 0
      %v2272 = vsel %vm731, %v2232, 0
      %v2275 = vsel %vm731, %v2233, 0
      %v2278 = vsel %vm731, %v2234, 0
      %v2281 = vsel %vm731, %v2235, 0
      %v2284 = vsel %vm731, %v2236, 0
      %v2287 = vsel %vm731, %v2237, 0
      %v2290 = vsel %vm731, %v2238, 0
      %v2293 = vsel %vm731, %v2239, 0
      %v2296 = vsel %vm731, %v2240, 0
      %v2299 = vsel %vm731, %v2241, 0
      %v2302 = vsel %vm731, %v2242, 0
      %v2305 = vsel %vm731, %v2243, 0
      %v2308 = vsel %vm731, %v2244, 0
      %v2311 = vsel %vm731, %v2245, 0
      %v2314 = vsel %vm731, %v2246, 0
      %v2317 = vsel %vm731, %v2247, 0
      %v2320 = vsel %vm731, %v2248, 0
      %v2323 = vsel %vm731, %v2249, 0
      %v2326 = vsel %vm731, %v2250, 0
      %v2329 = vsel %vm731, %v2251, 0
      %v2332 = vsel %vm731, %v2252, 0
      %v2335 = vsel %vm731, %v2253, 0
      %v2338 = vsel %vm731, %v2254, 0
      %v2341 = vsel %vm731, %v2255, 0
      %v2344 = vsel %vm731, %v2256, 0
      %v2347 = vsel %vm731, %v2257, 0
      %v2350 = vsel %vm731, %v2258, 0
      %v2353 = vsel %vm731, %v2259, 0
      %v2356 = vsel %vm731, %v2260, 0
      %2358 = vmatpush.msra.mxu0 0.0
      %2359 = vmatpush.msra.mxu0 0.0
      %2360 = vmatpush.msra.mxu0 0.0
      %2361 = vmatpush.msra.mxu0 0.0
      %2362 = vmatpush.msra.mxu0 0.0
      %2363 = vmatpush.msra.mxu0 0.0
      %2364 = vmatpush.msra.mxu0 0.0
      %2365 = vmatpush.msra.mxu0 0.0
      %2366 = vmatpush.msra.mxu0 0.0
      %2367 = vmatpush.msra.mxu0 0.0
      %2368 = vmatpush.msra.mxu0 0.0
      %2369 = vmatpush.msra.mxu0 0.0
      %2370 = vmatpush.msra.mxu0 0.0
      %2371 = vmatpush.msra.mxu0 0.0
      %2372 = vmatpush.msra.mxu0 0.0
      %2373 = vmatpush.msra.mxu0 %v2261
      %2374 = vmatmul.f32.gmra.mxu0 %v2263
      %v2375 = vpop.f32.mrf.mxu0
      %v2376 = vadd.f32 0.0, %v2375
      %2377 = vmatmul.f32.gmra.mxu0 %v2266
      %v2378 = vpop.f32.mrf.mxu0
      %v2379 = vadd.f32 0.0, %v2378
      %2380 = vmatmul.f32.gmra.mxu0 %v2269
      %v2381 = vpop.f32.mrf.mxu0
      %v2382 = vadd.f32 0.0, %v2381
      %2383 = vmatmul.f32.gmra.mxu0 %v2272
      %v2384 = vpop.f32.mrf.mxu0
      %v2385 = vadd.f32 0.0, %v2384
      %2386 = vmatmul.f32.gmra.mxu0 %v2275
      %v2387 = vpop.f32.mrf.mxu0
      %v2388 = vadd.f32 0.0, %v2387
      %2389 = vmatmul.f32.gmra.mxu0 %v2278
      %v2390 = vpop.f32.mrf.mxu0
      %v2391 = vadd.f32 0.0, %v2390
      %2392 = vmatmul.f32.gmra.mxu0 %v2281
      %v2393 = vpop.f32.mrf.mxu0
      %v2394 = vadd.f32 0.0, %v2393
      %2395 = vmatmul.f32.gmra.mxu0 %v2284
      %v2396 = vpop.f32.mrf.mxu0
      %v2397 = vadd.f32 0.0, %v2396
      %2398 = vmatmul.f32.gmra.mxu0 %v2287
      %v2399 = vpop.f32.mrf.mxu0
      %v2400 = vadd.f32 0.0, %v2399
      %2401 = vmatmul.f32.gmra.mxu0 %v2290
      %v2402 = vpop.f32.mrf.mxu0
      %v2403 = vadd.f32 0.0, %v2402
      %2404 = vmatmul.f32.gmra.mxu0 %v2293
      %v2405 = vpop.f32.mrf.mxu0
      %v2406 = vadd.f32 0.0, %v2405
      %2407 = vmatmul.f32.gmra.mxu0 %v2296
      %v2408 = vpop.f32.mrf.mxu0
      %v2409 = vadd.f32 0.0, %v2408
      %2410 = vmatmul.f32.gmra.mxu0 %v2299
      %v2411 = vpop.f32.mrf.mxu0
      %v2412 = vadd.f32 0.0, %v2411
      %2413 = vmatmul.f32.gmra.mxu0 %v2302
      %v2414 = vpop.f32.mrf.mxu0
      %v2415 = vadd.f32 0.0, %v2414
      %2416 = vmatmul.f32.gmra.mxu0 %v2305
      %v2417 = vpop.f32.mrf.mxu0
      %v2418 = vadd.f32 0.0, %v2417
      %2419 = vmatmul.f32.gmra.mxu0 %v2308
      %v2420 = vpop.f32.mrf.mxu0
      %v2421 = vadd.f32 0.0, %v2420
      %2422 = vmatmul.f32.gmra.mxu0 %v2311
      %v2423 = vpop.f32.mrf.mxu0
      %v2424 = vadd.f32 0.0, %v2423
      %2425 = vmatmul.f32.gmra.mxu0 %v2314
      %v2426 = vpop.f32.mrf.mxu0
      %v2427 = vadd.f32 0.0, %v2426
      %2428 = vmatmul.f32.gmra.mxu0 %v2317
      %v2429 = vpop.f32.mrf.mxu0
      %v2430 = vadd.f32 0.0, %v2429
      %2431 = vmatmul.f32.gmra.mxu0 %v2320
      %v2432 = vpop.f32.mrf.mxu0
      %v2433 = vadd.f32 0.0, %v2432
      %2434 = vmatmul.f32.gmra.mxu0 %v2323
      %v2435 = vpop.f32.mrf.mxu0
      %v2436 = vadd.f32 0.0, %v2435
      %2437 = vmatmul.f32.gmra.mxu0 %v2326
      %v2438 = vpop.f32.mrf.mxu0
      %v2439 = vadd.f32 0.0, %v2438
      %2440 = vmatmul.f32.gmra.mxu0 %v2329
      %v2441 = vpop.f32.mrf.mxu0
      %v2442 = vadd.f32 0.0, %v2441
      %2443 = vmatmul.f32.gmra.mxu0 %v2332
      %v2444 = vpop.f32.mrf.mxu0
      %v2445 = vadd.f32 0.0, %v2444
      %2446 = vmatmul.f32.gmra.mxu0 %v2335
      %v2447 = vpop.f32.mrf.mxu0
      %v2448 = vadd.f32 0.0, %v2447
      %2449 = vmatmul.f32.gmra.mxu0 %v2338
      %v2450 = vpop.f32.mrf.mxu0
      %v2451 = vadd.f32 0.0, %v2450
      %2452 = vmatmul.f32.gmra.mxu0 %v2341
      %v2453 = vpop.f32.mrf.mxu0
      %v2454 = vadd.f32 0.0, %v2453
      %2455 = vmatmul.f32.gmra.mxu0 %v2344
      %v2456 = vpop.f32.mrf.mxu0
      %v2457 = vadd.f32 0.0, %v2456
      %2458 = vmatmul.f32.gmra.mxu0 %v2347
      %v2459 = vpop.f32.mrf.mxu0
      %v2460 = vadd.f32 0.0, %v2459
      %2461 = vmatmul.f32.gmra.mxu0 %v2350
      %v2462 = vpop.f32.mrf.mxu0
      %v2463 = vadd.f32 0.0, %v2462
      %2464 = vmatmul.f32.gmra.mxu0 %v2353
      %v2465 = vpop.f32.mrf.mxu0
      %v2466 = vadd.f32 0.0, %v2465
      %2467 = vmatmul.f32.gmra.mxu0 %v2356
      %v2468 = vpop.f32.mrf.mxu0
      %v2469 = vadd.f32 0.0, %v2468
      %2470 = vdwg.mxu0
      %v2471 = vadd.f32 %v2133, %v2376
      %v2472 = vadd.f32 %v2134, %v2379
      %v2473 = vadd.f32 %v2135, %v2382
      %v2474 = vadd.f32 %v2136, %v2385
      %v2475 = vadd.f32 %v2137, %v2388
      %v2476 = vadd.f32 %v2138, %v2391
      %v2477 = vadd.f32 %v2139, %v2394
      %v2478 = vadd.f32 %v2140, %v2397
      %v2479 = vadd.f32 %v2141, %v2400
      %v2480 = vadd.f32 %v2142, %v2403
      %v2481 = vadd.f32 %v2143, %v2406
      %v2482 = vadd.f32 %v2144, %v2409
      %v2483 = vadd.f32 %v2145, %v2412
      %v2484 = vadd.f32 %v2146, %v2415
      %v2485 = vadd.f32 %v2147, %v2418
      %v2486 = vadd.f32 %v2148, %v2421
      %v2487 = vadd.f32 %v2149, %v2424
      %v2488 = vadd.f32 %v2150, %v2427
      %v2489 = vadd.f32 %v2151, %v2430
      %v2490 = vadd.f32 %v2152, %v2433
      %v2491 = vadd.f32 %v2153, %v2436
      %v2492 = vadd.f32 %v2154, %v2439
      %v2493 = vadd.f32 %v2155, %v2442
      %v2494 = vadd.f32 %v2156, %v2445
      %v2495 = vadd.f32 %v2157, %v2448
      %v2496 = vadd.f32 %v2158, %v2451
      %v2497 = vadd.f32 %v2159, %v2454
      %v2498 = vadd.f32 %v2160, %v2457
      %v2499 = vadd.f32 %v2161, %v2460
      %v2500 = vadd.f32 %v2162, %v2463
      %v2501 = vadd.f32 %v2163, %v2466
      %v2502 = vadd.f32 %v2164, %v2469
      %vm2503 = vmand %vm344, %vm376
      %vm2504 = vmand %vm345, %vm377
      %vm2505 = vmand %vm346, %vm378
      %vm2506 = vmand %vm347, %vm379
      %vm2507 = vmand %vm348, %vm380
      %vm2508 = vmand %vm349, %vm381
      %vm2509 = vmand %vm350, %vm382
      %vm2510 = vmand %vm351, %vm383
      %vm2511 = vmand %vm352, %vm384
      %vm2512 = vmand %vm353, %vm385
      %vm2513 = vmand %vm354, %vm386
      %vm2514 = vmand %vm355, %vm387
      %vm2515 = vmand %vm356, %vm388
      %vm2516 = vmand %vm357, %vm389
      %vm2517 = vmand %vm358, %vm390
      %vm2518 = vmand %vm359, %vm391
      %vm2519 = vmand %vm360, %vm392
      %vm2520 = vmand %vm361, %vm393
      %vm2521 = vmand %vm362, %vm394
      %vm2522 = vmand %vm363, %vm395
      %vm2523 = vmand %vm364, %vm396
      %vm2524 = vmand %vm365, %vm397
      %vm2525 = vmand %vm366, %vm398
      %vm2526 = vmand %vm367, %vm399
      %vm2527 = vmand %vm368, %vm400
      %vm2528 = vmand %vm369, %vm401
      %vm2529 = vmand %vm370, %vm402
      %vm2530 = vmand %vm371, %vm403
      %vm2531 = vmand %vm372, %vm404
      %vm2532 = vmand %vm373, %vm405
      %vm2533 = vmand %vm374, %vm406
      %vm2534 = vmand %vm375, %vm407
      %v2535 = vsel %vm2503, 1, 0
      %v2536 = vsel %vm2504, 1, 0
      %v2537 = vsel %vm2505, 1, 0
      %v2538 = vsel %vm2506, 1, 0
      %v2539 = vsel %vm2507, 1, 0
      %v2540 = vsel %vm2508, 1, 0
      %v2541 = vsel %vm2509, 1, 0
      %v2542 = vsel %vm2510, 1, 0
      %v2543 = vsel %vm2511, 1, 0
      %v2544 = vsel %vm2512, 1, 0
      %v2545 = vsel %vm2513, 1, 0
      %v2546 = vsel %vm2514, 1, 0
      %v2547 = vsel %vm2515, 1, 0
      %v2548 = vsel %vm2516, 1, 0
      %v2549 = vsel %vm2517, 1, 0
      %v2550 = vsel %vm2518, 1, 0
      %v2551 = vsel %vm2519, 1, 0
      %v2552 = vsel %vm2520, 1, 0
      %v2553 = vsel %vm2521, 1, 0
      %v2554 = vsel %vm2522, 1, 0
      %v2555 = vsel %vm2523, 1, 0
      %v2556 = vsel %vm2524, 1, 0
      %v2557 = vsel %vm2525, 1, 0
      %v2558 = vsel %vm2526, 1, 0
      %v2559 = vsel %vm2527, 1, 0
      %v2560 = vsel %vm2528, 1, 0
      %v2561 = vsel %vm2529, 1, 0
      %v2562 = vsel %vm2530, 1, 0
      %v2563 = vsel %vm2531, 1, 0
      %v2564 = vsel %vm2532, 1, 0
      %v2565 = vsel %vm2533, 1, 0
      %v2566 = vsel %vm2534, 1, 0
      %vm2567 = vcmp.eq.s32.totalorder %v2535, 1
      %vm2568 = vcmp.eq.s32.totalorder %v2536, 1
      %vm2569 = vcmp.eq.s32.totalorder %v2537, 1
      %vm2570 = vcmp.eq.s32.totalorder %v2538, 1
      %vm2571 = vcmp.eq.s32.totalorder %v2539, 1
      %vm2572 = vcmp.eq.s32.totalorder %v2540, 1
      %vm2573 = vcmp.eq.s32.totalorder %v2541, 1
      %vm2574 = vcmp.eq.s32.totalorder %v2542, 1
      %vm2575 = vcmp.eq.s32.totalorder %v2543, 1
      %vm2576 = vcmp.eq.s32.totalorder %v2544, 1
      %vm2577 = vcmp.eq.s32.totalorder %v2545, 1
      %vm2578 = vcmp.eq.s32.totalorder %v2546, 1
      %vm2579 = vcmp.eq.s32.totalorder %v2547, 1
      %vm2580 = vcmp.eq.s32.totalorder %v2548, 1
      %vm2581 = vcmp.eq.s32.totalorder %v2549, 1
      %vm2582 = vcmp.eq.s32.totalorder %v2550, 1
      %vm2583 = vcmp.eq.s32.totalorder %v2551, 1
      %vm2584 = vcmp.eq.s32.totalorder %v2552, 1
      %vm2585 = vcmp.eq.s32.totalorder %v2553, 1
      %vm2586 = vcmp.eq.s32.totalorder %v2554, 1
      %vm2587 = vcmp.eq.s32.totalorder %v2555, 1
      %vm2588 = vcmp.eq.s32.totalorder %v2556, 1
      %vm2589 = vcmp.eq.s32.totalorder %v2557, 1
      %vm2590 = vcmp.eq.s32.totalorder %v2558, 1
      %vm2591 = vcmp.eq.s32.totalorder %v2559, 1
      %vm2592 = vcmp.eq.s32.totalorder %v2560, 1
      %vm2593 = vcmp.eq.s32.totalorder %v2561, 1
      %vm2594 = vcmp.eq.s32.totalorder %v2562, 1
      %vm2595 = vcmp.eq.s32.totalorder %v2563, 1
      %vm2596 = vcmp.eq.s32.totalorder %v2564, 1
      %vm2597 = vcmp.eq.s32.totalorder %v2565, 1
      %vm2598 = vcmp.eq.s32.totalorder %v2566, 1
      %v2599 = vsel %vm2567, %v502, 0.0
      %v2600 = vsel %vm2568, %v501, 0.0
      %v2601 = vsel %vm2569, %v500, 0.0
      %v2602 = vsel %vm2570, %v499, 0.0
      %v2603 = vsel %vm2571, %v498, 0.0
      %v2604 = vsel %vm2572, %v497, 0.0
      %v2605 = vsel %vm2573, %v496, 0.0
      %v2606 = vsel %vm2574, %v495, 0.0
      %v2607 = vsel %vm2575, %v494, 0.0
      %v2608 = vsel %vm2576, %v493, 0.0
      %v2609 = vsel %vm2577, %v492, 0.0
      %v2610 = vsel %vm2578, %v491, 0.0
      %v2611 = vsel %vm2579, %v490, 0.0
      %v2612 = vsel %vm2580, %v489, 0.0
      %v2613 = vsel %vm2581, %v488, 0.0
      %v2614 = vsel %vm2582, %v487, 0.0
      %v2615 = vsel %vm2583, %v486, 0.0
      %v2616 = vsel %vm2584, %v485, 0.0
      %v2617 = vsel %vm2585, %v484, 0.0
      %v2618 = vsel %vm2586, %v483, 0.0
      %v2619 = vsel %vm2587, %v482, 0.0
      %v2620 = vsel %vm2588, %v481, 0.0
      %v2621 = vsel %vm2589, %v480, 0.0
      %v2622 = vsel %vm2590, %v479, 0.0
      %v2623 = vsel %vm2591, %v478, 0.0
      %v2624 = vsel %vm2592, %v477, 0.0
      %v2625 = vsel %vm2593, %v476, 0.0
      %v2626 = vsel %vm2594, %v475, 0.0
      %v2627 = vsel %vm2595, %v474, 0.0
      %v2628 = vsel %vm2596, %v473, 0.0
      %v2629 = vsel %vm2597, %v504, 0.0
      %v2630 = vsel %vm2598, %v503, 0.0
      %v2631 = vld [vmem:[%s1 + $0x30] sm:$0xff]
      %v2633 = vsel %vm731, %v2599, 0
      %v2636 = vsel %vm731, %v2600, 0
      %v2639 = vsel %vm731, %v2601, 0
      %v2642 = vsel %vm731, %v2602, 0
      %v2645 = vsel %vm731, %v2603, 0
      %v2648 = vsel %vm731, %v2604, 0
      %v2651 = vsel %vm731, %v2605, 0
      %v2654 = vsel %vm731, %v2606, 0
      %v2657 = vsel %vm731, %v2607, 0
      %v2660 = vsel %vm731, %v2608, 0
      %v2663 = vsel %vm731, %v2609, 0
      %v2666 = vsel %vm731, %v2610, 0
      %v2669 = vsel %vm731, %v2611, 0
      %v2672 = vsel %vm731, %v2612, 0
      %v2675 = vsel %vm731, %v2613, 0
      %v2678 = vsel %vm731, %v2614, 0
      %v2681 = vsel %vm731, %v2615, 0
      %v2684 = vsel %vm731, %v2616, 0
      %v2687 = vsel %vm731, %v2617, 0
      %v2690 = vsel %vm731, %v2618, 0
      %v2693 = vsel %vm731, %v2619, 0
      %v2696 = vsel %vm731, %v2620, 0
      %v2699 = vsel %vm731, %v2621, 0
      %v2702 = vsel %vm731, %v2622, 0
      %v2705 = vsel %vm731, %v2623, 0
      %v2708 = vsel %vm731, %v2624, 0
      %v2711 = vsel %vm731, %v2625, 0
      %v2714 = vsel %vm731, %v2626, 0
      %v2717 = vsel %vm731, %v2627, 0
      %v2720 = vsel %vm731, %v2628, 0
      %v2723 = vsel %vm731, %v2629, 0
      %v2726 = vsel %vm731, %v2630, 0
      %2728 = vmatpush.msra.mxu0 0.0
      %2729 = vmatpush.msra.mxu0 0.0
      %2730 = vmatpush.msra.mxu0 0.0
      %2731 = vmatpush.msra.mxu0 0.0
      %2732 = vmatpush.msra.mxu0 0.0
      %2733 = vmatpush.msra.mxu0 0.0
      %2734 = vmatpush.msra.mxu0 0.0
      %2735 = vmatpush.msra.mxu0 0.0
      %2736 = vmatpush.msra.mxu0 0.0
      %2737 = vmatpush.msra.mxu0 0.0
      %2738 = vmatpush.msra.mxu0 0.0
      %2739 = vmatpush.msra.mxu0 0.0
      %2740 = vmatpush.msra.mxu0 0.0
      %2741 = vmatpush.msra.mxu0 0.0
      %2742 = vmatpush.msra.mxu0 0.0
      %2743 = vmatpush.msra.mxu0 %v2631
      %2744 = vmatmul.f32.gmra.mxu0 %v2633
      %v2745 = vpop.f32.mrf.mxu0
      %v2746 = vadd.f32 0.0, %v2745
      %2747 = vmatmul.f32.gmra.mxu0 %v2636
      %v2748 = vpop.f32.mrf.mxu0
      %v2749 = vadd.f32 0.0, %v2748
      %2750 = vmatmul.f32.gmra.mxu0 %v2639
      %v2751 = vpop.f32.mrf.mxu0
      %v2752 = vadd.f32 0.0, %v2751
      %2753 = vmatmul.f32.gmra.mxu0 %v2642
      %v2754 = vpop.f32.mrf.mxu0
      %v2755 = vadd.f32 0.0, %v2754
      %2756 = vmatmul.f32.gmra.mxu0 %v2645
      %v2757 = vpop.f32.mrf.mxu0
      %v2758 = vadd.f32 0.0, %v2757
      %2759 = vmatmul.f32.gmra.mxu0 %v2648
      %v2760 = vpop.f32.mrf.mxu0
      %v2761 = vadd.f32 0.0, %v2760
      %2762 = vmatmul.f32.gmra.mxu0 %v2651
      %v2763 = vpop.f32.mrf.mxu0
      %v2764 = vadd.f32 0.0, %v2763
      %2765 = vmatmul.f32.gmra.mxu0 %v2654
      %v2766 = vpop.f32.mrf.mxu0
      %v2767 = vadd.f32 0.0, %v2766
      %2768 = vmatmul.f32.gmra.mxu0 %v2657
      %v2769 = vpop.f32.mrf.mxu0
      %v2770 = vadd.f32 0.0, %v2769
      %2771 = vmatmul.f32.gmra.mxu0 %v2660
      %v2772 = vpop.f32.mrf.mxu0
      %v2773 = vadd.f32 0.0, %v2772
      %2774 = vmatmul.f32.gmra.mxu0 %v2663
      %v2775 = vpop.f32.mrf.mxu0
      %v2776 = vadd.f32 0.0, %v2775
      %2777 = vmatmul.f32.gmra.mxu0 %v2666
      %v2778 = vpop.f32.mrf.mxu0
      %v2779 = vadd.f32 0.0, %v2778
      %2780 = vmatmul.f32.gmra.mxu0 %v2669
      %v2781 = vpop.f32.mrf.mxu0
      %v2782 = vadd.f32 0.0, %v2781
      %2783 = vmatmul.f32.gmra.mxu0 %v2672
      %v2784 = vpop.f32.mrf.mxu0
      %v2785 = vadd.f32 0.0, %v2784
      %2786 = vmatmul.f32.gmra.mxu0 %v2675
      %v2787 = vpop.f32.mrf.mxu0
      %v2788 = vadd.f32 0.0, %v2787
      %2789 = vmatmul.f32.gmra.mxu0 %v2678
      %v2790 = vpop.f32.mrf.mxu0
      %v2791 = vadd.f32 0.0, %v2790
      %2792 = vmatmul.f32.gmra.mxu0 %v2681
      %v2793 = vpop.f32.mrf.mxu0
      %v2794 = vadd.f32 0.0, %v2793
      %2795 = vmatmul.f32.gmra.mxu0 %v2684
      %v2796 = vpop.f32.mrf.mxu0
      %v2797 = vadd.f32 0.0, %v2796
      %2798 = vmatmul.f32.gmra.mxu0 %v2687
      %v2799 = vpop.f32.mrf.mxu0
      %v2800 = vadd.f32 0.0, %v2799
      %2801 = vmatmul.f32.gmra.mxu0 %v2690
      %v2802 = vpop.f32.mrf.mxu0
      %v2803 = vadd.f32 0.0, %v2802
      %2804 = vmatmul.f32.gmra.mxu0 %v2693
      %v2805 = vpop.f32.mrf.mxu0
      %v2806 = vadd.f32 0.0, %v2805
      %2807 = vmatmul.f32.gmra.mxu0 %v2696
      %v2808 = vpop.f32.mrf.mxu0
      %v2809 = vadd.f32 0.0, %v2808
      %2810 = vmatmul.f32.gmra.mxu0 %v2699
      %v2811 = vpop.f32.mrf.mxu0
      %v2812 = vadd.f32 0.0, %v2811
      %2813 = vmatmul.f32.gmra.mxu0 %v2702
      %v2814 = vpop.f32.mrf.mxu0
      %v2815 = vadd.f32 0.0, %v2814
      %2816 = vmatmul.f32.gmra.mxu0 %v2705
      %v2817 = vpop.f32.mrf.mxu0
      %v2818 = vadd.f32 0.0, %v2817
      %2819 = vmatmul.f32.gmra.mxu0 %v2708
      %v2820 = vpop.f32.mrf.mxu0
      %v2821 = vadd.f32 0.0, %v2820
      %2822 = vmatmul.f32.gmra.mxu0 %v2711
      %v2823 = vpop.f32.mrf.mxu0
      %v2824 = vadd.f32 0.0, %v2823
      %2825 = vmatmul.f32.gmra.mxu0 %v2714
      %v2826 = vpop.f32.mrf.mxu0
      %v2827 = vadd.f32 0.0, %v2826
      %2828 = vmatmul.f32.gmra.mxu0 %v2717
      %v2829 = vpop.f32.mrf.mxu0
      %v2830 = vadd.f32 0.0, %v2829
      %2831 = vmatmul.f32.gmra.mxu0 %v2720
      %v2832 = vpop.f32.mrf.mxu0
      %v2833 = vadd.f32 0.0, %v2832
      %2834 = vmatmul.f32.gmra.mxu0 %v2723
      %v2835 = vpop.f32.mrf.mxu0
      %v2836 = vadd.f32 0.0, %v2835
      %2837 = vmatmul.f32.gmra.mxu0 %v2726
      %v2838 = vpop.f32.mrf.mxu0
      %v2839 = vadd.f32 0.0, %v2838
      %2840 = vdwg.mxu0
      %v2841 = vadd.f32 %v2471, %v2746
      %v2842 = vadd.f32 %v2472, %v2749
      %v2843 = vadd.f32 %v2473, %v2752
      %v2844 = vadd.f32 %v2474, %v2755
      %v2845 = vadd.f32 %v2475, %v2758
      %v2846 = vadd.f32 %v2476, %v2761
      %v2847 = vadd.f32 %v2477, %v2764
      %v2848 = vadd.f32 %v2478, %v2767
      %v2849 = vadd.f32 %v2479, %v2770
      %v2850 = vadd.f32 %v2480, %v2773
      %v2851 = vadd.f32 %v2481, %v2776
      %v2852 = vadd.f32 %v2482, %v2779
      %v2853 = vadd.f32 %v2483, %v2782
      %v2854 = vadd.f32 %v2484, %v2785
      %v2855 = vadd.f32 %v2485, %v2788
      %v2856 = vadd.f32 %v2486, %v2791
      %v2857 = vadd.f32 %v2487, %v2794
      %v2858 = vadd.f32 %v2488, %v2797
      %v2859 = vadd.f32 %v2489, %v2800
      %v2860 = vadd.f32 %v2490, %v2803
      %v2861 = vadd.f32 %v2491, %v2806
      %v2862 = vadd.f32 %v2492, %v2809
      %v2863 = vadd.f32 %v2493, %v2812
      %v2864 = vadd.f32 %v2494, %v2815
      %v2865 = vadd.f32 %v2495, %v2818
      %v2866 = vadd.f32 %v2496, %v2821
      %v2867 = vadd.f32 %v2497, %v2824
      %v2868 = vadd.f32 %v2498, %v2827
      %v2869 = vadd.f32 %v2499, %v2830
      %v2870 = vadd.f32 %v2500, %v2833
      %v2871 = vadd.f32 %v2501, %v2836
      %v2872 = vadd.f32 %v2502, %v2839
      %v2873 = vsel %vm344, 1, 0
      %v2874 = vsel %vm345, 1, 0
      %v2875 = vsel %vm346, 1, 0
      %v2876 = vsel %vm347, 1, 0
      %v2877 = vsel %vm348, 1, 0
      %v2878 = vsel %vm349, 1, 0
      %v2879 = vsel %vm350, 1, 0
      %v2880 = vsel %vm351, 1, 0
      %v2881 = vsel %vm352, 1, 0
      %v2882 = vsel %vm353, 1, 0
      %v2883 = vsel %vm354, 1, 0
      %v2884 = vsel %vm355, 1, 0
      %v2885 = vsel %vm356, 1, 0
      %v2886 = vsel %vm357, 1, 0
      %v2887 = vsel %vm358, 1, 0
      %v2888 = vsel %vm359, 1, 0
      %v2889 = vsel %vm360, 1, 0
      %v2890 = vsel %vm361, 1, 0
      %v2891 = vsel %vm362, 1, 0
      %v2892 = vsel %vm363, 1, 0
      %v2893 = vsel %vm364, 1, 0
      %v2894 = vsel %vm365, 1, 0
      %v2895 = vsel %vm366, 1, 0
      %v2896 = vsel %vm367, 1, 0
      %v2897 = vsel %vm368, 1, 0
      %v2898 = vsel %vm369, 1, 0
      %v2899 = vsel %vm370, 1, 0
      %v2900 = vsel %vm371, 1, 0
      %v2901 = vsel %vm372, 1, 0
      %v2902 = vsel %vm373, 1, 0
      %v2903 = vsel %vm374, 1, 0
      %v2904 = vsel %vm375, 1, 0
      %vm2905 = vcmp.eq.s32.totalorder %v2873, 1
      %vm2906 = vcmp.eq.s32.totalorder %v2874, 1
      %vm2907 = vcmp.eq.s32.totalorder %v2875, 1
      %vm2908 = vcmp.eq.s32.totalorder %v2876, 1
      %vm2909 = vcmp.eq.s32.totalorder %v2877, 1
      %vm2910 = vcmp.eq.s32.totalorder %v2878, 1
      %vm2911 = vcmp.eq.s32.totalorder %v2879, 1
      %vm2912 = vcmp.eq.s32.totalorder %v2880, 1
      %vm2913 = vcmp.eq.s32.totalorder %v2881, 1
      %vm2914 = vcmp.eq.s32.totalorder %v2882, 1
      %vm2915 = vcmp.eq.s32.totalorder %v2883, 1
      %vm2916 = vcmp.eq.s32.totalorder %v2884, 1
      %vm2917 = vcmp.eq.s32.totalorder %v2885, 1
      %vm2918 = vcmp.eq.s32.totalorder %v2886, 1
      %vm2919 = vcmp.eq.s32.totalorder %v2887, 1
      %vm2920 = vcmp.eq.s32.totalorder %v2888, 1
      %vm2921 = vcmp.eq.s32.totalorder %v2889, 1
      %vm2922 = vcmp.eq.s32.totalorder %v2890, 1
      %vm2923 = vcmp.eq.s32.totalorder %v2891, 1
      %vm2924 = vcmp.eq.s32.totalorder %v2892, 1
      %vm2925 = vcmp.eq.s32.totalorder %v2893, 1
      %vm2926 = vcmp.eq.s32.totalorder %v2894, 1
      %vm2927 = vcmp.eq.s32.totalorder %v2895, 1
      %vm2928 = vcmp.eq.s32.totalorder %v2896, 1
      %vm2929 = vcmp.eq.s32.totalorder %v2897, 1
      %vm2930 = vcmp.eq.s32.totalorder %v2898, 1
      %vm2931 = vcmp.eq.s32.totalorder %v2899, 1
      %vm2932 = vcmp.eq.s32.totalorder %v2900, 1
      %vm2933 = vcmp.eq.s32.totalorder %v2901, 1
      %vm2934 = vcmp.eq.s32.totalorder %v2902, 1
      %vm2935 = vcmp.eq.s32.totalorder %v2903, 1
      %vm2936 = vcmp.eq.s32.totalorder %v2904, 1
      %v2937 = vsel %vm2905, %v217, 0.0
      %v2938 = vsel %vm2906, %v218, 0.0
      %v2939 = vsel %vm2907, %v219, 0.0
      %v2940 = vsel %vm2908, %v220, 0.0
      %v2941 = vsel %vm2909, %v221, 0.0
      %v2942 = vsel %vm2910, %v222, 0.0
      %v2943 = vsel %vm2911, %v223, 0.0
      %v2944 = vsel %vm2912, %v224, 0.0
      %v2945 = vsel %vm2913, %v225, 0.0
      %v2946 = vsel %vm2914, %v226, 0.0
      %v2947 = vsel %vm2915, %v227, 0.0
      %v2948 = vsel %vm2916, %v228, 0.0
      %v2949 = vsel %vm2917, %v229, 0.0
      %v2950 = vsel %vm2918, %v230, 0.0
      %v2951 = vsel %vm2919, %v231, 0.0
      %v2952 = vsel %vm2920, %v232, 0.0
      %v2953 = vsel %vm2921, %v233, 0.0
      %v2954 = vsel %vm2922, %v234, 0.0
      %v2955 = vsel %vm2923, %v235, 0.0
      %v2956 = vsel %vm2924, %v236, 0.0
      %v2957 = vsel %vm2925, %v237, 0.0
      %v2958 = vsel %vm2926, %v238, 0.0
      %v2959 = vsel %vm2927, %v239, 0.0
      %v2960 = vsel %vm2928, %v240, 0.0
      %v2961 = vsel %vm2929, %v241, 0.0
      %v2962 = vsel %vm2930, %v242, 0.0
      %v2963 = vsel %vm2931, %v243, 0.0
      %v2964 = vsel %vm2932, %v244, 0.0
      %v2965 = vsel %vm2933, %v245, 0.0
      %v2966 = vsel %vm2934, %v246, 0.0
      %v2967 = vsel %vm2935, %v215, 0.0
      %v2968 = vsel %vm2936, %v216, 0.0
      %v2969 = vld [vmem:[%s1 + $0x38] sm:$0xff]
      %v2971 = vsel %vm731, %v2937, 0
      %v2974 = vsel %vm731, %v2938, 0
      %v2977 = vsel %vm731, %v2939, 0
      %v2980 = vsel %vm731, %v2940, 0
      %v2983 = vsel %vm731, %v2941, 0
      %v2986 = vsel %vm731, %v2942, 0
      %v2989 = vsel %vm731, %v2943, 0
      %v2992 = vsel %vm731, %v2944, 0
      %v2995 = vsel %vm731, %v2945, 0
      %v2998 = vsel %vm731, %v2946, 0
      %v3001 = vsel %vm731, %v2947, 0
      %v3004 = vsel %vm731, %v2948, 0
      %v3007 = vsel %vm731, %v2949, 0
      %v3010 = vsel %vm731, %v2950, 0
      %v3013 = vsel %vm731, %v2951, 0
      %v3016 = vsel %vm731, %v2952, 0
      %v3019 = vsel %vm731, %v2953, 0
      %v3022 = vsel %vm731, %v2954, 0
      %v3025 = vsel %vm731, %v2955, 0
      %v3028 = vsel %vm731, %v2956, 0
      %v3031 = vsel %vm731, %v2957, 0
      %v3034 = vsel %vm731, %v2958, 0
      %v3037 = vsel %vm731, %v2959, 0
      %v3040 = vsel %vm731, %v2960, 0
      %v3043 = vsel %vm731, %v2961, 0
      %v3046 = vsel %vm731, %v2962, 0
      %v3049 = vsel %vm731, %v2963, 0
      %v3052 = vsel %vm731, %v2964, 0
      %v3055 = vsel %vm731, %v2965, 0
      %v3058 = vsel %vm731, %v2966, 0
      %v3061 = vsel %vm731, %v2967, 0
      %v3064 = vsel %vm731, %v2968, 0
      %3066 = vmatpush.msra.mxu0 0.0
      %3067 = vmatpush.msra.mxu0 0.0
      %3068 = vmatpush.msra.mxu0 0.0
      %3069 = vmatpush.msra.mxu0 0.0
      %3070 = vmatpush.msra.mxu0 0.0
      %3071 = vmatpush.msra.mxu0 0.0
      %3072 = vmatpush.msra.mxu0 0.0
      %3073 = vmatpush.msra.mxu0 0.0
      %3074 = vmatpush.msra.mxu0 0.0
      %3075 = vmatpush.msra.mxu0 0.0
      %3076 = vmatpush.msra.mxu0 0.0
      %3077 = vmatpush.msra.mxu0 0.0
      %3078 = vmatpush.msra.mxu0 0.0
      %3079 = vmatpush.msra.mxu0 0.0
      %3080 = vmatpush.msra.mxu0 0.0
      %3081 = vmatpush.msra.mxu0 %v2969
      %3082 = vmatmul.f32.gmra.mxu0 %v2971
      %v3083 = vpop.f32.mrf.mxu0
      %v3084 = vadd.f32 0.0, %v3083
      %3085 = vmatmul.f32.gmra.mxu0 %v2974
      %v3086 = vpop.f32.mrf.mxu0
      %v3087 = vadd.f32 0.0, %v3086
      %3088 = vmatmul.f32.gmra.mxu0 %v2977
      %v3089 = vpop.f32.mrf.mxu0
      %v3090 = vadd.f32 0.0, %v3089
      %3091 = vmatmul.f32.gmra.mxu0 %v2980
      %v3092 = vpop.f32.mrf.mxu0
      %v3093 = vadd.f32 0.0, %v3092
      %3094 = vmatmul.f32.gmra.mxu0 %v2983
      %v3095 = vpop.f32.mrf.mxu0
      %v3096 = vadd.f32 0.0, %v3095
      %3097 = vmatmul.f32.gmra.mxu0 %v2986
      %v3098 = vpop.f32.mrf.mxu0
      %v3099 = vadd.f32 0.0, %v3098
      %3100 = vmatmul.f32.gmra.mxu0 %v2989
      %v3101 = vpop.f32.mrf.mxu0
      %v3102 = vadd.f32 0.0, %v3101
      %3103 = vmatmul.f32.gmra.mxu0 %v2992
      %v3104 = vpop.f32.mrf.mxu0
      %v3105 = vadd.f32 0.0, %v3104
      %3106 = vmatmul.f32.gmra.mxu0 %v2995
      %v3107 = vpop.f32.mrf.mxu0
      %v3108 = vadd.f32 0.0, %v3107
      %3109 = vmatmul.f32.gmra.mxu0 %v2998
      %v3110 = vpop.f32.mrf.mxu0
      %v3111 = vadd.f32 0.0, %v3110
      %3112 = vmatmul.f32.gmra.mxu0 %v3001
      %v3113 = vpop.f32.mrf.mxu0
      %v3114 = vadd.f32 0.0, %v3113
      %3115 = vmatmul.f32.gmra.mxu0 %v3004
      %v3116 = vpop.f32.mrf.mxu0
      %v3117 = vadd.f32 0.0, %v3116
      %3118 = vmatmul.f32.gmra.mxu0 %v3007
      %v3119 = vpop.f32.mrf.mxu0
      %v3120 = vadd.f32 0.0, %v3119
      %3121 = vmatmul.f32.gmra.mxu0 %v3010
      %v3122 = vpop.f32.mrf.mxu0
      %v3123 = vadd.f32 0.0, %v3122
      %3124 = vmatmul.f32.gmra.mxu0 %v3013
      %v3125 = vpop.f32.mrf.mxu0
      %v3126 = vadd.f32 0.0, %v3125
      %3127 = vmatmul.f32.gmra.mxu0 %v3016
      %v3128 = vpop.f32.mrf.mxu0
      %v3129 = vadd.f32 0.0, %v3128
      %3130 = vmatmul.f32.gmra.mxu0 %v3019
      %v3131 = vpop.f32.mrf.mxu0
      %v3132 = vadd.f32 0.0, %v3131
      %3133 = vmatmul.f32.gmra.mxu0 %v3022
      %v3134 = vpop.f32.mrf.mxu0
      %v3135 = vadd.f32 0.0, %v3134
      %3136 = vmatmul.f32.gmra.mxu0 %v3025
      %v3137 = vpop.f32.mrf.mxu0
      %v3138 = vadd.f32 0.0, %v3137
      %3139 = vmatmul.f32.gmra.mxu0 %v3028
      %v3140 = vpop.f32.mrf.mxu0
      %v3141 = vadd.f32 0.0, %v3140
      %3142 = vmatmul.f32.gmra.mxu0 %v3031
      %v3143 = vpop.f32.mrf.mxu0
      %v3144 = vadd.f32 0.0, %v3143
      %3145 = vmatmul.f32.gmra.mxu0 %v3034
      %v3146 = vpop.f32.mrf.mxu0
      %v3147 = vadd.f32 0.0, %v3146
      %3148 = vmatmul.f32.gmra.mxu0 %v3037
      %v3149 = vpop.f32.mrf.mxu0
      %v3150 = vadd.f32 0.0, %v3149
      %3151 = vmatmul.f32.gmra.mxu0 %v3040
      %v3152 = vpop.f32.mrf.mxu0
      %v3153 = vadd.f32 0.0, %v3152
      %3154 = vmatmul.f32.gmra.mxu0 %v3043
      %v3155 = vpop.f32.mrf.mxu0
      %v3156 = vadd.f32 0.0, %v3155
      %3157 = vmatmul.f32.gmra.mxu0 %v3046
      %v3158 = vpop.f32.mrf.mxu0
      %v3159 = vadd.f32 0.0, %v3158
      %3160 = vmatmul.f32.gmra.mxu0 %v3049
      %v3161 = vpop.f32.mrf.mxu0
      %v3162 = vadd.f32 0.0, %v3161
      %3163 = vmatmul.f32.gmra.mxu0 %v3052
      %v3164 = vpop.f32.mrf.mxu0
      %v3165 = vadd.f32 0.0, %v3164
      %3166 = vmatmul.f32.gmra.mxu0 %v3055
      %v3167 = vpop.f32.mrf.mxu0
      %v3168 = vadd.f32 0.0, %v3167
      %3169 = vmatmul.f32.gmra.mxu0 %v3058
      %v3170 = vpop.f32.mrf.mxu0
      %v3171 = vadd.f32 0.0, %v3170
      %3172 = vmatmul.f32.gmra.mxu0 %v3061
      %v3173 = vpop.f32.mrf.mxu0
      %v3174 = vadd.f32 0.0, %v3173
      %3175 = vmatmul.f32.gmra.mxu0 %v3064
      %v3176 = vpop.f32.mrf.mxu0
      %v3177 = vadd.f32 0.0, %v3176
      %3178 = vdwg.mxu0
      %v3179 = vadd.f32 %v2841, %v3084
      %v3180 = vadd.f32 %v2842, %v3087
      %v3181 = vadd.f32 %v2843, %v3090
      %v3182 = vadd.f32 %v2844, %v3093
      %v3183 = vadd.f32 %v2845, %v3096
      %v3184 = vadd.f32 %v2846, %v3099
      %v3185 = vadd.f32 %v2847, %v3102
      %v3186 = vadd.f32 %v2848, %v3105
      %v3187 = vadd.f32 %v2849, %v3108
      %v3188 = vadd.f32 %v2850, %v3111
      %v3189 = vadd.f32 %v2851, %v3114
      %v3190 = vadd.f32 %v2852, %v3117
      %v3191 = vadd.f32 %v2853, %v3120
      %v3192 = vadd.f32 %v2854, %v3123
      %v3193 = vadd.f32 %v2855, %v3126
      %v3194 = vadd.f32 %v2856, %v3129
      %v3195 = vadd.f32 %v2857, %v3132
      %v3196 = vadd.f32 %v2858, %v3135
      %v3197 = vadd.f32 %v2859, %v3138
      %v3198 = vadd.f32 %v2860, %v3141
      %v3199 = vadd.f32 %v2861, %v3144
      %v3200 = vadd.f32 %v2862, %v3147
      %v3201 = vadd.f32 %v2863, %v3150
      %v3202 = vadd.f32 %v2864, %v3153
      %v3203 = vadd.f32 %v2865, %v3156
      %v3204 = vadd.f32 %v2866, %v3159
      %v3205 = vadd.f32 %v2867, %v3162
      %v3206 = vadd.f32 %v2868, %v3165
      %v3207 = vadd.f32 %v2869, %v3168
      %v3208 = vadd.f32 %v2870, %v3171
      %v3209 = vadd.f32 %v2871, %v3174
      %v3210 = vadd.f32 %v2872, %v3177
      %vm3211 = vmand %vm344, %vm408
      %vm3212 = vmand %vm345, %vm409
      %vm3213 = vmand %vm346, %vm410
      %vm3214 = vmand %vm347, %vm411
      %vm3215 = vmand %vm348, %vm412
      %vm3216 = vmand %vm349, %vm413
      %vm3217 = vmand %vm350, %vm414
      %vm3218 = vmand %vm351, %vm415
      %vm3219 = vmand %vm352, %vm416
      %vm3220 = vmand %vm353, %vm417
      %vm3221 = vmand %vm354, %vm418
      %vm3222 = vmand %vm355, %vm419
      %vm3223 = vmand %vm356, %vm420
      %vm3224 = vmand %vm357, %vm421
      %vm3225 = vmand %vm358, %vm422
      %vm3226 = vmand %vm359, %vm423
      %vm3227 = vmand %vm360, %vm424
      %vm3228 = vmand %vm361, %vm425
      %vm3229 = vmand %vm362, %vm426
      %vm3230 = vmand %vm363, %vm427
      %vm3231 = vmand %vm364, %vm428
      %vm3232 = vmand %vm365, %vm429
      %vm3233 = vmand %vm366, %vm430
      %vm3234 = vmand %vm367, %vm431
      %vm3235 = vmand %vm368, %vm432
      %vm3236 = vmand %vm369, %vm433
      %vm3237 = vmand %vm370, %vm434
      %vm3238 = vmand %vm371, %vm435
      %vm3239 = vmand %vm372, %vm436
      %vm3240 = vmand %vm373, %vm437
      %vm3241 = vmand %vm374, %vm438
      %vm3242 = vmand %vm375, %vm439
      %v3243 = vsel %vm3211, 1, 0
      %v3244 = vsel %vm3212, 1, 0
      %v3245 = vsel %vm3213, 1, 0
      %v3246 = vsel %vm3214, 1, 0
      %v3247 = vsel %vm3215, 1, 0
      %v3248 = vsel %vm3216, 1, 0
      %v3249 = vsel %vm3217, 1, 0
      %v3250 = vsel %vm3218, 1, 0
      %v3251 = vsel %vm3219, 1, 0
      %v3252 = vsel %vm3220, 1, 0
      %v3253 = vsel %vm3221, 1, 0
      %v3254 = vsel %vm3222, 1, 0
      %v3255 = vsel %vm3223, 1, 0
      %v3256 = vsel %vm3224, 1, 0
      %v3257 = vsel %vm3225, 1, 0
      %v3258 = vsel %vm3226, 1, 0
      %v3259 = vsel %vm3227, 1, 0
      %v3260 = vsel %vm3228, 1, 0
      %v3261 = vsel %vm3229, 1, 0
      %v3262 = vsel %vm3230, 1, 0
      %v3263 = vsel %vm3231, 1, 0
      %v3264 = vsel %vm3232, 1, 0
      %v3265 = vsel %vm3233, 1, 0
      %v3266 = vsel %vm3234, 1, 0
      %v3267 = vsel %vm3235, 1, 0
      %v3268 = vsel %vm3236, 1, 0
      %v3269 = vsel %vm3237, 1, 0
      %v3270 = vsel %vm3238, 1, 0
      %v3271 = vsel %vm3239, 1, 0
      %v3272 = vsel %vm3240, 1, 0
      %v3273 = vsel %vm3241, 1, 0
      %v3274 = vsel %vm3242, 1, 0
      %vm3275 = vcmp.eq.s32.totalorder %v3243, 1
      %vm3276 = vcmp.eq.s32.totalorder %v3244, 1
      %vm3277 = vcmp.eq.s32.totalorder %v3245, 1
      %vm3278 = vcmp.eq.s32.totalorder %v3246, 1
      %vm3279 = vcmp.eq.s32.totalorder %v3247, 1
      %vm3280 = vcmp.eq.s32.totalorder %v3248, 1
      %vm3281 = vcmp.eq.s32.totalorder %v3249, 1
      %vm3282 = vcmp.eq.s32.totalorder %v3250, 1
      %vm3283 = vcmp.eq.s32.totalorder %v3251, 1
      %vm3284 = vcmp.eq.s32.totalorder %v3252, 1
      %vm3285 = vcmp.eq.s32.totalorder %v3253, 1
      %vm3286 = vcmp.eq.s32.totalorder %v3254, 1
      %vm3287 = vcmp.eq.s32.totalorder %v3255, 1
      %vm3288 = vcmp.eq.s32.totalorder %v3256, 1
      %vm3289 = vcmp.eq.s32.totalorder %v3257, 1
      %vm3290 = vcmp.eq.s32.totalorder %v3258, 1
      %vm3291 = vcmp.eq.s32.totalorder %v3259, 1
      %vm3292 = vcmp.eq.s32.totalorder %v3260, 1
      %vm3293 = vcmp.eq.s32.totalorder %v3261, 1
      %vm3294 = vcmp.eq.s32.totalorder %v3262, 1
      %vm3295 = vcmp.eq.s32.totalorder %v3263, 1
      %vm3296 = vcmp.eq.s32.totalorder %v3264, 1
      %vm3297 = vcmp.eq.s32.totalorder %v3265, 1
      %vm3298 = vcmp.eq.s32.totalorder %v3266, 1
      %vm3299 = vcmp.eq.s32.totalorder %v3267, 1
      %vm3300 = vcmp.eq.s32.totalorder %v3268, 1
      %vm3301 = vcmp.eq.s32.totalorder %v3269, 1
      %vm3302 = vcmp.eq.s32.totalorder %v3270, 1
      %vm3303 = vcmp.eq.s32.totalorder %v3271, 1
      %vm3304 = vcmp.eq.s32.totalorder %v3272, 1
      %vm3305 = vcmp.eq.s32.totalorder %v3273, 1
      %vm3306 = vcmp.eq.s32.totalorder %v3274, 1
      %v3307 = vsel %vm3275, %v1211, 0.0
      %v3308 = vsel %vm3276, %v1210, 0.0
      %v3309 = vsel %vm3277, %v1209, 0.0
      %v3310 = vsel %vm3278, %v1208, 0.0
      %v3311 = vsel %vm3279, %v1207, 0.0
      %v3312 = vsel %vm3280, %v1206, 0.0
      %v3313 = vsel %vm3281, %v1205, 0.0
      %v3314 = vsel %vm3282, %v1204, 0.0
      %v3315 = vsel %vm3283, %v1203, 0.0
      %v3316 = vsel %vm3284, %v1202, 0.0
      %v3317 = vsel %vm3285, %v1201, 0.0
      %v3318 = vsel %vm3286, %v1200, 0.0
      %v3319 = vsel %vm3287, %v1199, 0.0
      %v3320 = vsel %vm3288, %v1198, 0.0
      %v3321 = vsel %vm3289, %v1197, 0.0
      %v3322 = vsel %vm3290, %v1196, 0.0
      %v3323 = vsel %vm3291, %v1195, 0.0
      %v3324 = vsel %vm3292, %v1194, 0.0
      %v3325 = vsel %vm3293, %v1193, 0.0
      %v3326 = vsel %vm3294, %v1192, 0.0
      %v3327 = vsel %vm3295, %v1191, 0.0
      %v3328 = vsel %vm3296, %v1190, 0.0
      %v3329 = vsel %vm3297, %v1189, 0.0
      %v3330 = vsel %vm3298, %v1188, 0.0
      %v3331 = vsel %vm3299, %v1187, 0.0
      %v3332 = vsel %vm3300, %v1186, 0.0
      %v3333 = vsel %vm3301, %v1185, 0.0
      %v3334 = vsel %vm3302, %v1184, 0.0
      %v3335 = vsel %vm3303, %v1183, 0.0
      %v3336 = vsel %vm3304, %v1214, 0.0
      %v3337 = vsel %vm3305, %v1213, 0.0
      %v3338 = vsel %vm3306, %v1212, 0.0
      %v3339 = vld [vmem:[%s1 + $0x40] sm:$0xff]
      %v3341 = vsel %vm731, %v3307, 0
      %v3344 = vsel %vm731, %v3308, 0
      %v3347 = vsel %vm731, %v3309, 0
      %v3350 = vsel %vm731, %v3310, 0
      %v3353 = vsel %vm731, %v3311, 0
      %v3356 = vsel %vm731, %v3312, 0
      %v3359 = vsel %vm731, %v3313, 0
      %v3362 = vsel %vm731, %v3314, 0
      %v3365 = vsel %vm731, %v3315, 0
      %v3368 = vsel %vm731, %v3316, 0
      %v3371 = vsel %vm731, %v3317, 0
      %v3374 = vsel %vm731, %v3318, 0
      %v3377 = vsel %vm731, %v3319, 0
      %v3380 = vsel %vm731, %v3320, 0
      %v3383 = vsel %vm731, %v3321, 0
      %v3386 = vsel %vm731, %v3322, 0
      %v3389 = vsel %vm731, %v3323, 0
      %v3392 = vsel %vm731, %v3324, 0
      %v3395 = vsel %vm731, %v3325, 0
      %v3398 = vsel %vm731, %v3326, 0
      %v3401 = vsel %vm731, %v3327, 0
      %v3404 = vsel %vm731, %v3328, 0
      %v3407 = vsel %vm731, %v3329, 0
      %v3410 = vsel %vm731, %v3330, 0
      %v3413 = vsel %vm731, %v3331, 0
      %v3416 = vsel %vm731, %v3332, 0
      %v3419 = vsel %vm731, %v3333, 0
      %v3422 = vsel %vm731, %v3334, 0
      %v3425 = vsel %vm731, %v3335, 0
      %v3428 = vsel %vm731, %v3336, 0
      %v3431 = vsel %vm731, %v3337, 0
      %v3434 = vsel %vm731, %v3338, 0
      %3436 = vmatpush.msra.mxu0 0.0
      %3437 = vmatpush.msra.mxu0 0.0
      %3438 = vmatpush.msra.mxu0 0.0
      %3439 = vmatpush.msra.mxu0 0.0
      %3440 = vmatpush.msra.mxu0 0.0
      %3441 = vmatpush.msra.mxu0 0.0
      %3442 = vmatpush.msra.mxu0 0.0
      %3443 = vmatpush.msra.mxu0 0.0
      %3444 = vmatpush.msra.mxu0 0.0
      %3445 = vmatpush.msra.mxu0 0.0
      %3446 = vmatpush.msra.mxu0 0.0
      %3447 = vmatpush.msra.mxu0 0.0
      %3448 = vmatpush.msra.mxu0 0.0
      %3449 = vmatpush.msra.mxu0 0.0
      %3450 = vmatpush.msra.mxu0 0.0
      %3451 = vmatpush.msra.mxu0 %v3339
      %3452 = vmatmul.f32.gmra.mxu0 %v3341
      %v3453 = vpop.f32.mrf.mxu0
      %v3454 = vadd.f32 0.0, %v3453
      %3455 = vmatmul.f32.gmra.mxu0 %v3344
      %v3456 = vpop.f32.mrf.mxu0
      %v3457 = vadd.f32 0.0, %v3456
      %3458 = vmatmul.f32.gmra.mxu0 %v3347
      %v3459 = vpop.f32.mrf.mxu0
      %v3460 = vadd.f32 0.0, %v3459
      %3461 = vmatmul.f32.gmra.mxu0 %v3350
      %v3462 = vpop.f32.mrf.mxu0
      %v3463 = vadd.f32 0.0, %v3462
      %3464 = vmatmul.f32.gmra.mxu0 %v3353
      %v3465 = vpop.f32.mrf.mxu0
      %v3466 = vadd.f32 0.0, %v3465
      %3467 = vmatmul.f32.gmra.mxu0 %v3356
      %v3468 = vpop.f32.mrf.mxu0
      %v3469 = vadd.f32 0.0, %v3468
      %3470 = vmatmul.f32.gmra.mxu0 %v3359
      %v3471 = vpop.f32.mrf.mxu0
      %v3472 = vadd.f32 0.0, %v3471
      %3473 = vmatmul.f32.gmra.mxu0 %v3362
      %v3474 = vpop.f32.mrf.mxu0
      %v3475 = vadd.f32 0.0, %v3474
      %3476 = vmatmul.f32.gmra.mxu0 %v3365
      %v3477 = vpop.f32.mrf.mxu0
      %v3478 = vadd.f32 0.0, %v3477
      %3479 = vmatmul.f32.gmra.mxu0 %v3368
      %v3480 = vpop.f32.mrf.mxu0
      %v3481 = vadd.f32 0.0, %v3480
      %3482 = vmatmul.f32.gmra.mxu0 %v3371
      %v3483 = vpop.f32.mrf.mxu0
      %v3484 = vadd.f32 0.0, %v3483
      %3485 = vmatmul.f32.gmra.mxu0 %v3374
      %v3486 = vpop.f32.mrf.mxu0
      %v3487 = vadd.f32 0.0, %v3486
      %3488 = vmatmul.f32.gmra.mxu0 %v3377
      %v3489 = vpop.f32.mrf.mxu0
      %v3490 = vadd.f32 0.0, %v3489
      %3491 = vmatmul.f32.gmra.mxu0 %v3380
      %v3492 = vpop.f32.mrf.mxu0
      %v3493 = vadd.f32 0.0, %v3492
      %3494 = vmatmul.f32.gmra.mxu0 %v3383
      %v3495 = vpop.f32.mrf.mxu0
      %v3496 = vadd.f32 0.0, %v3495
      %3497 = vmatmul.f32.gmra.mxu0 %v3386
      %v3498 = vpop.f32.mrf.mxu0
      %v3499 = vadd.f32 0.0, %v3498
      %3500 = vmatmul.f32.gmra.mxu0 %v3389
      %v3501 = vpop.f32.mrf.mxu0
      %v3502 = vadd.f32 0.0, %v3501
      %3503 = vmatmul.f32.gmra.mxu0 %v3392
      %v3504 = vpop.f32.mrf.mxu0
      %v3505 = vadd.f32 0.0, %v3504
      %3506 = vmatmul.f32.gmra.mxu0 %v3395
      %v3507 = vpop.f32.mrf.mxu0
      %v3508 = vadd.f32 0.0, %v3507
      %3509 = vmatmul.f32.gmra.mxu0 %v3398
      %v3510 = vpop.f32.mrf.mxu0
      %v3511 = vadd.f32 0.0, %v3510
      %3512 = vmatmul.f32.gmra.mxu0 %v3401
      %v3513 = vpop.f32.mrf.mxu0
      %v3514 = vadd.f32 0.0, %v3513
      %3515 = vmatmul.f32.gmra.mxu0 %v3404
      %v3516 = vpop.f32.mrf.mxu0
      %v3517 = vadd.f32 0.0, %v3516
      %3518 = vmatmul.f32.gmra.mxu0 %v3407
      %v3519 = vpop.f32.mrf.mxu0
      %v3520 = vadd.f32 0.0, %v3519
      %3521 = vmatmul.f32.gmra.mxu0 %v3410
      %v3522 = vpop.f32.mrf.mxu0
      %v3523 = vadd.f32 0.0, %v3522
      %3524 = vmatmul.f32.gmra.mxu0 %v3413
      %v3525 = vpop.f32.mrf.mxu0
      %v3526 = vadd.f32 0.0, %v3525
      %3527 = vmatmul.f32.gmra.mxu0 %v3416
      %v3528 = vpop.f32.mrf.mxu0
      %v3529 = vadd.f32 0.0, %v3528
      %3530 = vmatmul.f32.gmra.mxu0 %v3419
      %v3531 = vpop.f32.mrf.mxu0
      %v3532 = vadd.f32 0.0, %v3531
      %3533 = vmatmul.f32.gmra.mxu0 %v3422
      %v3534 = vpop.f32.mrf.mxu0
      %v3535 = vadd.f32 0.0, %v3534
      %3536 = vmatmul.f32.gmra.mxu0 %v3425
      %v3537 = vpop.f32.mrf.mxu0
      %v3538 = vadd.f32 0.0, %v3537
      %3539 = vmatmul.f32.gmra.mxu0 %v3428
      %v3540 = vpop.f32.mrf.mxu0
      %v3541 = vadd.f32 0.0, %v3540
      %3542 = vmatmul.f32.gmra.mxu0 %v3431
      %v3543 = vpop.f32.mrf.mxu0
      %v3544 = vadd.f32 0.0, %v3543
      %3545 = vmatmul.f32.gmra.mxu0 %v3434
      %v3546 = vpop.f32.mrf.mxu0
      %v3547 = vadd.f32 0.0, %v3546
      %3548 = vdwg.mxu0
      %v3549 = vadd.f32 %v3179, %v3454
      %v3550 = vadd.f32 %v3180, %v3457
      %v3551 = vadd.f32 %v3181, %v3460
      %v3552 = vadd.f32 %v3182, %v3463
      %v3553 = vadd.f32 %v3183, %v3466
      %v3554 = vadd.f32 %v3184, %v3469
      %v3555 = vadd.f32 %v3185, %v3472
      %v3556 = vadd.f32 %v3186, %v3475
      %v3557 = vadd.f32 %v3187, %v3478
      %v3558 = vadd.f32 %v3188, %v3481
      %v3559 = vadd.f32 %v3189, %v3484
      %v3560 = vadd.f32 %v3190, %v3487
      %v3561 = vadd.f32 %v3191, %v3490
      %v3562 = vadd.f32 %v3192, %v3493
      %v3563 = vadd.f32 %v3193, %v3496
      %v3564 = vadd.f32 %v3194, %v3499
      %v3565 = vadd.f32 %v3195, %v3502
      %v3566 = vadd.f32 %v3196, %v3505
      %v3567 = vadd.f32 %v3197, %v3508
      %v3568 = vadd.f32 %v3198, %v3511
      %v3569 = vadd.f32 %v3199, %v3514
      %v3570 = vadd.f32 %v3200, %v3517
      %v3571 = vadd.f32 %v3201, %v3520
      %v3572 = vadd.f32 %v3202, %v3523
      %v3573 = vadd.f32 %v3203, %v3526
      %v3574 = vadd.f32 %v3204, %v3529
      %v3575 = vadd.f32 %v3205, %v3532
      %v3576 = vadd.f32 %v3206, %v3535
      %v3577 = vadd.f32 %v3207, %v3538
      %v3578 = vadd.f32 %v3208, %v3541
      %v3579 = vadd.f32 %v3209, %v3544
      %v3580 = vadd.f32 %v3210, %v3547
      %3581 = vst [vmem:[%s208] sm:$0xff] %v3549
      %3582 = vst [vmem:[%s208 + $0x8] sm:$0xff] %v3550
      %3583 = vst [vmem:[%s208 + $0x10] sm:$0xff] %v3551
      %3584 = vst [vmem:[%s208 + $0x18] sm:$0xff] %v3552
      %3585 = vst [vmem:[%s208 + $0x20] sm:$0xff] %v3553
      %3586 = vst [vmem:[%s208 + $0x28] sm:$0xff] %v3554
      %3587 = vst [vmem:[%s208 + $0x30] sm:$0xff] %v3555
      %3588 = vst [vmem:[%s208 + $0x38] sm:$0xff] %v3556
      %3589 = vst [vmem:[%s208 + $0x40] sm:$0xff] %v3557
      %3590 = vst [vmem:[%s208 + $0x48] sm:$0xff] %v3558
      %3591 = vst [vmem:[%s208 + $0x50] sm:$0xff] %v3559
      %3592 = vst [vmem:[%s208 + $0x58] sm:$0xff] %v3560
      %3593 = vst [vmem:[%s208 + $0x60] sm:$0xff] %v3561
      %3594 = vst [vmem:[%s208 + $0x68] sm:$0xff] %v3562
      %3595 = vst [vmem:[%s208 + $0x70] sm:$0xff] %v3563
      %3596 = vst [vmem:[%s208 + $0x78] sm:$0xff] %v3564
      %3597 = vst [vmem:[%s208 + $0x80] sm:$0xff] %v3565
      %3598 = vst [vmem:[%s208 + $0x88] sm:$0xff] %v3566
      %3599 = vst [vmem:[%s208 + $0x90] sm:$0xff] %v3567
      %3600 = vst [vmem:[%s208 + $0x98] sm:$0xff] %v3568
      %3601 = vst [vmem:[%s208 + $0xa0] sm:$0xff] %v3569
      %3602 = vst [vmem:[%s208 + $0xa8] sm:$0xff] %v3570
      %3603 = vst [vmem:[%s208 + $0xb0] sm:$0xff] %v3571
      %3604 = vst [vmem:[%s208 + $0xb8] sm:$0xff] %v3572
      %3605 = vst [vmem:[%s208 + $0xc0] sm:$0xff] %v3573
      %3606 = vst [vmem:[%s208 + $0xc8] sm:$0xff] %v3574
      %3607 = vst [vmem:[%s208 + $0xd0] sm:$0xff] %v3575
      %3608 = vst [vmem:[%s208 + $0xd8] sm:$0xff] %v3576
      %3609 = vst [vmem:[%s208 + $0xe0] sm:$0xff] %v3577
      %3610 = vst [vmem:[%s208 + $0xe8] sm:$0xff] %v3578
      %3611 = vst [vmem:[%s208 + $0xf0] sm:$0xff] %v3579
      %3612 = vst [vmem:[%s208 + $0xf8] sm:$0xff] %v3580
      %v3613 = vadd.f32 %v3549, %v3550
      %v3614 = vadd.f32 %v3613, %v3551
      %v3615 = vadd.f32 %v3614, %v3552
      %v3616 = vadd.f32 %v3615, %v3553
      %v3617 = vadd.f32 %v3616, %v3554
      %v3618 = vadd.f32 %v3617, %v3555
      %v3619 = vadd.f32 %v3618, %v3556
      %v3620 = vadd.f32 %v3619, %v3557
      %v3621 = vadd.f32 %v3620, %v3558
      %v3622 = vadd.f32 %v3621, %v3559
      %v3623 = vadd.f32 %v3622, %v3560
      %v3624 = vadd.f32 %v3623, %v3561
      %v3625 = vadd.f32 %v3624, %v3562
      %v3626 = vadd.f32 %v3625, %v3563
      %v3627 = vadd.f32 %v3626, %v3564
      %v3628 = vadd.f32 %v3627, %v3565
      %v3629 = vadd.f32 %v3628, %v3566
      %v3630 = vadd.f32 %v3629, %v3567
      %v3631 = vadd.f32 %v3630, %v3568
      %v3632 = vadd.f32 %v3631, %v3569
      %v3633 = vadd.f32 %v3632, %v3570
      %v3634 = vadd.f32 %v3633, %v3571
      %v3635 = vadd.f32 %v3634, %v3572
      %v3636 = vadd.f32 %v3635, %v3573
      %v3637 = vadd.f32 %v3636, %v3574
      %v3638 = vadd.f32 %v3637, %v3575
      %v3639 = vadd.f32 %v3638, %v3576
      %v3640 = vadd.f32 %v3639, %v3577
      %v3641 = vadd.f32 %v3640, %v3578
      %v3642 = vadd.f32 %v3641, %v3579
      %v3643 = vadd.f32 %v3642, %v3580
      %v3644 = vrot.slane %v3643, 4
      %v3645 = vadd.f32 %v3643, %v3644
      %v3646 = vrot.slane %v3645, 2
      %v3647 = vadd.f32 %v3645, %v3646
      %v3648 = vrot.slane %v3647, 1
      %v3649 = vadd.f32 %v3647, %v3648
      %3650 = vst [vmem:[%s211] sm:$0x1] %v3649
      %v3651 = vmul.f32 %v3549, %v3549
      %v3652 = vmul.f32 %v3550, %v3550
      %v3653 = vmul.f32 %v3551, %v3551
      %v3654 = vmul.f32 %v3552, %v3552
      %v3655 = vmul.f32 %v3553, %v3553
      %v3656 = vmul.f32 %v3554, %v3554
      %v3657 = vmul.f32 %v3555, %v3555
      %v3658 = vmul.f32 %v3556, %v3556
      %v3659 = vmul.f32 %v3557, %v3557
      %v3660 = vmul.f32 %v3558, %v3558
      %v3661 = vmul.f32 %v3559, %v3559
      %v3662 = vmul.f32 %v3560, %v3560
      %v3663 = vmul.f32 %v3561, %v3561
      %v3664 = vmul.f32 %v3562, %v3562
      %v3665 = vmul.f32 %v3563, %v3563
      %v3666 = vmul.f32 %v3564, %v3564
      %v3667 = vmul.f32 %v3565, %v3565
      %v3668 = vmul.f32 %v3566, %v3566
      %v3669 = vmul.f32 %v3567, %v3567
      %v3670 = vmul.f32 %v3568, %v3568
      %v3671 = vmul.f32 %v3569, %v3569
      %v3672 = vmul.f32 %v3570, %v3570
      %v3673 = vmul.f32 %v3571, %v3571
      %v3674 = vmul.f32 %v3572, %v3572
      %v3675 = vmul.f32 %v3573, %v3573
      %v3676 = vmul.f32 %v3574, %v3574
      %v3677 = vmul.f32 %v3575, %v3575
      %v3678 = vmul.f32 %v3576, %v3576
      %v3679 = vmul.f32 %v3577, %v3577
      %v3680 = vmul.f32 %v3578, %v3578
      %v3681 = vmul.f32 %v3579, %v3579
      %v3682 = vmul.f32 %v3580, %v3580
      %v3683 = vadd.f32 %v3651, %v3652
      %v3684 = vadd.f32 %v3683, %v3653
      %v3685 = vadd.f32 %v3684, %v3654
      %v3686 = vadd.f32 %v3685, %v3655
      %v3687 = vadd.f32 %v3686, %v3656
      %v3688 = vadd.f32 %v3687, %v3657
      %v3689 = vadd.f32 %v3688, %v3658
      %v3690 = vadd.f32 %v3689, %v3659
      %v3691 = vadd.f32 %v3690, %v3660
      %v3692 = vadd.f32 %v3691, %v3661
      %v3693 = vadd.f32 %v3692, %v3662
      %v3694 = vadd.f32 %v3693, %v3663
      %v3695 = vadd.f32 %v3694, %v3664
      %v3696 = vadd.f32 %v3695, %v3665
      %v3697 = vadd.f32 %v3696, %v3666
      %v3698 = vadd.f32 %v3697, %v3667
      %v3699 = vadd.f32 %v3698, %v3668
      %v3700 = vadd.f32 %v3699, %v3669
      %v3701 = vadd.f32 %v3700, %v3670
      %v3702 = vadd.f32 %v3701, %v3671
      %v3703 = vadd.f32 %v3702, %v3672
      %v3704 = vadd.f32 %v3703, %v3673
      %v3705 = vadd.f32 %v3704, %v3674
      %v3706 = vadd.f32 %v3705, %v3675
      %v3707 = vadd.f32 %v3706, %v3676
      %v3708 = vadd.f32 %v3707, %v3677
      %v3709 = vadd.f32 %v3708, %v3678
      %v3710 = vadd.f32 %v3709, %v3679
      %v3711 = vadd.f32 %v3710, %v3680
      %v3712 = vadd.f32 %v3711, %v3681
      %v3713 = vadd.f32 %v3712, %v3682
      %v3714 = vrot.slane %v3713, 4
      %v3715 = vadd.f32 %v3713, %v3714
      %v3716 = vrot.slane %v3715, 2
      %v3717 = vadd.f32 %v3715, %v3716
      %v3718 = vrot.slane %v3717, 1
      %v3719 = vadd.f32 %v3717, %v3718
      %3720 = vst [vmem:[%s214] sm:$0x1] %v3719
      %p3721 = scmp.lt.s32.totalorder %s16, 1
      %s3722 = scalar_select %p3721, %s16, 1
      %s3723 = smul.addr %s3722, 32
      %s3724 = smul.addr %s3723, 8
      %s3725 = scalar_lea.vmem %s2, %s3724
      %p3726 = scmp.lt.s32.totalorder %s16, 1
      %s3727 = scalar_select %p3726, %s16, 1
      %s3728 = scalar_lea.vmem %s3, %s3727
      %p3729 = scmp.lt.s32.totalorder %s16, 1
      %s3730 = scalar_select %p3729, %s16, 1
      %s3731 = scalar_lea.vmem %s4, %s3730
      // Predicated region
      $region29: #{double_conv.3} parent=27 // pred_check
        %p3732 = pneg %p81
      $region30: #{double_conv.3} parent=27 // pred_check_branch
        %3734 = sbr.rel (%p3732) target = $region32
      $region31: #{double_conv.3} parent=27 // pred_region
        _
      $region32: #{double_conv.3} parent=27 // pred_fallthru
        _
      // Predicated region
      $region33: #{double_conv.3} parent=27 // pred_check
        %p3735 = pneg %p107
      $region34: #{double_conv.3} parent=27 // pred_check_branch
        %3737 = sbr.rel (%p3735) target = $region36
      $region35: #{double_conv.3} parent=27 // pred_region
        _
      $region36: #{double_conv.3} parent=27 // pred_fallthru
        _
      // Predicated region
      $region37: #{double_conv.3} parent=27 // pred_check
        %p3738 = pneg %p133
      $region38: #{double_conv.3} parent=27 // pred_check_branch
        %3740 = sbr.rel (%p3738) target = $region40
      $region39: #{double_conv.3} parent=27 // pred_region
        _
      $region40: #{double_conv.3} parent=27 // pred_fallthru
        _
    $region28: #{double_conv.3} parent=5 // pred_fallthru
      _
    %p3741 = scmp.le.s32.totalorder 2, %s11
    // Predicated region
    $region41: #{double_conv.3} parent=5 // pred_check
      %p3742 = pneg %p3741
    $region42: #{double_conv.3} parent=5 // pred_check_branch
      %3744 = sbr.rel (%p3742) target = $region44
    $region43: #{double_conv.3} parent=5 // pred_region
      %s3745 = ssub.s32 %s11, 2
      // Predicated region
      $region45: #{double_conv.3} parent=43 // pred_check
        %p3746 = pneg %p87
      $region46: #{double_conv.3} parent=43 // pred_check_branch
        %3748 = sbr.rel (%p3746) target = $region48
      $region47: #{double_conv.3} parent=43 // pred_region
        %p3749 = scmp.lt.s32.totalorder %s17, 1
        %s3750 = scalar_select %p3749, %s17, 1
        %s3751 = smul.addr %s3750, 32
        %s3752 = smul.addr %s3751, 8
        %s3753 = scalar_lea.vmem %s2, %s3752
      $region48: #{double_conv.3} parent=43 // pred_fallthru
        _
      // Predicated region
      $region49: #{double_conv.3} parent=43 // pred_check
        %p3754 = pneg %p113
      $region50: #{double_conv.3} parent=43 // pred_check_branch
        %3756 = sbr.rel (%p3754) target = $region52
      $region51: #{double_conv.3} parent=43 // pred_region
        %p3757 = scmp.lt.s32.totalorder %s17, 1
        %s3758 = scalar_select %p3757, %s17, 1
        %s3759 = scalar_lea.vmem %s3, %s3758
      $region52: #{double_conv.3} parent=43 // pred_fallthru
        _
      // Predicated region
      $region53: #{double_conv.3} parent=43 // pred_check
        %p3760 = pneg %p139
      $region54: #{double_conv.3} parent=43 // pred_check_branch
        %3762 = sbr.rel (%p3760) target = $region56
      $region55: #{double_conv.3} parent=43 // pred_region
        %p3763 = scmp.lt.s32.totalorder %s17, 1
        %s3764 = scalar_select %p3763, %s17, 1
        %s3765 = scalar_lea.vmem %s4, %s3764
      $region56: #{double_conv.3} parent=43 // pred_fallthru
        _
    $region44: #{double_conv.3} parent=5 // pred_fallthru
      _
  $region6: #{double_conv.3} parent=0 // loop_footer
    %s15 = sadd.s32 1, %s11
  $region7: #{double_conv.3} parent=0 // loop_footer_branch
    %10 = sbr.rel target = $region3
  $region8: #{double_conv.3} parent=0 // loop_exit
    _

// kernel: double_conv.4
$region0: #{double_conv.4}
  #allocation0 [shape = 'u32[]', space=smem, size = 0x4, offset = 0x4, fixed_abs, tag = 'smem constant byte address 0x4 - core index']
  #allocation1 [shape = 'u32[72,128]{1,0:T(1,128)}', space=vmem, size = 0x9000, scoped, tag = 'internal scratch']
  %s0 = inlined_call_operand.vmem [shape: f32[2,256,128], index: 0, kind: input, shape index: {}]
  %s1 = inlined_call_operand.vmem [shape: f32[1,128], index: 1, kind: input, shape index: {}]
  %s2 = inlined_call_operand.vmem [shape: f32[1,128], index: 2, kind: input, shape index: {}]
  %s3 = inlined_call_operand.vmem [shape: f32[1152,128], index: 3, kind: input, shape index: {}]
  %s4 = inlined_call_operand.vmem [shape: f32[2,256,128], index: 4, kind: output, shape index: {0}]
  %s5 = inlined_call_operand.vmem [shape: f32[2,1,128], index: 5, kind: output, shape index: {1}]
  %s6 = inlined_call_operand.vmem [shape: f32[2,1,128], index: 6, kind: output, shape index: {2}]
  %7 = xla_tuple %s4, %s5, %s6
  %s8 = sld [smem:[#allocation0]]
  $region65: #{double_conv.4} parent=0
    _
  %s10 = ssub.s32 1, %s8
  %s11 = scalar_select 0, %s10, %s8
  loop: start=0, step=1, limit=4
  $region2: #{double_conv.4} parent=0 // loop_pre_header
    _
  $region3: #{double_conv.4} parent=0 // loop_header
    %s13 = sphi 0, %s17
    %p14 = scmp.ge.s32.totalorder %s13, 4
    %s23 = sphi 0, %s25
    %s26 = sphi 0, %s23
    %s27 = sphi 0, %s26
    %s43 = sphi 0, %s27
    %s47 = sphi 0, %s47
    %s49 = sphi 0, %s47
    %s50 = sphi 0, %s49
    %s64 = sphi 0, %s50
    %s68 = sphi 0, %s68
    %s70 = sphi 0, %s68
    %s71 = sphi 0, %s70
    %s85 = sphi 0, %s71
    %s89 = sphi 0, %s89
    %s91 = sphi 0, %s89
    %s92 = sphi 0, %s91
    %s106 = sphi 0, %s92
    %s112 = sphi 0, %s114
    %s115 = sphi 0, %s112
    %s116 = sphi 0, %s115
    %s132 = sphi 0, %s116
    %s138 = sphi 0, %s140
    %s141 = sphi 0, %s138
    %s142 = sphi 0, %s141
    %s158 = sphi 0, %s142
    %s164 = sphi 0, %s166
    %s167 = sphi 0, %s164
    %s168 = sphi 0, %s167
    %s184 = sphi 0, %s168
  $region4: #{double_conv.4} parent=0 // loop_header_branch
    %16 = sbr.rel (%p14) target = $region8
  $region5: #{double_conv.4} parent=0 // loop_body
    %s18 = ssub.s32 %s13, 1
    %s19 = ssub.s32 %s13, 2
    %s20 = sadd.s32 %s13, 1
    %s21 = ssub.s32 %s13, %s20
    %p22 = scmp.eq.s32.totalorder %s21, 0
    %s24 = sadd.s32 %s23, 1
    %s25 = scalar_select %p22, %s23, %s24
    %p28 = pneg %p22
    %p29 = scmp.eq.s32.totalorder %s13, 1
    %p30 = por %p28, %p29
    %p31 = scmp.ne.s32.totalorder %s23, %s26
    %p32 = scmp.eq.s32.totalorder %s13, 0
    %p33 = por %p31, %p32
    %p34 = scmp.ne.s32.totalorder %s23, %s26
    %p35 = scmp.eq.s32.totalorder %s18, 1
    %p36 = por %p34, %p35
    %p37 = scmp.ne.s32.totalorder %s26, %s27
    %p38 = scmp.eq.s32.totalorder %s18, 0
    %p39 = por %p37, %p38
    %p40 = scmp.ne.s32.totalorder %s26, %s27
    %p41 = scmp.eq.s32.totalorder %s19, 1
    %p42 = por %p40, %p41
    %p44 = scmp.ne.s32.totalorder %s27, %s43
    %p45 = scmp.eq.s32.totalorder %s19, 0
    %p46 = por %p44, %p45
    %s48 = sadd.s32 %s47, 1
    %p51 = scmp.eq.s32.totalorder %s13, 1
    %p52 = scmp.ne.s32.totalorder %s47, %s49
    %p53 = scmp.eq.s32.totalorder %s13, 0
    %p54 = por %p52, %p53
    %p55 = scmp.ne.s32.totalorder %s47, %s49
    %p56 = scmp.eq.s32.totalorder %s18, 1
    %p57 = por %p55, %p56
    %p58 = scmp.ne.s32.totalorder %s49, %s50
    %p59 = scmp.eq.s32.totalorder %s18, 0
    %p60 = por %p58, %p59
    %p61 = scmp.ne.s32.totalorder %s49, %s50
    %p62 = scmp.eq.s32.totalorder %s19, 1
    %p63 = por %p61, %p62
    %p65 = scmp.ne.s32.totalorder %s50, %s64
    %p66 = scmp.eq.s32.totalorder %s19, 0
    %p67 = por %p65, %p66
    %s69 = sadd.s32 %s68, 1
    %p72 = scmp.eq.s32.totalorder %s13, 1
    %p73 = scmp.ne.s32.totalorder %s68, %s70
    %p74 = scmp.eq.s32.totalorder %s13, 0
    %p75 = por %p73, %p74
    %p76 = scmp.ne.s32.totalorder %s68, %s70
    %p77 = scmp.eq.s32.totalorder %s18, 1
    %p78 = por %p76, %p77
    %p79 = scmp.ne.s32.totalorder %s70, %s71
    %p80 = scmp.eq.s32.totalorder %s18, 0
    %p81 = por %p79, %p80
    %p82 = scmp.ne.s32.totalorder %s70, %s71
    %p83 = scmp.eq.s32.totalorder %s19, 1
    %p84 = por %p82, %p83
    %p86 = scmp.ne.s32.totalorder %s71, %s85
    %p87 = scmp.eq.s32.totalorder %s19, 0
    %p88 = por %p86, %p87
    %s90 = sadd.s32 %s89, 1
    %p93 = scmp.eq.s32.totalorder %s13, 1
    %p94 = scmp.ne.s32.totalorder %s89, %s91
    %p95 = scmp.eq.s32.totalorder %s13, 0
    %p96 = por %p94, %p95
    %p97 = scmp.ne.s32.totalorder %s89, %s91
    %p98 = scmp.eq.s32.totalorder %s18, 1
    %p99 = por %p97, %p98
    %p100 = scmp.ne.s32.totalorder %s91, %s92
    %p101 = scmp.eq.s32.totalorder %s18, 0
    %p102 = por %p100, %p101
    %p103 = scmp.ne.s32.totalorder %s91, %s92
    %p104 = scmp.eq.s32.totalorder %s19, 1
    %p105 = por %p103, %p104
    %p107 = scmp.ne.s32.totalorder %s92, %s106
    %p108 = scmp.eq.s32.totalorder %s19, 0
    %p109 = por %p107, %p108
    %s110 = ssub.s32 %s13, %s20
    %p111 = scmp.eq.s32.totalorder %s110, 0
    %s113 = sadd.s32 %s112, 1
    %s114 = scalar_select %p111, %s112, %s113
    %p117 = pneg %p111
    %p118 = scmp.eq.s32.totalorder %s13, 1
    %p119 = por %p117, %p118
    %p120 = scmp.ne.s32.totalorder %s112, %s115
    %p121 = scmp.eq.s32.totalorder %s13, 0
    %p122 = por %p120, %p121
    %p123 = scmp.ne.s32.totalorder %s112, %s115
    %p124 = scmp.eq.s32.totalorder %s18, 1
    %p125 = por %p123, %p124
    %p126 = scmp.ne.s32.totalorder %s115, %s116
    %p127 = scmp.eq.s32.totalorder %s18, 0
    %p128 = por %p126, %p127
    %p129 = scmp.ne.s32.totalorder %s115, %s116
    %p130 = scmp.eq.s32.totalorder %s19, 1
    %p131 = por %p129, %p130
    %p133 = scmp.ne.s32.totalorder %s116, %s132
    %p134 = scmp.eq.s32.totalorder %s19, 0
    %p135 = por %p133, %p134
    %s136 = ssub.s32 %s13, %s20
    %p137 = scmp.eq.s32.totalorder %s136, 0
    %s139 = sadd.s32 %s138, 1
    %s140 = scalar_select %p137, %s138, %s139
    %p143 = pneg %p137
    %p144 = scmp.eq.s32.totalorder %s13, 1
    %p145 = por %p143, %p144
    %p146 = scmp.ne.s32.totalorder %s138, %s141
    %p147 = scmp.eq.s32.totalorder %s13, 0
    %p148 = por %p146, %p147
    %p149 = scmp.ne.s32.totalorder %s138, %s141
    %p150 = scmp.eq.s32.totalorder %s18, 1
    %p151 = por %p149, %p150
    %p152 = scmp.ne.s32.totalorder %s141, %s142
    %p153 = scmp.eq.s32.totalorder %s18, 0
    %p154 = por %p152, %p153
    %p155 = scmp.ne.s32.totalorder %s141, %s142
    %p156 = scmp.eq.s32.totalorder %s19, 1
    %p157 = por %p155, %p156
    %p159 = scmp.ne.s32.totalorder %s142, %s158
    %p160 = scmp.eq.s32.totalorder %s19, 0
    %p161 = por %p159, %p160
    %s162 = ssub.s32 %s13, %s20
    %p163 = scmp.eq.s32.totalorder %s162, 0
    %s165 = sadd.s32 %s164, 1
    %s166 = scalar_select %p163, %s164, %s165
    %p169 = pneg %p163
    %p170 = scmp.eq.s32.totalorder %s13, 1
    %p171 = por %p169, %p170
    %p172 = scmp.ne.s32.totalorder %s164, %s167
    %p173 = scmp.eq.s32.totalorder %s13, 0
    %p174 = por %p172, %p173
    %p175 = scmp.ne.s32.totalorder %s164, %s167
    %p176 = scmp.eq.s32.totalorder %s18, 1
    %p177 = por %p175, %p176
    %p178 = scmp.ne.s32.totalorder %s167, %s168
    %p179 = scmp.eq.s32.totalorder %s18, 0
    %p180 = por %p178, %p179
    %p181 = scmp.ne.s32.totalorder %s167, %s168
    %p182 = scmp.eq.s32.totalorder %s19, 1
    %p183 = por %p181, %p182
    %p185 = scmp.ne.s32.totalorder %s168, %s184
    %p186 = scmp.eq.s32.totalorder %s19, 0
    %p187 = por %p185, %p186
    %p188 = scmp.le.s32.totalorder 1, %s13
    %p189 = scmp.lt.s32.totalorder %s13, 3
    %p190 = pnand %p188, %p189
    %p191 = pneg %p190
    // Predicated region
    $region9: #{double_conv.4} parent=5 // pred_check
      _
    $region10: #{double_conv.4} parent=5 // pred_check_branch
      %193 = sbr.rel (%p190) target = $region12
    $region11: #{double_conv.4} parent=5 // pred_region
      %s194 = ssub.s32 %s13, 1
      // Predicated region
      $region13: #{double_conv.4} parent=11 // pred_check
        %p195 = pneg %p60
      $region14: #{double_conv.4} parent=11 // pred_check_branch
        %197 = sbr.rel (%p195) target = $region16
      $region15: #{double_conv.4} parent=11 // pred_region
        _
      $region16: #{double_conv.4} parent=11 // pred_fallthru
        _
      // Predicated region
      $region17: #{double_conv.4} parent=11 // pred_check
        %p198 = pneg %p81
      $region18: #{double_conv.4} parent=11 // pred_check_branch
        %200 = sbr.rel (%p198) target = $region20
      $region19: #{double_conv.4} parent=11 // pred_region
        _
      $region20: #{double_conv.4} parent=11 // pred_fallthru
        _
      // Predicated region
      $region21: #{double_conv.4} parent=11 // pred_check
        %p201 = pneg %p102
      $region22: #{double_conv.4} parent=11 // pred_check_branch
        %203 = sbr.rel (%p201) target = $region24
      $region23: #{double_conv.4} parent=11 // pred_region
        _
      $region24: #{double_conv.4} parent=11 // pred_fallthru
        _
    $region12: #{double_conv.4} parent=5 // pred_fallthru
      _
    %p204 = scmp.lt.s32.totalorder %s13, 2
    // Predicated region
    $region25: #{double_conv.4} parent=5 // pred_check
      %p205 = pneg %p204
    $region26: #{double_conv.4} parent=5 // pred_check_branch
      %207 = sbr.rel (%p205) target = $region28
    $region27: #{double_conv.4} parent=5 // pred_region
      // Predicated region
      $region29: #{double_conv.4} parent=27 // pred_check
        %p208 = pneg %p33
      $region30: #{double_conv.4} parent=27 // pred_check_branch
        %210 = sbr.rel (%p208) target = $region32
      $region31: #{double_conv.4} parent=27 // pred_region
        %p211 = scmp.lt.s32.totalorder %s13, 1
        %s212 = scalar_select %p211, %s13, 1
        %s213 = smul.addr %s212, 32
        %s214 = smul.addr %s213, 8
        %s215 = scalar_lea.vmem %s0, %s214
      $region32: #{double_conv.4} parent=27 // pred_fallthru
        _
    $region28: #{double_conv.4} parent=5 // pred_fallthru
      _
    %p216 = scmp.le.s32.totalorder 1, %s13
    %p217 = scmp.lt.s32.totalorder %s13, 3
    %p218 = pnand %p216, %p217
    %p219 = pneg %p218
    // Predicated region
    $region33: #{double_conv.4} parent=5 // pred_check
      _
    $region34: #{double_conv.4} parent=5 // pred_check_branch
      %221 = sbr.rel (%p218) target = $region36
    $region35: #{double_conv.4} parent=5 // pred_region
      %s222 = ssub.s32 %s13, 1
      %p223 = scmp.lt.s32.totalorder %s18, 1
      %s224 = scalar_select %p223, %s18, 1
      %s225 = smul.addr %s224, 32
      %s226 = smul.addr %s225, 8
      %s227 = scalar_lea.vmem %s0, %s226
      %p228 = pneg %p39
      %p229 = pneg %p36
      %p230 = pneg %p60
      %p231 = pneg %p57
      %p232 = pneg %p81
      %p233 = pneg %p78
      %p234 = pneg %p102
      %p235 = pneg %p99
      %p236 = pneg %p128
      %p237 = pneg %p125
      %p238 = scmp.lt.s32.totalorder %s18, 1
      %s239 = scalar_select %p238, %s18, 1
      %s240 = smul.addr %s239, 32
      %s241 = smul.addr %s240, 8
      %s242 = scalar_lea.vmem %s4, %s241
      %p243 = pneg %p154
      %p244 = pneg %p151
      %p245 = scmp.lt.s32.totalorder %s18, 1
      %s246 = scalar_select %p245, %s18, 1
      %s247 = scalar_lea.vmem %s5, %s246
      %p248 = pneg %p180
      %p249 = pneg %p177
      %p250 = scmp.lt.s32.totalorder %s18, 1
      %s251 = scalar_select %p250, %s18, 1
      %s252 = scalar_lea.vmem %s6, %s251
      %p253 = scmp.lt.s32.totalorder %s18, 1
      %s254 = scalar_select %p253, %s18, 1
      %s255 = smul.addr %s254, 32
      %s256 = smul.addr %s255, 8
      %s257 = scalar_lea.vmem %s0, %s256
      %p258 = scmp.lt.s32.totalorder %s18, 1
      %s259 = scalar_select %p258, %s18, 1
      %s260 = smul.addr %s259, 32
      %s261 = smul.addr %s260, 8
      %s262 = scalar_lea.vmem %s4, %s261
      %p263 = scmp.lt.s32.totalorder %s18, 1
      %s264 = scalar_select %p263, %s18, 1
      %s265 = scalar_lea.vmem %s5, %s264
      %p266 = scmp.lt.s32.totalorder %s18, 1
      %s267 = scalar_select %p266, %s18, 1
      %s268 = scalar_lea.vmem %s6, %s267
      %v269 = vld [vmem:[%s257] sm:$0xff]
      %v270 = vld [vmem:[%s257 + $0x8] sm:$0xff]
      %v271 = vld [vmem:[%s257 + $0x10] sm:$0xff]
      %v272 = vld [vmem:[%s257 + $0x18] sm:$0xff]
      %v273 = vld [vmem:[%s257 + $0x20] sm:$0xff]
      %v274 = vld [vmem:[%s257 + $0x28] sm:$0xff]
      %v275 = vld [vmem:[%s257 + $0x30] sm:$0xff]
      %v276 = vld [vmem:[%s257 + $0x38] sm:$0xff]
      %v277 = vld [vmem:[%s257 + $0x40] sm:$0xff]
      %v278 = vld [vmem:[%s257 + $0x48] sm:$0xff]
      %v279 = vld [vmem:[%s257 + $0x50] sm:$0xff]
      %v280 = vld [vmem:[%s257 + $0x58] sm:$0xff]
      %v281 = vld [vmem:[%s257 + $0x60] sm:$0xff]
      %v282 = vld [vmem:[%s257 + $0x68] sm:$0xff]
      %v283 = vld [vmem:[%s257 + $0x70] sm:$0xff]
      %v284 = vld [vmem:[%s257 + $0x78] sm:$0xff]
      %v285 = vld [vmem:[%s257 + $0x80] sm:$0xff]
      %v286 = vld [vmem:[%s257 + $0x88] sm:$0xff]
      %v287 = vld [vmem:[%s257 + $0x90] sm:$0xff]
      %v288 = vld [vmem:[%s257 + $0x98] sm:$0xff]
      %v289 = vld [vmem:[%s257 + $0xa0] sm:$0xff]
      %v290 = vld [vmem:[%s257 + $0xa8] sm:$0xff]
      %v291 = vld [vmem:[%s257 + $0xb0] sm:$0xff]
      %v292 = vld [vmem:[%s257 + $0xb8] sm:$0xff]
      %v293 = vld [vmem:[%s257 + $0xc0] sm:$0xff]
      %v294 = vld [vmem:[%s257 + $0xc8] sm:$0xff]
      %v295 = vld [vmem:[%s257 + $0xd0] sm:$0xff]
      %v296 = vld [vmem:[%s257 + $0xd8] sm:$0xff]
      %v297 = vld [vmem:[%s257 + $0xe0] sm:$0xff]
      %v298 = vld [vmem:[%s257 + $0xe8] sm:$0xff]
      %v299 = vld [vmem:[%s257 + $0xf0] sm:$0xff]
      %v300 = vld [vmem:[%s257 + $0xf8] sm:$0xff]
      %v301 = vld [vmem:[%s1] sm:$0x1]
      %v303 = vperm.slane %v301, 0
      %v305 = vmul.f32 %v269, %v303
      %v306 = vmul.f32 %v270, %v303
      %v307 = vmul.f32 %v271, %v303
      %v308 = vmul.f32 %v272, %v303
      %v309 = vmul.f32 %v273, %v303
      %v310 = vmul.f32 %v274, %v303
      %v311 = vmul.f32 %v275, %v303
      %v312 = vmul.f32 %v276, %v303
      %v313 = vmul.f32 %v277, %v303
      %v314 = vmul.f32 %v278, %v303
      %v315 = vmul.f32 %v279, %v303
      %v316 = vmul.f32 %v280, %v303
      %v317 = vmul.f32 %v281, %v303
      %v318 = vmul.f32 %v282, %v303
      %v319 = vmul.f32 %v283, %v303
      %v320 = vmul.f32 %v284, %v303
      %v321 = vmul.f32 %v285, %v303
      %v322 = vmul.f32 %v286, %v303
      %v323 = vmul.f32 %v287, %v303
      %v324 = vmul.f32 %v288, %v303
      %v325 = vmul.f32 %v289, %v303
      %v326 = vmul.f32 %v290, %v303
      %v327 = vmul.f32 %v291, %v303
      %v328 = vmul.f32 %v292, %v303
      %v329 = vmul.f32 %v293, %v303
      %v330 = vmul.f32 %v294, %v303
      %v331 = vmul.f32 %v295, %v303
      %v332 = vmul.f32 %v296, %v303
      %v333 = vmul.f32 %v297, %v303
      %v334 = vmul.f32 %v298, %v303
      %v335 = vmul.f32 %v299, %v303
      %v336 = vmul.f32 %v300, %v303
      %v337 = vld [vmem:[%s2] sm:$0x1]
      %v339 = vperm.slane %v337, 0
      %v341 = vadd.f32 %v305, %v339
      %v342 = vadd.f32 %v306, %v339
      %v343 = vadd.f32 %v307, %v339
      %v344 = vadd.f32 %v308, %v339
      %v345 = vadd.f32 %v309, %v339
      %v346 = vadd.f32 %v310, %v339
      %v347 = vadd.f32 %v311, %v339
      %v348 = vadd.f32 %v312, %v339
      %v349 = vadd.f32 %v313, %v339
      %v350 = vadd.f32 %v314, %v339
      %v351 = vadd.f32 %v315, %v339
      %v352 = vadd.f32 %v316, %v339
      %v353 = vadd.f32 %v317, %v339
      %v354 = vadd.f32 %v318, %v339
      %v355 = vadd.f32 %v319, %v339
      %v356 = vadd.f32 %v320, %v339
      %v357 = vadd.f32 %v321, %v339
      %v358 = vadd.f32 %v322, %v339
      %v359 = vadd.f32 %v323, %v339
      %v360 = vadd.f32 %v324, %v339
      %v361 = vadd.f32 %v325, %v339
      %v362 = vadd.f32 %v326, %v339
      %v363 = vadd.f32 %v327, %v339
      %v364 = vadd.f32 %v328, %v339
      %v365 = vadd.f32 %v329, %v339
      %v366 = vadd.f32 %v330, %v339
      %v367 = vadd.f32 %v331, %v339
      %v368 = vadd.f32 %v332, %v339
      %v369 = vadd.f32 %v333, %v339
      %v370 = vadd.f32 %v334, %v339
      %v371 = vadd.f32 %v335, %v339
      %v372 = vadd.f32 %v336, %v339
      %v373 = vmax.f32 %v341, 0.0
      %v374 = vmax.f32 %v342, 0.0
      %v375 = vmax.f32 %v343, 0.0
      %v376 = vmax.f32 %v344, 0.0
      %v377 = vmax.f32 %v345, 0.0
      %v378 = vmax.f32 %v346, 0.0
      %v379 = vmax.f32 %v347, 0.0
      %v380 = vmax.f32 %v348, 0.0
      %v381 = vmax.f32 %v349, 0.0
      %v382 = vmax.f32 %v350, 0.0
      %v383 = vmax.f32 %v351, 0.0
      %v384 = vmax.f32 %v352, 0.0
      %v385 = vmax.f32 %v353, 0.0
      %v386 = vmax.f32 %v354, 0.0
      %v387 = vmax.f32 %v355, 0.0
      %v388 = vmax.f32 %v356, 0.0
      %v389 = vmax.f32 %v357, 0.0
      %v390 = vmax.f32 %v358, 0.0
      %v391 = vmax.f32 %v359, 0.0
      %v392 = vmax.f32 %v360, 0.0
      %v393 = vmax.f32 %v361, 0.0
      %v394 = vmax.f32 %v362, 0.0
      %v395 = vmax.f32 %v363, 0.0
      %v396 = vmax.f32 %v364, 0.0
      %v397 = vmax.f32 %v365, 0.0
      %v398 = vmax.f32 %v366, 0.0
      %v399 = vmax.f32 %v367, 0.0
      %v400 = vmax.f32 %v368, 0.0
      %v401 = vmax.f32 %v369, 0.0
      %v402 = vmax.f32 %v370, 0.0
      %v403 = vmax.f32 %v371, 0.0
      %v404 = vmax.f32 %v372, 0.0
      %v405 = vlaneseq
      %v406 = vshrl.u32 %v405, 7
      %v407 = vadd.s32 %v406, 8
      %v408 = vadd.s32 %v406, 16
      %v409 = vadd.s32 %v406, 24
      %v410 = vadd.s32 %v406, 32
      %v411 = vadd.s32 %v406, 40
      %v412 = vadd.s32 %v406, 48
      %v413 = vadd.s32 %v406, 56
      %v414 = vadd.s32 %v406, 64
      %v415 = vadd.s32 %v406, 72
      %v416 = vadd.s32 %v406, 80
      %v417 = vadd.s32 %v406, 88
      %v418 = vadd.s32 %v406, 96
      %v419 = vadd.s32 %v406, 104
      %v420 = vadd.s32 %v406, 112
      %v421 = vadd.s32 %v406, 120
      %v422 = vadd.s32 %v406, 128
      %v423 = vadd.s32 %v406, 136
      %v424 = vadd.s32 %v406, 144
      %v425 = vadd.s32 %v406, 152
      %v426 = vadd.s32 %v406, 160
      %v427 = vadd.s32 %v406, 168
      %v428 = vadd.s32 %v406, 176
      %v429 = vadd.s32 %v406, 184
      %v430 = vadd.s32 %v406, 192
      %v431 = vadd.s32 %v406, 200
      %v432 = vadd.s32 %v406, 208
      %v433 = vadd.s32 %v406, 216
      %v434 = vadd.s32 %v406, 224
      %v435 = vadd.s32 %v406, 232
      %v436 = vadd.s32 %v406, 240
      %v437 = vadd.s32 %v406, 248
      %v438 = vand.u32 %v406, 15
      %v439 = vand.u32 %v407, 15
      %v440 = vand.u32 %v408, 15
      %v441 = vand.u32 %v409, 15
      %v442 = vand.u32 %v410, 15
      %v443 = vand.u32 %v411, 15
      %v444 = vand.u32 %v412, 15
      %v445 = vand.u32 %v413, 15
      %v446 = vand.u32 %v414, 15
      %v447 = vand.u32 %v415, 15
      %v448 = vand.u32 %v416, 15
      %v449 = vand.u32 %v417, 15
      %v450 = vand.u32 %v418, 15
      %v451 = vand.u32 %v419, 15
      %v452 = vand.u32 %v420, 15
      %v453 = vand.u32 %v421, 15
      %v454 = vand.u32 %v422, 15
      %v455 = vand.u32 %v423, 15
      %v456 = vand.u32 %v424, 15
      %v457 = vand.u32 %v425, 15
      %v458 = vand.u32 %v426, 15
      %v459 = vand.u32 %v427, 15
      %v460 = vand.u32 %v428, 15
      %v461 = vand.u32 %v429, 15
      %v462 = vand.u32 %v430, 15
      %v463 = vand.u32 %v431, 15
      %v464 = vand.u32 %v432, 15
      %v465 = vand.u32 %v433, 15
      %v466 = vand.u32 %v434, 15
      %v467 = vand.u32 %v435, 15
      %v468 = vand.u32 %v436, 15
      %v469 = vand.u32 %v437, 15
      %vm470 = vcmp.ge.s32.totalorder %v406, 16
      %vm471 = vcmp.ge.s32.totalorder %v407, 16
      %vm472 = vcmp.ge.s32.totalorder %v408, 16
      %vm473 = vcmp.ge.s32.totalorder %v409, 16
      %vm474 = vcmp.ge.s32.totalorder %v410, 16
      %vm475 = vcmp.ge.s32.totalorder %v411, 16
      %vm476 = vcmp.ge.s32.totalorder %v412, 16
      %vm477 = vcmp.ge.s32.totalorder %v413, 16
      %vm478 = vcmp.ge.s32.totalorder %v414, 16
      %vm479 = vcmp.ge.s32.totalorder %v415, 16
      %vm480 = vcmp.ge.s32.totalorder %v416, 16
      %vm481 = vcmp.ge.s32.totalorder %v417, 16
      %vm482 = vcmp.ge.s32.totalorder %v418, 16
      %vm483 = vcmp.ge.s32.totalorder %v419, 16
      %vm484 = vcmp.ge.s32.totalorder %v420, 16
      %vm485 = vcmp.ge.s32.totalorder %v421, 16
      %vm486 = vcmp.ge.s32.totalorder %v422, 16
      %vm487 = vcmp.ge.s32.totalorder %v423, 16
      %vm488 = vcmp.ge.s32.totalorder %v424, 16
      %vm489 = vcmp.ge.s32.totalorder %v425, 16
      %vm490 = vcmp.ge.s32.totalorder %v426, 16
      %vm491 = vcmp.ge.s32.totalorder %v427, 16
      %vm492 = vcmp.ge.s32.totalorder %v428, 16
      %vm493 = vcmp.ge.s32.totalorder %v429, 16
      %vm494 = vcmp.ge.s32.totalorder %v430, 16
      %vm495 = vcmp.ge.s32.totalorder %v431, 16
      %vm496 = vcmp.ge.s32.totalorder %v432, 16
      %vm497 = vcmp.ge.s32.totalorder %v433, 16
      %vm498 = vcmp.ge.s32.totalorder %v434, 16
      %vm499 = vcmp.ge.s32.totalorder %v435, 16
      %vm500 = vcmp.ge.s32.totalorder %v436, 16
      %vm501 = vcmp.ge.s32.totalorder %v437, 16
      %vm502 = vcmp.lt.s32.totalorder %v406, 240
      %vm503 = vcmp.lt.s32.totalorder %v407, 240
      %vm504 = vcmp.lt.s32.totalorder %v408, 240
      %vm505 = vcmp.lt.s32.totalorder %v409, 240
      %vm506 = vcmp.lt.s32.totalorder %v410, 240
      %vm507 = vcmp.lt.s32.totalorder %v411, 240
      %vm508 = vcmp.lt.s32.totalorder %v412, 240
      %vm509 = vcmp.lt.s32.totalorder %v413, 240
      %vm510 = vcmp.lt.s32.totalorder %v414, 240
      %vm511 = vcmp.lt.s32.totalorder %v415, 240
      %vm512 = vcmp.lt.s32.totalorder %v416, 240
      %vm513 = vcmp.lt.s32.totalorder %v417, 240
      %vm514 = vcmp.lt.s32.totalorder %v418, 240
      %vm515 = vcmp.lt.s32.totalorder %v419, 240
      %vm516 = vcmp.lt.s32.totalorder %v420, 240
      %vm517 = vcmp.lt.s32.totalorder %v421, 240
      %vm518 = vcmp.lt.s32.totalorder %v422, 240
      %vm519 = vcmp.lt.s32.totalorder %v423, 240
      %vm520 = vcmp.lt.s32.totalorder %v424, 240
      %vm521 = vcmp.lt.s32.totalorder %v425, 240
      %vm522 = vcmp.lt.s32.totalorder %v426, 240
      %vm523 = vcmp.lt.s32.totalorder %v427, 240
      %vm524 = vcmp.lt.s32.totalorder %v428, 240
      %vm525 = vcmp.lt.s32.totalorder %v429, 240
      %vm526 = vcmp.lt.s32.totalorder %v430, 240
      %vm527 = vcmp.lt.s32.totalorder %v431, 240
      %vm528 = vcmp.lt.s32.totalorder %v432, 240
      %vm529 = vcmp.lt.s32.totalorder %v433, 240
      %vm530 = vcmp.lt.s32.totalorder %v434, 240
      %vm531 = vcmp.lt.s32.totalorder %v435, 240
      %vm532 = vcmp.lt.s32.totalorder %v436, 240
      %vm533 = vcmp.lt.s32.totalorder %v437, 240
      %vm534 = vcmp.ge.s32.totalorder %v438, 1
      %vm535 = vcmp.ge.s32.totalorder %v439, 1
      %vm536 = vcmp.ge.s32.totalorder %v440, 1
      %vm537 = vcmp.ge.s32.totalorder %v441, 1
      %vm538 = vcmp.ge.s32.totalorder %v442, 1
      %vm539 = vcmp.ge.s32.totalorder %v443, 1
      %vm540 = vcmp.ge.s32.totalorder %v444, 1
      %vm541 = vcmp.ge.s32.totalorder %v445, 1
      %vm542 = vcmp.ge.s32.totalorder %v446, 1
      %vm543 = vcmp.ge.s32.totalorder %v447, 1
      %vm544 = vcmp.ge.s32.totalorder %v448, 1
      %vm545 = vcmp.ge.s32.totalorder %v449, 1
      %vm546 = vcmp.ge.s32.totalorder %v450, 1
      %vm547 = vcmp.ge.s32.totalorder %v451, 1
      %vm548 = vcmp.ge.s32.totalorder %v452, 1
      %vm549 = vcmp.ge.s32.totalorder %v453, 1
      %vm550 = vcmp.ge.s32.totalorder %v454, 1
      %vm551 = vcmp.ge.s32.totalorder %v455, 1
      %vm552 = vcmp.ge.s32.totalorder %v456, 1
      %vm553 = vcmp.ge.s32.totalorder %v457, 1
      %vm554 = vcmp.ge.s32.totalorder %v458, 1
      %vm555 = vcmp.ge.s32.totalorder %v459, 1
      %vm556 = vcmp.ge.s32.totalorder %v460, 1
      %vm557 = vcmp.ge.s32.totalorder %v461, 1
      %vm558 = vcmp.ge.s32.totalorder %v462, 1
      %vm559 = vcmp.ge.s32.totalorder %v463, 1
      %vm560 = vcmp.ge.s32.totalorder %v464, 1
      %vm561 = vcmp.ge.s32.totalorder %v465, 1
      %vm562 = vcmp.ge.s32.totalorder %v466, 1
      %vm563 = vcmp.ge.s32.totalorder %v467, 1
      %vm564 = vcmp.ge.s32.totalorder %v468, 1
      %vm565 = vcmp.ge.s32.totalorder %v469, 1
      %vm566 = vcmp.le.s32.totalorder %v438, 14
      %vm567 = vcmp.le.s32.totalorder %v439, 14
      %vm568 = vcmp.le.s32.totalorder %v440, 14
      %vm569 = vcmp.le.s32.totalorder %v441, 14
      %vm570 = vcmp.le.s32.totalorder %v442, 14
      %vm571 = vcmp.le.s32.totalorder %v443, 14
      %vm572 = vcmp.le.s32.totalorder %v444, 14
      %vm573 = vcmp.le.s32.totalorder %v445, 14
      %vm574 = vcmp.le.s32.totalorder %v446, 14
      %vm575 = vcmp.le.s32.totalorder %v447, 14
      %vm576 = vcmp.le.s32.totalorder %v448, 14
      %vm577 = vcmp.le.s32.totalorder %v449, 14
      %vm578 = vcmp.le.s32.totalorder %v450, 14
      %vm579 = vcmp.le.s32.totalorder %v451, 14
      %vm580 = vcmp.le.s32.totalorder %v452, 14
      %vm581 = vcmp.le.s32.totalorder %v453, 14
      %vm582 = vcmp.le.s32.totalorder %v454, 14
      %vm583 = vcmp.le.s32.totalorder %v455, 14
      %vm584 = vcmp.le.s32.totalorder %v456, 14
      %vm585 = vcmp.le.s32.totalorder %v457, 14
      %vm586 = vcmp.le.s32.totalorder %v458, 14
      %vm587 = vcmp.le.s32.totalorder %v459, 14
      %vm588 = vcmp.le.s32.totalorder %v460, 14
      %vm589 = vcmp.le.s32.totalorder %v461, 14
      %vm590 = vcmp.le.s32.totalorder %v462, 14
      %vm591 = vcmp.le.s32.totalorder %v463, 14
      %vm592 = vcmp.le.s32.totalorder %v464, 14
      %vm593 = vcmp.le.s32.totalorder %v465, 14
      %vm594 = vcmp.le.s32.totalorder %v466, 14
      %vm595 = vcmp.le.s32.totalorder %v467, 14
      %vm596 = vcmp.le.s32.totalorder %v468, 14
      %vm597 = vcmp.le.s32.totalorder %v469, 14
      %v598 = vrot.slane %v373, 7
      %v599 = vrot.slane %v374, 7
      %v600 = vrot.slane %v375, 7
      %v601 = vrot.slane %v376, 7
      %v602 = vrot.slane %v377, 7
      %v603 = vrot.slane %v378, 7
      %v604 = vrot.slane %v379, 7
      %v605 = vrot.slane %v380, 7
      %v606 = vrot.slane %v381, 7
      %v607 = vrot.slane %v382, 7
      %v608 = vrot.slane %v383, 7
      %v609 = vrot.slane %v384, 7
      %v610 = vrot.slane %v385, 7
      %v611 = vrot.slane %v386, 7
      %v612 = vrot.slane %v387, 7
      %v613 = vrot.slane %v388, 7
      %v614 = vrot.slane %v389, 7
      %v615 = vrot.slane %v390, 7
      %v616 = vrot.slane %v391, 7
      %v617 = vrot.slane %v392, 7
      %v618 = vrot.slane %v393, 7
      %v619 = vrot.slane %v394, 7
      %v620 = vrot.slane %v395, 7
      %v621 = vrot.slane %v396, 7
      %v622 = vrot.slane %v397, 7
      %v623 = vrot.slane %v398, 7
      %v624 = vrot.slane %v399, 7
      %v625 = vrot.slane %v400, 7
      %v626 = vrot.slane %v401, 7
      %v627 = vrot.slane %v402, 7
      %v628 = vrot.slane %v403, 7
      %v629 = vrot.slane %v404, 7
      %vm630 = vcmp.lt.s32.totalorder %v406, 1
      %v631 = vsel %vm630, %v628, %v629
      %v632 = vsel %vm630, %v627, %v628
      %v633 = vsel %vm630, %v626, %v627
      %v634 = vsel %vm630, %v625, %v626
      %v635 = vsel %vm630, %v624, %v625
      %v636 = vsel %vm630, %v623, %v624
      %v637 = vsel %vm630, %v622, %v623
      %v638 = vsel %vm630, %v621, %v622
      %v639 = vsel %vm630, %v620, %v621
      %v640 = vsel %vm630, %v619, %v620
      %v641 = vsel %vm630, %v618, %v619
      %v642 = vsel %vm630, %v617, %v618
      %v643 = vsel %vm630, %v616, %v617
      %v644 = vsel %vm630, %v615, %v616
      %v645 = vsel %vm630, %v614, %v615
      %v646 = vsel %vm630, %v613, %v614
      %v647 = vsel %vm630, %v612, %v613
      %v648 = vsel %vm630, %v611, %v612
      %v649 = vsel %vm630, %v610, %v611
      %v650 = vsel %vm630, %v609, %v610
      %v651 = vsel %vm630, %v608, %v609
      %v652 = vsel %vm630, %v607, %v608
      %v653 = vsel %vm630, %v606, %v607
      %v654 = vsel %vm630, %v605, %v606
      %v655 = vsel %vm630, %v604, %v605
      %v656 = vsel %vm630, %v603, %v604
      %v657 = vsel %vm630, %v602, %v603
      %v658 = vsel %vm630, %v601, %v602
      %v659 = vsel %vm630, %v600, %v601
      %v660 = vsel %vm630, %v599, %v600
      %v661 = vsel %vm630, %v598, %v599
      %v662 = vsel %vm630, %v629, %v598
      %vm663 = vmand %vm470, %vm534
      %vm664 = vmand %vm471, %vm535
      %vm665 = vmand %vm472, %vm536
      %vm666 = vmand %vm473, %vm537
      %vm667 = vmand %vm474, %vm538
      %vm668 = vmand %vm475, %vm539
      %vm669 = vmand %vm476, %vm540
      %vm670 = vmand %vm477, %vm541
      %vm671 = vmand %vm478, %vm542
      %vm672 = vmand %vm479, %vm543
      %vm673 = vmand %vm480, %vm544
      %vm674 = vmand %vm481, %vm545
      %vm675 = vmand %vm482, %vm546
      %vm676 = vmand %vm483, %vm547
      %vm677 = vmand %vm484, %vm548
      %vm678 = vmand %vm485, %vm549
      %vm679 = vmand %vm486, %vm550
      %vm680 = vmand %vm487, %vm551
      %vm681 = vmand %vm488, %vm552
      %vm682 = vmand %vm489, %vm553
      %vm683 = vmand %vm490, %vm554
      %vm684 = vmand %vm491, %vm555
      %vm685 = vmand %vm492, %vm556
      %vm686 = vmand %vm493, %vm557
      %vm687 = vmand %vm494, %vm558
      %vm688 = vmand %vm495, %vm559
      %vm689 = vmand %vm496, %vm560
      %vm690 = vmand %vm497, %vm561
      %vm691 = vmand %vm498, %vm562
      %vm692 = vmand %vm499, %vm563
      %vm693 = vmand %vm500, %vm564
      %vm694 = vmand %vm501, %vm565
      %v695 = vsel %vm663, 1, 0
      %v696 = vsel %vm664, 1, 0
      %v697 = vsel %vm665, 1, 0
      %v698 = vsel %vm666, 1, 0
      %v699 = vsel %vm667, 1, 0
      %v700 = vsel %vm668, 1, 0
      %v701 = vsel %vm669, 1, 0
      %v702 = vsel %vm670, 1, 0
      %v703 = vsel %vm671, 1, 0
      %v704 = vsel %vm672, 1, 0
      %v705 = vsel %vm673, 1, 0
      %v706 = vsel %vm674, 1, 0
      %v707 = vsel %vm675, 1, 0
      %v708 = vsel %vm676, 1, 0
      %v709 = vsel %vm677, 1, 0
      %v710 = vsel %vm678, 1, 0
      %v711 = vsel %vm679, 1, 0
      %v712 = vsel %vm680, 1, 0
      %v713 = vsel %vm681, 1, 0
      %v714 = vsel %vm682, 1, 0
      %v715 = vsel %vm683, 1, 0
      %v716 = vsel %vm684, 1, 0
      %v717 = vsel %vm685, 1, 0
      %v718 = vsel %vm686, 1, 0
      %v719 = vsel %vm687, 1, 0
      %v720 = vsel %vm688, 1, 0
      %v721 = vsel %vm689, 1, 0
      %v722 = vsel %vm690, 1, 0
      %v723 = vsel %vm691, 1, 0
      %v724 = vsel %vm692, 1, 0
      %v725 = vsel %vm693, 1, 0
      %v726 = vsel %vm694, 1, 0
      %vm727 = vcmp.eq.s32.totalorder %v695, 1
      %vm728 = vcmp.eq.s32.totalorder %v696, 1
      %vm729 = vcmp.eq.s32.totalorder %v697, 1
      %vm730 = vcmp.eq.s32.totalorder %v698, 1
      %vm731 = vcmp.eq.s32.totalorder %v699, 1
      %vm732 = vcmp.eq.s32.totalorder %v700, 1
      %vm733 = vcmp.eq.s32.totalorder %v701, 1
      %vm734 = vcmp.eq.s32.totalorder %v702, 1
      %vm735 = vcmp.eq.s32.totalorder %v703, 1
      %vm736 = vcmp.eq.s32.totalorder %v704, 1
      %vm737 = vcmp.eq.s32.totalorder %v705, 1
      %vm738 = vcmp.eq.s32.totalorder %v706, 1
      %vm739 = vcmp.eq.s32.totalorder %v707, 1
      %vm740 = vcmp.eq.s32.totalorder %v708, 1
      %vm741 = vcmp.eq.s32.totalorder %v709, 1
      %vm742 = vcmp.eq.s32.totalorder %v710, 1
      %vm743 = vcmp.eq.s32.totalorder %v711, 1
      %vm744 = vcmp.eq.s32.totalorder %v712, 1
      %vm745 = vcmp.eq.s32.totalorder %v713, 1
      %vm746 = vcmp.eq.s32.totalorder %v714, 1
      %vm747 = vcmp.eq.s32.totalorder %v715, 1
      %vm748 = vcmp.eq.s32.totalorder %v716, 1
      %vm749 = vcmp.eq.s32.totalorder %v717, 1
      %vm750 = vcmp.eq.s32.totalorder %v718, 1
      %vm751 = vcmp.eq.s32.totalorder %v719, 1
      %vm752 = vcmp.eq.s32.totalorder %v720, 1
      %vm753 = vcmp.eq.s32.totalorder %v721, 1
      %vm754 = vcmp.eq.s32.totalorder %v722, 1
      %vm755 = vcmp.eq.s32.totalorder %v723, 1
      %vm756 = vcmp.eq.s32.totalorder %v724, 1
      %vm757 = vcmp.eq.s32.totalorder %v725, 1
      %vm758 = vcmp.eq.s32.totalorder %v726, 1
      %v759 = vsel %vm727, %v632, 0.0
      %v760 = vsel %vm728, %v631, 0.0
      %v761 = vsel %vm729, %v662, 0.0
      %v762 = vsel %vm730, %v661, 0.0
      %v763 = vsel %vm731, %v660, 0.0
      %v764 = vsel %vm732, %v659, 0.0
      %v765 = vsel %vm733, %v658, 0.0
      %v766 = vsel %vm734, %v657, 0.0
      %v767 = vsel %vm735, %v656, 0.0
      %v768 = vsel %vm736, %v655, 0.0
      %v769 = vsel %vm737, %v654, 0.0
      %v770 = vsel %vm738, %v653, 0.0
      %v771 = vsel %vm739, %v652, 0.0
      %v772 = vsel %vm740, %v651, 0.0
      %v773 = vsel %vm741, %v650, 0.0
      %v774 = vsel %vm742, %v649, 0.0
      %v775 = vsel %vm743, %v648, 0.0
      %v776 = vsel %vm744, %v647, 0.0
      %v777 = vsel %vm745, %v646, 0.0
      %v778 = vsel %vm746, %v645, 0.0
      %v779 = vsel %vm747, %v644, 0.0
      %v780 = vsel %vm748, %v643, 0.0
      %v781 = vsel %vm749, %v642, 0.0
      %v782 = vsel %vm750, %v641, 0.0
      %v783 = vsel %vm751, %v640, 0.0
      %v784 = vsel %vm752, %v639, 0.0
      %v785 = vsel %vm753, %v638, 0.0
      %v786 = vsel %vm754, %v637, 0.0
      %v787 = vsel %vm755, %v636, 0.0
      %v788 = vsel %vm756, %v635, 0.0
      %v789 = vsel %vm757, %v634, 0.0
      %v790 = vsel %vm758, %v633, 0.0
      %v791 = vld [vmem:[%s3] sm:$0xff]
      %v792 = vld [vmem:[%s3 + $0x8] sm:$0xff]
      %v793 = vld [vmem:[%s3 + $0x10] sm:$0xff]
      %v794 = vld [vmem:[%s3 + $0x18] sm:$0xff]
      %v795 = vld [vmem:[%s3 + $0x20] sm:$0xff]
      %v796 = vld [vmem:[%s3 + $0x28] sm:$0xff]
      %v797 = vld [vmem:[%s3 + $0x30] sm:$0xff]
      %v798 = vld [vmem:[%s3 + $0x38] sm:$0xff]
      %v799 = vld [vmem:[%s3 + $0x40] sm:$0xff]
      %v800 = vld [vmem:[%s3 + $0x48] sm:$0xff]
      %v801 = vld [vmem:[%s3 + $0x50] sm:$0xff]
      %v802 = vld [vmem:[%s3 + $0x58] sm:$0xff]
      %v803 = vld [vmem:[%s3 + $0x60] sm:$0xff]
      %v804 = vld [vmem:[%s3 + $0x68] sm:$0xff]
      %v805 = vld [vmem:[%s3 + $0x70] sm:$0xff]
      %v806 = vld [vmem:[%s3 + $0x78] sm:$0xff]
      %v807 = vsel %vm470, 1, 0
      %v808 = vsel %vm471, 1, 0
      %v809 = vsel %vm472, 1, 0
      %v810 = vsel %vm473, 1, 0
      %v811 = vsel %vm474, 1, 0
      %v812 = vsel %vm475, 1, 0
      %v813 = vsel %vm476, 1, 0
      %v814 = vsel %vm477, 1, 0
      %v815 = vsel %vm478, 1, 0
      %v816 = vsel %vm479, 1, 0
      %v817 = vsel %vm480, 1, 0
      %v818 = vsel %vm481, 1, 0
      %v819 = vsel %vm482, 1, 0
      %v820 = vsel %vm483, 1, 0
      %v821 = vsel %vm484, 1, 0
      %v822 = vsel %vm485, 1, 0
      %v823 = vsel %vm486, 1, 0
      %v824 = vsel %vm487, 1, 0
      %v825 = vsel %vm488, 1, 0
      %v826 = vsel %vm489, 1, 0
      %v827 = vsel %vm490, 1, 0
      %v828 = vsel %vm491, 1, 0
      %v829 = vsel %vm492, 1, 0
      %v830 = vsel %vm493, 1, 0
      %v831 = vsel %vm494, 1, 0
      %v832 = vsel %vm495, 1, 0
      %v833 = vsel %vm496, 1, 0
      %v834 = vsel %vm497, 1, 0
      %v835 = vsel %vm498, 1, 0
      %v836 = vsel %vm499, 1, 0
      %v837 = vsel %vm500, 1, 0
      %v838 = vsel %vm501, 1, 0
      %vm839 = vcmp.eq.s32.totalorder %v807, 1
      %vm840 = vcmp.eq.s32.totalorder %v808, 1
      %vm841 = vcmp.eq.s32.totalorder %v809, 1
      %vm842 = vcmp.eq.s32.totalorder %v810, 1
      %vm843 = vcmp.eq.s32.totalorder %v811, 1
      %vm844 = vcmp.eq.s32.totalorder %v812, 1
      %vm845 = vcmp.eq.s32.totalorder %v813, 1
      %vm846 = vcmp.eq.s32.totalorder %v814, 1
      %vm847 = vcmp.eq.s32.totalorder %v815, 1
      %vm848 = vcmp.eq.s32.totalorder %v816, 1
      %vm849 = vcmp.eq.s32.totalorder %v817, 1
      %vm850 = vcmp.eq.s32.totalorder %v818, 1
      %vm851 = vcmp.eq.s32.totalorder %v819, 1
      %vm852 = vcmp.eq.s32.totalorder %v820, 1
      %vm853 = vcmp.eq.s32.totalorder %v821, 1
      %vm854 = vcmp.eq.s32.totalorder %v822, 1
      %vm855 = vcmp.eq.s32.totalorder %v823, 1
      %vm856 = vcmp.eq.s32.totalorder %v824, 1
      %vm857 = vcmp.eq.s32.totalorder %v825, 1
      %vm858 = vcmp.eq.s32.totalorder %v826, 1
      %vm859 = vcmp.eq.s32.totalorder %v827, 1
      %vm860 = vcmp.eq.s32.totalorder %v828, 1
      %vm861 = vcmp.eq.s32.totalorder %v829, 1
      %vm862 = vcmp.eq.s32.totalorder %v830, 1
      %vm863 = vcmp.eq.s32.totalorder %v831, 1
      %vm864 = vcmp.eq.s32.totalorder %v832, 1
      %vm865 = vcmp.eq.s32.totalorder %v833, 1
      %vm866 = vcmp.eq.s32.totalorder %v834, 1
      %vm867 = vcmp.eq.s32.totalorder %v835, 1
      %vm868 = vcmp.eq.s32.totalorder %v836, 1
      %vm869 = vcmp.eq.s32.totalorder %v837, 1
      %vm870 = vcmp.eq.s32.totalorder %v838, 1
      %v871 = vsel %vm839, %v403, 0.0
      %v872 = vsel %vm840, %v404, 0.0
      %v873 = vsel %vm841, %v373, 0.0
      %v874 = vsel %vm842, %v374, 0.0
      %v875 = vsel %vm843, %v375, 0.0
      %v876 = vsel %vm844, %v376, 0.0
      %v877 = vsel %vm845, %v377, 0.0
      %v878 = vsel %vm846, %v378, 0.0
      %v879 = vsel %vm847, %v379, 0.0
      %v880 = vsel %vm848, %v380, 0.0
      %v881 = vsel %vm849, %v381, 0.0
      %v882 = vsel %vm850, %v382, 0.0
      %v883 = vsel %vm851, %v383, 0.0
      %v884 = vsel %vm852, %v384, 0.0
      %v885 = vsel %vm853, %v385, 0.0
      %v886 = vsel %vm854, %v386, 0.0
      %v887 = vsel %vm855, %v387, 0.0
      %v888 = vsel %vm856, %v388, 0.0
      %v889 = vsel %vm857, %v389, 0.0
      %v890 = vsel %vm858, %v390, 0.0
      %v891 = vsel %vm859, %v391, 0.0
      %v892 = vsel %vm860, %v392, 0.0
      %v893 = vsel %vm861, %v393, 0.0
      %v894 = vsel %vm862, %v394, 0.0
      %v895 = vsel %vm863, %v395, 0.0
      %v896 = vsel %vm864, %v396, 0.0
      %v897 = vsel %vm865, %v397, 0.0
      %v898 = vsel %vm866, %v398, 0.0
      %v899 = vsel %vm867, %v399, 0.0
      %v900 = vsel %vm868, %v400, 0.0
      %v901 = vsel %vm869, %v401, 0.0
      %v902 = vsel %vm870, %v402, 0.0
      %v903 = vld [vmem:[%s3 + $0x80] sm:$0xff]
      %v904 = vld [vmem:[%s3 + $0x88] sm:$0xff]
      %v905 = vld [vmem:[%s3 + $0x90] sm:$0xff]
      %v906 = vld [vmem:[%s3 + $0x98] sm:$0xff]
      %v907 = vld [vmem:[%s3 + $0xa0] sm:$0xff]
      %v908 = vld [vmem:[%s3 + $0xa8] sm:$0xff]
      %v909 = vld [vmem:[%s3 + $0xb0] sm:$0xff]
      %v910 = vld [vmem:[%s3 + $0xb8] sm:$0xff]
      %v911 = vld [vmem:[%s3 + $0xc0] sm:$0xff]
      %v912 = vld [vmem:[%s3 + $0xc8] sm:$0xff]
      %v913 = vld [vmem:[%s3 + $0xd0] sm:$0xff]
      %v914 = vld [vmem:[%s3 + $0xd8] sm:$0xff]
      %v915 = vld [vmem:[%s3 + $0xe0] sm:$0xff]
      %v916 = vld [vmem:[%s3 + $0xe8] sm:$0xff]
      %v917 = vld [vmem:[%s3 + $0xf0] sm:$0xff]
      %v918 = vld [vmem:[%s3 + $0xf8] sm:$0xff]
      %919 = vmatpush.msra.mxu0 %v918
      %920 = vmatpush.msra.mxu0 %v917
      %921 = vmatpush.msra.mxu0 %v916
      %922 = vmatpush.msra.mxu0 %v915
      %923 = vmatpush.msra.mxu0 %v914
      %924 = vmatpush.msra.mxu0 %v913
      %925 = vmatpush.msra.mxu0 %v912
      %926 = vmatpush.msra.mxu0 %v911
      %927 = vmatpush.msra.mxu0 %v910
      %928 = vmatpush.msra.mxu0 %v909
      %929 = vmatpush.msra.mxu0 %v908
      %930 = vmatpush.msra.mxu0 %v907
      %931 = vmatpush.msra.mxu0 %v906
      %932 = vmatpush.msra.mxu0 %v905
      %933 = vmatpush.msra.mxu0 %v904
      %934 = vmatpush.msra.mxu0 %v903
      %935 = vmatmul.f32.gmra.mxu0 %v871
      %v936 = vpop.f32.mrf.mxu0
      %v937 = vadd.f32 0.0, %v936
      %938 = vmatmul.f32.gmra.mxu0 %v872
      %v939 = vpop.f32.mrf.mxu0
      %v940 = vadd.f32 0.0, %v939
      %941 = vmatmul.f32.gmra.mxu0 %v873
      %v942 = vpop.f32.mrf.mxu0
      %v943 = vadd.f32 0.0, %v942
      %944 = vmatmul.f32.gmra.mxu0 %v874
      %v945 = vpop.f32.mrf.mxu0
      %v946 = vadd.f32 0.0, %v945
      %947 = vmatmul.f32.gmra.mxu0 %v875
      %v948 = vpop.f32.mrf.mxu0
      %v949 = vadd.f32 0.0, %v948
      %950 = vmatmul.f32.gmra.mxu0 %v876
      %v951 = vpop.f32.mrf.mxu0
      %v952 = vadd.f32 0.0, %v951
      %953 = vmatmul.f32.gmra.mxu0 %v877
      %v954 = vpop.f32.mrf.mxu0
      %v955 = vadd.f32 0.0, %v954
      %956 = vmatmul.f32.gmra.mxu0 %v878
      %v957 = vpop.f32.mrf.mxu0
      %v958 = vadd.f32 0.0, %v957
      %959 = vmatmul.f32.gmra.mxu0 %v879
      %v960 = vpop.f32.mrf.mxu0
      %v961 = vadd.f32 0.0, %v960
      %962 = vmatmul.f32.gmra.mxu0 %v880
      %v963 = vpop.f32.mrf.mxu0
      %v964 = vadd.f32 0.0, %v963
      %965 = vmatmul.f32.gmra.mxu0 %v881
      %v966 = vpop.f32.mrf.mxu0
      %v967 = vadd.f32 0.0, %v966
      %968 = vmatmul.f32.gmra.mxu0 %v882
      %v969 = vpop.f32.mrf.mxu0
      %v970 = vadd.f32 0.0, %v969
      %971 = vmatmul.f32.gmra.mxu0 %v883
      %v972 = vpop.f32.mrf.mxu0
      %v973 = vadd.f32 0.0, %v972
      %974 = vmatmul.f32.gmra.mxu0 %v884
      %v975 = vpop.f32.mrf.mxu0
      %v976 = vadd.f32 0.0, %v975
      %977 = vmatmul.f32.gmra.mxu0 %v885
      %v978 = vpop.f32.mrf.mxu0
      %v979 = vadd.f32 0.0, %v978
      %980 = vmatmul.f32.gmra.mxu0 %v886
      %v981 = vpop.f32.mrf.mxu0
      %v982 = vadd.f32 0.0, %v981
      %983 = vmatmul.f32.gmra.mxu0 %v887
      %v984 = vpop.f32.mrf.mxu0
      %v985 = vadd.f32 0.0, %v984
      %986 = vmatmul.f32.gmra.mxu0 %v888
      %v987 = vpop.f32.mrf.mxu0
      %v988 = vadd.f32 0.0, %v987
      %989 = vmatmul.f32.gmra.mxu0 %v889
      %v990 = vpop.f32.mrf.mxu0
      %v991 = vadd.f32 0.0, %v990
      %992 = vmatmul.f32.gmra.mxu0 %v890
      %v993 = vpop.f32.mrf.mxu0
      %v994 = vadd.f32 0.0, %v993
      %995 = vmatmul.f32.gmra.mxu0 %v891
      %v996 = vpop.f32.mrf.mxu0
      %v997 = vadd.f32 0.0, %v996
      %998 = vmatmul.f32.gmra.mxu0 %v892
      %v999 = vpop.f32.mrf.mxu0
      %v1000 = vadd.f32 0.0, %v999
      %1001 = vmatmul.f32.gmra.mxu0 %v893
      %v1002 = vpop.f32.mrf.mxu0
      %v1003 = vadd.f32 0.0, %v1002
      %1004 = vmatmul.f32.gmra.mxu0 %v894
      %v1005 = vpop.f32.mrf.mxu0
      %v1006 = vadd.f32 0.0, %v1005
      %1007 = vmatmul.f32.gmra.mxu0 %v895
      %v1008 = vpop.f32.mrf.mxu0
      %v1009 = vadd.f32 0.0, %v1008
      %1010 = vmatmul.f32.gmra.mxu0 %v896
      %v1011 = vpop.f32.mrf.mxu0
      %v1012 = vadd.f32 0.0, %v1011
      %1013 = vmatmul.f32.gmra.mxu0 %v897
      %v1014 = vpop.f32.mrf.mxu0
      %v1015 = vadd.f32 0.0, %v1014
      %1016 = vmatmul.f32.gmra.mxu0 %v898
      %v1017 = vpop.f32.mrf.mxu0
      %v1018 = vadd.f32 0.0, %v1017
      %1019 = vmatmul.f32.gmra.mxu0 %v899
      %v1020 = vpop.f32.mrf.mxu0
      %v1021 = vadd.f32 0.0, %v1020
      %1022 = vmatmul.f32.gmra.mxu0 %v900
      %v1023 = vpop.f32.mrf.mxu0
      %v1024 = vadd.f32 0.0, %v1023
      %1025 = vmatmul.f32.gmra.mxu0 %v901
      %v1026 = vpop.f32.mrf.mxu0
      %v1027 = vadd.f32 0.0, %v1026
      %1028 = vmatmul.f32.gmra.mxu0 %v902
      %v1029 = vpop.f32.mrf.mxu0
      %v1030 = vadd.f32 0.0, %v1029
      %1031 = vdwg.mxu0
      %1032 = vmatpush.msra.mxu0 %v806
      %1033 = vmatpush.msra.mxu0 %v805
      %1034 = vmatpush.msra.mxu0 %v804
      %1035 = vmatpush.msra.mxu0 %v803
      %1036 = vmatpush.msra.mxu0 %v802
      %1037 = vmatpush.msra.mxu0 %v801
      %1038 = vmatpush.msra.mxu0 %v800
      %1039 = vmatpush.msra.mxu0 %v799
      %1040 = vmatpush.msra.mxu0 %v798
      %1041 = vmatpush.msra.mxu0 %v797
      %1042 = vmatpush.msra.mxu0 %v796
      %1043 = vmatpush.msra.mxu0 %v795
      %1044 = vmatpush.msra.mxu0 %v794
      %1045 = vmatpush.msra.mxu0 %v793
      %1046 = vmatpush.msra.mxu0 %v792
      %1047 = vmatpush.msra.mxu0 %v791
      %1048 = vmatmul.f32.gmra.mxu0 %v759
      %v1049 = vpop.f32.mrf.mxu0
      %v1050 = vadd.f32 %v937, %v1049
      %1051 = vmatmul.f32.gmra.mxu0 %v760
      %v1052 = vpop.f32.mrf.mxu0
      %v1053 = vadd.f32 %v940, %v1052
      %1054 = vmatmul.f32.gmra.mxu0 %v761
      %v1055 = vpop.f32.mrf.mxu0
      %v1056 = vadd.f32 %v943, %v1055
      %1057 = vmatmul.f32.gmra.mxu0 %v762
      %v1058 = vpop.f32.mrf.mxu0
      %v1059 = vadd.f32 %v946, %v1058
      %1060 = vmatmul.f32.gmra.mxu0 %v763
      %v1061 = vpop.f32.mrf.mxu0
      %v1062 = vadd.f32 %v949, %v1061
      %1063 = vmatmul.f32.gmra.mxu0 %v764
      %v1064 = vpop.f32.mrf.mxu0
      %v1065 = vadd.f32 %v952, %v1064
      %1066 = vmatmul.f32.gmra.mxu0 %v765
      %v1067 = vpop.f32.mrf.mxu0
      %v1068 = vadd.f32 %v955, %v1067
      %1069 = vmatmul.f32.gmra.mxu0 %v766
      %v1070 = vpop.f32.mrf.mxu0
      %v1071 = vadd.f32 %v958, %v1070
      %1072 = vmatmul.f32.gmra.mxu0 %v767
      %v1073 = vpop.f32.mrf.mxu0
      %v1074 = vadd.f32 %v961, %v1073
      %1075 = vmatmul.f32.gmra.mxu0 %v768
      %v1076 = vpop.f32.mrf.mxu0
      %v1077 = vadd.f32 %v964, %v1076
      %1078 = vmatmul.f32.gmra.mxu0 %v769
      %v1079 = vpop.f32.mrf.mxu0
      %v1080 = vadd.f32 %v967, %v1079
      %1081 = vmatmul.f32.gmra.mxu0 %v770
      %v1082 = vpop.f32.mrf.mxu0
      %v1083 = vadd.f32 %v970, %v1082
      %1084 = vmatmul.f32.gmra.mxu0 %v771
      %v1085 = vpop.f32.mrf.mxu0
      %v1086 = vadd.f32 %v973, %v1085
      %1087 = vmatmul.f32.gmra.mxu0 %v772
      %v1088 = vpop.f32.mrf.mxu0
      %v1089 = vadd.f32 %v976, %v1088
      %1090 = vmatmul.f32.gmra.mxu0 %v773
      %v1091 = vpop.f32.mrf.mxu0
      %v1092 = vadd.f32 %v979, %v1091
      %1093 = vmatmul.f32.gmra.mxu0 %v774
      %v1094 = vpop.f32.mrf.mxu0
      %v1095 = vadd.f32 %v982, %v1094
      %1096 = vmatmul.f32.gmra.mxu0 %v775
      %v1097 = vpop.f32.mrf.mxu0
      %v1098 = vadd.f32 %v985, %v1097
      %1099 = vmatmul.f32.gmra.mxu0 %v776
      %v1100 = vpop.f32.mrf.mxu0
      %v1101 = vadd.f32 %v988, %v1100
      %1102 = vmatmul.f32.gmra.mxu0 %v777
      %v1103 = vpop.f32.mrf.mxu0
      %v1104 = vadd.f32 %v991, %v1103
      %1105 = vmatmul.f32.gmra.mxu0 %v778
      %v1106 = vpop.f32.mrf.mxu0
      %v1107 = vadd.f32 %v994, %v1106
      %1108 = vmatmul.f32.gmra.mxu0 %v779
      %v1109 = vpop.f32.mrf.mxu0
      %v1110 = vadd.f32 %v997, %v1109
      %1111 = vmatmul.f32.gmra.mxu0 %v780
      %v1112 = vpop.f32.mrf.mxu0
      %v1113 = vadd.f32 %v1000, %v1112
      %1114 = vmatmul.f32.gmra.mxu0 %v781
      %v1115 = vpop.f32.mrf.mxu0
      %v1116 = vadd.f32 %v1003, %v1115
      %1117 = vmatmul.f32.gmra.mxu0 %v782
      %v1118 = vpop.f32.mrf.mxu0
      %v1119 = vadd.f32 %v1006, %v1118
      %1120 = vmatmul.f32.gmra.mxu0 %v783
      %v1121 = vpop.f32.mrf.mxu0
      %v1122 = vadd.f32 %v1009, %v1121
      %1123 = vmatmul.f32.gmra.mxu0 %v784
      %v1124 = vpop.f32.mrf.mxu0
      %v1125 = vadd.f32 %v1012, %v1124
      %1126 = vmatmul.f32.gmra.mxu0 %v785
      %v1127 = vpop.f32.mrf.mxu0
      %v1128 = vadd.f32 %v1015, %v1127
      %1129 = vmatmul.f32.gmra.mxu0 %v786
      %v1130 = vpop.f32.mrf.mxu0
      %v1131 = vadd.f32 %v1018, %v1130
      %1132 = vmatmul.f32.gmra.mxu0 %v787
      %v1133 = vpop.f32.mrf.mxu0
      %v1134 = vadd.f32 %v1021, %v1133
      %1135 = vmatmul.f32.gmra.mxu0 %v788
      %v1136 = vpop.f32.mrf.mxu0
      %v1137 = vadd.f32 %v1024, %v1136
      %1138 = vmatmul.f32.gmra.mxu0 %v789
      %v1139 = vpop.f32.mrf.mxu0
      %v1140 = vadd.f32 %v1027, %v1139
      %1141 = vmatmul.f32.gmra.mxu0 %v790
      %v1142 = vpop.f32.mrf.mxu0
      %v1143 = vadd.f32 %v1030, %v1142
      %1144 = vdwg.mxu0
      %v1145 = vrot.slane %v373, 1
      %v1146 = vrot.slane %v374, 1
      %v1147 = vrot.slane %v375, 1
      %v1148 = vrot.slane %v376, 1
      %v1149 = vrot.slane %v377, 1
      %v1150 = vrot.slane %v378, 1
      %v1151 = vrot.slane %v379, 1
      %v1152 = vrot.slane %v380, 1
      %v1153 = vrot.slane %v381, 1
      %v1154 = vrot.slane %v382, 1
      %v1155 = vrot.slane %v383, 1
      %v1156 = vrot.slane %v384, 1
      %v1157 = vrot.slane %v385, 1
      %v1158 = vrot.slane %v386, 1
      %v1159 = vrot.slane %v387, 1
      %v1160 = vrot.slane %v388, 1
      %v1161 = vrot.slane %v389, 1
      %v1162 = vrot.slane %v390, 1
      %v1163 = vrot.slane %v391, 1
      %v1164 = vrot.slane %v392, 1
      %v1165 = vrot.slane %v393, 1
      %v1166 = vrot.slane %v394, 1
      %v1167 = vrot.slane %v395, 1
      %v1168 = vrot.slane %v396, 1
      %v1169 = vrot.slane %v397, 1
      %v1170 = vrot.slane %v398, 1
      %v1171 = vrot.slane %v399, 1
      %v1172 = vrot.slane %v400, 1
      %v1173 = vrot.slane %v401, 1
      %v1174 = vrot.slane %v402, 1
      %v1175 = vrot.slane %v403, 1
      %v1176 = vrot.slane %v404, 1
      %vm1177 = vcmp.lt.s32.totalorder %v406, 7
      %v1178 = vsel %vm1177, %v1175, %v1176
      %v1179 = vsel %vm1177, %v1174, %v1175
      %v1180 = vsel %vm1177, %v1173, %v1174
      %v1181 = vsel %vm1177, %v1172, %v1173
      %v1182 = vsel %vm1177, %v1171, %v1172
      %v1183 = vsel %vm1177, %v1170, %v1171
      %v1184 = vsel %vm1177, %v1169, %v1170
      %v1185 = vsel %vm1177, %v1168, %v1169
      %v1186 = vsel %vm1177, %v1167, %v1168
      %v1187 = vsel %vm1177, %v1166, %v1167
      %v1188 = vsel %vm1177, %v1165, %v1166
      %v1189 = vsel %vm1177, %v1164, %v1165
      %v1190 = vsel %vm1177, %v1163, %v1164
      %v1191 = vsel %vm1177, %v1162, %v1163
      %v1192 = vsel %vm1177, %v1161, %v1162
      %v1193 = vsel %vm1177, %v1160, %v1161
      %v1194 = vsel %vm1177, %v1159, %v1160
      %v1195 = vsel %vm1177, %v1158, %v1159
      %v1196 = vsel %vm1177, %v1157, %v1158
      %v1197 = vsel %vm1177, %v1156, %v1157
      %v1198 = vsel %vm1177, %v1155, %v1156
      %v1199 = vsel %vm1177, %v1154, %v1155
      %v1200 = vsel %vm1177, %v1153, %v1154
      %v1201 = vsel %vm1177, %v1152, %v1153
      %v1202 = vsel %vm1177, %v1151, %v1152
      %v1203 = vsel %vm1177, %v1150, %v1151
      %v1204 = vsel %vm1177, %v1149, %v1150
      %v1205 = vsel %vm1177, %v1148, %v1149
      %v1206 = vsel %vm1177, %v1147, %v1148
      %v1207 = vsel %vm1177, %v1146, %v1147
      %v1208 = vsel %vm1177, %v1145, %v1146
      %v1209 = vsel %vm1177, %v1176, %v1145
      %vm1210 = vmand %vm470, %vm566
      %vm1211 = vmand %vm471, %vm567
      %vm1212 = vmand %vm472, %vm568
      %vm1213 = vmand %vm473, %vm569
      %vm1214 = vmand %vm474, %vm570
      %vm1215 = vmand %vm475, %vm571
      %vm1216 = vmand %vm476, %vm572
      %vm1217 = vmand %vm477, %vm573
      %vm1218 = vmand %vm478, %vm574
      %vm1219 = vmand %vm479, %vm575
      %vm1220 = vmand %vm480, %vm576
      %vm1221 = vmand %vm481, %vm577
      %vm1222 = vmand %vm482, %vm578
      %vm1223 = vmand %vm483, %vm579
      %vm1224 = vmand %vm484, %vm580
      %vm1225 = vmand %vm485, %vm581
      %vm1226 = vmand %vm486, %vm582
      %vm1227 = vmand %vm487, %vm583
      %vm1228 = vmand %vm488, %vm584
      %vm1229 = vmand %vm489, %vm585
      %vm1230 = vmand %vm490, %vm586
      %vm1231 = vmand %vm491, %vm587
      %vm1232 = vmand %vm492, %vm588
      %vm1233 = vmand %vm493, %vm589
      %vm1234 = vmand %vm494, %vm590
      %vm1235 = vmand %vm495, %vm591
      %vm1236 = vmand %vm496, %vm592
      %vm1237 = vmand %vm497, %vm593
      %vm1238 = vmand %vm498, %vm594
      %vm1239 = vmand %vm499, %vm595
      %vm1240 = vmand %vm500, %vm596
      %vm1241 = vmand %vm501, %vm597
      %v1242 = vsel %vm1210, 1, 0
      %v1243 = vsel %vm1211, 1, 0
      %v1244 = vsel %vm1212, 1, 0
      %v1245 = vsel %vm1213, 1, 0
      %v1246 = vsel %vm1214, 1, 0
      %v1247 = vsel %vm1215, 1, 0
      %v1248 = vsel %vm1216, 1, 0
      %v1249 = vsel %vm1217, 1, 0
      %v1250 = vsel %vm1218, 1, 0
      %v1251 = vsel %vm1219, 1, 0
      %v1252 = vsel %vm1220, 1, 0
      %v1253 = vsel %vm1221, 1, 0
      %v1254 = vsel %vm1222, 1, 0
      %v1255 = vsel %vm1223, 1, 0
      %v1256 = vsel %vm1224, 1, 0
      %v1257 = vsel %vm1225, 1, 0
      %v1258 = vsel %vm1226, 1, 0
      %v1259 = vsel %vm1227, 1, 0
      %v1260 = vsel %vm1228, 1, 0
      %v1261 = vsel %vm1229, 1, 0
      %v1262 = vsel %vm1230, 1, 0
      %v1263 = vsel %vm1231, 1, 0
      %v1264 = vsel %vm1232, 1, 0
      %v1265 = vsel %vm1233, 1, 0
      %v1266 = vsel %vm1234, 1, 0
      %v1267 = vsel %vm1235, 1, 0
      %v1268 = vsel %vm1236, 1, 0
      %v1269 = vsel %vm1237, 1, 0
      %v1270 = vsel %vm1238, 1, 0
      %v1271 = vsel %vm1239, 1, 0
      %v1272 = vsel %vm1240, 1, 0
      %v1273 = vsel %vm1241, 1, 0
      %vm1274 = vcmp.eq.s32.totalorder %v1242, 1
      %vm1275 = vcmp.eq.s32.totalorder %v1243, 1
      %vm1276 = vcmp.eq.s32.totalorder %v1244, 1
      %vm1277 = vcmp.eq.s32.totalorder %v1245, 1
      %vm1278 = vcmp.eq.s32.totalorder %v1246, 1
      %vm1279 = vcmp.eq.s32.totalorder %v1247, 1
      %vm1280 = vcmp.eq.s32.totalorder %v1248, 1
      %vm1281 = vcmp.eq.s32.totalorder %v1249, 1
      %vm1282 = vcmp.eq.s32.totalorder %v1250, 1
      %vm1283 = vcmp.eq.s32.totalorder %v1251, 1
      %vm1284 = vcmp.eq.s32.totalorder %v1252, 1
      %vm1285 = vcmp.eq.s32.totalorder %v1253, 1
      %vm1286 = vcmp.eq.s32.totalorder %v1254, 1
      %vm1287 = vcmp.eq.s32.totalorder %v1255, 1
      %vm1288 = vcmp.eq.s32.totalorder %v1256, 1
      %vm1289 = vcmp.eq.s32.totalorder %v1257, 1
      %vm1290 = vcmp.eq.s32.totalorder %v1258, 1
      %vm1291 = vcmp.eq.s32.totalorder %v1259, 1
      %vm1292 = vcmp.eq.s32.totalorder %v1260, 1
      %vm1293 = vcmp.eq.s32.totalorder %v1261, 1
      %vm1294 = vcmp.eq.s32.totalorder %v1262, 1
      %vm1295 = vcmp.eq.s32.totalorder %v1263, 1
      %vm1296 = vcmp.eq.s32.totalorder %v1264, 1
      %vm1297 = vcmp.eq.s32.totalorder %v1265, 1
      %vm1298 = vcmp.eq.s32.totalorder %v1266, 1
      %vm1299 = vcmp.eq.s32.totalorder %v1267, 1
      %vm1300 = vcmp.eq.s32.totalorder %v1268, 1
      %vm1301 = vcmp.eq.s32.totalorder %v1269, 1
      %vm1302 = vcmp.eq.s32.totalorder %v1270, 1
      %vm1303 = vcmp.eq.s32.totalorder %v1271, 1
      %vm1304 = vcmp.eq.s32.totalorder %v1272, 1
      %vm1305 = vcmp.eq.s32.totalorder %v1273, 1
      %v1306 = vsel %vm1274, %v1178, 0.0
      %v1307 = vsel %vm1275, %v1209, 0.0
      %v1308 = vsel %vm1276, %v1208, 0.0
      %v1309 = vsel %vm1277, %v1207, 0.0
      %v1310 = vsel %vm1278, %v1206, 0.0
      %v1311 = vsel %vm1279, %v1205, 0.0
      %v1312 = vsel %vm1280, %v1204, 0.0
      %v1313 = vsel %vm1281, %v1203, 0.0
      %v1314 = vsel %vm1282, %v1202, 0.0
      %v1315 = vsel %vm1283, %v1201, 0.0
      %v1316 = vsel %vm1284, %v1200, 0.0
      %v1317 = vsel %vm1285, %v1199, 0.0
      %v1318 = vsel %vm1286, %v1198, 0.0
      %v1319 = vsel %vm1287, %v1197, 0.0
      %v1320 = vsel %vm1288, %v1196, 0.0
      %v1321 = vsel %vm1289, %v1195, 0.0
      %v1322 = vsel %vm1290, %v1194, 0.0
      %v1323 = vsel %vm1291, %v1193, 0.0
      %v1324 = vsel %vm1292, %v1192, 0.0
      %v1325 = vsel %vm1293, %v1191, 0.0
      %v1326 = vsel %vm1294, %v1190, 0.0
      %v1327 = vsel %vm1295, %v1189, 0.0
      %v1328 = vsel %vm1296, %v1188, 0.0
      %v1329 = vsel %vm1297, %v1187, 0.0
      %v1330 = vsel %vm1298, %v1186, 0.0
      %v1331 = vsel %vm1299, %v1185, 0.0
      %v1332 = vsel %vm1300, %v1184, 0.0
      %v1333 = vsel %vm1301, %v1183, 0.0
      %v1334 = vsel %vm1302, %v1182, 0.0
      %v1335 = vsel %vm1303, %v1181, 0.0
      %v1336 = vsel %vm1304, %v1180, 0.0
      %v1337 = vsel %vm1305, %v1179, 0.0
      %v1338 = vld [vmem:[%s3 + $0x100] sm:$0xff]
      %v1339 = vld [vmem:[%s3 + $0x108] sm:$0xff]
      %v1340 = vld [vmem:[%s3 + $0x110] sm:$0xff]
      %v1341 = vld [vmem:[%s3 + $0x118] sm:$0xff]
      %v1342 = vld [vmem:[%s3 + $0x120] sm:$0xff]
      %v1343 = vld [vmem:[%s3 + $0x128] sm:$0xff]
      %v1344 = vld [vmem:[%s3 + $0x130] sm:$0xff]
      %v1345 = vld [vmem:[%s3 + $0x138] sm:$0xff]
      %v1346 = vld [vmem:[%s3 + $0x140] sm:$0xff]
      %v1347 = vld [vmem:[%s3 + $0x148] sm:$0xff]
      %v1348 = vld [vmem:[%s3 + $0x150] sm:$0xff]
      %v1349 = vld [vmem:[%s3 + $0x158] sm:$0xff]
      %v1350 = vld [vmem:[%s3 + $0x160] sm:$0xff]
      %v1351 = vld [vmem:[%s3 + $0x168] sm:$0xff]
      %v1352 = vld [vmem:[%s3 + $0x170] sm:$0xff]
      %v1353 = vld [vmem:[%s3 + $0x178] sm:$0xff]
      %1354 = vmatpush.msra.mxu0 %v1353
      %1355 = vmatpush.msra.mxu0 %v1352
      %1356 = vmatpush.msra.mxu0 %v1351
      %1357 = vmatpush.msra.mxu0 %v1350
      %1358 = vmatpush.msra.mxu0 %v1349
      %1359 = vmatpush.msra.mxu0 %v1348
      %1360 = vmatpush.msra.mxu0 %v1347
      %1361 = vmatpush.msra.mxu0 %v1346
      %1362 = vmatpush.msra.mxu0 %v1345
      %1363 = vmatpush.msra.mxu0 %v1344
      %1364 = vmatpush.msra.mxu0 %v1343
      %1365 = vmatpush.msra.mxu0 %v1342
      %1366 = vmatpush.msra.mxu0 %v1341
      %1367 = vmatpush.msra.mxu0 %v1340
      %1368 = vmatpush.msra.mxu0 %v1339
      %1369 = vmatpush.msra.mxu0 %v1338
      %1370 = vmatmul.f32.gmra.mxu0 %v1306
      %v1371 = vpop.f32.mrf.mxu0
      %v1372 = vadd.f32 0.0, %v1371
      %1373 = vmatmul.f32.gmra.mxu0 %v1307
      %v1374 = vpop.f32.mrf.mxu0
      %v1375 = vadd.f32 0.0, %v1374
      %1376 = vmatmul.f32.gmra.mxu0 %v1308
      %v1377 = vpop.f32.mrf.mxu0
      %v1378 = vadd.f32 0.0, %v1377
      %1379 = vmatmul.f32.gmra.mxu0 %v1309
      %v1380 = vpop.f32.mrf.mxu0
      %v1381 = vadd.f32 0.0, %v1380
      %1382 = vmatmul.f32.gmra.mxu0 %v1310
      %v1383 = vpop.f32.mrf.mxu0
      %v1384 = vadd.f32 0.0, %v1383
      %1385 = vmatmul.f32.gmra.mxu0 %v1311
      %v1386 = vpop.f32.mrf.mxu0
      %v1387 = vadd.f32 0.0, %v1386
      %1388 = vmatmul.f32.gmra.mxu0 %v1312
      %v1389 = vpop.f32.mrf.mxu0
      %v1390 = vadd.f32 0.0, %v1389
      %1391 = vmatmul.f32.gmra.mxu0 %v1313
      %v1392 = vpop.f32.mrf.mxu0
      %v1393 = vadd.f32 0.0, %v1392
      %1394 = vmatmul.f32.gmra.mxu0 %v1314
      %v1395 = vpop.f32.mrf.mxu0
      %v1396 = vadd.f32 0.0, %v1395
      %1397 = vmatmul.f32.gmra.mxu0 %v1315
      %v1398 = vpop.f32.mrf.mxu0
      %v1399 = vadd.f32 0.0, %v1398
      %1400 = vmatmul.f32.gmra.mxu0 %v1316
      %v1401 = vpop.f32.mrf.mxu0
      %v1402 = vadd.f32 0.0, %v1401
      %1403 = vmatmul.f32.gmra.mxu0 %v1317
      %v1404 = vpop.f32.mrf.mxu0
      %v1405 = vadd.f32 0.0, %v1404
      %1406 = vmatmul.f32.gmra.mxu0 %v1318
      %v1407 = vpop.f32.mrf.mxu0
      %v1408 = vadd.f32 0.0, %v1407
      %1409 = vmatmul.f32.gmra.mxu0 %v1319
      %v1410 = vpop.f32.mrf.mxu0
      %v1411 = vadd.f32 0.0, %v1410
      %1412 = vmatmul.f32.gmra.mxu0 %v1320
      %v1413 = vpop.f32.mrf.mxu0
      %v1414 = vadd.f32 0.0, %v1413
      %1415 = vmatmul.f32.gmra.mxu0 %v1321
      %v1416 = vpop.f32.mrf.mxu0
      %v1417 = vadd.f32 0.0, %v1416
      %1418 = vmatmul.f32.gmra.mxu0 %v1322
      %v1419 = vpop.f32.mrf.mxu0
      %v1420 = vadd.f32 0.0, %v1419
      %1421 = vmatmul.f32.gmra.mxu0 %v1323
      %v1422 = vpop.f32.mrf.mxu0
      %v1423 = vadd.f32 0.0, %v1422
      %1424 = vmatmul.f32.gmra.mxu0 %v1324
      %v1425 = vpop.f32.mrf.mxu0
      %v1426 = vadd.f32 0.0, %v1425
      %1427 = vmatmul.f32.gmra.mxu0 %v1325
      %v1428 = vpop.f32.mrf.mxu0
      %v1429 = vadd.f32 0.0, %v1428
      %1430 = vmatmul.f32.gmra.mxu0 %v1326
      %v1431 = vpop.f32.mrf.mxu0
      %v1432 = vadd.f32 0.0, %v1431
      %1433 = vmatmul.f32.gmra.mxu0 %v1327
      %v1434 = vpop.f32.mrf.mxu0
      %v1435 = vadd.f32 0.0, %v1434
      %1436 = vmatmul.f32.gmra.mxu0 %v1328
      %v1437 = vpop.f32.mrf.mxu0
      %v1438 = vadd.f32 0.0, %v1437
      %1439 = vmatmul.f32.gmra.mxu0 %v1329
      %v1440 = vpop.f32.mrf.mxu0
      %v1441 = vadd.f32 0.0, %v1440
      %1442 = vmatmul.f32.gmra.mxu0 %v1330
      %v1443 = vpop.f32.mrf.mxu0
      %v1444 = vadd.f32 0.0, %v1443
      %1445 = vmatmul.f32.gmra.mxu0 %v1331
      %v1446 = vpop.f32.mrf.mxu0
      %v1447 = vadd.f32 0.0, %v1446
      %1448 = vmatmul.f32.gmra.mxu0 %v1332
      %v1449 = vpop.f32.mrf.mxu0
      %v1450 = vadd.f32 0.0, %v1449
      %1451 = vmatmul.f32.gmra.mxu0 %v1333
      %v1452 = vpop.f32.mrf.mxu0
      %v1453 = vadd.f32 0.0, %v1452
      %1454 = vmatmul.f32.gmra.mxu0 %v1334
      %v1455 = vpop.f32.mrf.mxu0
      %v1456 = vadd.f32 0.0, %v1455
      %1457 = vmatmul.f32.gmra.mxu0 %v1335
      %v1458 = vpop.f32.mrf.mxu0
      %v1459 = vadd.f32 0.0, %v1458
      %1460 = vmatmul.f32.gmra.mxu0 %v1336
      %v1461 = vpop.f32.mrf.mxu0
      %v1462 = vadd.f32 0.0, %v1461
      %1463 = vmatmul.f32.gmra.mxu0 %v1337
      %v1464 = vpop.f32.mrf.mxu0
      %v1465 = vadd.f32 0.0, %v1464
      %1466 = vdwg.mxu0
      %v1467 = vadd.f32 %v1050, %v1372
      %v1468 = vadd.f32 %v1053, %v1375
      %v1469 = vadd.f32 %v1056, %v1378
      %v1470 = vadd.f32 %v1059, %v1381
      %v1471 = vadd.f32 %v1062, %v1384
      %v1472 = vadd.f32 %v1065, %v1387
      %v1473 = vadd.f32 %v1068, %v1390
      %v1474 = vadd.f32 %v1071, %v1393
      %v1475 = vadd.f32 %v1074, %v1396
      %v1476 = vadd.f32 %v1077, %v1399
      %v1477 = vadd.f32 %v1080, %v1402
      %v1478 = vadd.f32 %v1083, %v1405
      %v1479 = vadd.f32 %v1086, %v1408
      %v1480 = vadd.f32 %v1089, %v1411
      %v1481 = vadd.f32 %v1092, %v1414
      %v1482 = vadd.f32 %v1095, %v1417
      %v1483 = vadd.f32 %v1098, %v1420
      %v1484 = vadd.f32 %v1101, %v1423
      %v1485 = vadd.f32 %v1104, %v1426
      %v1486 = vadd.f32 %v1107, %v1429
      %v1487 = vadd.f32 %v1110, %v1432
      %v1488 = vadd.f32 %v1113, %v1435
      %v1489 = vadd.f32 %v1116, %v1438
      %v1490 = vadd.f32 %v1119, %v1441
      %v1491 = vadd.f32 %v1122, %v1444
      %v1492 = vadd.f32 %v1125, %v1447
      %v1493 = vadd.f32 %v1128, %v1450
      %v1494 = vadd.f32 %v1131, %v1453
      %v1495 = vadd.f32 %v1134, %v1456
      %v1496 = vadd.f32 %v1137, %v1459
      %v1497 = vadd.f32 %v1140, %v1462
      %v1498 = vadd.f32 %v1143, %v1465
      %v1499 = vsel %vm534, 1, 0
      %v1500 = vsel %vm535, 1, 0
      %v1501 = vsel %vm536, 1, 0
      %v1502 = vsel %vm537, 1, 0
      %v1503 = vsel %vm538, 1, 0
      %v1504 = vsel %vm539, 1, 0
      %v1505 = vsel %vm540, 1, 0
      %v1506 = vsel %vm541, 1, 0
      %v1507 = vsel %vm542, 1, 0
      %v1508 = vsel %vm543, 1, 0
      %v1509 = vsel %vm544, 1, 0
      %v1510 = vsel %vm545, 1, 0
      %v1511 = vsel %vm546, 1, 0
      %v1512 = vsel %vm547, 1, 0
      %v1513 = vsel %vm548, 1, 0
      %v1514 = vsel %vm549, 1, 0
      %v1515 = vsel %vm550, 1, 0
      %v1516 = vsel %vm551, 1, 0
      %v1517 = vsel %vm552, 1, 0
      %v1518 = vsel %vm553, 1, 0
      %v1519 = vsel %vm554, 1, 0
      %v1520 = vsel %vm555, 1, 0
      %v1521 = vsel %vm556, 1, 0
      %v1522 = vsel %vm557, 1, 0
      %v1523 = vsel %vm558, 1, 0
      %v1524 = vsel %vm559, 1, 0
      %v1525 = vsel %vm560, 1, 0
      %v1526 = vsel %vm561, 1, 0
      %v1527 = vsel %vm562, 1, 0
      %v1528 = vsel %vm563, 1, 0
      %v1529 = vsel %vm564, 1, 0
      %v1530 = vsel %vm565, 1, 0
      %vm1531 = vcmp.eq.s32.totalorder %v1499, 1
      %vm1532 = vcmp.eq.s32.totalorder %v1500, 1
      %vm1533 = vcmp.eq.s32.totalorder %v1501, 1
      %vm1534 = vcmp.eq.s32.totalorder %v1502, 1
      %vm1535 = vcmp.eq.s32.totalorder %v1503, 1
      %vm1536 = vcmp.eq.s32.totalorder %v1504, 1
      %vm1537 = vcmp.eq.s32.totalorder %v1505, 1
      %vm1538 = vcmp.eq.s32.totalorder %v1506, 1
      %vm1539 = vcmp.eq.s32.totalorder %v1507, 1
      %vm1540 = vcmp.eq.s32.totalorder %v1508, 1
      %vm1541 = vcmp.eq.s32.totalorder %v1509, 1
      %vm1542 = vcmp.eq.s32.totalorder %v1510, 1
      %vm1543 = vcmp.eq.s32.totalorder %v1511, 1
      %vm1544 = vcmp.eq.s32.totalorder %v1512, 1
      %vm1545 = vcmp.eq.s32.totalorder %v1513, 1
      %vm1546 = vcmp.eq.s32.totalorder %v1514, 1
      %vm1547 = vcmp.eq.s32.totalorder %v1515, 1
      %vm1548 = vcmp.eq.s32.totalorder %v1516, 1
      %vm1549 = vcmp.eq.s32.totalorder %v1517, 1
      %vm1550 = vcmp.eq.s32.totalorder %v1518, 1
      %vm1551 = vcmp.eq.s32.totalorder %v1519, 1
      %vm1552 = vcmp.eq.s32.totalorder %v1520, 1
      %vm1553 = vcmp.eq.s32.totalorder %v1521, 1
      %vm1554 = vcmp.eq.s32.totalorder %v1522, 1
      %vm1555 = vcmp.eq.s32.totalorder %v1523, 1
      %vm1556 = vcmp.eq.s32.totalorder %v1524, 1
      %vm1557 = vcmp.eq.s32.totalorder %v1525, 1
      %vm1558 = vcmp.eq.s32.totalorder %v1526, 1
      %vm1559 = vcmp.eq.s32.totalorder %v1527, 1
      %vm1560 = vcmp.eq.s32.totalorder %v1528, 1
      %vm1561 = vcmp.eq.s32.totalorder %v1529, 1
      %vm1562 = vcmp.eq.s32.totalorder %v1530, 1
      %v1563 = vsel %vm1531, %v662, 0.0
      %v1564 = vsel %vm1532, %v661, 0.0
      %v1565 = vsel %vm1533, %v660, 0.0
      %v1566 = vsel %vm1534, %v659, 0.0
      %v1567 = vsel %vm1535, %v658, 0.0
      %v1568 = vsel %vm1536, %v657, 0.0
      %v1569 = vsel %vm1537, %v656, 0.0
      %v1570 = vsel %vm1538, %v655, 0.0
      %v1571 = vsel %vm1539, %v654, 0.0
      %v1572 = vsel %vm1540, %v653, 0.0
      %v1573 = vsel %vm1541, %v652, 0.0
      %v1574 = vsel %vm1542, %v651, 0.0
      %v1575 = vsel %vm1543, %v650, 0.0
      %v1576 = vsel %vm1544, %v649, 0.0
      %v1577 = vsel %vm1545, %v648, 0.0
      %v1578 = vsel %vm1546, %v647, 0.0
      %v1579 = vsel %vm1547, %v646, 0.0
      %v1580 = vsel %vm1548, %v645, 0.0
      %v1581 = vsel %vm1549, %v644, 0.0
      %v1582 = vsel %vm1550, %v643, 0.0
      %v1583 = vsel %vm1551, %v642, 0.0
      %v1584 = vsel %vm1552, %v641, 0.0
      %v1585 = vsel %vm1553, %v640, 0.0
      %v1586 = vsel %vm1554, %v639, 0.0
      %v1587 = vsel %vm1555, %v638, 0.0
      %v1588 = vsel %vm1556, %v637, 0.0
      %v1589 = vsel %vm1557, %v636, 0.0
      %v1590 = vsel %vm1558, %v635, 0.0
      %v1591 = vsel %vm1559, %v634, 0.0
      %v1592 = vsel %vm1560, %v633, 0.0
      %v1593 = vsel %vm1561, %v632, 0.0
      %v1594 = vsel %vm1562, %v631, 0.0
      %v1595 = vld [vmem:[%s3 + $0x180] sm:$0xff]
      %v1596 = vld [vmem:[%s3 + $0x188] sm:$0xff]
      %v1597 = vld [vmem:[%s3 + $0x190] sm:$0xff]
      %v1598 = vld [vmem:[%s3 + $0x198] sm:$0xff]
      %v1599 = vld [vmem:[%s3 + $0x1a0] sm:$0xff]
      %v1600 = vld [vmem:[%s3 + $0x1a8] sm:$0xff]
      %v1601 = vld [vmem:[%s3 + $0x1b0] sm:$0xff]
      %v1602 = vld [vmem:[%s3 + $0x1b8] sm:$0xff]
      %v1603 = vld [vmem:[%s3 + $0x1c0] sm:$0xff]
      %v1604 = vld [vmem:[%s3 + $0x1c8] sm:$0xff]
      %v1605 = vld [vmem:[%s3 + $0x1d0] sm:$0xff]
      %v1606 = vld [vmem:[%s3 + $0x1d8] sm:$0xff]
      %v1607 = vld [vmem:[%s3 + $0x1e0] sm:$0xff]
      %v1608 = vld [vmem:[%s3 + $0x1e8] sm:$0xff]
      %v1609 = vld [vmem:[%s3 + $0x1f0] sm:$0xff]
      %v1610 = vld [vmem:[%s3 + $0x1f8] sm:$0xff]
      %1611 = vmatpush.msra.mxu0 %v1610
      %1612 = vmatpush.msra.mxu0 %v1609
      %1613 = vmatpush.msra.mxu0 %v1608
      %1614 = vmatpush.msra.mxu0 %v1607
      %1615 = vmatpush.msra.mxu0 %v1606
      %1616 = vmatpush.msra.mxu0 %v1605
      %1617 = vmatpush.msra.mxu0 %v1604
      %1618 = vmatpush.msra.mxu0 %v1603
      %1619 = vmatpush.msra.mxu0 %v1602
      %1620 = vmatpush.msra.mxu0 %v1601
      %1621 = vmatpush.msra.mxu0 %v1600
      %1622 = vmatpush.msra.mxu0 %v1599
      %1623 = vmatpush.msra.mxu0 %v1598
      %1624 = vmatpush.msra.mxu0 %v1597
      %1625 = vmatpush.msra.mxu0 %v1596
      %1626 = vmatpush.msra.mxu0 %v1595
      %1627 = vmatmul.f32.gmra.mxu0 %v1563
      %v1628 = vpop.f32.mrf.mxu0
      %v1629 = vadd.f32 0.0, %v1628
      %1630 = vmatmul.f32.gmra.mxu0 %v1564
      %v1631 = vpop.f32.mrf.mxu0
      %v1632 = vadd.f32 0.0, %v1631
      %1633 = vmatmul.f32.gmra.mxu0 %v1565
      %v1634 = vpop.f32.mrf.mxu0
      %v1635 = vadd.f32 0.0, %v1634
      %1636 = vmatmul.f32.gmra.mxu0 %v1566
      %v1637 = vpop.f32.mrf.mxu0
      %v1638 = vadd.f32 0.0, %v1637
      %1639 = vmatmul.f32.gmra.mxu0 %v1567
      %v1640 = vpop.f32.mrf.mxu0
      %v1641 = vadd.f32 0.0, %v1640
      %1642 = vmatmul.f32.gmra.mxu0 %v1568
      %v1643 = vpop.f32.mrf.mxu0
      %v1644 = vadd.f32 0.0, %v1643
      %1645 = vmatmul.f32.gmra.mxu0 %v1569
      %v1646 = vpop.f32.mrf.mxu0
      %v1647 = vadd.f32 0.0, %v1646
      %1648 = vmatmul.f32.gmra.mxu0 %v1570
      %v1649 = vpop.f32.mrf.mxu0
      %v1650 = vadd.f32 0.0, %v1649
      %1651 = vmatmul.f32.gmra.mxu0 %v1571
      %v1652 = vpop.f32.mrf.mxu0
      %v1653 = vadd.f32 0.0, %v1652
      %1654 = vmatmul.f32.gmra.mxu0 %v1572
      %v1655 = vpop.f32.mrf.mxu0
      %v1656 = vadd.f32 0.0, %v1655
      %1657 = vmatmul.f32.gmra.mxu0 %v1573
      %v1658 = vpop.f32.mrf.mxu0
      %v1659 = vadd.f32 0.0, %v1658
      %1660 = vmatmul.f32.gmra.mxu0 %v1574
      %v1661 = vpop.f32.mrf.mxu0
      %v1662 = vadd.f32 0.0, %v1661
      %1663 = vmatmul.f32.gmra.mxu0 %v1575
      %v1664 = vpop.f32.mrf.mxu0
      %v1665 = vadd.f32 0.0, %v1664
      %1666 = vmatmul.f32.gmra.mxu0 %v1576
      %v1667 = vpop.f32.mrf.mxu0
      %v1668 = vadd.f32 0.0, %v1667
      %1669 = vmatmul.f32.gmra.mxu0 %v1577
      %v1670 = vpop.f32.mrf.mxu0
      %v1671 = vadd.f32 0.0, %v1670
      %1672 = vmatmul.f32.gmra.mxu0 %v1578
      %v1673 = vpop.f32.mrf.mxu0
      %v1674 = vadd.f32 0.0, %v1673
      %1675 = vmatmul.f32.gmra.mxu0 %v1579
      %v1676 = vpop.f32.mrf.mxu0
      %v1677 = vadd.f32 0.0, %v1676
      %1678 = vmatmul.f32.gmra.mxu0 %v1580
      %v1679 = vpop.f32.mrf.mxu0
      %v1680 = vadd.f32 0.0, %v1679
      %1681 = vmatmul.f32.gmra.mxu0 %v1581
      %v1682 = vpop.f32.mrf.mxu0
      %v1683 = vadd.f32 0.0, %v1682
      %1684 = vmatmul.f32.gmra.mxu0 %v1582
      %v1685 = vpop.f32.mrf.mxu0
      %v1686 = vadd.f32 0.0, %v1685
      %1687 = vmatmul.f32.gmra.mxu0 %v1583
      %v1688 = vpop.f32.mrf.mxu0
      %v1689 = vadd.f32 0.0, %v1688
      %1690 = vmatmul.f32.gmra.mxu0 %v1584
      %v1691 = vpop.f32.mrf.mxu0
      %v1692 = vadd.f32 0.0, %v1691
      %1693 = vmatmul.f32.gmra.mxu0 %v1585
      %v1694 = vpop.f32.mrf.mxu0
      %v1695 = vadd.f32 0.0, %v1694
      %1696 = vmatmul.f32.gmra.mxu0 %v1586
      %v1697 = vpop.f32.mrf.mxu0
      %v1698 = vadd.f32 0.0, %v1697
      %1699 = vmatmul.f32.gmra.mxu0 %v1587
      %v1700 = vpop.f32.mrf.mxu0
      %v1701 = vadd.f32 0.0, %v1700
      %1702 = vmatmul.f32.gmra.mxu0 %v1588
      %v1703 = vpop.f32.mrf.mxu0
      %v1704 = vadd.f32 0.0, %v1703
      %1705 = vmatmul.f32.gmra.mxu0 %v1589
      %v1706 = vpop.f32.mrf.mxu0
      %v1707 = vadd.f32 0.0, %v1706
      %1708 = vmatmul.f32.gmra.mxu0 %v1590
      %v1709 = vpop.f32.mrf.mxu0
      %v1710 = vadd.f32 0.0, %v1709
      %1711 = vmatmul.f32.gmra.mxu0 %v1591
      %v1712 = vpop.f32.mrf.mxu0
      %v1713 = vadd.f32 0.0, %v1712
      %1714 = vmatmul.f32.gmra.mxu0 %v1592
      %v1715 = vpop.f32.mrf.mxu0
      %v1716 = vadd.f32 0.0, %v1715
      %1717 = vmatmul.f32.gmra.mxu0 %v1593
      %v1718 = vpop.f32.mrf.mxu0
      %v1719 = vadd.f32 0.0, %v1718
      %1720 = vmatmul.f32.gmra.mxu0 %v1594
      %v1721 = vpop.f32.mrf.mxu0
      %v1722 = vadd.f32 0.0, %v1721
      %1723 = vdwg.mxu0
      %v1724 = vadd.f32 %v1467, %v1629
      %v1725 = vadd.f32 %v1468, %v1632
      %v1726 = vadd.f32 %v1469, %v1635
      %v1727 = vadd.f32 %v1470, %v1638
      %v1728 = vadd.f32 %v1471, %v1641
      %v1729 = vadd.f32 %v1472, %v1644
      %v1730 = vadd.f32 %v1473, %v1647
      %v1731 = vadd.f32 %v1474, %v1650
      %v1732 = vadd.f32 %v1475, %v1653
      %v1733 = vadd.f32 %v1476, %v1656
      %v1734 = vadd.f32 %v1477, %v1659
      %v1735 = vadd.f32 %v1478, %v1662
      %v1736 = vadd.f32 %v1479, %v1665
      %v1737 = vadd.f32 %v1480, %v1668
      %v1738 = vadd.f32 %v1481, %v1671
      %v1739 = vadd.f32 %v1482, %v1674
      %v1740 = vadd.f32 %v1483, %v1677
      %v1741 = vadd.f32 %v1484, %v1680
      %v1742 = vadd.f32 %v1485, %v1683
      %v1743 = vadd.f32 %v1486, %v1686
      %v1744 = vadd.f32 %v1487, %v1689
      %v1745 = vadd.f32 %v1488, %v1692
      %v1746 = vadd.f32 %v1489, %v1695
      %v1747 = vadd.f32 %v1490, %v1698
      %v1748 = vadd.f32 %v1491, %v1701
      %v1749 = vadd.f32 %v1492, %v1704
      %v1750 = vadd.f32 %v1493, %v1707
      %v1751 = vadd.f32 %v1494, %v1710
      %v1752 = vadd.f32 %v1495, %v1713
      %v1753 = vadd.f32 %v1496, %v1716
      %v1754 = vadd.f32 %v1497, %v1719
      %v1755 = vadd.f32 %v1498, %v1722
      %v1756 = vld [vmem:[%s3 + $0x200] sm:$0xff]
      %v1757 = vld [vmem:[%s3 + $0x208] sm:$0xff]
      %v1758 = vld [vmem:[%s3 + $0x210] sm:$0xff]
      %v1759 = vld [vmem:[%s3 + $0x218] sm:$0xff]
      %v1760 = vld [vmem:[%s3 + $0x220] sm:$0xff]
      %v1761 = vld [vmem:[%s3 + $0x228] sm:$0xff]
      %v1762 = vld [vmem:[%s3 + $0x230] sm:$0xff]
      %v1763 = vld [vmem:[%s3 + $0x238] sm:$0xff]
      %v1764 = vld [vmem:[%s3 + $0x240] sm:$0xff]
      %v1765 = vld [vmem:[%s3 + $0x248] sm:$0xff]
      %v1766 = vld [vmem:[%s3 + $0x250] sm:$0xff]
      %v1767 = vld [vmem:[%s3 + $0x258] sm:$0xff]
      %v1768 = vld [vmem:[%s3 + $0x260] sm:$0xff]
      %v1769 = vld [vmem:[%s3 + $0x268] sm:$0xff]
      %v1770 = vld [vmem:[%s3 + $0x270] sm:$0xff]
      %v1771 = vld [vmem:[%s3 + $0x278] sm:$0xff]
      %1772 = vmatpush.msra.mxu0 %v1771
      %1773 = vmatpush.msra.mxu0 %v1770
      %1774 = vmatpush.msra.mxu0 %v1769
      %1775 = vmatpush.msra.mxu0 %v1768
      %1776 = vmatpush.msra.mxu0 %v1767
      %1777 = vmatpush.msra.mxu0 %v1766
      %1778 = vmatpush.msra.mxu0 %v1765
      %1779 = vmatpush.msra.mxu0 %v1764
      %1780 = vmatpush.msra.mxu0 %v1763
      %1781 = vmatpush.msra.mxu0 %v1762
      %1782 = vmatpush.msra.mxu0 %v1761
      %1783 = vmatpush.msra.mxu0 %v1760
      %1784 = vmatpush.msra.mxu0 %v1759
      %1785 = vmatpush.msra.mxu0 %v1758
      %1786 = vmatpush.msra.mxu0 %v1757
      %1787 = vmatpush.msra.mxu0 %v1756
      %1788 = vmatmul.f32.gmra.mxu0 %v373
      %v1789 = vpop.f32.mrf.mxu0
      %v1790 = vadd.f32 0.0, %v1789
      %1791 = vmatmul.f32.gmra.mxu0 %v374
      %v1792 = vpop.f32.mrf.mxu0
      %v1793 = vadd.f32 0.0, %v1792
      %1794 = vmatmul.f32.gmra.mxu0 %v375
      %v1795 = vpop.f32.mrf.mxu0
      %v1796 = vadd.f32 0.0, %v1795
      %1797 = vmatmul.f32.gmra.mxu0 %v376
      %v1798 = vpop.f32.mrf.mxu0
      %v1799 = vadd.f32 0.0, %v1798
      %1800 = vmatmul.f32.gmra.mxu0 %v377
      %v1801 = vpop.f32.mrf.mxu0
      %v1802 = vadd.f32 0.0, %v1801
      %1803 = vmatmul.f32.gmra.mxu0 %v378
      %v1804 = vpop.f32.mrf.mxu0
      %v1805 = vadd.f32 0.0, %v1804
      %1806 = vmatmul.f32.gmra.mxu0 %v379
      %v1807 = vpop.f32.mrf.mxu0
      %v1808 = vadd.f32 0.0, %v1807
      %1809 = vmatmul.f32.gmra.mxu0 %v380
      %v1810 = vpop.f32.mrf.mxu0
      %v1811 = vadd.f32 0.0, %v1810
      %1812 = vmatmul.f32.gmra.mxu0 %v381
      %v1813 = vpop.f32.mrf.mxu0
      %v1814 = vadd.f32 0.0, %v1813
      %1815 = vmatmul.f32.gmra.mxu0 %v382
      %v1816 = vpop.f32.mrf.mxu0
      %v1817 = vadd.f32 0.0, %v1816
      %1818 = vmatmul.f32.gmra.mxu0 %v383
      %v1819 = vpop.f32.mrf.mxu0
      %v1820 = vadd.f32 0.0, %v1819
      %1821 = vmatmul.f32.gmra.mxu0 %v384
      %v1822 = vpop.f32.mrf.mxu0
      %v1823 = vadd.f32 0.0, %v1822
      %1824 = vmatmul.f32.gmra.mxu0 %v385
      %v1825 = vpop.f32.mrf.mxu0
      %v1826 = vadd.f32 0.0, %v1825
      %1827 = vmatmul.f32.gmra.mxu0 %v386
      %v1828 = vpop.f32.mrf.mxu0
      %v1829 = vadd.f32 0.0, %v1828
      %1830 = vmatmul.f32.gmra.mxu0 %v387
      %v1831 = vpop.f32.mrf.mxu0
      %v1832 = vadd.f32 0.0, %v1831
      %1833 = vmatmul.f32.gmra.mxu0 %v388
      %v1834 = vpop.f32.mrf.mxu0
      %v1835 = vadd.f32 0.0, %v1834
      %1836 = vmatmul.f32.gmra.mxu0 %v389
      %v1837 = vpop.f32.mrf.mxu0
      %v1838 = vadd.f32 0.0, %v1837
      %1839 = vmatmul.f32.gmra.mxu0 %v390
      %v1840 = vpop.f32.mrf.mxu0
      %v1841 = vadd.f32 0.0, %v1840
      %1842 = vmatmul.f32.gmra.mxu0 %v391
      %v1843 = vpop.f32.mrf.mxu0
      %v1844 = vadd.f32 0.0, %v1843
      %1845 = vmatmul.f32.gmra.mxu0 %v392
      %v1846 = vpop.f32.mrf.mxu0
      %v1847 = vadd.f32 0.0, %v1846
      %1848 = vmatmul.f32.gmra.mxu0 %v393
      %v1849 = vpop.f32.mrf.mxu0
      %v1850 = vadd.f32 0.0, %v1849
      %1851 = vmatmul.f32.gmra.mxu0 %v394
      %v1852 = vpop.f32.mrf.mxu0
      %v1853 = vadd.f32 0.0, %v1852
      %1854 = vmatmul.f32.gmra.mxu0 %v395
      %v1855 = vpop.f32.mrf.mxu0
      %v1856 = vadd.f32 0.0, %v1855
      %1857 = vmatmul.f32.gmra.mxu0 %v396
      %v1858 = vpop.f32.mrf.mxu0
      %v1859 = vadd.f32 0.0, %v1858
      %1860 = vmatmul.f32.gmra.mxu0 %v397
      %v1861 = vpop.f32.mrf.mxu0
      %v1862 = vadd.f32 0.0, %v1861
      %1863 = vmatmul.f32.gmra.mxu0 %v398
      %v1864 = vpop.f32.mrf.mxu0
      %v1865 = vadd.f32 0.0, %v1864
      %1866 = vmatmul.f32.gmra.mxu0 %v399
      %v1867 = vpop.f32.mrf.mxu0
      %v1868 = vadd.f32 0.0, %v1867
      %1869 = vmatmul.f32.gmra.mxu0 %v400
      %v1870 = vpop.f32.mrf.mxu0
      %v1871 = vadd.f32 0.0, %v1870
      %1872 = vmatmul.f32.gmra.mxu0 %v401
      %v1873 = vpop.f32.mrf.mxu0
      %v1874 = vadd.f32 0.0, %v1873
      %1875 = vmatmul.f32.gmra.mxu0 %v402
      %v1876 = vpop.f32.mrf.mxu0
      %v1877 = vadd.f32 0.0, %v1876
      %1878 = vmatmul.f32.gmra.mxu0 %v403
      %v1879 = vpop.f32.mrf.mxu0
      %v1880 = vadd.f32 0.0, %v1879
      %1881 = vmatmul.f32.gmra.mxu0 %v404
      %v1882 = vpop.f32.mrf.mxu0
      %v1883 = vadd.f32 0.0, %v1882
      %1884 = vdwg.mxu0
      %v1885 = vadd.f32 %v1724, %v1790
      %v1886 = vadd.f32 %v1725, %v1793
      %v1887 = vadd.f32 %v1726, %v1796
      %v1888 = vadd.f32 %v1727, %v1799
      %v1889 = vadd.f32 %v1728, %v1802
      %v1890 = vadd.f32 %v1729, %v1805
      %v1891 = vadd.f32 %v1730, %v1808
      %v1892 = vadd.f32 %v1731, %v1811
      %v1893 = vadd.f32 %v1732, %v1814
      %v1894 = vadd.f32 %v1733, %v1817
      %v1895 = vadd.f32 %v1734, %v1820
      %v1896 = vadd.f32 %v1735, %v1823
      %v1897 = vadd.f32 %v1736, %v1826
      %v1898 = vadd.f32 %v1737, %v1829
      %v1899 = vadd.f32 %v1738, %v1832
      %v1900 = vadd.f32 %v1739, %v1835
      %v1901 = vadd.f32 %v1740, %v1838
      %v1902 = vadd.f32 %v1741, %v1841
      %v1903 = vadd.f32 %v1742, %v1844
      %v1904 = vadd.f32 %v1743, %v1847
      %v1905 = vadd.f32 %v1744, %v1850
      %v1906 = vadd.f32 %v1745, %v1853
      %v1907 = vadd.f32 %v1746, %v1856
      %v1908 = vadd.f32 %v1747, %v1859
      %v1909 = vadd.f32 %v1748, %v1862
      %v1910 = vadd.f32 %v1749, %v1865
      %v1911 = vadd.f32 %v1750, %v1868
      %v1912 = vadd.f32 %v1751, %v1871
      %v1913 = vadd.f32 %v1752, %v1874
      %v1914 = vadd.f32 %v1753, %v1877
      %v1915 = vadd.f32 %v1754, %v1880
      %v1916 = vadd.f32 %v1755, %v1883
      %v1917 = vsel %vm566, 1, 0
      %v1918 = vsel %vm567, 1, 0
      %v1919 = vsel %vm568, 1, 0
      %v1920 = vsel %vm569, 1, 0
      %v1921 = vsel %vm570, 1, 0
      %v1922 = vsel %vm571, 1, 0
      %v1923 = vsel %vm572, 1, 0
      %v1924 = vsel %vm573, 1, 0
      %v1925 = vsel %vm574, 1, 0
      %v1926 = vsel %vm575, 1, 0
      %v1927 = vsel %vm576, 1, 0
      %v1928 = vsel %vm577, 1, 0
      %v1929 = vsel %vm578, 1, 0
      %v1930 = vsel %vm579, 1, 0
      %v1931 = vsel %vm580, 1, 0
      %v1932 = vsel %vm581, 1, 0
      %v1933 = vsel %vm582, 1, 0
      %v1934 = vsel %vm583, 1, 0
      %v1935 = vsel %vm584, 1, 0
      %v1936 = vsel %vm585, 1, 0
      %v1937 = vsel %vm586, 1, 0
      %v1938 = vsel %vm587, 1, 0
      %v1939 = vsel %vm588, 1, 0
      %v1940 = vsel %vm589, 1, 0
      %v1941 = vsel %vm590, 1, 0
      %v1942 = vsel %vm591, 1, 0
      %v1943 = vsel %vm592, 1, 0
      %v1944 = vsel %vm593, 1, 0
      %v1945 = vsel %vm594, 1, 0
      %v1946 = vsel %vm595, 1, 0
      %v1947 = vsel %vm596, 1, 0
      %v1948 = vsel %vm597, 1, 0
      %vm1949 = vcmp.eq.s32.totalorder %v1917, 1
      %vm1950 = vcmp.eq.s32.totalorder %v1918, 1
      %vm1951 = vcmp.eq.s32.totalorder %v1919, 1
      %vm1952 = vcmp.eq.s32.totalorder %v1920, 1
      %vm1953 = vcmp.eq.s32.totalorder %v1921, 1
      %vm1954 = vcmp.eq.s32.totalorder %v1922, 1
      %vm1955 = vcmp.eq.s32.totalorder %v1923, 1
      %vm1956 = vcmp.eq.s32.totalorder %v1924, 1
      %vm1957 = vcmp.eq.s32.totalorder %v1925, 1
      %vm1958 = vcmp.eq.s32.totalorder %v1926, 1
      %vm1959 = vcmp.eq.s32.totalorder %v1927, 1
      %vm1960 = vcmp.eq.s32.totalorder %v1928, 1
      %vm1961 = vcmp.eq.s32.totalorder %v1929, 1
      %vm1962 = vcmp.eq.s32.totalorder %v1930, 1
      %vm1963 = vcmp.eq.s32.totalorder %v1931, 1
      %vm1964 = vcmp.eq.s32.totalorder %v1932, 1
      %vm1965 = vcmp.eq.s32.totalorder %v1933, 1
      %vm1966 = vcmp.eq.s32.totalorder %v1934, 1
      %vm1967 = vcmp.eq.s32.totalorder %v1935, 1
      %vm1968 = vcmp.eq.s32.totalorder %v1936, 1
      %vm1969 = vcmp.eq.s32.totalorder %v1937, 1
      %vm1970 = vcmp.eq.s32.totalorder %v1938, 1
      %vm1971 = vcmp.eq.s32.totalorder %v1939, 1
      %vm1972 = vcmp.eq.s32.totalorder %v1940, 1
      %vm1973 = vcmp.eq.s32.totalorder %v1941, 1
      %vm1974 = vcmp.eq.s32.totalorder %v1942, 1
      %vm1975 = vcmp.eq.s32.totalorder %v1943, 1
      %vm1976 = vcmp.eq.s32.totalorder %v1944, 1
      %vm1977 = vcmp.eq.s32.totalorder %v1945, 1
      %vm1978 = vcmp.eq.s32.totalorder %v1946, 1
      %vm1979 = vcmp.eq.s32.totalorder %v1947, 1
      %vm1980 = vcmp.eq.s32.totalorder %v1948, 1
      %v1981 = vsel %vm1949, %v1208, 0.0
      %v1982 = vsel %vm1950, %v1207, 0.0
      %v1983 = vsel %vm1951, %v1206, 0.0
      %v1984 = vsel %vm1952, %v1205, 0.0
      %v1985 = vsel %vm1953, %v1204, 0.0
      %v1986 = vsel %vm1954, %v1203, 0.0
      %v1987 = vsel %vm1955, %v1202, 0.0
      %v1988 = vsel %vm1956, %v1201, 0.0
      %v1989 = vsel %vm1957, %v1200, 0.0
      %v1990 = vsel %vm1958, %v1199, 0.0
      %v1991 = vsel %vm1959, %v1198, 0.0
      %v1992 = vsel %vm1960, %v1197, 0.0
      %v1993 = vsel %vm1961, %v1196, 0.0
      %v1994 = vsel %vm1962, %v1195, 0.0
      %v1995 = vsel %vm1963, %v1194, 0.0
      %v1996 = vsel %vm1964, %v1193, 0.0
      %v1997 = vsel %vm1965, %v1192, 0.0
      %v1998 = vsel %vm1966, %v1191, 0.0
      %v1999 = vsel %vm1967, %v1190, 0.0
      %v2000 = vsel %vm1968, %v1189, 0.0
      %v2001 = vsel %vm1969, %v1188, 0.0
      %v2002 = vsel %vm1970, %v1187, 0.0
      %v2003 = vsel %vm1971, %v1186, 0.0
      %v2004 = vsel %vm1972, %v1185, 0.0
      %v2005 = vsel %vm1973, %v1184, 0.0
      %v2006 = vsel %vm1974, %v1183, 0.0
      %v2007 = vsel %vm1975, %v1182, 0.0
      %v2008 = vsel %vm1976, %v1181, 0.0
      %v2009 = vsel %vm1977, %v1180, 0.0
      %v2010 = vsel %vm1978, %v1179, 0.0
      %v2011 = vsel %vm1979, %v1178, 0.0
      %v2012 = vsel %vm1980, %v1209, 0.0
      %v2013 = vld [vmem:[%s3 + $0x280] sm:$0xff]
      %v2014 = vld [vmem:[%s3 + $0x288] sm:$0xff]
      %v2015 = vld [vmem:[%s3 + $0x290] sm:$0xff]
      %v2016 = vld [vmem:[%s3 + $0x298] sm:$0xff]
      %v2017 = vld [vmem:[%s3 + $0x2a0] sm:$0xff]
      %v2018 = vld [vmem:[%s3 + $0x2a8] sm:$0xff]
      %v2019 = vld [vmem:[%s3 + $0x2b0] sm:$0xff]
      %v2020 = vld [vmem:[%s3 + $0x2b8] sm:$0xff]
      %v2021 = vld [vmem:[%s3 + $0x2c0] sm:$0xff]
      %v2022 = vld [vmem:[%s3 + $0x2c8] sm:$0xff]
      %v2023 = vld [vmem:[%s3 + $0x2d0] sm:$0xff]
      %v2024 = vld [vmem:[%s3 + $0x2d8] sm:$0xff]
      %v2025 = vld [vmem:[%s3 + $0x2e0] sm:$0xff]
      %v2026 = vld [vmem:[%s3 + $0x2e8] sm:$0xff]
      %v2027 = vld [vmem:[%s3 + $0x2f0] sm:$0xff]
      %v2028 = vld [vmem:[%s3 + $0x2f8] sm:$0xff]
      %2029 = vmatpush.msra.mxu0 %v2028
      %2030 = vmatpush.msra.mxu0 %v2027
      %2031 = vmatpush.msra.mxu0 %v2026
      %2032 = vmatpush.msra.mxu0 %v2025
      %2033 = vmatpush.msra.mxu0 %v2024
      %2034 = vmatpush.msra.mxu0 %v2023
      %2035 = vmatpush.msra.mxu0 %v2022
      %2036 = vmatpush.msra.mxu0 %v2021
      %2037 = vmatpush.msra.mxu0 %v2020
      %2038 = vmatpush.msra.mxu0 %v2019
      %2039 = vmatpush.msra.mxu0 %v2018
      %2040 = vmatpush.msra.mxu0 %v2017
      %2041 = vmatpush.msra.mxu0 %v2016
      %2042 = vmatpush.msra.mxu0 %v2015
      %2043 = vmatpush.msra.mxu0 %v2014
      %2044 = vmatpush.msra.mxu0 %v2013
      %2045 = vmatmul.f32.gmra.mxu0 %v1981
      %v2046 = vpop.f32.mrf.mxu0
      %v2047 = vadd.f32 0.0, %v2046
      %2048 = vmatmul.f32.gmra.mxu0 %v1982
      %v2049 = vpop.f32.mrf.mxu0
      %v2050 = vadd.f32 0.0, %v2049
      %2051 = vmatmul.f32.gmra.mxu0 %v1983
      %v2052 = vpop.f32.mrf.mxu0
      %v2053 = vadd.f32 0.0, %v2052
      %2054 = vmatmul.f32.gmra.mxu0 %v1984
      %v2055 = vpop.f32.mrf.mxu0
      %v2056 = vadd.f32 0.0, %v2055
      %2057 = vmatmul.f32.gmra.mxu0 %v1985
      %v2058 = vpop.f32.mrf.mxu0
      %v2059 = vadd.f32 0.0, %v2058
      %2060 = vmatmul.f32.gmra.mxu0 %v1986
      %v2061 = vpop.f32.mrf.mxu0
      %v2062 = vadd.f32 0.0, %v2061
      %2063 = vmatmul.f32.gmra.mxu0 %v1987
      %v2064 = vpop.f32.mrf.mxu0
      %v2065 = vadd.f32 0.0, %v2064
      %2066 = vmatmul.f32.gmra.mxu0 %v1988
      %v2067 = vpop.f32.mrf.mxu0
      %v2068 = vadd.f32 0.0, %v2067
      %2069 = vmatmul.f32.gmra.mxu0 %v1989
      %v2070 = vpop.f32.mrf.mxu0
      %v2071 = vadd.f32 0.0, %v2070
      %2072 = vmatmul.f32.gmra.mxu0 %v1990
      %v2073 = vpop.f32.mrf.mxu0
      %v2074 = vadd.f32 0.0, %v2073
      %2075 = vmatmul.f32.gmra.mxu0 %v1991
      %v2076 = vpop.f32.mrf.mxu0
      %v2077 = vadd.f32 0.0, %v2076
      %2078 = vmatmul.f32.gmra.mxu0 %v1992
      %v2079 = vpop.f32.mrf.mxu0
      %v2080 = vadd.f32 0.0, %v2079
      %2081 = vmatmul.f32.gmra.mxu0 %v1993
      %v2082 = vpop.f32.mrf.mxu0
      %v2083 = vadd.f32 0.0, %v2082
      %2084 = vmatmul.f32.gmra.mxu0 %v1994
      %v2085 = vpop.f32.mrf.mxu0
      %v2086 = vadd.f32 0.0, %v2085
      %2087 = vmatmul.f32.gmra.mxu0 %v1995
      %v2088 = vpop.f32.mrf.mxu0
      %v2089 = vadd.f32 0.0, %v2088
      %2090 = vmatmul.f32.gmra.mxu0 %v1996
      %v2091 = vpop.f32.mrf.mxu0
      %v2092 = vadd.f32 0.0, %v2091
      %2093 = vmatmul.f32.gmra.mxu0 %v1997
      %v2094 = vpop.f32.mrf.mxu0
      %v2095 = vadd.f32 0.0, %v2094
      %2096 = vmatmul.f32.gmra.mxu0 %v1998
      %v2097 = vpop.f32.mrf.mxu0
      %v2098 = vadd.f32 0.0, %v2097
      %2099 = vmatmul.f32.gmra.mxu0 %v1999
      %v2100 = vpop.f32.mrf.mxu0
      %v2101 = vadd.f32 0.0, %v2100
      %2102 = vmatmul.f32.gmra.mxu0 %v2000
      %v2103 = vpop.f32.mrf.mxu0
      %v2104 = vadd.f32 0.0, %v2103
      %2105 = vmatmul.f32.gmra.mxu0 %v2001
      %v2106 = vpop.f32.mrf.mxu0
      %v2107 = vadd.f32 0.0, %v2106
      %2108 = vmatmul.f32.gmra.mxu0 %v2002
      %v2109 = vpop.f32.mrf.mxu0
      %v2110 = vadd.f32 0.0, %v2109
      %2111 = vmatmul.f32.gmra.mxu0 %v2003
      %v2112 = vpop.f32.mrf.mxu0
      %v2113 = vadd.f32 0.0, %v2112
      %2114 = vmatmul.f32.gmra.mxu0 %v2004
      %v2115 = vpop.f32.mrf.mxu0
      %v2116 = vadd.f32 0.0, %v2115
      %2117 = vmatmul.f32.gmra.mxu0 %v2005
      %v2118 = vpop.f32.mrf.mxu0
      %v2119 = vadd.f32 0.0, %v2118
      %2120 = vmatmul.f32.gmra.mxu0 %v2006
      %v2121 = vpop.f32.mrf.mxu0
      %v2122 = vadd.f32 0.0, %v2121
      %2123 = vmatmul.f32.gmra.mxu0 %v2007
      %v2124 = vpop.f32.mrf.mxu0
      %v2125 = vadd.f32 0.0, %v2124
      %2126 = vmatmul.f32.gmra.mxu0 %v2008
      %v2127 = vpop.f32.mrf.mxu0
      %v2128 = vadd.f32 0.0, %v2127
      %2129 = vmatmul.f32.gmra.mxu0 %v2009
      %v2130 = vpop.f32.mrf.mxu0
      %v2131 = vadd.f32 0.0, %v2130
      %2132 = vmatmul.f32.gmra.mxu0 %v2010
      %v2133 = vpop.f32.mrf.mxu0
      %v2134 = vadd.f32 0.0, %v2133
      %2135 = vmatmul.f32.gmra.mxu0 %v2011
      %v2136 = vpop.f32.mrf.mxu0
      %v2137 = vadd.f32 0.0, %v2136
      %2138 = vmatmul.f32.gmra.mxu0 %v2012
      %v2139 = vpop.f32.mrf.mxu0
      %v2140 = vadd.f32 0.0, %v2139
      %2141 = vdwg.mxu0
      %v2142 = vadd.f32 %v1885, %v2047
      %v2143 = vadd.f32 %v1886, %v2050
      %v2144 = vadd.f32 %v1887, %v2053
      %v2145 = vadd.f32 %v1888, %v2056
      %v2146 = vadd.f32 %v1889, %v2059
      %v2147 = vadd.f32 %v1890, %v2062
      %v2148 = vadd.f32 %v1891, %v2065
      %v2149 = vadd.f32 %v1892, %v2068
      %v2150 = vadd.f32 %v1893, %v2071
      %v2151 = vadd.f32 %v1894, %v2074
      %v2152 = vadd.f32 %v1895, %v2077
      %v2153 = vadd.f32 %v1896, %v2080
      %v2154 = vadd.f32 %v1897, %v2083
      %v2155 = vadd.f32 %v1898, %v2086
      %v2156 = vadd.f32 %v1899, %v2089
      %v2157 = vadd.f32 %v1900, %v2092
      %v2158 = vadd.f32 %v1901, %v2095
      %v2159 = vadd.f32 %v1902, %v2098
      %v2160 = vadd.f32 %v1903, %v2101
      %v2161 = vadd.f32 %v1904, %v2104
      %v2162 = vadd.f32 %v1905, %v2107
      %v2163 = vadd.f32 %v1906, %v2110
      %v2164 = vadd.f32 %v1907, %v2113
      %v2165 = vadd.f32 %v1908, %v2116
      %v2166 = vadd.f32 %v1909, %v2119
      %v2167 = vadd.f32 %v1910, %v2122
      %v2168 = vadd.f32 %v1911, %v2125
      %v2169 = vadd.f32 %v1912, %v2128
      %v2170 = vadd.f32 %v1913, %v2131
      %v2171 = vadd.f32 %v1914, %v2134
      %v2172 = vadd.f32 %v1915, %v2137
      %v2173 = vadd.f32 %v1916, %v2140
      %vm2174 = vmand %vm502, %vm534
      %vm2175 = vmand %vm503, %vm535
      %vm2176 = vmand %vm504, %vm536
      %vm2177 = vmand %vm505, %vm537
      %vm2178 = vmand %vm506, %vm538
      %vm2179 = vmand %vm507, %vm539
      %vm2180 = vmand %vm508, %vm540
      %vm2181 = vmand %vm509, %vm541
      %vm2182 = vmand %vm510, %vm542
      %vm2183 = vmand %vm511, %vm543
      %vm2184 = vmand %vm512, %vm544
      %vm2185 = vmand %vm513, %vm545
      %vm2186 = vmand %vm514, %vm546
      %vm2187 = vmand %vm515, %vm547
      %vm2188 = vmand %vm516, %vm548
      %vm2189 = vmand %vm517, %vm549
      %vm2190 = vmand %vm518, %vm550
      %vm2191 = vmand %vm519, %vm551
      %vm2192 = vmand %vm520, %vm552
      %vm2193 = vmand %vm521, %vm553
      %vm2194 = vmand %vm522, %vm554
      %vm2195 = vmand %vm523, %vm555
      %vm2196 = vmand %vm524, %vm556
      %vm2197 = vmand %vm525, %vm557
      %vm2198 = vmand %vm526, %vm558
      %vm2199 = vmand %vm527, %vm559
      %vm2200 = vmand %vm528, %vm560
      %vm2201 = vmand %vm529, %vm561
      %vm2202 = vmand %vm530, %vm562
      %vm2203 = vmand %vm531, %vm563
      %vm2204 = vmand %vm532, %vm564
      %vm2205 = vmand %vm533, %vm565
      %v2206 = vsel %vm2174, 1, 0
      %v2207 = vsel %vm2175, 1, 0
      %v2208 = vsel %vm2176, 1, 0
      %v2209 = vsel %vm2177, 1, 0
      %v2210 = vsel %vm2178, 1, 0
      %v2211 = vsel %vm2179, 1, 0
      %v2212 = vsel %vm2180, 1, 0
      %v2213 = vsel %vm2181, 1, 0
      %v2214 = vsel %vm2182, 1, 0
      %v2215 = vsel %vm2183, 1, 0
      %v2216 = vsel %vm2184, 1, 0
      %v2217 = vsel %vm2185, 1, 0
      %v2218 = vsel %vm2186, 1, 0
      %v2219 = vsel %vm2187, 1, 0
      %v2220 = vsel %vm2188, 1, 0
      %v2221 = vsel %vm2189, 1, 0
      %v2222 = vsel %vm2190, 1, 0
      %v2223 = vsel %vm2191, 1, 0
      %v2224 = vsel %vm2192, 1, 0
      %v2225 = vsel %vm2193, 1, 0
      %v2226 = vsel %vm2194, 1, 0
      %v2227 = vsel %vm2195, 1, 0
      %v2228 = vsel %vm2196, 1, 0
      %v2229 = vsel %vm2197, 1, 0
      %v2230 = vsel %vm2198, 1, 0
      %v2231 = vsel %vm2199, 1, 0
      %v2232 = vsel %vm2200, 1, 0
      %v2233 = vsel %vm2201, 1, 0
      %v2234 = vsel %vm2202, 1, 0
      %v2235 = vsel %vm2203, 1, 0
      %v2236 = vsel %vm2204, 1, 0
      %v2237 = vsel %vm2205, 1, 0
      %vm2238 = vcmp.eq.s32.totalorder %v2206, 1
      %vm2239 = vcmp.eq.s32.totalorder %v2207, 1
      %vm2240 = vcmp.eq.s32.totalorder %v2208, 1
      %vm2241 = vcmp.eq.s32.totalorder %v2209, 1
      %vm2242 = vcmp.eq.s32.totalorder %v2210, 1
      %vm2243 = vcmp.eq.s32.totalorder %v2211, 1
      %vm2244 = vcmp.eq.s32.totalorder %v2212, 1
      %vm2245 = vcmp.eq.s32.totalorder %v2213, 1
      %vm2246 = vcmp.eq.s32.totalorder %v2214, 1
      %vm2247 = vcmp.eq.s32.totalorder %v2215, 1
      %vm2248 = vcmp.eq.s32.totalorder %v2216, 1
      %vm2249 = vcmp.eq.s32.totalorder %v2217, 1
      %vm2250 = vcmp.eq.s32.totalorder %v2218, 1
      %vm2251 = vcmp.eq.s32.totalorder %v2219, 1
      %vm2252 = vcmp.eq.s32.totalorder %v2220, 1
      %vm2253 = vcmp.eq.s32.totalorder %v2221, 1
      %vm2254 = vcmp.eq.s32.totalorder %v2222, 1
      %vm2255 = vcmp.eq.s32.totalorder %v2223, 1
      %vm2256 = vcmp.eq.s32.totalorder %v2224, 1
      %vm2257 = vcmp.eq.s32.totalorder %v2225, 1
      %vm2258 = vcmp.eq.s32.totalorder %v2226, 1
      %vm2259 = vcmp.eq.s32.totalorder %v2227, 1
      %vm2260 = vcmp.eq.s32.totalorder %v2228, 1
      %vm2261 = vcmp.eq.s32.totalorder %v2229, 1
      %vm2262 = vcmp.eq.s32.totalorder %v2230, 1
      %vm2263 = vcmp.eq.s32.totalorder %v2231, 1
      %vm2264 = vcmp.eq.s32.totalorder %v2232, 1
      %vm2265 = vcmp.eq.s32.totalorder %v2233, 1
      %vm2266 = vcmp.eq.s32.totalorder %v2234, 1
      %vm2267 = vcmp.eq.s32.totalorder %v2235, 1
      %vm2268 = vcmp.eq.s32.totalorder %v2236, 1
      %vm2269 = vcmp.eq.s32.totalorder %v2237, 1
      %v2270 = vsel %vm2238, %v660, 0.0
      %v2271 = vsel %vm2239, %v659, 0.0
      %v2272 = vsel %vm2240, %v658, 0.0
      %v2273 = vsel %vm2241, %v657, 0.0
      %v2274 = vsel %vm2242, %v656, 0.0
      %v2275 = vsel %vm2243, %v655, 0.0
      %v2276 = vsel %vm2244, %v654, 0.0
      %v2277 = vsel %vm2245, %v653, 0.0
      %v2278 = vsel %vm2246, %v652, 0.0
      %v2279 = vsel %vm2247, %v651, 0.0
      %v2280 = vsel %vm2248, %v650, 0.0
      %v2281 = vsel %vm2249, %v649, 0.0
      %v2282 = vsel %vm2250, %v648, 0.0
      %v2283 = vsel %vm2251, %v647, 0.0
      %v2284 = vsel %vm2252, %v646, 0.0
      %v2285 = vsel %vm2253, %v645, 0.0
      %v2286 = vsel %vm2254, %v644, 0.0
      %v2287 = vsel %vm2255, %v643, 0.0
      %v2288 = vsel %vm2256, %v642, 0.0
      %v2289 = vsel %vm2257, %v641, 0.0
      %v2290 = vsel %vm2258, %v640, 0.0
      %v2291 = vsel %vm2259, %v639, 0.0
      %v2292 = vsel %vm2260, %v638, 0.0
      %v2293 = vsel %vm2261, %v637, 0.0
      %v2294 = vsel %vm2262, %v636, 0.0
      %v2295 = vsel %vm2263, %v635, 0.0
      %v2296 = vsel %vm2264, %v634, 0.0
      %v2297 = vsel %vm2265, %v633, 0.0
      %v2298 = vsel %vm2266, %v632, 0.0
      %v2299 = vsel %vm2267, %v631, 0.0
      %v2300 = vsel %vm2268, %v662, 0.0
      %v2301 = vsel %vm2269, %v661, 0.0
      %v2302 = vld [vmem:[%s3 + $0x300] sm:$0xff]
      %v2303 = vld [vmem:[%s3 + $0x308] sm:$0xff]
      %v2304 = vld [vmem:[%s3 + $0x310] sm:$0xff]
      %v2305 = vld [vmem:[%s3 + $0x318] sm:$0xff]
      %v2306 = vld [vmem:[%s3 + $0x320] sm:$0xff]
      %v2307 = vld [vmem:[%s3 + $0x328] sm:$0xff]
      %v2308 = vld [vmem:[%s3 + $0x330] sm:$0xff]
      %v2309 = vld [vmem:[%s3 + $0x338] sm:$0xff]
      %v2310 = vld [vmem:[%s3 + $0x340] sm:$0xff]
      %v2311 = vld [vmem:[%s3 + $0x348] sm:$0xff]
      %v2312 = vld [vmem:[%s3 + $0x350] sm:$0xff]
      %v2313 = vld [vmem:[%s3 + $0x358] sm:$0xff]
      %v2314 = vld [vmem:[%s3 + $0x360] sm:$0xff]
      %v2315 = vld [vmem:[%s3 + $0x368] sm:$0xff]
      %v2316 = vld [vmem:[%s3 + $0x370] sm:$0xff]
      %v2317 = vld [vmem:[%s3 + $0x378] sm:$0xff]
      %2318 = vmatpush.msra.mxu0 %v2317
      %2319 = vmatpush.msra.mxu0 %v2316
      %2320 = vmatpush.msra.mxu0 %v2315
      %2321 = vmatpush.msra.mxu0 %v2314
      %2322 = vmatpush.msra.mxu0 %v2313
      %2323 = vmatpush.msra.mxu0 %v2312
      %2324 = vmatpush.msra.mxu0 %v2311
      %2325 = vmatpush.msra.mxu0 %v2310
      %2326 = vmatpush.msra.mxu0 %v2309
      %2327 = vmatpush.msra.mxu0 %v2308
      %2328 = vmatpush.msra.mxu0 %v2307
      %2329 = vmatpush.msra.mxu0 %v2306
      %2330 = vmatpush.msra.mxu0 %v2305
      %2331 = vmatpush.msra.mxu0 %v2304
      %2332 = vmatpush.msra.mxu0 %v2303
      %2333 = vmatpush.msra.mxu0 %v2302
      %2334 = vmatmul.f32.gmra.mxu0 %v2270
      %v2335 = vpop.f32.mrf.mxu0
      %v2336 = vadd.f32 0.0, %v2335
      %2337 = vmatmul.f32.gmra.mxu0 %v2271
      %v2338 = vpop.f32.mrf.mxu0
      %v2339 = vadd.f32 0.0, %v2338
      %2340 = vmatmul.f32.gmra.mxu0 %v2272
      %v2341 = vpop.f32.mrf.mxu0
      %v2342 = vadd.f32 0.0, %v2341
      %2343 = vmatmul.f32.gmra.mxu0 %v2273
      %v2344 = vpop.f32.mrf.mxu0
      %v2345 = vadd.f32 0.0, %v2344
      %2346 = vmatmul.f32.gmra.mxu0 %v2274
      %v2347 = vpop.f32.mrf.mxu0
      %v2348 = vadd.f32 0.0, %v2347
      %2349 = vmatmul.f32.gmra.mxu0 %v2275
      %v2350 = vpop.f32.mrf.mxu0
      %v2351 = vadd.f32 0.0, %v2350
      %2352 = vmatmul.f32.gmra.mxu0 %v2276
      %v2353 = vpop.f32.mrf.mxu0
      %v2354 = vadd.f32 0.0, %v2353
      %2355 = vmatmul.f32.gmra.mxu0 %v2277
      %v2356 = vpop.f32.mrf.mxu0
      %v2357 = vadd.f32 0.0, %v2356
      %2358 = vmatmul.f32.gmra.mxu0 %v2278
      %v2359 = vpop.f32.mrf.mxu0
      %v2360 = vadd.f32 0.0, %v2359
      %2361 = vmatmul.f32.gmra.mxu0 %v2279
      %v2362 = vpop.f32.mrf.mxu0
      %v2363 = vadd.f32 0.0, %v2362
      %2364 = vmatmul.f32.gmra.mxu0 %v2280
      %v2365 = vpop.f32.mrf.mxu0
      %v2366 = vadd.f32 0.0, %v2365
      %2367 = vmatmul.f32.gmra.mxu0 %v2281
      %v2368 = vpop.f32.mrf.mxu0
      %v2369 = vadd.f32 0.0, %v2368
      %2370 = vmatmul.f32.gmra.mxu0 %v2282
      %v2371 = vpop.f32.mrf.mxu0
      %v2372 = vadd.f32 0.0, %v2371
      %2373 = vmatmul.f32.gmra.mxu0 %v2283
      %v2374 = vpop.f32.mrf.mxu0
      %v2375 = vadd.f32 0.0, %v2374
      %2376 = vmatmul.f32.gmra.mxu0 %v2284
      %v2377 = vpop.f32.mrf.mxu0
      %v2378 = vadd.f32 0.0, %v2377
      %2379 = vmatmul.f32.gmra.mxu0 %v2285
      %v2380 = vpop.f32.mrf.mxu0
      %v2381 = vadd.f32 0.0, %v2380
      %2382 = vmatmul.f32.gmra.mxu0 %v2286
      %v2383 = vpop.f32.mrf.mxu0
      %v2384 = vadd.f32 0.0, %v2383
      %2385 = vmatmul.f32.gmra.mxu0 %v2287
      %v2386 = vpop.f32.mrf.mxu0
      %v2387 = vadd.f32 0.0, %v2386
      %2388 = vmatmul.f32.gmra.mxu0 %v2288
      %v2389 = vpop.f32.mrf.mxu0
      %v2390 = vadd.f32 0.0, %v2389
      %2391 = vmatmul.f32.gmra.mxu0 %v2289
      %v2392 = vpop.f32.mrf.mxu0
      %v2393 = vadd.f32 0.0, %v2392
      %2394 = vmatmul.f32.gmra.mxu0 %v2290
      %v2395 = vpop.f32.mrf.mxu0
      %v2396 = vadd.f32 0.0, %v2395
      %2397 = vmatmul.f32.gmra.mxu0 %v2291
      %v2398 = vpop.f32.mrf.mxu0
      %v2399 = vadd.f32 0.0, %v2398
      %2400 = vmatmul.f32.gmra.mxu0 %v2292
      %v2401 = vpop.f32.mrf.mxu0
      %v2402 = vadd.f32 0.0, %v2401
      %2403 = vmatmul.f32.gmra.mxu0 %v2293
      %v2404 = vpop.f32.mrf.mxu0
      %v2405 = vadd.f32 0.0, %v2404
      %2406 = vmatmul.f32.gmra.mxu0 %v2294
      %v2407 = vpop.f32.mrf.mxu0
      %v2408 = vadd.f32 0.0, %v2407
      %2409 = vmatmul.f32.gmra.mxu0 %v2295
      %v2410 = vpop.f32.mrf.mxu0
      %v2411 = vadd.f32 0.0, %v2410
      %2412 = vmatmul.f32.gmra.mxu0 %v2296
      %v2413 = vpop.f32.mrf.mxu0
      %v2414 = vadd.f32 0.0, %v2413
      %2415 = vmatmul.f32.gmra.mxu0 %v2297
      %v2416 = vpop.f32.mrf.mxu0
      %v2417 = vadd.f32 0.0, %v2416
      %2418 = vmatmul.f32.gmra.mxu0 %v2298
      %v2419 = vpop.f32.mrf.mxu0
      %v2420 = vadd.f32 0.0, %v2419
      %2421 = vmatmul.f32.gmra.mxu0 %v2299
      %v2422 = vpop.f32.mrf.mxu0
      %v2423 = vadd.f32 0.0, %v2422
      %2424 = vmatmul.f32.gmra.mxu0 %v2300
      %v2425 = vpop.f32.mrf.mxu0
      %v2426 = vadd.f32 0.0, %v2425
      %2427 = vmatmul.f32.gmra.mxu0 %v2301
      %v2428 = vpop.f32.mrf.mxu0
      %v2429 = vadd.f32 0.0, %v2428
      %2430 = vdwg.mxu0
      %v2431 = vadd.f32 %v2142, %v2336
      %v2432 = vadd.f32 %v2143, %v2339
      %v2433 = vadd.f32 %v2144, %v2342
      %v2434 = vadd.f32 %v2145, %v2345
      %v2435 = vadd.f32 %v2146, %v2348
      %v2436 = vadd.f32 %v2147, %v2351
      %v2437 = vadd.f32 %v2148, %v2354
      %v2438 = vadd.f32 %v2149, %v2357
      %v2439 = vadd.f32 %v2150, %v2360
      %v2440 = vadd.f32 %v2151, %v2363
      %v2441 = vadd.f32 %v2152, %v2366
      %v2442 = vadd.f32 %v2153, %v2369
      %v2443 = vadd.f32 %v2154, %v2372
      %v2444 = vadd.f32 %v2155, %v2375
      %v2445 = vadd.f32 %v2156, %v2378
      %v2446 = vadd.f32 %v2157, %v2381
      %v2447 = vadd.f32 %v2158, %v2384
      %v2448 = vadd.f32 %v2159, %v2387
      %v2449 = vadd.f32 %v2160, %v2390
      %v2450 = vadd.f32 %v2161, %v2393
      %v2451 = vadd.f32 %v2162, %v2396
      %v2452 = vadd.f32 %v2163, %v2399
      %v2453 = vadd.f32 %v2164, %v2402
      %v2454 = vadd.f32 %v2165, %v2405
      %v2455 = vadd.f32 %v2166, %v2408
      %v2456 = vadd.f32 %v2167, %v2411
      %v2457 = vadd.f32 %v2168, %v2414
      %v2458 = vadd.f32 %v2169, %v2417
      %v2459 = vadd.f32 %v2170, %v2420
      %v2460 = vadd.f32 %v2171, %v2423
      %v2461 = vadd.f32 %v2172, %v2426
      %v2462 = vadd.f32 %v2173, %v2429
      %v2463 = vsel %vm502, 1, 0
      %v2464 = vsel %vm503, 1, 0
      %v2465 = vsel %vm504, 1, 0
      %v2466 = vsel %vm505, 1, 0
      %v2467 = vsel %vm506, 1, 0
      %v2468 = vsel %vm507, 1, 0
      %v2469 = vsel %vm508, 1, 0
      %v2470 = vsel %vm509, 1, 0
      %v2471 = vsel %vm510, 1, 0
      %v2472 = vsel %vm511, 1, 0
      %v2473 = vsel %vm512, 1, 0
      %v2474 = vsel %vm513, 1, 0
      %v2475 = vsel %vm514, 1, 0
      %v2476 = vsel %vm515, 1, 0
      %v2477 = vsel %vm516, 1, 0
      %v2478 = vsel %vm517, 1, 0
      %v2479 = vsel %vm518, 1, 0
      %v2480 = vsel %vm519, 1, 0
      %v2481 = vsel %vm520, 1, 0
      %v2482 = vsel %vm521, 1, 0
      %v2483 = vsel %vm522, 1, 0
      %v2484 = vsel %vm523, 1, 0
      %v2485 = vsel %vm524, 1, 0
      %v2486 = vsel %vm525, 1, 0
      %v2487 = vsel %vm526, 1, 0
      %v2488 = vsel %vm527, 1, 0
      %v2489 = vsel %vm528, 1, 0
      %v2490 = vsel %vm529, 1, 0
      %v2491 = vsel %vm530, 1, 0
      %v2492 = vsel %vm531, 1, 0
      %v2493 = vsel %vm532, 1, 0
      %v2494 = vsel %vm533, 1, 0
      %vm2495 = vcmp.eq.s32.totalorder %v2463, 1
      %vm2496 = vcmp.eq.s32.totalorder %v2464, 1
      %vm2497 = vcmp.eq.s32.totalorder %v2465, 1
      %vm2498 = vcmp.eq.s32.totalorder %v2466, 1
      %vm2499 = vcmp.eq.s32.totalorder %v2467, 1
      %vm2500 = vcmp.eq.s32.totalorder %v2468, 1
      %vm2501 = vcmp.eq.s32.totalorder %v2469, 1
      %vm2502 = vcmp.eq.s32.totalorder %v2470, 1
      %vm2503 = vcmp.eq.s32.totalorder %v2471, 1
      %vm2504 = vcmp.eq.s32.totalorder %v2472, 1
      %vm2505 = vcmp.eq.s32.totalorder %v2473, 1
      %vm2506 = vcmp.eq.s32.totalorder %v2474, 1
      %vm2507 = vcmp.eq.s32.totalorder %v2475, 1
      %vm2508 = vcmp.eq.s32.totalorder %v2476, 1
      %vm2509 = vcmp.eq.s32.totalorder %v2477, 1
      %vm2510 = vcmp.eq.s32.totalorder %v2478, 1
      %vm2511 = vcmp.eq.s32.totalorder %v2479, 1
      %vm2512 = vcmp.eq.s32.totalorder %v2480, 1
      %vm2513 = vcmp.eq.s32.totalorder %v2481, 1
      %vm2514 = vcmp.eq.s32.totalorder %v2482, 1
      %vm2515 = vcmp.eq.s32.totalorder %v2483, 1
      %vm2516 = vcmp.eq.s32.totalorder %v2484, 1
      %vm2517 = vcmp.eq.s32.totalorder %v2485, 1
      %vm2518 = vcmp.eq.s32.totalorder %v2486, 1
      %vm2519 = vcmp.eq.s32.totalorder %v2487, 1
      %vm2520 = vcmp.eq.s32.totalorder %v2488, 1
      %vm2521 = vcmp.eq.s32.totalorder %v2489, 1
      %vm2522 = vcmp.eq.s32.totalorder %v2490, 1
      %vm2523 = vcmp.eq.s32.totalorder %v2491, 1
      %vm2524 = vcmp.eq.s32.totalorder %v2492, 1
      %vm2525 = vcmp.eq.s32.totalorder %v2493, 1
      %vm2526 = vcmp.eq.s32.totalorder %v2494, 1
      %v2527 = vsel %vm2495, %v375, 0.0
      %v2528 = vsel %vm2496, %v376, 0.0
      %v2529 = vsel %vm2497, %v377, 0.0
      %v2530 = vsel %vm2498, %v378, 0.0
      %v2531 = vsel %vm2499, %v379, 0.0
      %v2532 = vsel %vm2500, %v380, 0.0
      %v2533 = vsel %vm2501, %v381, 0.0
      %v2534 = vsel %vm2502, %v382, 0.0
      %v2535 = vsel %vm2503, %v383, 0.0
      %v2536 = vsel %vm2504, %v384, 0.0
      %v2537 = vsel %vm2505, %v385, 0.0
      %v2538 = vsel %vm2506, %v386, 0.0
      %v2539 = vsel %vm2507, %v387, 0.0
      %v2540 = vsel %vm2508, %v388, 0.0
      %v2541 = vsel %vm2509, %v389, 0.0
      %v2542 = vsel %vm2510, %v390, 0.0
      %v2543 = vsel %vm2511, %v391, 0.0
      %v2544 = vsel %vm2512, %v392, 0.0
      %v2545 = vsel %vm2513, %v393, 0.0
      %v2546 = vsel %vm2514, %v394, 0.0
      %v2547 = vsel %vm2515, %v395, 0.0
      %v2548 = vsel %vm2516, %v396, 0.0
      %v2549 = vsel %vm2517, %v397, 0.0
      %v2550 = vsel %vm2518, %v398, 0.0
      %v2551 = vsel %vm2519, %v399, 0.0
      %v2552 = vsel %vm2520, %v400, 0.0
      %v2553 = vsel %vm2521, %v401, 0.0
      %v2554 = vsel %vm2522, %v402, 0.0
      %v2555 = vsel %vm2523, %v403, 0.0
      %v2556 = vsel %vm2524, %v404, 0.0
      %v2557 = vsel %vm2525, %v373, 0.0
      %v2558 = vsel %vm2526, %v374, 0.0
      %v2559 = vld [vmem:[%s3 + $0x380] sm:$0xff]
      %v2560 = vld [vmem:[%s3 + $0x388] sm:$0xff]
      %v2561 = vld [vmem:[%s3 + $0x390] sm:$0xff]
      %v2562 = vld [vmem:[%s3 + $0x398] sm:$0xff]
      %v2563 = vld [vmem:[%s3 + $0x3a0] sm:$0xff]
      %v2564 = vld [vmem:[%s3 + $0x3a8] sm:$0xff]
      %v2565 = vld [vmem:[%s3 + $0x3b0] sm:$0xff]
      %v2566 = vld [vmem:[%s3 + $0x3b8] sm:$0xff]
      %v2567 = vld [vmem:[%s3 + $0x3c0] sm:$0xff]
      %v2568 = vld [vmem:[%s3 + $0x3c8] sm:$0xff]
      %v2569 = vld [vmem:[%s3 + $0x3d0] sm:$0xff]
      %v2570 = vld [vmem:[%s3 + $0x3d8] sm:$0xff]
      %v2571 = vld [vmem:[%s3 + $0x3e0] sm:$0xff]
      %v2572 = vld [vmem:[%s3 + $0x3e8] sm:$0xff]
      %v2573 = vld [vmem:[%s3 + $0x3f0] sm:$0xff]
      %v2574 = vld [vmem:[%s3 + $0x3f8] sm:$0xff]
      %2575 = vmatpush.msra.mxu0 %v2574
      %2576 = vmatpush.msra.mxu0 %v2573
      %2577 = vmatpush.msra.mxu0 %v2572
      %2578 = vmatpush.msra.mxu0 %v2571
      %2579 = vmatpush.msra.mxu0 %v2570
      %2580 = vmatpush.msra.mxu0 %v2569
      %2581 = vmatpush.msra.mxu0 %v2568
      %2582 = vmatpush.msra.mxu0 %v2567
      %2583 = vmatpush.msra.mxu0 %v2566
      %2584 = vmatpush.msra.mxu0 %v2565
      %2585 = vmatpush.msra.mxu0 %v2564
      %2586 = vmatpush.msra.mxu0 %v2563
      %2587 = vmatpush.msra.mxu0 %v2562
      %2588 = vmatpush.msra.mxu0 %v2561
      %2589 = vmatpush.msra.mxu0 %v2560
      %2590 = vmatpush.msra.mxu0 %v2559
      %2591 = vmatmul.f32.gmra.mxu0 %v2527
      %v2592 = vpop.f32.mrf.mxu0
      %v2593 = vadd.f32 0.0, %v2592
      %2594 = vmatmul.f32.gmra.mxu0 %v2528
      %v2595 = vpop.f32.mrf.mxu0
      %v2596 = vadd.f32 0.0, %v2595
      %2597 = vmatmul.f32.gmra.mxu0 %v2529
      %v2598 = vpop.f32.mrf.mxu0
      %v2599 = vadd.f32 0.0, %v2598
      %2600 = vmatmul.f32.gmra.mxu0 %v2530
      %v2601 = vpop.f32.mrf.mxu0
      %v2602 = vadd.f32 0.0, %v2601
      %2603 = vmatmul.f32.gmra.mxu0 %v2531
      %v2604 = vpop.f32.mrf.mxu0
      %v2605 = vadd.f32 0.0, %v2604
      %2606 = vmatmul.f32.gmra.mxu0 %v2532
      %v2607 = vpop.f32.mrf.mxu0
      %v2608 = vadd.f32 0.0, %v2607
      %2609 = vmatmul.f32.gmra.mxu0 %v2533
      %v2610 = vpop.f32.mrf.mxu0
      %v2611 = vadd.f32 0.0, %v2610
      %2612 = vmatmul.f32.gmra.mxu0 %v2534
      %v2613 = vpop.f32.mrf.mxu0
      %v2614 = vadd.f32 0.0, %v2613
      %2615 = vmatmul.f32.gmra.mxu0 %v2535
      %v2616 = vpop.f32.mrf.mxu0
      %v2617 = vadd.f32 0.0, %v2616
      %2618 = vmatmul.f32.gmra.mxu0 %v2536
      %v2619 = vpop.f32.mrf.mxu0
      %v2620 = vadd.f32 0.0, %v2619
      %2621 = vmatmul.f32.gmra.mxu0 %v2537
      %v2622 = vpop.f32.mrf.mxu0
      %v2623 = vadd.f32 0.0, %v2622
      %2624 = vmatmul.f32.gmra.mxu0 %v2538
      %v2625 = vpop.f32.mrf.mxu0
      %v2626 = vadd.f32 0.0, %v2625
      %2627 = vmatmul.f32.gmra.mxu0 %v2539
      %v2628 = vpop.f32.mrf.mxu0
      %v2629 = vadd.f32 0.0, %v2628
      %2630 = vmatmul.f32.gmra.mxu0 %v2540
      %v2631 = vpop.f32.mrf.mxu0
      %v2632 = vadd.f32 0.0, %v2631
      %2633 = vmatmul.f32.gmra.mxu0 %v2541
      %v2634 = vpop.f32.mrf.mxu0
      %v2635 = vadd.f32 0.0, %v2634
      %2636 = vmatmul.f32.gmra.mxu0 %v2542
      %v2637 = vpop.f32.mrf.mxu0
      %v2638 = vadd.f32 0.0, %v2637
      %2639 = vmatmul.f32.gmra.mxu0 %v2543
      %v2640 = vpop.f32.mrf.mxu0
      %v2641 = vadd.f32 0.0, %v2640
      %2642 = vmatmul.f32.gmra.mxu0 %v2544
      %v2643 = vpop.f32.mrf.mxu0
      %v2644 = vadd.f32 0.0, %v2643
      %2645 = vmatmul.f32.gmra.mxu0 %v2545
      %v2646 = vpop.f32.mrf.mxu0
      %v2647 = vadd.f32 0.0, %v2646
      %2648 = vmatmul.f32.gmra.mxu0 %v2546
      %v2649 = vpop.f32.mrf.mxu0
      %v2650 = vadd.f32 0.0, %v2649
      %2651 = vmatmul.f32.gmra.mxu0 %v2547
      %v2652 = vpop.f32.mrf.mxu0
      %v2653 = vadd.f32 0.0, %v2652
      %2654 = vmatmul.f32.gmra.mxu0 %v2548
      %v2655 = vpop.f32.mrf.mxu0
      %v2656 = vadd.f32 0.0, %v2655
      %2657 = vmatmul.f32.gmra.mxu0 %v2549
      %v2658 = vpop.f32.mrf.mxu0
      %v2659 = vadd.f32 0.0, %v2658
      %2660 = vmatmul.f32.gmra.mxu0 %v2550
      %v2661 = vpop.f32.mrf.mxu0
      %v2662 = vadd.f32 0.0, %v2661
      %2663 = vmatmul.f32.gmra.mxu0 %v2551
      %v2664 = vpop.f32.mrf.mxu0
      %v2665 = vadd.f32 0.0, %v2664
      %2666 = vmatmul.f32.gmra.mxu0 %v2552
      %v2667 = vpop.f32.mrf.mxu0
      %v2668 = vadd.f32 0.0, %v2667
      %2669 = vmatmul.f32.gmra.mxu0 %v2553
      %v2670 = vpop.f32.mrf.mxu0
      %v2671 = vadd.f32 0.0, %v2670
      %2672 = vmatmul.f32.gmra.mxu0 %v2554
      %v2673 = vpop.f32.mrf.mxu0
      %v2674 = vadd.f32 0.0, %v2673
      %2675 = vmatmul.f32.gmra.mxu0 %v2555
      %v2676 = vpop.f32.mrf.mxu0
      %v2677 = vadd.f32 0.0, %v2676
      %2678 = vmatmul.f32.gmra.mxu0 %v2556
      %v2679 = vpop.f32.mrf.mxu0
      %v2680 = vadd.f32 0.0, %v2679
      %2681 = vmatmul.f32.gmra.mxu0 %v2557
      %v2682 = vpop.f32.mrf.mxu0
      %v2683 = vadd.f32 0.0, %v2682
      %2684 = vmatmul.f32.gmra.mxu0 %v2558
      %v2685 = vpop.f32.mrf.mxu0
      %v2686 = vadd.f32 0.0, %v2685
      %2687 = vdwg.mxu0
      %v2688 = vadd.f32 %v2431, %v2593
      %v2689 = vadd.f32 %v2432, %v2596
      %v2690 = vadd.f32 %v2433, %v2599
      %v2691 = vadd.f32 %v2434, %v2602
      %v2692 = vadd.f32 %v2435, %v2605
      %v2693 = vadd.f32 %v2436, %v2608
      %v2694 = vadd.f32 %v2437, %v2611
      %v2695 = vadd.f32 %v2438, %v2614
      %v2696 = vadd.f32 %v2439, %v2617
      %v2697 = vadd.f32 %v2440, %v2620
      %v2698 = vadd.f32 %v2441, %v2623
      %v2699 = vadd.f32 %v2442, %v2626
      %v2700 = vadd.f32 %v2443, %v2629
      %v2701 = vadd.f32 %v2444, %v2632
      %v2702 = vadd.f32 %v2445, %v2635
      %v2703 = vadd.f32 %v2446, %v2638
      %v2704 = vadd.f32 %v2447, %v2641
      %v2705 = vadd.f32 %v2448, %v2644
      %v2706 = vadd.f32 %v2449, %v2647
      %v2707 = vadd.f32 %v2450, %v2650
      %v2708 = vadd.f32 %v2451, %v2653
      %v2709 = vadd.f32 %v2452, %v2656
      %v2710 = vadd.f32 %v2453, %v2659
      %v2711 = vadd.f32 %v2454, %v2662
      %v2712 = vadd.f32 %v2455, %v2665
      %v2713 = vadd.f32 %v2456, %v2668
      %v2714 = vadd.f32 %v2457, %v2671
      %v2715 = vadd.f32 %v2458, %v2674
      %v2716 = vadd.f32 %v2459, %v2677
      %v2717 = vadd.f32 %v2460, %v2680
      %v2718 = vadd.f32 %v2461, %v2683
      %v2719 = vadd.f32 %v2462, %v2686
      %vm2720 = vmand %vm502, %vm566
      %vm2721 = vmand %vm503, %vm567
      %vm2722 = vmand %vm504, %vm568
      %vm2723 = vmand %vm505, %vm569
      %vm2724 = vmand %vm506, %vm570
      %vm2725 = vmand %vm507, %vm571
      %vm2726 = vmand %vm508, %vm572
      %vm2727 = vmand %vm509, %vm573
      %vm2728 = vmand %vm510, %vm574
      %vm2729 = vmand %vm511, %vm575
      %vm2730 = vmand %vm512, %vm576
      %vm2731 = vmand %vm513, %vm577
      %vm2732 = vmand %vm514, %vm578
      %vm2733 = vmand %vm515, %vm579
      %vm2734 = vmand %vm516, %vm580
      %vm2735 = vmand %vm517, %vm581
      %vm2736 = vmand %vm518, %vm582
      %vm2737 = vmand %vm519, %vm583
      %vm2738 = vmand %vm520, %vm584
      %vm2739 = vmand %vm521, %vm585
      %vm2740 = vmand %vm522, %vm586
      %vm2741 = vmand %vm523, %vm587
      %vm2742 = vmand %vm524, %vm588
      %vm2743 = vmand %vm525, %vm589
      %vm2744 = vmand %vm526, %vm590
      %vm2745 = vmand %vm527, %vm591
      %vm2746 = vmand %vm528, %vm592
      %vm2747 = vmand %vm529, %vm593
      %vm2748 = vmand %vm530, %vm594
      %vm2749 = vmand %vm531, %vm595
      %vm2750 = vmand %vm532, %vm596
      %vm2751 = vmand %vm533, %vm597
      %v2752 = vsel %vm2720, 1, 0
      %v2753 = vsel %vm2721, 1, 0
      %v2754 = vsel %vm2722, 1, 0
      %v2755 = vsel %vm2723, 1, 0
      %v2756 = vsel %vm2724, 1, 0
      %v2757 = vsel %vm2725, 1, 0
      %v2758 = vsel %vm2726, 1, 0
      %v2759 = vsel %vm2727, 1, 0
      %v2760 = vsel %vm2728, 1, 0
      %v2761 = vsel %vm2729, 1, 0
      %v2762 = vsel %vm2730, 1, 0
      %v2763 = vsel %vm2731, 1, 0
      %v2764 = vsel %vm2732, 1, 0
      %v2765 = vsel %vm2733, 1, 0
      %v2766 = vsel %vm2734, 1, 0
      %v2767 = vsel %vm2735, 1, 0
      %v2768 = vsel %vm2736, 1, 0
      %v2769 = vsel %vm2737, 1, 0
      %v2770 = vsel %vm2738, 1, 0
      %v2771 = vsel %vm2739, 1, 0
      %v2772 = vsel %vm2740, 1, 0
      %v2773 = vsel %vm2741, 1, 0
      %v2774 = vsel %vm2742, 1, 0
      %v2775 = vsel %vm2743, 1, 0
      %v2776 = vsel %vm2744, 1, 0
      %v2777 = vsel %vm2745, 1, 0
      %v2778 = vsel %vm2746, 1, 0
      %v2779 = vsel %vm2747, 1, 0
      %v2780 = vsel %vm2748, 1, 0
      %v2781 = vsel %vm2749, 1, 0
      %v2782 = vsel %vm2750, 1, 0
      %v2783 = vsel %vm2751, 1, 0
      %vm2784 = vcmp.eq.s32.totalorder %v2752, 1
      %vm2785 = vcmp.eq.s32.totalorder %v2753, 1
      %vm2786 = vcmp.eq.s32.totalorder %v2754, 1
      %vm2787 = vcmp.eq.s32.totalorder %v2755, 1
      %vm2788 = vcmp.eq.s32.totalorder %v2756, 1
      %vm2789 = vcmp.eq.s32.totalorder %v2757, 1
      %vm2790 = vcmp.eq.s32.totalorder %v2758, 1
      %vm2791 = vcmp.eq.s32.totalorder %v2759, 1
      %vm2792 = vcmp.eq.s32.totalorder %v2760, 1
      %vm2793 = vcmp.eq.s32.totalorder %v2761, 1
      %vm2794 = vcmp.eq.s32.totalorder %v2762, 1
      %vm2795 = vcmp.eq.s32.totalorder %v2763, 1
      %vm2796 = vcmp.eq.s32.totalorder %v2764, 1
      %vm2797 = vcmp.eq.s32.totalorder %v2765, 1
      %vm2798 = vcmp.eq.s32.totalorder %v2766, 1
      %vm2799 = vcmp.eq.s32.totalorder %v2767, 1
      %vm2800 = vcmp.eq.s32.totalorder %v2768, 1
      %vm2801 = vcmp.eq.s32.totalorder %v2769, 1
      %vm2802 = vcmp.eq.s32.totalorder %v2770, 1
      %vm2803 = vcmp.eq.s32.totalorder %v2771, 1
      %vm2804 = vcmp.eq.s32.totalorder %v2772, 1
      %vm2805 = vcmp.eq.s32.totalorder %v2773, 1
      %vm2806 = vcmp.eq.s32.totalorder %v2774, 1
      %vm2807 = vcmp.eq.s32.totalorder %v2775, 1
      %vm2808 = vcmp.eq.s32.totalorder %v2776, 1
      %vm2809 = vcmp.eq.s32.totalorder %v2777, 1
      %vm2810 = vcmp.eq.s32.totalorder %v2778, 1
      %vm2811 = vcmp.eq.s32.totalorder %v2779, 1
      %vm2812 = vcmp.eq.s32.totalorder %v2780, 1
      %vm2813 = vcmp.eq.s32.totalorder %v2781, 1
      %vm2814 = vcmp.eq.s32.totalorder %v2782, 1
      %vm2815 = vcmp.eq.s32.totalorder %v2783, 1
      %v2816 = vsel %vm2784, %v1206, 0.0
      %v2817 = vsel %vm2785, %v1205, 0.0
      %v2818 = vsel %vm2786, %v1204, 0.0
      %v2819 = vsel %vm2787, %v1203, 0.0
      %v2820 = vsel %vm2788, %v1202, 0.0
      %v2821 = vsel %vm2789, %v1201, 0.0
      %v2822 = vsel %vm2790, %v1200, 0.0
      %v2823 = vsel %vm2791, %v1199, 0.0
      %v2824 = vsel %vm2792, %v1198, 0.0
      %v2825 = vsel %vm2793, %v1197, 0.0
      %v2826 = vsel %vm2794, %v1196, 0.0
      %v2827 = vsel %vm2795, %v1195, 0.0
      %v2828 = vsel %vm2796, %v1194, 0.0
      %v2829 = vsel %vm2797, %v1193, 0.0
      %v2830 = vsel %vm2798, %v1192, 0.0
      %v2831 = vsel %vm2799, %v1191, 0.0
      %v2832 = vsel %vm2800, %v1190, 0.0
      %v2833 = vsel %vm2801, %v1189, 0.0
      %v2834 = vsel %vm2802, %v1188, 0.0
      %v2835 = vsel %vm2803, %v1187, 0.0
      %v2836 = vsel %vm2804, %v1186, 0.0
      %v2837 = vsel %vm2805, %v1185, 0.0
      %v2838 = vsel %vm2806, %v1184, 0.0
      %v2839 = vsel %vm2807, %v1183, 0.0
      %v2840 = vsel %vm2808, %v1182, 0.0
      %v2841 = vsel %vm2809, %v1181, 0.0
      %v2842 = vsel %vm2810, %v1180, 0.0
      %v2843 = vsel %vm2811, %v1179, 0.0
      %v2844 = vsel %vm2812, %v1178, 0.0
      %v2845 = vsel %vm2813, %v1209, 0.0
      %v2846 = vsel %vm2814, %v1208, 0.0
      %v2847 = vsel %vm2815, %v1207, 0.0
      %v2848 = vld [vmem:[%s3 + $0x400] sm:$0xff]
      %v2849 = vld [vmem:[%s3 + $0x408] sm:$0xff]
      %v2850 = vld [vmem:[%s3 + $0x410] sm:$0xff]
      %v2851 = vld [vmem:[%s3 + $0x418] sm:$0xff]
      %v2852 = vld [vmem:[%s3 + $0x420] sm:$0xff]
      %v2853 = vld [vmem:[%s3 + $0x428] sm:$0xff]
      %v2854 = vld [vmem:[%s3 + $0x430] sm:$0xff]
      %v2855 = vld [vmem:[%s3 + $0x438] sm:$0xff]
      %v2856 = vld [vmem:[%s3 + $0x440] sm:$0xff]
      %v2857 = vld [vmem:[%s3 + $0x448] sm:$0xff]
      %v2858 = vld [vmem:[%s3 + $0x450] sm:$0xff]
      %v2859 = vld [vmem:[%s3 + $0x458] sm:$0xff]
      %v2860 = vld [vmem:[%s3 + $0x460] sm:$0xff]
      %v2861 = vld [vmem:[%s3 + $0x468] sm:$0xff]
      %v2862 = vld [vmem:[%s3 + $0x470] sm:$0xff]
      %v2863 = vld [vmem:[%s3 + $0x478] sm:$0xff]
      %2864 = vmatpush.msra.mxu0 %v2863
      %2865 = vmatpush.msra.mxu0 %v2862
      %2866 = vmatpush.msra.mxu0 %v2861
      %2867 = vmatpush.msra.mxu0 %v2860
      %2868 = vmatpush.msra.mxu0 %v2859
      %2869 = vmatpush.msra.mxu0 %v2858
      %2870 = vmatpush.msra.mxu0 %v2857
      %2871 = vmatpush.msra.mxu0 %v2856
      %2872 = vmatpush.msra.mxu0 %v2855
      %2873 = vmatpush.msra.mxu0 %v2854
      %2874 = vmatpush.msra.mxu0 %v2853
      %2875 = vmatpush.msra.mxu0 %v2852
      %2876 = vmatpush.msra.mxu0 %v2851
      %2877 = vmatpush.msra.mxu0 %v2850
      %2878 = vmatpush.msra.mxu0 %v2849
      %2879 = vmatpush.msra.mxu0 %v2848
      %2880 = vmatmul.f32.gmra.mxu0 %v2816
      %v2881 = vpop.f32.mrf.mxu0
      %v2882 = vadd.f32 0.0, %v2881
      %2883 = vmatmul.f32.gmra.mxu0 %v2817
      %v2884 = vpop.f32.mrf.mxu0
      %v2885 = vadd.f32 0.0, %v2884
      %2886 = vmatmul.f32.gmra.mxu0 %v2818
      %v2887 = vpop.f32.mrf.mxu0
      %v2888 = vadd.f32 0.0, %v2887
      %2889 = vmatmul.f32.gmra.mxu0 %v2819
      %v2890 = vpop.f32.mrf.mxu0
      %v2891 = vadd.f32 0.0, %v2890
      %2892 = vmatmul.f32.gmra.mxu0 %v2820
      %v2893 = vpop.f32.mrf.mxu0
      %v2894 = vadd.f32 0.0, %v2893
      %2895 = vmatmul.f32.gmra.mxu0 %v2821
      %v2896 = vpop.f32.mrf.mxu0
      %v2897 = vadd.f32 0.0, %v2896
      %2898 = vmatmul.f32.gmra.mxu0 %v2822
      %v2899 = vpop.f32.mrf.mxu0
      %v2900 = vadd.f32 0.0, %v2899
      %2901 = vmatmul.f32.gmra.mxu0 %v2823
      %v2902 = vpop.f32.mrf.mxu0
      %v2903 = vadd.f32 0.0, %v2902
      %2904 = vmatmul.f32.gmra.mxu0 %v2824
      %v2905 = vpop.f32.mrf.mxu0
      %v2906 = vadd.f32 0.0, %v2905
      %2907 = vmatmul.f32.gmra.mxu0 %v2825
      %v2908 = vpop.f32.mrf.mxu0
      %v2909 = vadd.f32 0.0, %v2908
      %2910 = vmatmul.f32.gmra.mxu0 %v2826
      %v2911 = vpop.f32.mrf.mxu0
      %v2912 = vadd.f32 0.0, %v2911
      %2913 = vmatmul.f32.gmra.mxu0 %v2827
      %v2914 = vpop.f32.mrf.mxu0
      %v2915 = vadd.f32 0.0, %v2914
      %2916 = vmatmul.f32.gmra.mxu0 %v2828
      %v2917 = vpop.f32.mrf.mxu0
      %v2918 = vadd.f32 0.0, %v2917
      %2919 = vmatmul.f32.gmra.mxu0 %v2829
      %v2920 = vpop.f32.mrf.mxu0
      %v2921 = vadd.f32 0.0, %v2920
      %2922 = vmatmul.f32.gmra.mxu0 %v2830
      %v2923 = vpop.f32.mrf.mxu0
      %v2924 = vadd.f32 0.0, %v2923
      %2925 = vmatmul.f32.gmra.mxu0 %v2831
      %v2926 = vpop.f32.mrf.mxu0
      %v2927 = vadd.f32 0.0, %v2926
      %2928 = vmatmul.f32.gmra.mxu0 %v2832
      %v2929 = vpop.f32.mrf.mxu0
      %v2930 = vadd.f32 0.0, %v2929
      %2931 = vmatmul.f32.gmra.mxu0 %v2833
      %v2932 = vpop.f32.mrf.mxu0
      %v2933 = vadd.f32 0.0, %v2932
      %2934 = vmatmul.f32.gmra.mxu0 %v2834
      %v2935 = vpop.f32.mrf.mxu0
      %v2936 = vadd.f32 0.0, %v2935
      %2937 = vmatmul.f32.gmra.mxu0 %v2835
      %v2938 = vpop.f32.mrf.mxu0
      %v2939 = vadd.f32 0.0, %v2938
      %2940 = vmatmul.f32.gmra.mxu0 %v2836
      %v2941 = vpop.f32.mrf.mxu0
      %v2942 = vadd.f32 0.0, %v2941
      %2943 = vmatmul.f32.gmra.mxu0 %v2837
      %v2944 = vpop.f32.mrf.mxu0
      %v2945 = vadd.f32 0.0, %v2944
      %2946 = vmatmul.f32.gmra.mxu0 %v2838
      %v2947 = vpop.f32.mrf.mxu0
      %v2948 = vadd.f32 0.0, %v2947
      %2949 = vmatmul.f32.gmra.mxu0 %v2839
      %v2950 = vpop.f32.mrf.mxu0
      %v2951 = vadd.f32 0.0, %v2950
      %2952 = vmatmul.f32.gmra.mxu0 %v2840
      %v2953 = vpop.f32.mrf.mxu0
      %v2954 = vadd.f32 0.0, %v2953
      %2955 = vmatmul.f32.gmra.mxu0 %v2841
      %v2956 = vpop.f32.mrf.mxu0
      %v2957 = vadd.f32 0.0, %v2956
      %2958 = vmatmul.f32.gmra.mxu0 %v2842
      %v2959 = vpop.f32.mrf.mxu0
      %v2960 = vadd.f32 0.0, %v2959
      %2961 = vmatmul.f32.gmra.mxu0 %v2843
      %v2962 = vpop.f32.mrf.mxu0
      %v2963 = vadd.f32 0.0, %v2962
      %2964 = vmatmul.f32.gmra.mxu0 %v2844
      %v2965 = vpop.f32.mrf.mxu0
      %v2966 = vadd.f32 0.0, %v2965
      %2967 = vmatmul.f32.gmra.mxu0 %v2845
      %v2968 = vpop.f32.mrf.mxu0
      %v2969 = vadd.f32 0.0, %v2968
      %2970 = vmatmul.f32.gmra.mxu0 %v2846
      %v2971 = vpop.f32.mrf.mxu0
      %v2972 = vadd.f32 0.0, %v2971
      %2973 = vmatmul.f32.gmra.mxu0 %v2847
      %v2974 = vpop.f32.mrf.mxu0
      %v2975 = vadd.f32 0.0, %v2974
      %2976 = vdwg.mxu0
      %v2977 = vadd.f32 %v2688, %v2882
      %v2978 = vadd.f32 %v2689, %v2885
      %v2979 = vadd.f32 %v2690, %v2888
      %v2980 = vadd.f32 %v2691, %v2891
      %v2981 = vadd.f32 %v2692, %v2894
      %v2982 = vadd.f32 %v2693, %v2897
      %v2983 = vadd.f32 %v2694, %v2900
      %v2984 = vadd.f32 %v2695, %v2903
      %v2985 = vadd.f32 %v2696, %v2906
      %v2986 = vadd.f32 %v2697, %v2909
      %v2987 = vadd.f32 %v2698, %v2912
      %v2988 = vadd.f32 %v2699, %v2915
      %v2989 = vadd.f32 %v2700, %v2918
      %v2990 = vadd.f32 %v2701, %v2921
      %v2991 = vadd.f32 %v2702, %v2924
      %v2992 = vadd.f32 %v2703, %v2927
      %v2993 = vadd.f32 %v2704, %v2930
      %v2994 = vadd.f32 %v2705, %v2933
      %v2995 = vadd.f32 %v2706, %v2936
      %v2996 = vadd.f32 %v2707, %v2939
      %v2997 = vadd.f32 %v2708, %v2942
      %v2998 = vadd.f32 %v2709, %v2945
      %v2999 = vadd.f32 %v2710, %v2948
      %v3000 = vadd.f32 %v2711, %v2951
      %v3001 = vadd.f32 %v2712, %v2954
      %v3002 = vadd.f32 %v2713, %v2957
      %v3003 = vadd.f32 %v2714, %v2960
      %v3004 = vadd.f32 %v2715, %v2963
      %v3005 = vadd.f32 %v2716, %v2966
      %v3006 = vadd.f32 %v2717, %v2969
      %v3007 = vadd.f32 %v2718, %v2972
      %v3008 = vadd.f32 %v2719, %v2975
      %3009 = vst [vmem:[%s262] sm:$0xff] %v2977
      %3010 = vst [vmem:[%s262 + $0x8] sm:$0xff] %v2978
      %3011 = vst [vmem:[%s262 + $0x10] sm:$0xff] %v2979
      %3012 = vst [vmem:[%s262 + $0x18] sm:$0xff] %v2980
      %3013 = vst [vmem:[%s262 + $0x20] sm:$0xff] %v2981
      %3014 = vst [vmem:[%s262 + $0x28] sm:$0xff] %v2982
      %3015 = vst [vmem:[%s262 + $0x30] sm:$0xff] %v2983
      %3016 = vst [vmem:[%s262 + $0x38] sm:$0xff] %v2984
      %3017 = vst [vmem:[%s262 + $0x40] sm:$0xff] %v2985
      %3018 = vst [vmem:[%s262 + $0x48] sm:$0xff] %v2986
      %3019 = vst [vmem:[%s262 + $0x50] sm:$0xff] %v2987
      %3020 = vst [vmem:[%s262 + $0x58] sm:$0xff] %v2988
      %3021 = vst [vmem:[%s262 + $0x60] sm:$0xff] %v2989
      %3022 = vst [vmem:[%s262 + $0x68] sm:$0xff] %v2990
      %3023 = vst [vmem:[%s262 + $0x70] sm:$0xff] %v2991
      %3024 = vst [vmem:[%s262 + $0x78] sm:$0xff] %v2992
      %3025 = vst [vmem:[%s262 + $0x80] sm:$0xff] %v2993
      %3026 = vst [vmem:[%s262 + $0x88] sm:$0xff] %v2994
      %3027 = vst [vmem:[%s262 + $0x90] sm:$0xff] %v2995
      %3028 = vst [vmem:[%s262 + $0x98] sm:$0xff] %v2996
      %3029 = vst [vmem:[%s262 + $0xa0] sm:$0xff] %v2997
      %3030 = vst [vmem:[%s262 + $0xa8] sm:$0xff] %v2998
      %3031 = vst [vmem:[%s262 + $0xb0] sm:$0xff] %v2999
      %3032 = vst [vmem:[%s262 + $0xb8] sm:$0xff] %v3000
      %3033 = vst [vmem:[%s262 + $0xc0] sm:$0xff] %v3001
      %3034 = vst [vmem:[%s262 + $0xc8] sm:$0xff] %v3002
      %3035 = vst [vmem:[%s262 + $0xd0] sm:$0xff] %v3003
      %3036 = vst [vmem:[%s262 + $0xd8] sm:$0xff] %v3004
      %3037 = vst [vmem:[%s262 + $0xe0] sm:$0xff] %v3005
      %3038 = vst [vmem:[%s262 + $0xe8] sm:$0xff] %v3006
      %3039 = vst [vmem:[%s262 + $0xf0] sm:$0xff] %v3007
      %3040 = vst [vmem:[%s262 + $0xf8] sm:$0xff] %v3008
      %v3041 = vadd.f32 %v2977, %v2978
      %v3042 = vadd.f32 %v3041, %v2979
      %v3043 = vadd.f32 %v3042, %v2980
      %v3044 = vadd.f32 %v3043, %v2981
      %v3045 = vadd.f32 %v3044, %v2982
      %v3046 = vadd.f32 %v3045, %v2983
      %v3047 = vadd.f32 %v3046, %v2984
      %v3048 = vadd.f32 %v3047, %v2985
      %v3049 = vadd.f32 %v3048, %v2986
      %v3050 = vadd.f32 %v3049, %v2987
      %v3051 = vadd.f32 %v3050, %v2988
      %v3052 = vadd.f32 %v3051, %v2989
      %v3053 = vadd.f32 %v3052, %v2990
      %v3054 = vadd.f32 %v3053, %v2991
      %v3055 = vadd.f32 %v3054, %v2992
      %v3056 = vadd.f32 %v3055, %v2993
      %v3057 = vadd.f32 %v3056, %v2994
      %v3058 = vadd.f32 %v3057, %v2995
      %v3059 = vadd.f32 %v3058, %v2996
      %v3060 = vadd.f32 %v3059, %v2997
      %v3061 = vadd.f32 %v3060, %v2998
      %v3062 = vadd.f32 %v3061, %v2999
      %v3063 = vadd.f32 %v3062, %v3000
      %v3064 = vadd.f32 %v3063, %v3001
      %v3065 = vadd.f32 %v3064, %v3002
      %v3066 = vadd.f32 %v3065, %v3003
      %v3067 = vadd.f32 %v3066, %v3004
      %v3068 = vadd.f32 %v3067, %v3005
      %v3069 = vadd.f32 %v3068, %v3006
      %v3070 = vadd.f32 %v3069, %v3007
      %v3071 = vadd.f32 %v3070, %v3008
      %v3072 = vrot.slane %v3071, 4
      %v3073 = vadd.f32 %v3071, %v3072
      %v3074 = vrot.slane %v3073, 2
      %v3075 = vadd.f32 %v3073, %v3074
      %v3076 = vrot.slane %v3075, 1
      %v3077 = vadd.f32 %v3075, %v3076
      %3078 = vst [vmem:[%s265] sm:$0x1] %v3077
      %v3079 = vmul.f32 %v2977, %v2977
      %v3080 = vmul.f32 %v2978, %v2978
      %v3081 = vmul.f32 %v2979, %v2979
      %v3082 = vmul.f32 %v2980, %v2980
      %v3083 = vmul.f32 %v2981, %v2981
      %v3084 = vmul.f32 %v2982, %v2982
      %v3085 = vmul.f32 %v2983, %v2983
      %v3086 = vmul.f32 %v2984, %v2984
      %v3087 = vmul.f32 %v2985, %v2985
      %v3088 = vmul.f32 %v2986, %v2986
      %v3089 = vmul.f32 %v2987, %v2987
      %v3090 = vmul.f32 %v2988, %v2988
      %v3091 = vmul.f32 %v2989, %v2989
      %v3092 = vmul.f32 %v2990, %v2990
      %v3093 = vmul.f32 %v2991, %v2991
      %v3094 = vmul.f32 %v2992, %v2992
      %v3095 = vmul.f32 %v2993, %v2993
      %v3096 = vmul.f32 %v2994, %v2994
      %v3097 = vmul.f32 %v2995, %v2995
      %v3098 = vmul.f32 %v2996, %v2996
      %v3099 = vmul.f32 %v2997, %v2997
      %v3100 = vmul.f32 %v2998, %v2998
      %v3101 = vmul.f32 %v2999, %v2999
      %v3102 = vmul.f32 %v3000, %v3000
      %v3103 = vmul.f32 %v3001, %v3001
      %v3104 = vmul.f32 %v3002, %v3002
      %v3105 = vmul.f32 %v3003, %v3003
      %v3106 = vmul.f32 %v3004, %v3004
      %v3107 = vmul.f32 %v3005, %v3005
      %v3108 = vmul.f32 %v3006, %v3006
      %v3109 = vmul.f32 %v3007, %v3007
      %v3110 = vmul.f32 %v3008, %v3008
      %v3111 = vadd.f32 %v3079, %v3080
      %v3112 = vadd.f32 %v3111, %v3081
      %v3113 = vadd.f32 %v3112, %v3082
      %v3114 = vadd.f32 %v3113, %v3083
      %v3115 = vadd.f32 %v3114, %v3084
      %v3116 = vadd.f32 %v3115, %v3085
      %v3117 = vadd.f32 %v3116, %v3086
      %v3118 = vadd.f32 %v3117, %v3087
      %v3119 = vadd.f32 %v3118, %v3088
      %v3120 = vadd.f32 %v3119, %v3089
      %v3121 = vadd.f32 %v3120, %v3090
      %v3122 = vadd.f32 %v3121, %v3091
      %v3123 = vadd.f32 %v3122, %v3092
      %v3124 = vadd.f32 %v3123, %v3093
      %v3125 = vadd.f32 %v3124, %v3094
      %v3126 = vadd.f32 %v3125, %v3095
      %v3127 = vadd.f32 %v3126, %v3096
      %v3128 = vadd.f32 %v3127, %v3097
      %v3129 = vadd.f32 %v3128, %v3098
      %v3130 = vadd.f32 %v3129, %v3099
      %v3131 = vadd.f32 %v3130, %v3100
      %v3132 = vadd.f32 %v3131, %v3101
      %v3133 = vadd.f32 %v3132, %v3102
      %v3134 = vadd.f32 %v3133, %v3103
      %v3135 = vadd.f32 %v3134, %v3104
      %v3136 = vadd.f32 %v3135, %v3105
      %v3137 = vadd.f32 %v3136, %v3106
      %v3138 = vadd.f32 %v3137, %v3107
      %v3139 = vadd.f32 %v3138, %v3108
      %v3140 = vadd.f32 %v3139, %v3109
      %v3141 = vadd.f32 %v3140, %v3110
      %v3142 = vrot.slane %v3141, 4
      %v3143 = vadd.f32 %v3141, %v3142
      %v3144 = vrot.slane %v3143, 2
      %v3145 = vadd.f32 %v3143, %v3144
      %v3146 = vrot.slane %v3145, 1
      %v3147 = vadd.f32 %v3145, %v3146
      %3148 = vst [vmem:[%s268] sm:$0x1] %v3147
      %p3149 = scmp.lt.s32.totalorder %s18, 1
      %s3150 = scalar_select %p3149, %s18, 1
      %s3151 = smul.addr %s3150, 32
      %s3152 = smul.addr %s3151, 8
      %s3153 = scalar_lea.vmem %s4, %s3152
      %p3154 = scmp.lt.s32.totalorder %s18, 1
      %s3155 = scalar_select %p3154, %s18, 1
      %s3156 = scalar_lea.vmem %s5, %s3155
      %p3157 = scmp.lt.s32.totalorder %s18, 1
      %s3158 = scalar_select %p3157, %s18, 1
      %s3159 = scalar_lea.vmem %s6, %s3158
      // Predicated region
      $region37: #{double_conv.4} parent=35 // pred_check
        %p3160 = pneg %p125
      $region38: #{double_conv.4} parent=35 // pred_check_branch
        %3162 = sbr.rel (%p3160) target = $region40
      $region39: #{double_conv.4} parent=35 // pred_region
        _
      $region40: #{double_conv.4} parent=35 // pred_fallthru
        _
      // Predicated region
      $region41: #{double_conv.4} parent=35 // pred_check
        %p3163 = pneg %p151
      $region42: #{double_conv.4} parent=35 // pred_check_branch
        %3165 = sbr.rel (%p3163) target = $region44
      $region43: #{double_conv.4} parent=35 // pred_region
        _
      $region44: #{double_conv.4} parent=35 // pred_fallthru
        _
      // Predicated region
      $region45: #{double_conv.4} parent=35 // pred_check
        %p3166 = pneg %p177
      $region46: #{double_conv.4} parent=35 // pred_check_branch
        %3168 = sbr.rel (%p3166) target = $region48
      $region47: #{double_conv.4} parent=35 // pred_region
        _
      $region48: #{double_conv.4} parent=35 // pred_fallthru
        _
    $region36: #{double_conv.4} parent=5 // pred_fallthru
      _
    %p3169 = scmp.le.s32.totalorder 2, %s13
    // Predicated region
    $region49: #{double_conv.4} parent=5 // pred_check
      %p3170 = pneg %p3169
    $region50: #{double_conv.4} parent=5 // pred_check_branch
      %3172 = sbr.rel (%p3170) target = $region52
    $region51: #{double_conv.4} parent=5 // pred_region
      %s3173 = ssub.s32 %s13, 2
      // Predicated region
      $region53: #{double_conv.4} parent=51 // pred_check
        %p3174 = pneg %p131
      $region54: #{double_conv.4} parent=51 // pred_check_branch
        %3176 = sbr.rel (%p3174) target = $region56
      $region55: #{double_conv.4} parent=51 // pred_region
        %p3177 = scmp.lt.s32.totalorder %s19, 1
        %s3178 = scalar_select %p3177, %s19, 1
        %s3179 = smul.addr %s3178, 32
        %s3180 = smul.addr %s3179, 8
        %s3181 = scalar_lea.vmem %s4, %s3180
      $region56: #{double_conv.4} parent=51 // pred_fallthru
        _
      // Predicated region
      $region57: #{double_conv.4} parent=51 // pred_check
        %p3182 = pneg %p157
      $region58: #{double_conv.4} parent=51 // pred_check_branch
        %3184 = sbr.rel (%p3182) target = $region60
      $region59: #{double_conv.4} parent=51 // pred_region
        %p3185 = scmp.lt.s32.totalorder %s19, 1
        %s3186 = scalar_select %p3185, %s19, 1
        %s3187 = scalar_lea.vmem %s5, %s3186
      $region60: #{double_conv.4} parent=51 // pred_fallthru
        _
      // Predicated region
      $region61: #{double_conv.4} parent=51 // pred_check
        %p3188 = pneg %p183
      $region62: #{double_conv.4} parent=51 // pred_check_branch
        %3190 = sbr.rel (%p3188) target = $region64
      $region63: #{double_conv.4} parent=51 // pred_region
        %p3191 = scmp.lt.s32.totalorder %s19, 1
        %s3192 = scalar_select %p3191, %s19, 1
        %s3193 = scalar_lea.vmem %s6, %s3192
      $region64: #{double_conv.4} parent=51 // pred_fallthru
        _
    $region52: #{double_conv.4} parent=5 // pred_fallthru
      _
  $region6: #{double_conv.4} parent=0 // loop_footer
    %s17 = sadd.s32 1, %s13
  $region7: #{double_conv.4} parent=0 // loop_footer_branch
    %12 = sbr.rel target = $region3
  $region8: #{double_conv.4} parent=0 // loop_exit
    _

</llo_original>
